<compile_context>
chip_gen: v6e
topology: v6e:2x2x1
jax: 0.10.0
libtpu: 0.0.40
codegen_flags: <defaults>
</compile_context>

<pallas_src>
import functools

import jax
import jax.numpy as jnp
import numpy as np
from jax.experimental import pallas as pl
from jax.experimental.pallas import tpu as pltpu


def _round_up(v, m):
    return (v + m - 1) // m * m


def _tap_offsets(kd, kh, kw, Hp, Wp):
    """Flat offsets (into the padded D*H*W volume) for each kernel tap, row-major tap order."""
    offs = []
    for i in range(kd):
        for j in range(kh):
            for k in range(kw):
                dd, dh, dw = i - kd // 2, j - kh // 2, k - kw // 2
                offs.append(dd * Hp * Wp + dh * Wp + dw)
    return tuple(offs)


def _pack_weight_im2col(w):
    """PyTorch conv3d weight (O, I, kd, kh, kw) -> (O, T*I) with K ordered (tap, in-channel)."""
    O, I, kd, kh, kw = w.shape
    T = kd * kh * kw
    return jnp.transpose(jnp.reshape(w, (O, I, T)), (0, 2, 1)).reshape(O, T * I)


# ----------------------------------------------------------------------------
# Fused kernel: one batch sample per grid step, everything in VMEM
# ----------------------------------------------------------------------------
def _fused_asym_block_kernel(
    x_ref, w1_ref, w12_ref, w2_ref, w3_ref, gam_ref, bet_ref, mask_ref,   # inputs
    o_ref,                                                                # output (Cout, Ppad)
    buf_ref, short_ref, patch_ref,                                        # VMEM scratch
    *, M, Ppad, P, Cin, Cout, G, cg, offs_133, offs_313, eps, neg_slope):
    """Whole Asymmetric_Residual_Block for one sample.

    Activations are (C, Ppad) f32 with the flattened *padded* spatial volume on the lane axis.
    `mask` marks interior (non-padding) positions so GroupNorm statistics and the data fed to
    the next conv stage exactly reproduce zero-padded conv + GroupNorm semantics.
    """
    mask = mask_ref[...] != 0.0                      # (1, Ppad) bool, True at interior positions
    inv_cnt = 1.0 / float(cg * P)                    # GroupNorm count: channels_per_group * D*H*W
    ch_idx = jax.lax.broadcasted_iota(jnp.int32, (Cout, 1), 0)

    def conv_leaky(src_ref, w_ref_, offs, cin):
        # src_ref: (cin, L) flat padded volume with zeroed margins.
        # In-VMEM im2col: stack shifted lane-slices on sublanes, one MXU matmul (K = taps*cin).
        for t, off in enumerate(offs):
            patch_ref[t * cin:(t + 1) * cin, :] = src_ref[:, M + off:M + off + Ppad]
        k = len(offs) * cin
        y = jnp.dot(w_ref_[...], patch_ref[0:k, :], preferred_element_type=jnp.float32)
        y = jnp.where(y >= 0, y, neg_slope * y)      # LeakyReLU
        return jnp.where(mask, y, 0.0)               # zero at padding ring / lane tail

    def group_combine(v_c):
        # v_c: (Cout, 1) per-channel partial stats -> per-channel broadcast of group sums.
        out = jnp.zeros_like(v_c)
        for g in range(G):
            gsel = jnp.logical_and(ch_idx >= g * cg, ch_idx < (g + 1) * cg)
            gsum = jnp.sum(jnp.where(gsel, v_c, 0.0), keepdims=True)        # (1,1)
            out = jnp.where(gsel, gsum, out)
        return out

    def groupnorm(y, s):
        # y: (Cout, Ppad), already zero off-interior. One lane-reduce per stat, one normalize pass.
        gam = gam_ref[s]                             # (Cout, 1)
        bet = bet_ref[s]
        s_c = jnp.sum(y, axis=1, keepdims=True)      # (Cout, 1)
        mean_c = group_combine(s_c) * inv_cnt        # per-channel broadcast of group mean
        d = jnp.where(mask, y - mean_c, 0.0)
        q_c = jnp.sum(d * d, axis=1, keepdims=True)
        var_c = group_combine(q_c) * inv_cnt         # biased variance (matches PyTorch GroupNorm)
        rstd = jax.lax.rsqrt(var_c + eps)
        return jnp.where(mask, d * (rstd * gam) + bet, 0.0)

    # Zero the staging buffer so its margins / padding ring act as conv zero-padding.
    buf_ref[...] = jnp.zeros_like(buf_ref)

    # shortcut branch: conv1 (1,3,3) -> LeakyReLU -> bn0
    buf_ref[:, M:M + Ppad] = groupnorm(conv_leaky(x_ref, w1_ref, offs_133, Cin), 0)
    # conv1_2 (3,1,3) -> LeakyReLU -> bn0_2   (shortcut result kept in VMEM)
    short_ref[...] = groupnorm(conv_leaky(buf_ref, w12_ref, offs_313, Cout), 1)
    # main branch: conv2 (3,1,3) -> LeakyReLU -> bn1  (reuse staging buffer; margins stay zero)
    buf_ref[:, M:M + Ppad] = groupnorm(conv_leaky(x_ref, w2_ref, offs_313, Cin), 2)
    # conv3 (1,3,3) -> LeakyReLU -> bn2, then fused residual add with the shortcut
    o_ref[...] = (groupnorm(conv_leaky(buf_ref, w3_ref, offs_133, Cout), 3)
                  + short_ref[...]).astype(o_ref.dtype)


# ----------------------------------------------------------------------------
# Wrapper: one-time glue (pad/flatten/pack) + a single pallas_call
# ----------------------------------------------------------------------------
def asym_residual_block_pallas(x, params, groups):
    """x: (N, Cin, D, H, W) float32 (NCDHW, as in PyTorch). Returns (N, Cout, D, H, W)."""
    N, Cin, D, H, W = x.shape
    Cout = params["w_conv1"].shape[0]
    G = groups
    cg = Cout // G
    Dp, Hp, Wp = D + 2, H + 2, W + 2
    Pp = Dp * Hp * Wp                        # padded flat volume size
    P = D * H * W                            # interior element count (GroupNorm denominator)
    Ppad = _round_up(Pp, 128)                # lane-dense activation width inside the kernel
    max_off = Hp * Wp + Wp + 1               # safe bound on |tap offset|
    M = _round_up(max_off, 128)              # lane-aligned front margin
    L = _round_up(M + Ppad + max_off, 128)   # total flat length incl. tail margin

    # one-time glue: spatial zero-pad, flatten, add flat margins (channels stay as in PyTorch)
    xp = jnp.pad(x.astype(jnp.float32), ((0, 0), (0, 0), (1, 1), (1, 1), (1, 1)))
    x_flat = xp.reshape(N, Cin, Pp)
    x_in = jnp.pad(x_flat, ((0, 0), (0, 0), (M, L - M - Pp)))

    w1 = _pack_weight_im2col(params["w_conv1"])      # (Cout, 9*Cin)
    w12 = _pack_weight_im2col(params["w_conv1_2"])   # (Cout, 9*Cout)
    w2 = _pack_weight_im2col(params["w_conv2"])      # (Cout, 9*Cin)
    w3 = _pack_weight_im2col(params["w_conv3"])      # (Cout, 9*Cout)
    gammas = jnp.stack([params["g_bn0"], params["g_bn0_2"],
                        params["g_bn1"], params["g_bn2"]]).reshape(4, Cout, 1)
    betas = jnp.stack([params["b_bn0"], params["b_bn0_2"],
                       params["b_bn1"], params["b_bn2"]]).reshape(4, Cout, 1)

    mask_np = np.zeros((Dp, Hp, Wp), np.float32)
    mask_np[1:-1, 1:-1, 1:-1] = 1.0
    mask_flat = np.zeros((1, Ppad), np.float32)
    mask_flat[0, :Pp] = mask_np.reshape(-1)
    interior_mask = jnp.asarray(mask_flat)

    kernel = functools.partial(
        _fused_asym_block_kernel,
        M=M, Ppad=Ppad, P=P, Cin=Cin, Cout=Cout, G=G, cg=cg,
        offs_133=_tap_offsets(1, 3, 3, Hp, Wp),
        offs_313=_tap_offsets(3, 1, 3, Hp, Wp),
        eps=1e-5, neg_slope=0.01)

    out_flat = pl.pallas_call(
        kernel,
        out_shape=jax.ShapeDtypeStruct((N, Cout, Ppad), jnp.float32),
        grid=(N,),
        in_specs=[
            pl.BlockSpec((None, Cin, L), lambda i: (i, 0, 0)),      # padded-flat input, per sample
            pl.BlockSpec((Cout, 9 * Cin), lambda i: (0, 0)),        # conv1   im2col weights
            pl.BlockSpec((Cout, 9 * Cout), lambda i: (0, 0)),       # conv1_2 im2col weights
            pl.BlockSpec((Cout, 9 * Cin), lambda i: (0, 0)),        # conv2   im2col weights
            pl.BlockSpec((Cout, 9 * Cout), lambda i: (0, 0)),       # conv3   im2col weights
            pl.BlockSpec((4, Cout, 1), lambda i: (0, 0, 0)),        # GN gammas (bn0, bn0_2, bn1, bn2)
            pl.BlockSpec((4, Cout, 1), lambda i: (0, 0, 0)),        # GN betas
            pl.BlockSpec((1, Ppad), lambda i: (0, 0)),              # interior mask
        ],
        out_specs=pl.BlockSpec((None, Cout, Ppad), lambda i: (i, 0, 0)),
        scratch_shapes=[
            pltpu.VMEM((Cout, L), jnp.float32),        # conv-input staging buffer (zero margins)
            pltpu.VMEM((Cout, Ppad), jnp.float32),     # shortcut-branch result
            pltpu.VMEM((9 * Cout, Ppad), jnp.float32), # im2col patch buffer
        ],
        compiler_params=pltpu.CompilerParams(dimension_semantics=("parallel",)),
    )(x_in, w1, w12, w2, w3, gammas, betas, interior_mask)

    out = out_flat[:, :, :Pp].reshape(N, Cout, Dp, Hp, Wp)[:, :, 1:-1, 1:-1, 1:-1]
    return out


# ----------------------------------------------------------------------------
# Pure-JAX reference (mirrors the PyTorch forward exactly) for a sanity check
# ----------------------------------------------------------------------------
def reference_forward(x, params, groups):
    def conv3d(x, w, pads):
        return jax.lax.conv_general_dilated(
            x, w, window_strides=(1, 1, 1),
            padding=[(p, p) for p in pads],
            dimension_numbers=("NCDHW", "OIDHW", "NCDHW"))

    def leaky(v):
        return jnp.where(v >= 0, v, 0.01 * v)

    def gn(v, gamma, beta, g, eps=1e-5):
        N, C, D, H, W = v.shape
        vg = v.reshape(N, g, C // g, D, H, W)
        mean = vg.mean(axis=(2, 3, 4, 5), keepdims=True)
        var = vg.var(axis=(2, 3, 4, 5), keepdims=True)
        vn = ((vg - mean) / jnp.sqrt(var + eps)).reshape(N, C, D, H, W)
        return vn * gamma[None, :, None, None, None] + beta[None, :, None, None, None]

    s = gn(leaky(conv3d(x, params["w_conv1"], (0, 1, 1))), params["g_bn0"], params["b_bn0"], groups)
    s = gn(leaky(conv3d(s, params["w_conv1_2"], (1, 0, 1))), params["g_bn0_2"], params["b_bn0_2"], groups)
    r = gn(leaky(conv3d(x, params["w_conv2"], (1, 0, 1))), params["g_bn1"], params["b_bn1"], groups)
    r = gn(leaky(conv3d(r, params["w_conv3"], (0, 1, 1))), params["g_bn2"], params["b_bn2"], groups)
    return r + s


# ----------------------------------------------------------------------------
if __name__ == "__main__":
    # small shapes: batch=2, in_filters=8, out_filters=16, D=4, H=W=8
    N, Cin, Cout, D, H, W = 2, 8, 16, 4, 8, 8
    groups = 8  # in_filters < 32  ->  GroupNorm(8, ...)

    key = jax.random.PRNGKey(0)
    ks = jax.random.split(key, 16)
    params = {
        "w_conv1":   0.1 * jax.random.normal(ks[0], (Cout, Cin, 1, 3, 3), jnp.float32),
        "w_conv1_2": 0.1 * jax.random.normal(ks[1], (Cout, Cout, 3, 1, 3), jnp.float32),
        "w_conv2":   0.1 * jax.random.normal(ks[2], (Cout, Cin, 3, 1, 3), jnp.float32),
        "w_conv3":   0.1 * jax.random.normal(ks[3], (Cout, Cout, 1, 3, 3), jnp.float32),
        "g_bn0":   1.0 + 0.1 * jax.random.normal(ks[4], (Cout,), jnp.float32),
        "b_bn0":   0.1 * jax.random.normal(ks[5], (Cout,), jnp.float32),
        "g_bn0_2": 1.0 + 0.1 * jax.random.normal(ks[6], (Cout,), jnp.float32),
        "b_bn0_2": 0.1 * jax.random.normal(ks[7], (Cout,), jnp.float32),
        "g_bn1":   1.0 + 0.1 * jax.random.normal(ks[8], (Cout,), jnp.float32),
        "b_bn1":   0.1 * jax.random.normal(ks[9], (Cout,), jnp.float32),
        "g_bn2":   1.0 + 0.1 * jax.random.normal(ks[10], (Cout,), jnp.float32),
        "b_bn2":   0.1 * jax.random.normal(ks[11], (Cout,), jnp.float32),
    }
    x = jax.random.normal(ks[12], (N, Cin, D, H, W), jnp.float32)

    fwd = jax.jit(functools.partial(asym_residual_block_pallas, groups=groups))
    out = jax.block_until_ready(fwd(x, params))
    ref = jax.block_until_ready(reference_forward(x, params, groups))

    np.testing.assert_allclose(np.asarray(out), np.asarray(ref), rtol=1e-3, atol=1e-3)
    assert out.shape == (N, Cout, D, H, W)
    print("KERNEL_OK")
</pallas_src>

<mosaic_0001>
module attributes {stable_mosaic.version = 11 : i64} {
  func.func @_fused_asym_block_kernel(%arg0: i32, %arg1: memref<1x8x896xf32, #tpu.memory_space<vmem>>, %arg2: memref<16x72xf32, #tpu.memory_space<vmem>>, %arg3: memref<16x144xf32, #tpu.memory_space<vmem>>, %arg4: memref<16x72xf32, #tpu.memory_space<vmem>>, %arg5: memref<16x144xf32, #tpu.memory_space<vmem>>, %arg6: memref<4x16x1xf32, #tpu.memory_space<vmem>>, %arg7: memref<4x16x1xf32, #tpu.memory_space<vmem>>, %arg8: memref<1x640xf32, #tpu.memory_space<vmem>>, %arg9: memref<1x16x640xf32, #tpu.memory_space<vmem>>, %arg10: memref<16x896xf32, #tpu.memory_space<vmem>>, %arg11: memref<16x640xf32, #tpu.memory_space<vmem>>, %arg12: memref<144x640xf32, #tpu.memory_space<vmem>>) attributes {dimension_semantics = [#tpu.dimension_semantics<parallel>], iteration_bounds = array<i64: 2>, scalar_prefetch = 0 : i64, scratch_operands = 3 : i64, tpu.core_type = #tpu.core_type<tc>, window_params = [{transform_indices = @transform_0, window_bounds = array<i64: 1, 8, 896>}, {pipeline_mode = #tpu.pipeline_mode<synchronous>, transform_indices = @transform_1, window_bounds = array<i64: 16, 72>}, {pipeline_mode = #tpu.pipeline_mode<synchronous>, transform_indices = @transform_2, window_bounds = array<i64: 16, 144>}, {pipeline_mode = #tpu.pipeline_mode<synchronous>, transform_indices = @transform_3, window_bounds = array<i64: 16, 72>}, {pipeline_mode = #tpu.pipeline_mode<synchronous>, transform_indices = @transform_4, window_bounds = array<i64: 16, 144>}, {pipeline_mode = #tpu.pipeline_mode<synchronous>, transform_indices = @transform_5, window_bounds = array<i64: 4, 16, 1>}, {pipeline_mode = #tpu.pipeline_mode<synchronous>, transform_indices = @transform_6, window_bounds = array<i64: 4, 16, 1>}, {pipeline_mode = #tpu.pipeline_mode<synchronous>, transform_indices = @transform_7, window_bounds = array<i64: 1, 640>}, {transform_indices = @transform_8, window_bounds = array<i64: 1, 16, 640>}]} {
    %c0 = arith.constant 0 : index
    %c0_0 = arith.constant 0 : index
    %0 = vector.load %arg8[%c0, %c0_0] : memref<1x640xf32, #tpu.memory_space<vmem>>, vector<1x640xf32>
    %cst = arith.constant 0.000000e+00 : f32
    %1 = vector.broadcast %cst : f32 to vector<1x640xf32>
    %2 = arith.cmpf one, %0, %1 : vector<1x640xf32>
    %3 = tpu.iota {dimensions = array<i32: 0>} : vector<16x1xi32>
    %cst_1 = arith.constant 0.000000e+00 : f32
    %4 = vector.broadcast %cst_1 : f32 to vector<16x896xf32>
    %c0_2 = arith.constant 0 : index
    %c0_3 = arith.constant 0 : index
    %5 = vector.load %arg10[%c0_2, %c0_3] : memref<16x896xf32, #tpu.memory_space<vmem>>, vector<16x896xf32>
    tpu.vector_store %arg10[%c0_2, %c0_3], %4 {strides = array<i32>} : memref<16x896xf32, #tpu.memory_space<vmem>>, vector<16x896xf32>,
    %c0_4 = arith.constant 0 : index
    %c0_5 = arith.constant 0 : index
    %c117 = arith.constant 117 : index
    %6 = vector.load %arg1[%c0_4, %c0_5, %c117] : memref<1x8x896xf32, #tpu.memory_space<vmem>>, vector<1x8x640xf32>
    %7 = vector.shape_cast %6 : vector<1x8x640xf32> to vector<8x640xf32>
    %c0_6 = arith.constant 0 : index
    %c0_7 = arith.constant 0 : index
    %8 = vector.load %arg12[%c0_6, %c0_7] : memref<144x640xf32, #tpu.memory_space<vmem>>, vector<8x640xf32>
    tpu.vector_store %arg12[%c0_6, %c0_7], %7 {strides = array<i32>} : memref<144x640xf32, #tpu.memory_space<vmem>>, vector<8x640xf32>,
    %c0_8 = arith.constant 0 : index
    %c0_9 = arith.constant 0 : index
    %c118 = arith.constant 118 : index
    %9 = vector.load %arg1[%c0_8, %c0_9, %c118] : memref<1x8x896xf32, #tpu.memory_space<vmem>>, vector<1x8x640xf32>
    %10 = vector.shape_cast %9 : vector<1x8x640xf32> to vector<8x640xf32>
    %c8 = arith.constant 8 : index
    %c0_10 = arith.constant 0 : index
    %11 = vector.load %arg12[%c8, %c0_10] : memref<144x640xf32, #tpu.memory_space<vmem>>, vector<8x640xf32>
    tpu.vector_store %arg12[%c8, %c0_10], %10 {strides = array<i32>} : memref<144x640xf32, #tpu.memory_space<vmem>>, vector<8x640xf32>,
    %c0_11 = arith.constant 0 : index
    %c0_12 = arith.constant 0 : index
    %c119 = arith.constant 119 : index
    %12 = vector.load %arg1[%c0_11, %c0_12, %c119] : memref<1x8x896xf32, #tpu.memory_space<vmem>>, vector<1x8x640xf32>
    %13 = vector.shape_cast %12 : vector<1x8x640xf32> to vector<8x640xf32>
    %c16 = arith.constant 16 : index
    %c0_13 = arith.constant 0 : index
    %14 = vector.load %arg12[%c16, %c0_13] : memref<144x640xf32, #tpu.memory_space<vmem>>, vector<8x640xf32>
    tpu.vector_store %arg12[%c16, %c0_13], %13 {strides = array<i32>} : memref<144x640xf32, #tpu.memory_space<vmem>>, vector<8x640xf32>,
    %c0_14 = arith.constant 0 : index
    %c0_15 = arith.constant 0 : index
    %c127 = arith.constant 127 : index
    %15 = vector.load %arg1[%c0_14, %c0_15, %c127] : memref<1x8x896xf32, #tpu.memory_space<vmem>>, vector<1x8x640xf32>
    %16 = vector.shape_cast %15 : vector<1x8x640xf32> to vector<8x640xf32>
    %c24 = arith.constant 24 : index
    %c0_16 = arith.constant 0 : index
    %17 = vector.load %arg12[%c24, %c0_16] : memref<144x640xf32, #tpu.memory_space<vmem>>, vector<8x640xf32>
    tpu.vector_store %arg12[%c24, %c0_16], %16 {strides = array<i32>} : memref<144x640xf32, #tpu.memory_space<vmem>>, vector<8x640xf32>,
    %c0_17 = arith.constant 0 : index
    %c0_18 = arith.constant 0 : index
    %c128 = arith.constant 128 : index
    %18 = vector.load %arg1[%c0_17, %c0_18, %c128] : memref<1x8x896xf32, #tpu.memory_space<vmem>>, vector<1x8x640xf32>
    %19 = vector.shape_cast %18 : vector<1x8x640xf32> to vector<8x640xf32>
    %c32 = arith.constant 32 : index
    %c0_19 = arith.constant 0 : index
    %20 = vector.load %arg12[%c32, %c0_19] : memref<144x640xf32, #tpu.memory_space<vmem>>, vector<8x640xf32>
    tpu.vector_store %arg12[%c32, %c0_19], %19 {strides = array<i32>} : memref<144x640xf32, #tpu.memory_space<vmem>>, vector<8x640xf32>,
    %c0_20 = arith.constant 0 : index
    %c0_21 = arith.constant 0 : index
    %c129 = arith.constant 129 : index
    %21 = vector.load %arg1[%c0_20, %c0_21, %c129] : memref<1x8x896xf32, #tpu.memory_space<vmem>>, vector<1x8x640xf32>
    %22 = vector.shape_cast %21 : vector<1x8x640xf32> to vector<8x640xf32>
    %c40 = arith.constant 40 : index
    %c0_22 = arith.constant 0 : index
    %23 = vector.load %arg12[%c40, %c0_22] : memref<144x640xf32, #tpu.memory_space<vmem>>, vector<8x640xf32>
    tpu.vector_store %arg12[%c40, %c0_22], %22 {strides = array<i32>} : memref<144x640xf32, #tpu.memory_space<vmem>>, vector<8x640xf32>,
    %c0_23 = arith.constant 0 : index
    %c0_24 = arith.constant 0 : index
    %c137 = arith.constant 137 : index
    %24 = vector.load %arg1[%c0_23, %c0_24, %c137] : memref<1x8x896xf32, #tpu.memory_space<vmem>>, vector<1x8x640xf32>
    %25 = vector.shape_cast %24 : vector<1x8x640xf32> to vector<8x640xf32>
    %c48 = arith.constant 48 : index
    %c0_25 = arith.constant 0 : index
    %26 = vector.load %arg12[%c48, %c0_25] : memref<144x640xf32, #tpu.memory_space<vmem>>, vector<8x640xf32>
    tpu.vector_store %arg12[%c48, %c0_25], %25 {strides = array<i32>} : memref<144x640xf32, #tpu.memory_space<vmem>>, vector<8x640xf32>,
    %c0_26 = arith.constant 0 : index
    %c0_27 = arith.constant 0 : index
    %c138 = arith.constant 138 : index
    %27 = vector.load %arg1[%c0_26, %c0_27, %c138] : memref<1x8x896xf32, #tpu.memory_space<vmem>>, vector<1x8x640xf32>
    %28 = vector.shape_cast %27 : vector<1x8x640xf32> to vector<8x640xf32>
    %c56 = arith.constant 56 : index
    %c0_28 = arith.constant 0 : index
    %29 = vector.load %arg12[%c56, %c0_28] : memref<144x640xf32, #tpu.memory_space<vmem>>, vector<8x640xf32>
    tpu.vector_store %arg12[%c56, %c0_28], %28 {strides = array<i32>} : memref<144x640xf32, #tpu.memory_space<vmem>>, vector<8x640xf32>,
    %c0_29 = arith.constant 0 : index
    %c0_30 = arith.constant 0 : index
    %c139 = arith.constant 139 : index
    %30 = vector.load %arg1[%c0_29, %c0_30, %c139] : memref<1x8x896xf32, #tpu.memory_space<vmem>>, vector<1x8x640xf32>
    %31 = vector.shape_cast %30 : vector<1x8x640xf32> to vector<8x640xf32>
    %c64 = arith.constant 64 : index
    %c0_31 = arith.constant 0 : index
    %32 = vector.load %arg12[%c64, %c0_31] : memref<144x640xf32, #tpu.memory_space<vmem>>, vector<8x640xf32>
    tpu.vector_store %arg12[%c64, %c0_31], %31 {strides = array<i32>} : memref<144x640xf32, #tpu.memory_space<vmem>>, vector<8x640xf32>,
    %c0_32 = arith.constant 0 : index
    %c0_33 = arith.constant 0 : index
    %33 = vector.load %arg2[%c0_32, %c0_33] : memref<16x72xf32, #tpu.memory_space<vmem>>, vector<16x72xf32>
    %c0_34 = arith.constant 0 : index
    %c0_35 = arith.constant 0 : index
    %34 = vector.load %arg12[%c0_34, %c0_35] : memref<144x640xf32, #tpu.memory_space<vmem>>, vector<72x640xf32>
    %cst_36 = arith.constant dense<0.000000e+00> : vector<16x640xf32>
    %35 = tpu.matmul %33, %34, %cst_36 {dimension_numbers = #tpu.dot_dimension_numbers<[1], [0], [0], [1], [0, 0, 1, 1], [], []>} : vector<16x72xf32>, vector<72x640xf32>, vector<16x640xf32> -> vector<16x640xf32>
    %cst_37 = arith.constant 0.000000e+00 : f32
    %36 = vector.broadcast %cst_37 : f32 to vector<16x640xf32>
    %37 = arith.cmpf oge, %35, %36 : vector<16x640xf32>
    %cst_38 = arith.constant 0.00999999977 : f32
    %38 = vector.broadcast %cst_38 : f32 to vector<16x640xf32>
    %39 = arith.mulf %38, %35 : vector<16x640xf32>
    %40 = arith.select %37, %35, %39 : vector<16x640xi1>, vector<16x640xf32>
    %cst_39 = arith.constant 0.000000e+00 : f32
    %41 = vector.shape_cast %2 : vector<1x640xi1> to vector<1x640xi1>
    %42 = vector.broadcast %41 : vector<1x640xi1> to vector<16x640xi1>
    %43 = vector.broadcast %cst_39 : f32 to vector<16x640xf32>
    %44 = arith.select %42, %40, %43 : vector<16x640xi1>, vector<16x640xf32>
    %c0_40 = arith.constant 0 : index
    %c0_41 = arith.constant 0 : index
    %c0_42 = arith.constant 0 : index
    %45 = vector.load %arg6[%c0_40, %c0_41, %c0_42] : memref<4x16x1xf32, #tpu.memory_space<vmem>>, vector<1x16x1xf32>
    %46 = vector.shape_cast %45 : vector<1x16x1xf32> to vector<16x1xf32>
    %c0_43 = arith.constant 0 : index
    %c0_44 = arith.constant 0 : index
    %c0_45 = arith.constant 0 : index
    %47 = vector.load %arg7[%c0_43, %c0_44, %c0_45] : memref<4x16x1xf32, #tpu.memory_space<vmem>>, vector<1x16x1xf32>
    %48 = vector.shape_cast %47 : vector<1x16x1xf32> to vector<16x1xf32>
    %cst_46 = arith.constant dense<0.000000e+00> : vector<16xf32>
    %49 = vector.multi_reduction <add>, %44, %cst_46 [1] : vector<16x640xf32> to vector<16xf32>
    %50 = vector.shape_cast %49 : vector<16xf32> to vector<16x1xf32>
    %cst_47 = arith.constant 0.000000e+00 : f32
    %51 = vector.broadcast %cst_47 : f32 to vector<16x1xf32>
    %c0_i32 = arith.constant 0 : i32
    %52 = vector.broadcast %c0_i32 : i32 to vector<16x1xi32>
    %53 = arith.cmpi sge, %3, %52 : vector<16x1xi32>
    %c2_i32 = arith.constant 2 : i32
    %54 = vector.broadcast %c2_i32 : i32 to vector<16x1xi32>
    %55 = arith.cmpi slt, %3, %54 : vector<16x1xi32>
    %56 = arith.andi %53, %55 : vector<16x1xi1>
    %cst_48 = arith.constant 0.000000e+00 : f32
    %57 = vector.broadcast %cst_48 : f32 to vector<16x1xf32>
    %58 = arith.select %56, %50, %57 : vector<16x1xi1>, vector<16x1xf32>
    %59 = vector.shape_cast %58 : vector<16x1xf32> to vector<1x16x1xf32>
    %cst_49 = arith.constant dense<0.000000e+00> : vector<1xf32>
    %60 = vector.multi_reduction <add>, %59, %cst_49 [1, 2] : vector<1x16x1xf32> to vector<1xf32>
    %61 = vector.shape_cast %60 : vector<1xf32> to vector<1x1x1xf32>
    %62 = vector.extract %61[0, 0, 0] : f32 from vector<1x1x1xf32>
    %63 = vector.broadcast %62 : f32 to vector<1x1xf32>
    %64 = vector.shape_cast %63 : vector<1x1xf32> to vector<1x1xf32>
    %65 = vector.broadcast %64 : vector<1x1xf32> to vector<16x1xf32>
    %66 = arith.select %56, %65, %51 : vector<16x1xi1>, vector<16x1xf32>
    %c2_i32_50 = arith.constant 2 : i32
    %67 = vector.broadcast %c2_i32_50 : i32 to vector<16x1xi32>
    %68 = arith.cmpi sge, %3, %67 : vector<16x1xi32>
    %c4_i32 = arith.constant 4 : i32
    %69 = vector.broadcast %c4_i32 : i32 to vector<16x1xi32>
    %70 = arith.cmpi slt, %3, %69 : vector<16x1xi32>
    %71 = arith.andi %68, %70 : vector<16x1xi1>
    %cst_51 = arith.constant 0.000000e+00 : f32
    %72 = vector.broadcast %cst_51 : f32 to vector<16x1xf32>
    %73 = arith.select %71, %50, %72 : vector<16x1xi1>, vector<16x1xf32>
    %74 = vector.shape_cast %73 : vector<16x1xf32> to vector<1x16x1xf32>
    %cst_52 = arith.constant dense<0.000000e+00> : vector<1xf32>
    %75 = vector.multi_reduction <add>, %74, %cst_52 [1, 2] : vector<1x16x1xf32> to vector<1xf32>
    %76 = vector.shape_cast %75 : vector<1xf32> to vector<1x1x1xf32>
    %77 = vector.extract %76[0, 0, 0] : f32 from vector<1x1x1xf32>
    %78 = vector.broadcast %77 : f32 to vector<1x1xf32>
    %79 = vector.shape_cast %78 : vector<1x1xf32> to vector<1x1xf32>
    %80 = vector.broadcast %79 : vector<1x1xf32> to vector<16x1xf32>
    %81 = arith.select %71, %80, %66 : vector<16x1xi1>, vector<16x1xf32>
    %c4_i32_53 = arith.constant 4 : i32
    %82 = vector.broadcast %c4_i32_53 : i32 to vector<16x1xi32>
    %83 = arith.cmpi sge, %3, %82 : vector<16x1xi32>
    %c6_i32 = arith.constant 6 : i32
    %84 = vector.broadcast %c6_i32 : i32 to vector<16x1xi32>
    %85 = arith.cmpi slt, %3, %84 : vector<16x1xi32>
    %86 = arith.andi %83, %85 : vector<16x1xi1>
    %cst_54 = arith.constant 0.000000e+00 : f32
    %87 = vector.broadcast %cst_54 : f32 to vector<16x1xf32>
    %88 = arith.select %86, %50, %87 : vector<16x1xi1>, vector<16x1xf32>
    %89 = vector.shape_cast %88 : vector<16x1xf32> to vector<1x16x1xf32>
    %cst_55 = arith.constant dense<0.000000e+00> : vector<1xf32>
    %90 = vector.multi_reduction <add>, %89, %cst_55 [1, 2] : vector<1x16x1xf32> to vector<1xf32>
    %91 = vector.shape_cast %90 : vector<1xf32> to vector<1x1x1xf32>
    %92 = vector.extract %91[0, 0, 0] : f32 from vector<1x1x1xf32>
    %93 = vector.broadcast %92 : f32 to vector<1x1xf32>
    %94 = vector.shape_cast %93 : vector<1x1xf32> to vector<1x1xf32>
    %95 = vector.broadcast %94 : vector<1x1xf32> to vector<16x1xf32>
    %96 = arith.select %86, %95, %81 : vector<16x1xi1>, vector<16x1xf32>
    %c6_i32_56 = arith.constant 6 : i32
    %97 = vector.broadcast %c6_i32_56 : i32 to vector<16x1xi32>
    %98 = arith.cmpi sge, %3, %97 : vector<16x1xi32>
    %c8_i32 = arith.constant 8 : i32
    %99 = vector.broadcast %c8_i32 : i32 to vector<16x1xi32>
    %100 = arith.cmpi slt, %3, %99 : vector<16x1xi32>
    %101 = arith.andi %98, %100 : vector<16x1xi1>
    %cst_57 = arith.constant 0.000000e+00 : f32
    %102 = vector.broadcast %cst_57 : f32 to vector<16x1xf32>
    %103 = arith.select %101, %50, %102 : vector<16x1xi1>, vector<16x1xf32>
    %104 = vector.shape_cast %103 : vector<16x1xf32> to vector<1x16x1xf32>
    %cst_58 = arith.constant dense<0.000000e+00> : vector<1xf32>
    %105 = vector.multi_reduction <add>, %104, %cst_58 [1, 2] : vector<1x16x1xf32> to vector<1xf32>
    %106 = vector.shape_cast %105 : vector<1xf32> to vector<1x1x1xf32>
    %107 = vector.extract %106[0, 0, 0] : f32 from vector<1x1x1xf32>
    %108 = vector.broadcast %107 : f32 to vector<1x1xf32>
    %109 = vector.shape_cast %108 : vector<1x1xf32> to vector<1x1xf32>
    %110 = vector.broadcast %109 : vector<1x1xf32> to vector<16x1xf32>
    %111 = arith.select %101, %110, %96 : vector<16x1xi1>, vector<16x1xf32>
    %c8_i32_59 = arith.constant 8 : i32
    %112 = vector.broadcast %c8_i32_59 : i32 to vector<16x1xi32>
    %113 = arith.cmpi sge, %3, %112 : vector<16x1xi32>
    %c10_i32 = arith.constant 10 : i32
    %114 = vector.broadcast %c10_i32 : i32 to vector<16x1xi32>
    %115 = arith.cmpi slt, %3, %114 : vector<16x1xi32>
    %116 = arith.andi %113, %115 : vector<16x1xi1>
    %cst_60 = arith.constant 0.000000e+00 : f32
    %117 = vector.broadcast %cst_60 : f32 to vector<16x1xf32>
    %118 = arith.select %116, %50, %117 : vector<16x1xi1>, vector<16x1xf32>
    %119 = vector.shape_cast %118 : vector<16x1xf32> to vector<1x16x1xf32>
    %cst_61 = arith.constant dense<0.000000e+00> : vector<1xf32>
    %120 = vector.multi_reduction <add>, %119, %cst_61 [1, 2] : vector<1x16x1xf32> to vector<1xf32>
    %121 = vector.shape_cast %120 : vector<1xf32> to vector<1x1x1xf32>
    %122 = vector.extract %121[0, 0, 0] : f32 from vector<1x1x1xf32>
    %123 = vector.broadcast %122 : f32 to vector<1x1xf32>
    %124 = vector.shape_cast %123 : vector<1x1xf32> to vector<1x1xf32>
    %125 = vector.broadcast %124 : vector<1x1xf32> to vector<16x1xf32>
    %126 = arith.select %116, %125, %111 : vector<16x1xi1>, vector<16x1xf32>
    %c10_i32_62 = arith.constant 10 : i32
    %127 = vector.broadcast %c10_i32_62 : i32 to vector<16x1xi32>
    %128 = arith.cmpi sge, %3, %127 : vector<16x1xi32>
    %c12_i32 = arith.constant 12 : i32
    %129 = vector.broadcast %c12_i32 : i32 to vector<16x1xi32>
    %130 = arith.cmpi slt, %3, %129 : vector<16x1xi32>
    %131 = arith.andi %128, %130 : vector<16x1xi1>
    %cst_63 = arith.constant 0.000000e+00 : f32
    %132 = vector.broadcast %cst_63 : f32 to vector<16x1xf32>
    %133 = arith.select %131, %50, %132 : vector<16x1xi1>, vector<16x1xf32>
    %134 = vector.shape_cast %133 : vector<16x1xf32> to vector<1x16x1xf32>
    %cst_64 = arith.constant dense<0.000000e+00> : vector<1xf32>
    %135 = vector.multi_reduction <add>, %134, %cst_64 [1, 2] : vector<1x16x1xf32> to vector<1xf32>
    %136 = vector.shape_cast %135 : vector<1xf32> to vector<1x1x1xf32>
    %137 = vector.extract %136[0, 0, 0] : f32 from vector<1x1x1xf32>
    %138 = vector.broadcast %137 : f32 to vector<1x1xf32>
    %139 = vector.shape_cast %138 : vector<1x1xf32> to vector<1x1xf32>
    %140 = vector.broadcast %139 : vector<1x1xf32> to vector<16x1xf32>
    %141 = arith.select %131, %140, %126 : vector<16x1xi1>, vector<16x1xf32>
    %c12_i32_65 = arith.constant 12 : i32
    %142 = vector.broadcast %c12_i32_65 : i32 to vector<16x1xi32>
    %143 = arith.cmpi sge, %3, %142 : vector<16x1xi32>
    %c14_i32 = arith.constant 14 : i32
    %144 = vector.broadcast %c14_i32 : i32 to vector<16x1xi32>
    %145 = arith.cmpi slt, %3, %144 : vector<16x1xi32>
    %146 = arith.andi %143, %145 : vector<16x1xi1>
    %cst_66 = arith.constant 0.000000e+00 : f32
    %147 = vector.broadcast %cst_66 : f32 to vector<16x1xf32>
    %148 = arith.select %146, %50, %147 : vector<16x1xi1>, vector<16x1xf32>
    %149 = vector.shape_cast %148 : vector<16x1xf32> to vector<1x16x1xf32>
    %cst_67 = arith.constant dense<0.000000e+00> : vector<1xf32>
    %150 = vector.multi_reduction <add>, %149, %cst_67 [1, 2] : vector<1x16x1xf32> to vector<1xf32>
    %151 = vector.shape_cast %150 : vector<1xf32> to vector<1x1x1xf32>
    %152 = vector.extract %151[0, 0, 0] : f32 from vector<1x1x1xf32>
    %153 = vector.broadcast %152 : f32 to vector<1x1xf32>
    %154 = vector.shape_cast %153 : vector<1x1xf32> to vector<1x1xf32>
    %155 = vector.broadcast %154 : vector<1x1xf32> to vector<16x1xf32>
    %156 = arith.select %146, %155, %141 : vector<16x1xi1>, vector<16x1xf32>
    %c14_i32_68 = arith.constant 14 : i32
    %157 = vector.broadcast %c14_i32_68 : i32 to vector<16x1xi32>
    %158 = arith.cmpi sge, %3, %157 : vector<16x1xi32>
    %c16_i32 = arith.constant 16 : i32
    %159 = vector.broadcast %c16_i32 : i32 to vector<16x1xi32>
    %160 = arith.cmpi slt, %3, %159 : vector<16x1xi32>
    %161 = arith.andi %158, %160 : vector<16x1xi1>
    %cst_69 = arith.constant 0.000000e+00 : f32
    %162 = vector.broadcast %cst_69 : f32 to vector<16x1xf32>
    %163 = arith.select %161, %50, %162 : vector<16x1xi1>, vector<16x1xf32>
    %164 = vector.shape_cast %163 : vector<16x1xf32> to vector<1x16x1xf32>
    %cst_70 = arith.constant dense<0.000000e+00> : vector<1xf32>
    %165 = vector.multi_reduction <add>, %164, %cst_70 [1, 2] : vector<1x16x1xf32> to vector<1xf32>
    %166 = vector.shape_cast %165 : vector<1xf32> to vector<1x1x1xf32>
    %167 = vector.extract %166[0, 0, 0] : f32 from vector<1x1x1xf32>
    %168 = vector.broadcast %167 : f32 to vector<1x1xf32>
    %169 = vector.shape_cast %168 : vector<1x1xf32> to vector<1x1xf32>
    %170 = vector.broadcast %169 : vector<1x1xf32> to vector<16x1xf32>
    %171 = arith.select %161, %170, %156 : vector<16x1xi1>, vector<16x1xf32>
    %cst_71 = arith.constant 0.001953125 : f32
    %172 = vector.broadcast %cst_71 : f32 to vector<16x1xf32>
    %173 = arith.mulf %171, %172 : vector<16x1xf32>
    %174 = vector.broadcast %173 : vector<16x1xf32> to vector<16x640xf32>
    %175 = arith.subf %44, %174 : vector<16x640xf32>
    %cst_72 = arith.constant 0.000000e+00 : f32
    %176 = vector.shape_cast %2 : vector<1x640xi1> to vector<1x640xi1>
    %177 = vector.broadcast %176 : vector<1x640xi1> to vector<16x640xi1>
    %178 = vector.broadcast %cst_72 : f32 to vector<16x640xf32>
    %179 = arith.select %177, %175, %178 : vector<16x640xi1>, vector<16x640xf32>
    %180 = arith.mulf %179, %179 : vector<16x640xf32>
    %cst_73 = arith.constant dense<0.000000e+00> : vector<16xf32>
    %181 = vector.multi_reduction <add>, %180, %cst_73 [1] : vector<16x640xf32> to vector<16xf32>
    %182 = vector.shape_cast %181 : vector<16xf32> to vector<16x1xf32>
    %cst_74 = arith.constant 0.000000e+00 : f32
    %183 = vector.broadcast %cst_74 : f32 to vector<16x1xf32>
    %c0_i32_75 = arith.constant 0 : i32
    %184 = vector.broadcast %c0_i32_75 : i32 to vector<16x1xi32>
    %185 = arith.cmpi sge, %3, %184 : vector<16x1xi32>
    %c2_i32_76 = arith.constant 2 : i32
    %186 = vector.broadcast %c2_i32_76 : i32 to vector<16x1xi32>
    %187 = arith.cmpi slt, %3, %186 : vector<16x1xi32>
    %188 = arith.andi %185, %187 : vector<16x1xi1>
    %cst_77 = arith.constant 0.000000e+00 : f32
    %189 = vector.broadcast %cst_77 : f32 to vector<16x1xf32>
    %190 = arith.select %188, %182, %189 : vector<16x1xi1>, vector<16x1xf32>
    %191 = vector.shape_cast %190 : vector<16x1xf32> to vector<1x16x1xf32>
    %cst_78 = arith.constant dense<0.000000e+00> : vector<1xf32>
    %192 = vector.multi_reduction <add>, %191, %cst_78 [1, 2] : vector<1x16x1xf32> to vector<1xf32>
    %193 = vector.shape_cast %192 : vector<1xf32> to vector<1x1x1xf32>
    %194 = vector.extract %193[0, 0, 0] : f32 from vector<1x1x1xf32>
    %195 = vector.broadcast %194 : f32 to vector<1x1xf32>
    %196 = vector.shape_cast %195 : vector<1x1xf32> to vector<1x1xf32>
    %197 = vector.broadcast %196 : vector<1x1xf32> to vector<16x1xf32>
    %198 = arith.select %188, %197, %183 : vector<16x1xi1>, vector<16x1xf32>
    %c2_i32_79 = arith.constant 2 : i32
    %199 = vector.broadcast %c2_i32_79 : i32 to vector<16x1xi32>
    %200 = arith.cmpi sge, %3, %199 : vector<16x1xi32>
    %c4_i32_80 = arith.constant 4 : i32
    %201 = vector.broadcast %c4_i32_80 : i32 to vector<16x1xi32>
    %202 = arith.cmpi slt, %3, %201 : vector<16x1xi32>
    %203 = arith.andi %200, %202 : vector<16x1xi1>
    %cst_81 = arith.constant 0.000000e+00 : f32
    %204 = vector.broadcast %cst_81 : f32 to vector<16x1xf32>
    %205 = arith.select %203, %182, %204 : vector<16x1xi1>, vector<16x1xf32>
    %206 = vector.shape_cast %205 : vector<16x1xf32> to vector<1x16x1xf32>
    %cst_82 = arith.constant dense<0.000000e+00> : vector<1xf32>
    %207 = vector.multi_reduction <add>, %206, %cst_82 [1, 2] : vector<1x16x1xf32> to vector<1xf32>
    %208 = vector.shape_cast %207 : vector<1xf32> to vector<1x1x1xf32>
    %209 = vector.extract %208[0, 0, 0] : f32 from vector<1x1x1xf32>
    %210 = vector.broadcast %209 : f32 to vector<1x1xf32>
    %211 = vector.shape_cast %210 : vector<1x1xf32> to vector<1x1xf32>
    %212 = vector.broadcast %211 : vector<1x1xf32> to vector<16x1xf32>
    %213 = arith.select %203, %212, %198 : vector<16x1xi1>, vector<16x1xf32>
    %c4_i32_83 = arith.constant 4 : i32
    %214 = vector.broadcast %c4_i32_83 : i32 to vector<16x1xi32>
    %215 = arith.cmpi sge, %3, %214 : vector<16x1xi32>
    %c6_i32_84 = arith.constant 6 : i32
    %216 = vector.broadcast %c6_i32_84 : i32 to vector<16x1xi32>
    %217 = arith.cmpi slt, %3, %216 : vector<16x1xi32>
    %218 = arith.andi %215, %217 : vector<16x1xi1>
    %cst_85 = arith.constant 0.000000e+00 : f32
    %219 = vector.broadcast %cst_85 : f32 to vector<16x1xf32>
    %220 = arith.select %218, %182, %219 : vector<16x1xi1>, vector<16x1xf32>
    %221 = vector.shape_cast %220 : vector<16x1xf32> to vector<1x16x1xf32>
    %cst_86 = arith.constant dense<0.000000e+00> : vector<1xf32>
    %222 = vector.multi_reduction <add>, %221, %cst_86 [1, 2] : vector<1x16x1xf32> to vector<1xf32>
    %223 = vector.shape_cast %222 : vector<1xf32> to vector<1x1x1xf32>
    %224 = vector.extract %223[0, 0, 0] : f32 from vector<1x1x1xf32>
    %225 = vector.broadcast %224 : f32 to vector<1x1xf32>
    %226 = vector.shape_cast %225 : vector<1x1xf32> to vector<1x1xf32>
    %227 = vector.broadcast %226 : vector<1x1xf32> to vector<16x1xf32>
    %228 = arith.select %218, %227, %213 : vector<16x1xi1>, vector<16x1xf32>
    %c6_i32_87 = arith.constant 6 : i32
    %229 = vector.broadcast %c6_i32_87 : i32 to vector<16x1xi32>
    %230 = arith.cmpi sge, %3, %229 : vector<16x1xi32>
    %c8_i32_88 = arith.constant 8 : i32
    %231 = vector.broadcast %c8_i32_88 : i32 to vector<16x1xi32>
    %232 = arith.cmpi slt, %3, %231 : vector<16x1xi32>
    %233 = arith.andi %230, %232 : vector<16x1xi1>
    %cst_89 = arith.constant 0.000000e+00 : f32
    %234 = vector.broadcast %cst_89 : f32 to vector<16x1xf32>
    %235 = arith.select %233, %182, %234 : vector<16x1xi1>, vector<16x1xf32>
    %236 = vector.shape_cast %235 : vector<16x1xf32> to vector<1x16x1xf32>
    %cst_90 = arith.constant dense<0.000000e+00> : vector<1xf32>
    %237 = vector.multi_reduction <add>, %236, %cst_90 [1, 2] : vector<1x16x1xf32> to vector<1xf32>
    %238 = vector.shape_cast %237 : vector<1xf32> to vector<1x1x1xf32>
    %239 = vector.extract %238[0, 0, 0] : f32 from vector<1x1x1xf32>
    %240 = vector.broadcast %239 : f32 to vector<1x1xf32>
    %241 = vector.shape_cast %240 : vector<1x1xf32> to vector<1x1xf32>
    %242 = vector.broadcast %241 : vector<1x1xf32> to vector<16x1xf32>
    %243 = arith.select %233, %242, %228 : vector<16x1xi1>, vector<16x1xf32>
    %c8_i32_91 = arith.constant 8 : i32
    %244 = vector.broadcast %c8_i32_91 : i32 to vector<16x1xi32>
    %245 = arith.cmpi sge, %3, %244 : vector<16x1xi32>
    %c10_i32_92 = arith.constant 10 : i32
    %246 = vector.broadcast %c10_i32_92 : i32 to vector<16x1xi32>
    %247 = arith.cmpi slt, %3, %246 : vector<16x1xi32>
    %248 = arith.andi %245, %247 : vector<16x1xi1>
    %cst_93 = arith.constant 0.000000e+00 : f32
    %249 = vector.broadcast %cst_93 : f32 to vector<16x1xf32>
    %250 = arith.select %248, %182, %249 : vector<16x1xi1>, vector<16x1xf32>
    %251 = vector.shape_cast %250 : vector<16x1xf32> to vector<1x16x1xf32>
    %cst_94 = arith.constant dense<0.000000e+00> : vector<1xf32>
    %252 = vector.multi_reduction <add>, %251, %cst_94 [1, 2] : vector<1x16x1xf32> to vector<1xf32>
    %253 = vector.shape_cast %252 : vector<1xf32> to vector<1x1x1xf32>
    %254 = vector.extract %253[0, 0, 0] : f32 from vector<1x1x1xf32>
    %255 = vector.broadcast %254 : f32 to vector<1x1xf32>
    %256 = vector.shape_cast %255 : vector<1x1xf32> to vector<1x1xf32>
    %257 = vector.broadcast %256 : vector<1x1xf32> to vector<16x1xf32>
    %258 = arith.select %248, %257, %243 : vector<16x1xi1>, vector<16x1xf32>
    %c10_i32_95 = arith.constant 10 : i32
    %259 = vector.broadcast %c10_i32_95 : i32 to vector<16x1xi32>
    %260 = arith.cmpi sge, %3, %259 : vector<16x1xi32>
    %c12_i32_96 = arith.constant 12 : i32
    %261 = vector.broadcast %c12_i32_96 : i32 to vector<16x1xi32>
    %262 = arith.cmpi slt, %3, %261 : vector<16x1xi32>
    %263 = arith.andi %260, %262 : vector<16x1xi1>
    %cst_97 = arith.constant 0.000000e+00 : f32
    %264 = vector.broadcast %cst_97 : f32 to vector<16x1xf32>
    %265 = arith.select %263, %182, %264 : vector<16x1xi1>, vector<16x1xf32>
    %266 = vector.shape_cast %265 : vector<16x1xf32> to vector<1x16x1xf32>
    %cst_98 = arith.constant dense<0.000000e+00> : vector<1xf32>
    %267 = vector.multi_reduction <add>, %266, %cst_98 [1, 2] : vector<1x16x1xf32> to vector<1xf32>
    %268 = vector.shape_cast %267 : vector<1xf32> to vector<1x1x1xf32>
    %269 = vector.extract %268[0, 0, 0] : f32 from vector<1x1x1xf32>
    %270 = vector.broadcast %269 : f32 to vector<1x1xf32>
    %271 = vector.shape_cast %270 : vector<1x1xf32> to vector<1x1xf32>
    %272 = vector.broadcast %271 : vector<1x1xf32> to vector<16x1xf32>
    %273 = arith.select %263, %272, %258 : vector<16x1xi1>, vector<16x1xf32>
    %c12_i32_99 = arith.constant 12 : i32
    %274 = vector.broadcast %c12_i32_99 : i32 to vector<16x1xi32>
    %275 = arith.cmpi sge, %3, %274 : vector<16x1xi32>
    %c14_i32_100 = arith.constant 14 : i32
    %276 = vector.broadcast %c14_i32_100 : i32 to vector<16x1xi32>
    %277 = arith.cmpi slt, %3, %276 : vector<16x1xi32>
    %278 = arith.andi %275, %277 : vector<16x1xi1>
    %cst_101 = arith.constant 0.000000e+00 : f32
    %279 = vector.broadcast %cst_101 : f32 to vector<16x1xf32>
    %280 = arith.select %278, %182, %279 : vector<16x1xi1>, vector<16x1xf32>
    %281 = vector.shape_cast %280 : vector<16x1xf32> to vector<1x16x1xf32>
    %cst_102 = arith.constant dense<0.000000e+00> : vector<1xf32>
    %282 = vector.multi_reduction <add>, %281, %cst_102 [1, 2] : vector<1x16x1xf32> to vector<1xf32>
    %283 = vector.shape_cast %282 : vector<1xf32> to vector<1x1x1xf32>
    %284 = vector.extract %283[0, 0, 0] : f32 from vector<1x1x1xf32>
    %285 = vector.broadcast %284 : f32 to vector<1x1xf32>
    %286 = vector.shape_cast %285 : vector<1x1xf32> to vector<1x1xf32>
    %287 = vector.broadcast %286 : vector<1x1xf32> to vector<16x1xf32>
    %288 = arith.select %278, %287, %273 : vector<16x1xi1>, vector<16x1xf32>
    %c14_i32_103 = arith.constant 14 : i32
    %289 = vector.broadcast %c14_i32_103 : i32 to vector<16x1xi32>
    %290 = arith.cmpi sge, %3, %289 : vector<16x1xi32>
    %c16_i32_104 = arith.constant 16 : i32
    %291 = vector.broadcast %c16_i32_104 : i32 to vector<16x1xi32>
    %292 = arith.cmpi slt, %3, %291 : vector<16x1xi32>
    %293 = arith.andi %290, %292 : vector<16x1xi1>
    %cst_105 = arith.constant 0.000000e+00 : f32
    %294 = vector.broadcast %cst_105 : f32 to vector<16x1xf32>
    %295 = arith.select %293, %182, %294 : vector<16x1xi1>, vector<16x1xf32>
    %296 = vector.shape_cast %295 : vector<16x1xf32> to vector<1x16x1xf32>
    %cst_106 = arith.constant dense<0.000000e+00> : vector<1xf32>
    %297 = vector.multi_reduction <add>, %296, %cst_106 [1, 2] : vector<1x16x1xf32> to vector<1xf32>
    %298 = vector.shape_cast %297 : vector<1xf32> to vector<1x1x1xf32>
    %299 = vector.extract %298[0, 0, 0] : f32 from vector<1x1x1xf32>
    %300 = vector.broadcast %299 : f32 to vector<1x1xf32>
    %301 = vector.shape_cast %300 : vector<1x1xf32> to vector<1x1xf32>
    %302 = vector.broadcast %301 : vector<1x1xf32> to vector<16x1xf32>
    %303 = arith.select %293, %302, %288 : vector<16x1xi1>, vector<16x1xf32>
    %cst_107 = arith.constant 0.001953125 : f32
    %304 = vector.broadcast %cst_107 : f32 to vector<16x1xf32>
    %305 = arith.mulf %303, %304 : vector<16x1xf32>
    %cst_108 = arith.constant 9.99999974E-6 : f32
    %306 = vector.broadcast %cst_108 : f32 to vector<16x1xf32>
    %307 = arith.addf %305, %306 : vector<16x1xf32>
    %308 = math.rsqrt %307 : vector<16x1xf32>
    %309 = arith.mulf %308, %46 : vector<16x1xf32>
    %310 = vector.broadcast %309 : vector<16x1xf32> to vector<16x640xf32>
    %311 = arith.mulf %179, %310 : vector<16x640xf32>
    %312 = vector.broadcast %48 : vector<16x1xf32> to vector<16x640xf32>
    %313 = arith.addf %311, %312 : vector<16x640xf32>
    %cst_109 = arith.constant 0.000000e+00 : f32
    %314 = vector.shape_cast %2 : vector<1x640xi1> to vector<1x640xi1>
    %315 = vector.broadcast %314 : vector<1x640xi1> to vector<16x640xi1>
    %316 = vector.broadcast %cst_109 : f32 to vector<16x640xf32>
    %317 = arith.select %315, %313, %316 : vector<16x640xi1>, vector<16x640xf32>
    %c0_110 = arith.constant 0 : index
    %c128_111 = arith.constant 128 : index
    %318 = vector.load %arg10[%c0_110, %c128_111] : memref<16x896xf32, #tpu.memory_space<vmem>>, vector<16x640xf32>
    tpu.vector_store %arg10[%c0_110, %c128_111], %317 {strides = array<i32>} : memref<16x896xf32, #tpu.memory_space<vmem>>, vector<16x640xf32>,
    %c0_112 = arith.constant 0 : index
    %c27 = arith.constant 27 : index
    %319 = vector.load %arg10[%c0_112, %c27] : memref<16x896xf32, #tpu.memory_space<vmem>>, vector<16x640xf32>
    %c0_113 = arith.constant 0 : index
    %c0_114 = arith.constant 0 : index
    %320 = vector.load %arg12[%c0_113, %c0_114] : memref<144x640xf32, #tpu.memory_space<vmem>>, vector<16x640xf32>
    tpu.vector_store %arg12[%c0_113, %c0_114], %319 {strides = array<i32>} : memref<144x640xf32, #tpu.memory_space<vmem>>, vector<16x640xf32>,
    %c0_115 = arith.constant 0 : index
    %c28 = arith.constant 28 : index
    %321 = vector.load %arg10[%c0_115, %c28] : memref<16x896xf32, #tpu.memory_space<vmem>>, vector<16x640xf32>
    %c16_116 = arith.constant 16 : index
    %c0_117 = arith.constant 0 : index
    %322 = vector.load %arg12[%c16_116, %c0_117] : memref<144x640xf32, #tpu.memory_space<vmem>>, vector<16x640xf32>
    tpu.vector_store %arg12[%c16_116, %c0_117], %321 {strides = array<i32>} : memref<144x640xf32, #tpu.memory_space<vmem>>, vector<16x640xf32>,
    %c0_118 = arith.constant 0 : index
    %c29 = arith.constant 29 : index
    %323 = vector.load %arg10[%c0_118, %c29] : memref<16x896xf32, #tpu.memory_space<vmem>>, vector<16x640xf32>
    %c32_119 = arith.constant 32 : index
    %c0_120 = arith.constant 0 : index
    %324 = vector.load %arg12[%c32_119, %c0_120] : memref<144x640xf32, #tpu.memory_space<vmem>>, vector<16x640xf32>
    tpu.vector_store %arg12[%c32_119, %c0_120], %323 {strides = array<i32>} : memref<144x640xf32, #tpu.memory_space<vmem>>, vector<16x640xf32>,
    %c0_121 = arith.constant 0 : index
    %c127_122 = arith.constant 127 : index
    %325 = vector.load %arg10[%c0_121, %c127_122] : memref<16x896xf32, #tpu.memory_space<vmem>>, vector<16x640xf32>
    %c48_123 = arith.constant 48 : index
    %c0_124 = arith.constant 0 : index
    %326 = vector.load %arg12[%c48_123, %c0_124] : memref<144x640xf32, #tpu.memory_space<vmem>>, vector<16x640xf32>
    tpu.vector_store %arg12[%c48_123, %c0_124], %325 {strides = array<i32>} : memref<144x640xf32, #tpu.memory_space<vmem>>, vector<16x640xf32>,
    %c0_125 = arith.constant 0 : index
    %c128_126 = arith.constant 128 : index
    %327 = vector.load %arg10[%c0_125, %c128_126] : memref<16x896xf32, #tpu.memory_space<vmem>>, vector<16x640xf32>
    %c64_127 = arith.constant 64 : index
    %c0_128 = arith.constant 0 : index
    %328 = vector.load %arg12[%c64_127, %c0_128] : memref<144x640xf32, #tpu.memory_space<vmem>>, vector<16x640xf32>
    tpu.vector_store %arg12[%c64_127, %c0_128], %327 {strides = array<i32>} : memref<144x640xf32, #tpu.memory_space<vmem>>, vector<16x640xf32>,
    %c0_129 = arith.constant 0 : index
    %c129_130 = arith.constant 129 : index
    %329 = vector.load %arg10[%c0_129, %c129_130] : memref<16x896xf32, #tpu.memory_space<vmem>>, vector<16x640xf32>
    %c80 = arith.constant 80 : index
    %c0_131 = arith.constant 0 : index
    %330 = vector.load %arg12[%c80, %c0_131] : memref<144x640xf32, #tpu.memory_space<vmem>>, vector<16x640xf32>
    tpu.vector_store %arg12[%c80, %c0_131], %329 {strides = array<i32>} : memref<144x640xf32, #tpu.memory_space<vmem>>, vector<16x640xf32>,
    %c0_132 = arith.constant 0 : index
    %c227 = arith.constant 227 : index
    %331 = vector.load %arg10[%c0_132, %c227] : memref<16x896xf32, #tpu.memory_space<vmem>>, vector<16x640xf32>
    %c96 = arith.constant 96 : index
    %c0_133 = arith.constant 0 : index
    %332 = vector.load %arg12[%c96, %c0_133] : memref<144x640xf32, #tpu.memory_space<vmem>>, vector<16x640xf32>
    tpu.vector_store %arg12[%c96, %c0_133], %331 {strides = array<i32>} : memref<144x640xf32, #tpu.memory_space<vmem>>, vector<16x640xf32>,
    %c0_134 = arith.constant 0 : index
    %c228 = arith.constant 228 : index
    %333 = vector.load %arg10[%c0_134, %c228] : memref<16x896xf32, #tpu.memory_space<vmem>>, vector<16x640xf32>
    %c112 = arith.constant 112 : index
    %c0_135 = arith.constant 0 : index
    %334 = vector.load %arg12[%c112, %c0_135] : memref<144x640xf32, #tpu.memory_space<vmem>>, vector<16x640xf32>
    tpu.vector_store %arg12[%c112, %c0_135], %333 {strides = array<i32>} : memref<144x640xf32, #tpu.memory_space<vmem>>, vector<16x640xf32>,
    %c0_136 = arith.constant 0 : index
    %c229 = arith.constant 229 : index
    %335 = vector.load %arg10[%c0_136, %c229] : memref<16x896xf32, #tpu.memory_space<vmem>>, vector<16x640xf32>
    %c128_137 = arith.constant 128 : index
    %c0_138 = arith.constant 0 : index
    %336 = vector.load %arg12[%c128_137, %c0_138] : memref<144x640xf32, #tpu.memory_space<vmem>>, vector<16x640xf32>
    tpu.vector_store %arg12[%c128_137, %c0_138], %335 {strides = array<i32>} : memref<144x640xf32, #tpu.memory_space<vmem>>, vector<16x640xf32>,
    %c0_139 = arith.constant 0 : index
    %c0_140 = arith.constant 0 : index
    %337 = vector.load %arg3[%c0_139, %c0_140] : memref<16x144xf32, #tpu.memory_space<vmem>>, vector<16x144xf32>
    %c0_141 = arith.constant 0 : index
    %c0_142 = arith.constant 0 : index
    %338 = vector.load %arg12[%c0_141, %c0_142] : memref<144x640xf32, #tpu.memory_space<vmem>>, vector<144x640xf32>
    %cst_143 = arith.constant dense<0.000000e+00> : vector<16x640xf32>
    %339 = tpu.matmul %337, %338, %cst_143 {dimension_numbers = #tpu.dot_dimension_numbers<[1], [0], [0], [1], [0, 0, 1, 1], [], []>} : vector<16x144xf32>, vector<144x640xf32>, vector<16x640xf32> -> vector<16x640xf32>
    %cst_144 = arith.constant 0.000000e+00 : f32
    %340 = vector.broadcast %cst_144 : f32 to vector<16x640xf32>
    %341 = arith.cmpf oge, %339, %340 : vector<16x640xf32>
    %cst_145 = arith.constant 0.00999999977 : f32
    %342 = vector.broadcast %cst_145 : f32 to vector<16x640xf32>
    %343 = arith.mulf %342, %339 : vector<16x640xf32>
    %344 = arith.select %341, %339, %343 : vector<16x640xi1>, vector<16x640xf32>
    %cst_146 = arith.constant 0.000000e+00 : f32
    %345 = vector.shape_cast %2 : vector<1x640xi1> to vector<1x640xi1>
    %346 = vector.broadcast %345 : vector<1x640xi1> to vector<16x640xi1>
    %347 = vector.broadcast %cst_146 : f32 to vector<16x640xf32>
    %348 = arith.select %346, %344, %347 : vector<16x640xi1>, vector<16x640xf32>
    %c1 = arith.constant 1 : index
    %c0_147 = arith.constant 0 : index
    %c0_148 = arith.constant 0 : index
    %349 = vector.load %arg6[%c1, %c0_147, %c0_148] : memref<4x16x1xf32, #tpu.memory_space<vmem>>, vector<1x16x1xf32>
    %350 = vector.shape_cast %349 : vector<1x16x1xf32> to vector<16x1xf32>
    %c1_149 = arith.constant 1 : index
    %c0_150 = arith.constant 0 : index
    %c0_151 = arith.constant 0 : index
    %351 = vector.load %arg7[%c1_149, %c0_150, %c0_151] : memref<4x16x1xf32, #tpu.memory_space<vmem>>, vector<1x16x1xf32>
    %352 = vector.shape_cast %351 : vector<1x16x1xf32> to vector<16x1xf32>
    %cst_152 = arith.constant dense<0.000000e+00> : vector<16xf32>
    %353 = vector.multi_reduction <add>, %348, %cst_152 [1] : vector<16x640xf32> to vector<16xf32>
    %354 = vector.shape_cast %353 : vector<16xf32> to vector<16x1xf32>
    %cst_153 = arith.constant 0.000000e+00 : f32
    %355 = vector.broadcast %cst_153 : f32 to vector<16x1xf32>
    %c0_i32_154 = arith.constant 0 : i32
    %356 = vector.broadcast %c0_i32_154 : i32 to vector<16x1xi32>
    %357 = arith.cmpi sge, %3, %356 : vector<16x1xi32>
    %c2_i32_155 = arith.constant 2 : i32
    %358 = vector.broadcast %c2_i32_155 : i32 to vector<16x1xi32>
    %359 = arith.cmpi slt, %3, %358 : vector<16x1xi32>
    %360 = arith.andi %357, %359 : vector<16x1xi1>
    %cst_156 = arith.constant 0.000000e+00 : f32
    %361 = vector.broadcast %cst_156 : f32 to vector<16x1xf32>
    %362 = arith.select %360, %354, %361 : vector<16x1xi1>, vector<16x1xf32>
    %363 = vector.shape_cast %362 : vector<16x1xf32> to vector<1x16x1xf32>
    %cst_157 = arith.constant dense<0.000000e+00> : vector<1xf32>
    %364 = vector.multi_reduction <add>, %363, %cst_157 [1, 2] : vector<1x16x1xf32> to vector<1xf32>
    %365 = vector.shape_cast %364 : vector<1xf32> to vector<1x1x1xf32>
    %366 = vector.extract %365[0, 0, 0] : f32 from vector<1x1x1xf32>
    %367 = vector.broadcast %366 : f32 to vector<1x1xf32>
    %368 = vector.shape_cast %367 : vector<1x1xf32> to vector<1x1xf32>
    %369 = vector.broadcast %368 : vector<1x1xf32> to vector<16x1xf32>
    %370 = arith.select %360, %369, %355 : vector<16x1xi1>, vector<16x1xf32>
    %c2_i32_158 = arith.constant 2 : i32
    %371 = vector.broadcast %c2_i32_158 : i32 to vector<16x1xi32>
    %372 = arith.cmpi sge, %3, %371 : vector<16x1xi32>
    %c4_i32_159 = arith.constant 4 : i32
    %373 = vector.broadcast %c4_i32_159 : i32 to vector<16x1xi32>
    %374 = arith.cmpi slt, %3, %373 : vector<16x1xi32>
    %375 = arith.andi %372, %374 : vector<16x1xi1>
    %cst_160 = arith.constant 0.000000e+00 : f32
    %376 = vector.broadcast %cst_160 : f32 to vector<16x1xf32>
    %377 = arith.select %375, %354, %376 : vector<16x1xi1>, vector<16x1xf32>
    %378 = vector.shape_cast %377 : vector<16x1xf32> to vector<1x16x1xf32>
    %cst_161 = arith.constant dense<0.000000e+00> : vector<1xf32>
    %379 = vector.multi_reduction <add>, %378, %cst_161 [1, 2] : vector<1x16x1xf32> to vector<1xf32>
    %380 = vector.shape_cast %379 : vector<1xf32> to vector<1x1x1xf32>
    %381 = vector.extract %380[0, 0, 0] : f32 from vector<1x1x1xf32>
    %382 = vector.broadcast %381 : f32 to vector<1x1xf32>
    %383 = vector.shape_cast %382 : vector<1x1xf32> to vector<1x1xf32>
    %384 = vector.broadcast %383 : vector<1x1xf32> to vector<16x1xf32>
    %385 = arith.select %375, %384, %370 : vector<16x1xi1>, vector<16x1xf32>
    %c4_i32_162 = arith.constant 4 : i32
    %386 = vector.broadcast %c4_i32_162 : i32 to vector<16x1xi32>
    %387 = arith.cmpi sge, %3, %386 : vector<16x1xi32>
    %c6_i32_163 = arith.constant 6 : i32
    %388 = vector.broadcast %c6_i32_163 : i32 to vector<16x1xi32>
    %389 = arith.cmpi slt, %3, %388 : vector<16x1xi32>
    %390 = arith.andi %387, %389 : vector<16x1xi1>
    %cst_164 = arith.constant 0.000000e+00 : f32
    %391 = vector.broadcast %cst_164 : f32 to vector<16x1xf32>
    %392 = arith.select %390, %354, %391 : vector<16x1xi1>, vector<16x1xf32>
    %393 = vector.shape_cast %392 : vector<16x1xf32> to vector<1x16x1xf32>
    %cst_165 = arith.constant dense<0.000000e+00> : vector<1xf32>
    %394 = vector.multi_reduction <add>, %393, %cst_165 [1, 2] : vector<1x16x1xf32> to vector<1xf32>
    %395 = vector.shape_cast %394 : vector<1xf32> to vector<1x1x1xf32>
    %396 = vector.extract %395[0, 0, 0] : f32 from vector<1x1x1xf32>
    %397 = vector.broadcast %396 : f32 to vector<1x1xf32>
    %398 = vector.shape_cast %397 : vector<1x1xf32> to vector<1x1xf32>
    %399 = vector.broadcast %398 : vector<1x1xf32> to vector<16x1xf32>
    %400 = arith.select %390, %399, %385 : vector<16x1xi1>, vector<16x1xf32>
    %c6_i32_166 = arith.constant 6 : i32
    %401 = vector.broadcast %c6_i32_166 : i32 to vector<16x1xi32>
    %402 = arith.cmpi sge, %3, %401 : vector<16x1xi32>
    %c8_i32_167 = arith.constant 8 : i32
    %403 = vector.broadcast %c8_i32_167 : i32 to vector<16x1xi32>
    %404 = arith.cmpi slt, %3, %403 : vector<16x1xi32>
    %405 = arith.andi %402, %404 : vector<16x1xi1>
    %cst_168 = arith.constant 0.000000e+00 : f32
    %406 = vector.broadcast %cst_168 : f32 to vector<16x1xf32>
    %407 = arith.select %405, %354, %406 : vector<16x1xi1>, vector<16x1xf32>
    %408 = vector.shape_cast %407 : vector<16x1xf32> to vector<1x16x1xf32>
    %cst_169 = arith.constant dense<0.000000e+00> : vector<1xf32>
    %409 = vector.multi_reduction <add>, %408, %cst_169 [1, 2] : vector<1x16x1xf32> to vector<1xf32>
    %410 = vector.shape_cast %409 : vector<1xf32> to vector<1x1x1xf32>
    %411 = vector.extract %410[0, 0, 0] : f32 from vector<1x1x1xf32>
    %412 = vector.broadcast %411 : f32 to vector<1x1xf32>
    %413 = vector.shape_cast %412 : vector<1x1xf32> to vector<1x1xf32>
    %414 = vector.broadcast %413 : vector<1x1xf32> to vector<16x1xf32>
    %415 = arith.select %405, %414, %400 : vector<16x1xi1>, vector<16x1xf32>
    %c8_i32_170 = arith.constant 8 : i32
    %416 = vector.broadcast %c8_i32_170 : i32 to vector<16x1xi32>
    %417 = arith.cmpi sge, %3, %416 : vector<16x1xi32>
    %c10_i32_171 = arith.constant 10 : i32
    %418 = vector.broadcast %c10_i32_171 : i32 to vector<16x1xi32>
    %419 = arith.cmpi slt, %3, %418 : vector<16x1xi32>
    %420 = arith.andi %417, %419 : vector<16x1xi1>
    %cst_172 = arith.constant 0.000000e+00 : f32
    %421 = vector.broadcast %cst_172 : f32 to vector<16x1xf32>
    %422 = arith.select %420, %354, %421 : vector<16x1xi1>, vector<16x1xf32>
    %423 = vector.shape_cast %422 : vector<16x1xf32> to vector<1x16x1xf32>
    %cst_173 = arith.constant dense<0.000000e+00> : vector<1xf32>
    %424 = vector.multi_reduction <add>, %423, %cst_173 [1, 2] : vector<1x16x1xf32> to vector<1xf32>
    %425 = vector.shape_cast %424 : vector<1xf32> to vector<1x1x1xf32>
    %426 = vector.extract %425[0, 0, 0] : f32 from vector<1x1x1xf32>
    %427 = vector.broadcast %426 : f32 to vector<1x1xf32>
    %428 = vector.shape_cast %427 : vector<1x1xf32> to vector<1x1xf32>
    %429 = vector.broadcast %428 : vector<1x1xf32> to vector<16x1xf32>
    %430 = arith.select %420, %429, %415 : vector<16x1xi1>, vector<16x1xf32>
    %c10_i32_174 = arith.constant 10 : i32
    %431 = vector.broadcast %c10_i32_174 : i32 to vector<16x1xi32>
    %432 = arith.cmpi sge, %3, %431 : vector<16x1xi32>
    %c12_i32_175 = arith.constant 12 : i32
    %433 = vector.broadcast %c12_i32_175 : i32 to vector<16x1xi32>
    %434 = arith.cmpi slt, %3, %433 : vector<16x1xi32>
    %435 = arith.andi %432, %434 : vector<16x1xi1>
    %cst_176 = arith.constant 0.000000e+00 : f32
    %436 = vector.broadcast %cst_176 : f32 to vector<16x1xf32>
    %437 = arith.select %435, %354, %436 : vector<16x1xi1>, vector<16x1xf32>
    %438 = vector.shape_cast %437 : vector<16x1xf32> to vector<1x16x1xf32>
    %cst_177 = arith.constant dense<0.000000e+00> : vector<1xf32>
    %439 = vector.multi_reduction <add>, %438, %cst_177 [1, 2] : vector<1x16x1xf32> to vector<1xf32>
    %440 = vector.shape_cast %439 : vector<1xf32> to vector<1x1x1xf32>
    %441 = vector.extract %440[0, 0, 0] : f32 from vector<1x1x1xf32>
    %442 = vector.broadcast %441 : f32 to vector<1x1xf32>
    %443 = vector.shape_cast %442 : vector<1x1xf32> to vector<1x1xf32>
    %444 = vector.broadcast %443 : vector<1x1xf32> to vector<16x1xf32>
    %445 = arith.select %435, %444, %430 : vector<16x1xi1>, vector<16x1xf32>
    %c12_i32_178 = arith.constant 12 : i32
    %446 = vector.broadcast %c12_i32_178 : i32 to vector<16x1xi32>
    %447 = arith.cmpi sge, %3, %446 : vector<16x1xi32>
    %c14_i32_179 = arith.constant 14 : i32
    %448 = vector.broadcast %c14_i32_179 : i32 to vector<16x1xi32>
    %449 = arith.cmpi slt, %3, %448 : vector<16x1xi32>
    %450 = arith.andi %447, %449 : vector<16x1xi1>
    %cst_180 = arith.constant 0.000000e+00 : f32
    %451 = vector.broadcast %cst_180 : f32 to vector<16x1xf32>
    %452 = arith.select %450, %354, %451 : vector<16x1xi1>, vector<16x1xf32>
    %453 = vector.shape_cast %452 : vector<16x1xf32> to vector<1x16x1xf32>
    %cst_181 = arith.constant dense<0.000000e+00> : vector<1xf32>
    %454 = vector.multi_reduction <add>, %453, %cst_181 [1, 2] : vector<1x16x1xf32> to vector<1xf32>
    %455 = vector.shape_cast %454 : vector<1xf32> to vector<1x1x1xf32>
    %456 = vector.extract %455[0, 0, 0] : f32 from vector<1x1x1xf32>
    %457 = vector.broadcast %456 : f32 to vector<1x1xf32>
    %458 = vector.shape_cast %457 : vector<1x1xf32> to vector<1x1xf32>
    %459 = vector.broadcast %458 : vector<1x1xf32> to vector<16x1xf32>
    %460 = arith.select %450, %459, %445 : vector<16x1xi1>, vector<16x1xf32>
    %c14_i32_182 = arith.constant 14 : i32
    %461 = vector.broadcast %c14_i32_182 : i32 to vector<16x1xi32>
    %462 = arith.cmpi sge, %3, %461 : vector<16x1xi32>
    %c16_i32_183 = arith.constant 16 : i32
    %463 = vector.broadcast %c16_i32_183 : i32 to vector<16x1xi32>
    %464 = arith.cmpi slt, %3, %463 : vector<16x1xi32>
    %465 = arith.andi %462, %464 : vector<16x1xi1>
    %cst_184 = arith.constant 0.000000e+00 : f32
    %466 = vector.broadcast %cst_184 : f32 to vector<16x1xf32>
    %467 = arith.select %465, %354, %466 : vector<16x1xi1>, vector<16x1xf32>
    %468 = vector.shape_cast %467 : vector<16x1xf32> to vector<1x16x1xf32>
    %cst_185 = arith.constant dense<0.000000e+00> : vector<1xf32>
    %469 = vector.multi_reduction <add>, %468, %cst_185 [1, 2] : vector<1x16x1xf32> to vector<1xf32>
    %470 = vector.shape_cast %469 : vector<1xf32> to vector<1x1x1xf32>
    %471 = vector.extract %470[0, 0, 0] : f32 from vector<1x1x1xf32>
    %472 = vector.broadcast %471 : f32 to vector<1x1xf32>
    %473 = vector.shape_cast %472 : vector<1x1xf32> to vector<1x1xf32>
    %474 = vector.broadcast %473 : vector<1x1xf32> to vector<16x1xf32>
    %475 = arith.select %465, %474, %460 : vector<16x1xi1>, vector<16x1xf32>
    %cst_186 = arith.constant 0.001953125 : f32
    %476 = vector.broadcast %cst_186 : f32 to vector<16x1xf32>
    %477 = arith.mulf %475, %476 : vector<16x1xf32>
    %478 = vector.broadcast %477 : vector<16x1xf32> to vector<16x640xf32>
    %479 = arith.subf %348, %478 : vector<16x640xf32>
    %cst_187 = arith.constant 0.000000e+00 : f32
    %480 = vector.shape_cast %2 : vector<1x640xi1> to vector<1x640xi1>
    %481 = vector.broadcast %480 : vector<1x640xi1> to vector<16x640xi1>
    %482 = vector.broadcast %cst_187 : f32 to vector<16x640xf32>
    %483 = arith.select %481, %479, %482 : vector<16x640xi1>, vector<16x640xf32>
    %484 = arith.mulf %483, %483 : vector<16x640xf32>
    %cst_188 = arith.constant dense<0.000000e+00> : vector<16xf32>
    %485 = vector.multi_reduction <add>, %484, %cst_188 [1] : vector<16x640xf32> to vector<16xf32>
    %486 = vector.shape_cast %485 : vector<16xf32> to vector<16x1xf32>
    %cst_189 = arith.constant 0.000000e+00 : f32
    %487 = vector.broadcast %cst_189 : f32 to vector<16x1xf32>
    %c0_i32_190 = arith.constant 0 : i32
    %488 = vector.broadcast %c0_i32_190 : i32 to vector<16x1xi32>
    %489 = arith.cmpi sge, %3, %488 : vector<16x1xi32>
    %c2_i32_191 = arith.constant 2 : i32
    %490 = vector.broadcast %c2_i32_191 : i32 to vector<16x1xi32>
    %491 = arith.cmpi slt, %3, %490 : vector<16x1xi32>
    %492 = arith.andi %489, %491 : vector<16x1xi1>
    %cst_192 = arith.constant 0.000000e+00 : f32
    %493 = vector.broadcast %cst_192 : f32 to vector<16x1xf32>
    %494 = arith.select %492, %486, %493 : vector<16x1xi1>, vector<16x1xf32>
    %495 = vector.shape_cast %494 : vector<16x1xf32> to vector<1x16x1xf32>
    %cst_193 = arith.constant dense<0.000000e+00> : vector<1xf32>
    %496 = vector.multi_reduction <add>, %495, %cst_193 [1, 2] : vector<1x16x1xf32> to vector<1xf32>
    %497 = vector.shape_cast %496 : vector<1xf32> to vector<1x1x1xf32>
    %498 = vector.extract %497[0, 0, 0] : f32 from vector<1x1x1xf32>
    %499 = vector.broadcast %498 : f32 to vector<1x1xf32>
    %500 = vector.shape_cast %499 : vector<1x1xf32> to vector<1x1xf32>
    %501 = vector.broadcast %500 : vector<1x1xf32> to vector<16x1xf32>
    %502 = arith.select %492, %501, %487 : vector<16x1xi1>, vector<16x1xf32>
    %c2_i32_194 = arith.constant 2 : i32
    %503 = vector.broadcast %c2_i32_194 : i32 to vector<16x1xi32>
    %504 = arith.cmpi sge, %3, %503 : vector<16x1xi32>
    %c4_i32_195 = arith.constant 4 : i32
    %505 = vector.broadcast %c4_i32_195 : i32 to vector<16x1xi32>
    %506 = arith.cmpi slt, %3, %505 : vector<16x1xi32>
    %507 = arith.andi %504, %506 : vector<16x1xi1>
    %cst_196 = arith.constant 0.000000e+00 : f32
    %508 = vector.broadcast %cst_196 : f32 to vector<16x1xf32>
    %509 = arith.select %507, %486, %508 : vector<16x1xi1>, vector<16x1xf32>
    %510 = vector.shape_cast %509 : vector<16x1xf32> to vector<1x16x1xf32>
    %cst_197 = arith.constant dense<0.000000e+00> : vector<1xf32>
    %511 = vector.multi_reduction <add>, %510, %cst_197 [1, 2] : vector<1x16x1xf32> to vector<1xf32>
    %512 = vector.shape_cast %511 : vector<1xf32> to vector<1x1x1xf32>
    %513 = vector.extract %512[0, 0, 0] : f32 from vector<1x1x1xf32>
    %514 = vector.broadcast %513 : f32 to vector<1x1xf32>
    %515 = vector.shape_cast %514 : vector<1x1xf32> to vector<1x1xf32>
    %516 = vector.broadcast %515 : vector<1x1xf32> to vector<16x1xf32>
    %517 = arith.select %507, %516, %502 : vector<16x1xi1>, vector<16x1xf32>
    %c4_i32_198 = arith.constant 4 : i32
    %518 = vector.broadcast %c4_i32_198 : i32 to vector<16x1xi32>
    %519 = arith.cmpi sge, %3, %518 : vector<16x1xi32>
    %c6_i32_199 = arith.constant 6 : i32
    %520 = vector.broadcast %c6_i32_199 : i32 to vector<16x1xi32>
    %521 = arith.cmpi slt, %3, %520 : vector<16x1xi32>
    %522 = arith.andi %519, %521 : vector<16x1xi1>
    %cst_200 = arith.constant 0.000000e+00 : f32
    %523 = vector.broadcast %cst_200 : f32 to vector<16x1xf32>
    %524 = arith.select %522, %486, %523 : vector<16x1xi1>, vector<16x1xf32>
    %525 = vector.shape_cast %524 : vector<16x1xf32> to vector<1x16x1xf32>
    %cst_201 = arith.constant dense<0.000000e+00> : vector<1xf32>
    %526 = vector.multi_reduction <add>, %525, %cst_201 [1, 2] : vector<1x16x1xf32> to vector<1xf32>
    %527 = vector.shape_cast %526 : vector<1xf32> to vector<1x1x1xf32>
    %528 = vector.extract %527[0, 0, 0] : f32 from vector<1x1x1xf32>
    %529 = vector.broadcast %528 : f32 to vector<1x1xf32>
    %530 = vector.shape_cast %529 : vector<1x1xf32> to vector<1x1xf32>
    %531 = vector.broadcast %530 : vector<1x1xf32> to vector<16x1xf32>
    %532 = arith.select %522, %531, %517 : vector<16x1xi1>, vector<16x1xf32>
    %c6_i32_202 = arith.constant 6 : i32
    %533 = vector.broadcast %c6_i32_202 : i32 to vector<16x1xi32>
    %534 = arith.cmpi sge, %3, %533 : vector<16x1xi32>
    %c8_i32_203 = arith.constant 8 : i32
    %535 = vector.broadcast %c8_i32_203 : i32 to vector<16x1xi32>
    %536 = arith.cmpi slt, %3, %535 : vector<16x1xi32>
    %537 = arith.andi %534, %536 : vector<16x1xi1>
    %cst_204 = arith.constant 0.000000e+00 : f32
    %538 = vector.broadcast %cst_204 : f32 to vector<16x1xf32>
    %539 = arith.select %537, %486, %538 : vector<16x1xi1>, vector<16x1xf32>
    %540 = vector.shape_cast %539 : vector<16x1xf32> to vector<1x16x1xf32>
    %cst_205 = arith.constant dense<0.000000e+00> : vector<1xf32>
    %541 = vector.multi_reduction <add>, %540, %cst_205 [1, 2] : vector<1x16x1xf32> to vector<1xf32>
    %542 = vector.shape_cast %541 : vector<1xf32> to vector<1x1x1xf32>
    %543 = vector.extract %542[0, 0, 0] : f32 from vector<1x1x1xf32>
    %544 = vector.broadcast %543 : f32 to vector<1x1xf32>
    %545 = vector.shape_cast %544 : vector<1x1xf32> to vector<1x1xf32>
    %546 = vector.broadcast %545 : vector<1x1xf32> to vector<16x1xf32>
    %547 = arith.select %537, %546, %532 : vector<16x1xi1>, vector<16x1xf32>
    %c8_i32_206 = arith.constant 8 : i32
    %548 = vector.broadcast %c8_i32_206 : i32 to vector<16x1xi32>
    %549 = arith.cmpi sge, %3, %548 : vector<16x1xi32>
    %c10_i32_207 = arith.constant 10 : i32
    %550 = vector.broadcast %c10_i32_207 : i32 to vector<16x1xi32>
    %551 = arith.cmpi slt, %3, %550 : vector<16x1xi32>
    %552 = arith.andi %549, %551 : vector<16x1xi1>
    %cst_208 = arith.constant 0.000000e+00 : f32
    %553 = vector.broadcast %cst_208 : f32 to vector<16x1xf32>
    %554 = arith.select %552, %486, %553 : vector<16x1xi1>, vector<16x1xf32>
    %555 = vector.shape_cast %554 : vector<16x1xf32> to vector<1x16x1xf32>
    %cst_209 = arith.constant dense<0.000000e+00> : vector<1xf32>
    %556 = vector.multi_reduction <add>, %555, %cst_209 [1, 2] : vector<1x16x1xf32> to vector<1xf32>
    %557 = vector.shape_cast %556 : vector<1xf32> to vector<1x1x1xf32>
    %558 = vector.extract %557[0, 0, 0] : f32 from vector<1x1x1xf32>
    %559 = vector.broadcast %558 : f32 to vector<1x1xf32>
    %560 = vector.shape_cast %559 : vector<1x1xf32> to vector<1x1xf32>
    %561 = vector.broadcast %560 : vector<1x1xf32> to vector<16x1xf32>
    %562 = arith.select %552, %561, %547 : vector<16x1xi1>, vector<16x1xf32>
    %c10_i32_210 = arith.constant 10 : i32
    %563 = vector.broadcast %c10_i32_210 : i32 to vector<16x1xi32>
    %564 = arith.cmpi sge, %3, %563 : vector<16x1xi32>
    %c12_i32_211 = arith.constant 12 : i32
    %565 = vector.broadcast %c12_i32_211 : i32 to vector<16x1xi32>
    %566 = arith.cmpi slt, %3, %565 : vector<16x1xi32>
    %567 = arith.andi %564, %566 : vector<16x1xi1>
    %cst_212 = arith.constant 0.000000e+00 : f32
    %568 = vector.broadcast %cst_212 : f32 to vector<16x1xf32>
    %569 = arith.select %567, %486, %568 : vector<16x1xi1>, vector<16x1xf32>
    %570 = vector.shape_cast %569 : vector<16x1xf32> to vector<1x16x1xf32>
    %cst_213 = arith.constant dense<0.000000e+00> : vector<1xf32>
    %571 = vector.multi_reduction <add>, %570, %cst_213 [1, 2] : vector<1x16x1xf32> to vector<1xf32>
    %572 = vector.shape_cast %571 : vector<1xf32> to vector<1x1x1xf32>
    %573 = vector.extract %572[0, 0, 0] : f32 from vector<1x1x1xf32>
    %574 = vector.broadcast %573 : f32 to vector<1x1xf32>
    %575 = vector.shape_cast %574 : vector<1x1xf32> to vector<1x1xf32>
    %576 = vector.broadcast %575 : vector<1x1xf32> to vector<16x1xf32>
    %577 = arith.select %567, %576, %562 : vector<16x1xi1>, vector<16x1xf32>
    %c12_i32_214 = arith.constant 12 : i32
    %578 = vector.broadcast %c12_i32_214 : i32 to vector<16x1xi32>
    %579 = arith.cmpi sge, %3, %578 : vector<16x1xi32>
    %c14_i32_215 = arith.constant 14 : i32
    %580 = vector.broadcast %c14_i32_215 : i32 to vector<16x1xi32>
    %581 = arith.cmpi slt, %3, %580 : vector<16x1xi32>
    %582 = arith.andi %579, %581 : vector<16x1xi1>
    %cst_216 = arith.constant 0.000000e+00 : f32
    %583 = vector.broadcast %cst_216 : f32 to vector<16x1xf32>
    %584 = arith.select %582, %486, %583 : vector<16x1xi1>, vector<16x1xf32>
    %585 = vector.shape_cast %584 : vector<16x1xf32> to vector<1x16x1xf32>
    %cst_217 = arith.constant dense<0.000000e+00> : vector<1xf32>
    %586 = vector.multi_reduction <add>, %585, %cst_217 [1, 2] : vector<1x16x1xf32> to vector<1xf32>
    %587 = vector.shape_cast %586 : vector<1xf32> to vector<1x1x1xf32>
    %588 = vector.extract %587[0, 0, 0] : f32 from vector<1x1x1xf32>
    %589 = vector.broadcast %588 : f32 to vector<1x1xf32>
    %590 = vector.shape_cast %589 : vector<1x1xf32> to vector<1x1xf32>
    %591 = vector.broadcast %590 : vector<1x1xf32> to vector<16x1xf32>
    %592 = arith.select %582, %591, %577 : vector<16x1xi1>, vector<16x1xf32>
    %c14_i32_218 = arith.constant 14 : i32
    %593 = vector.broadcast %c14_i32_218 : i32 to vector<16x1xi32>
    %594 = arith.cmpi sge, %3, %593 : vector<16x1xi32>
    %c16_i32_219 = arith.constant 16 : i32
    %595 = vector.broadcast %c16_i32_219 : i32 to vector<16x1xi32>
    %596 = arith.cmpi slt, %3, %595 : vector<16x1xi32>
    %597 = arith.andi %594, %596 : vector<16x1xi1>
    %cst_220 = arith.constant 0.000000e+00 : f32
    %598 = vector.broadcast %cst_220 : f32 to vector<16x1xf32>
    %599 = arith.select %597, %486, %598 : vector<16x1xi1>, vector<16x1xf32>
    %600 = vector.shape_cast %599 : vector<16x1xf32> to vector<1x16x1xf32>
    %cst_221 = arith.constant dense<0.000000e+00> : vector<1xf32>
    %601 = vector.multi_reduction <add>, %600, %cst_221 [1, 2] : vector<1x16x1xf32> to vector<1xf32>
    %602 = vector.shape_cast %601 : vector<1xf32> to vector<1x1x1xf32>
    %603 = vector.extract %602[0, 0, 0] : f32 from vector<1x1x1xf32>
    %604 = vector.broadcast %603 : f32 to vector<1x1xf32>
    %605 = vector.shape_cast %604 : vector<1x1xf32> to vector<1x1xf32>
    %606 = vector.broadcast %605 : vector<1x1xf32> to vector<16x1xf32>
    %607 = arith.select %597, %606, %592 : vector<16x1xi1>, vector<16x1xf32>
    %cst_222 = arith.constant 0.001953125 : f32
    %608 = vector.broadcast %cst_222 : f32 to vector<16x1xf32>
    %609 = arith.mulf %607, %608 : vector<16x1xf32>
    %cst_223 = arith.constant 9.99999974E-6 : f32
    %610 = vector.broadcast %cst_223 : f32 to vector<16x1xf32>
    %611 = arith.addf %609, %610 : vector<16x1xf32>
    %612 = math.rsqrt %611 : vector<16x1xf32>
    %613 = arith.mulf %612, %350 : vector<16x1xf32>
    %614 = vector.broadcast %613 : vector<16x1xf32> to vector<16x640xf32>
    %615 = arith.mulf %483, %614 : vector<16x640xf32>
    %616 = vector.broadcast %352 : vector<16x1xf32> to vector<16x640xf32>
    %617 = arith.addf %615, %616 : vector<16x640xf32>
    %cst_224 = arith.constant 0.000000e+00 : f32
    %618 = vector.shape_cast %2 : vector<1x640xi1> to vector<1x640xi1>
    %619 = vector.broadcast %618 : vector<1x640xi1> to vector<16x640xi1>
    %620 = vector.broadcast %cst_224 : f32 to vector<16x640xf32>
    %621 = arith.select %619, %617, %620 : vector<16x640xi1>, vector<16x640xf32>
    %c0_225 = arith.constant 0 : index
    %c0_226 = arith.constant 0 : index
    %622 = vector.load %arg11[%c0_225, %c0_226] : memref<16x640xf32, #tpu.memory_space<vmem>>, vector<16x640xf32>
    tpu.vector_store %arg11[%c0_225, %c0_226], %621 {strides = array<i32>} : memref<16x640xf32, #tpu.memory_space<vmem>>, vector<16x640xf32>,
    %c0_227 = arith.constant 0 : index
    %c0_228 = arith.constant 0 : index
    %c27_229 = arith.constant 27 : index
    %623 = vector.load %arg1[%c0_227, %c0_228, %c27_229] : memref<1x8x896xf32, #tpu.memory_space<vmem>>, vector<1x8x640xf32>
    %624 = vector.shape_cast %623 : vector<1x8x640xf32> to vector<8x640xf32>
    %c0_230 = arith.constant 0 : index
    %c0_231 = arith.constant 0 : index
    %625 = vector.load %arg12[%c0_230, %c0_231] : memref<144x640xf32, #tpu.memory_space<vmem>>, vector<8x640xf32>
    tpu.vector_store %arg12[%c0_230, %c0_231], %624 {strides = array<i32>} : memref<144x640xf32, #tpu.memory_space<vmem>>, vector<8x640xf32>,
    %c0_232 = arith.constant 0 : index
    %c0_233 = arith.constant 0 : index
    %c28_234 = arith.constant 28 : index
    %626 = vector.load %arg1[%c0_232, %c0_233, %c28_234] : memref<1x8x896xf32, #tpu.memory_space<vmem>>, vector<1x8x640xf32>
    %627 = vector.shape_cast %626 : vector<1x8x640xf32> to vector<8x640xf32>
    %c8_235 = arith.constant 8 : index
    %c0_236 = arith.constant 0 : index
    %628 = vector.load %arg12[%c8_235, %c0_236] : memref<144x640xf32, #tpu.memory_space<vmem>>, vector<8x640xf32>
    tpu.vector_store %arg12[%c8_235, %c0_236], %627 {strides = array<i32>} : memref<144x640xf32, #tpu.memory_space<vmem>>, vector<8x640xf32>,
    %c0_237 = arith.constant 0 : index
    %c0_238 = arith.constant 0 : index
    %c29_239 = arith.constant 29 : index
    %629 = vector.load %arg1[%c0_237, %c0_238, %c29_239] : memref<1x8x896xf32, #tpu.memory_space<vmem>>, vector<1x8x640xf32>
    %630 = vector.shape_cast %629 : vector<1x8x640xf32> to vector<8x640xf32>
    %c16_240 = arith.constant 16 : index
    %c0_241 = arith.constant 0 : index
    %631 = vector.load %arg12[%c16_240, %c0_241] : memref<144x640xf32, #tpu.memory_space<vmem>>, vector<8x640xf32>
    tpu.vector_store %arg12[%c16_240, %c0_241], %630 {strides = array<i32>} : memref<144x640xf32, #tpu.memory_space<vmem>>, vector<8x640xf32>,
    %c0_242 = arith.constant 0 : index
    %c0_243 = arith.constant 0 : index
    %c127_244 = arith.constant 127 : index
    %632 = vector.load %arg1[%c0_242, %c0_243, %c127_244] : memref<1x8x896xf32, #tpu.memory_space<vmem>>, vector<1x8x640xf32>
    %633 = vector.shape_cast %632 : vector<1x8x640xf32> to vector<8x640xf32>
    %c24_245 = arith.constant 24 : index
    %c0_246 = arith.constant 0 : index
    %634 = vector.load %arg12[%c24_245, %c0_246] : memref<144x640xf32, #tpu.memory_space<vmem>>, vector<8x640xf32>
    tpu.vector_store %arg12[%c24_245, %c0_246], %633 {strides = array<i32>} : memref<144x640xf32, #tpu.memory_space<vmem>>, vector<8x640xf32>,
    %c0_247 = arith.constant 0 : index
    %c0_248 = arith.constant 0 : index
    %c128_249 = arith.constant 128 : index
    %635 = vector.load %arg1[%c0_247, %c0_248, %c128_249] : memref<1x8x896xf32, #tpu.memory_space<vmem>>, vector<1x8x640xf32>
    %636 = vector.shape_cast %635 : vector<1x8x640xf32> to vector<8x640xf32>
    %c32_250 = arith.constant 32 : index
    %c0_251 = arith.constant 0 : index
    %637 = vector.load %arg12[%c32_250, %c0_251] : memref<144x640xf32, #tpu.memory_space<vmem>>, vector<8x640xf32>
    tpu.vector_store %arg12[%c32_250, %c0_251], %636 {strides = array<i32>} : memref<144x640xf32, #tpu.memory_space<vmem>>, vector<8x640xf32>,
    %c0_252 = arith.constant 0 : index
    %c0_253 = arith.constant 0 : index
    %c129_254 = arith.constant 129 : index
    %638 = vector.load %arg1[%c0_252, %c0_253, %c129_254] : memref<1x8x896xf32, #tpu.memory_space<vmem>>, vector<1x8x640xf32>
    %639 = vector.shape_cast %638 : vector<1x8x640xf32> to vector<8x640xf32>
    %c40_255 = arith.constant 40 : index
    %c0_256 = arith.constant 0 : index
    %640 = vector.load %arg12[%c40_255, %c0_256] : memref<144x640xf32, #tpu.memory_space<vmem>>, vector<8x640xf32>
    tpu.vector_store %arg12[%c40_255, %c0_256], %639 {strides = array<i32>} : memref<144x640xf32, #tpu.memory_space<vmem>>, vector<8x640xf32>,
    %c0_257 = arith.constant 0 : index
    %c0_258 = arith.constant 0 : index
    %c227_259 = arith.constant 227 : index
    %641 = vector.load %arg1[%c0_257, %c0_258, %c227_259] : memref<1x8x896xf32, #tpu.memory_space<vmem>>, vector<1x8x640xf32>
    %642 = vector.shape_cast %641 : vector<1x8x640xf32> to vector<8x640xf32>
    %c48_260 = arith.constant 48 : index
    %c0_261 = arith.constant 0 : index
    %643 = vector.load %arg12[%c48_260, %c0_261] : memref<144x640xf32, #tpu.memory_space<vmem>>, vector<8x640xf32>
    tpu.vector_store %arg12[%c48_260, %c0_261], %642 {strides = array<i32>} : memref<144x640xf32, #tpu.memory_space<vmem>>, vector<8x640xf32>,
    %c0_262 = arith.constant 0 : index
    %c0_263 = arith.constant 0 : index
    %c228_264 = arith.constant 228 : index
    %644 = vector.load %arg1[%c0_262, %c0_263, %c228_264] : memref<1x8x896xf32, #tpu.memory_space<vmem>>, vector<1x8x640xf32>
    %645 = vector.shape_cast %644 : vector<1x8x640xf32> to vector<8x640xf32>
    %c56_265 = arith.constant 56 : index
    %c0_266 = arith.constant 0 : index
    %646 = vector.load %arg12[%c56_265, %c0_266] : memref<144x640xf32, #tpu.memory_space<vmem>>, vector<8x640xf32>
    tpu.vector_store %arg12[%c56_265, %c0_266], %645 {strides = array<i32>} : memref<144x640xf32, #tpu.memory_space<vmem>>, vector<8x640xf32>,
    %c0_267 = arith.constant 0 : index
    %c0_268 = arith.constant 0 : index
    %c229_269 = arith.constant 229 : index
    %647 = vector.load %arg1[%c0_267, %c0_268, %c229_269] : memref<1x8x896xf32, #tpu.memory_space<vmem>>, vector<1x8x640xf32>
    %648 = vector.shape_cast %647 : vector<1x8x640xf32> to vector<8x640xf32>
    %c64_270 = arith.constant 64 : index
    %c0_271 = arith.constant 0 : index
    %649 = vector.load %arg12[%c64_270, %c0_271] : memref<144x640xf32, #tpu.memory_space<vmem>>, vector<8x640xf32>
    tpu.vector_store %arg12[%c64_270, %c0_271], %648 {strides = array<i32>} : memref<144x640xf32, #tpu.memory_space<vmem>>, vector<8x640xf32>,
    %c0_272 = arith.constant 0 : index
    %c0_273 = arith.constant 0 : index
    %650 = vector.load %arg4[%c0_272, %c0_273] : memref<16x72xf32, #tpu.memory_space<vmem>>, vector<16x72xf32>
    %c0_274 = arith.constant 0 : index
    %c0_275 = arith.constant 0 : index
    %651 = vector.load %arg12[%c0_274, %c0_275] : memref<144x640xf32, #tpu.memory_space<vmem>>, vector<72x640xf32>
    %cst_276 = arith.constant dense<0.000000e+00> : vector<16x640xf32>
    %652 = tpu.matmul %650, %651, %cst_276 {dimension_numbers = #tpu.dot_dimension_numbers<[1], [0], [0], [1], [0, 0, 1, 1], [], []>} : vector<16x72xf32>, vector<72x640xf32>, vector<16x640xf32> -> vector<16x640xf32>
    %cst_277 = arith.constant 0.000000e+00 : f32
    %653 = vector.broadcast %cst_277 : f32 to vector<16x640xf32>
    %654 = arith.cmpf oge, %652, %653 : vector<16x640xf32>
    %cst_278 = arith.constant 0.00999999977 : f32
    %655 = vector.broadcast %cst_278 : f32 to vector<16x640xf32>
    %656 = arith.mulf %655, %652 : vector<16x640xf32>
    %657 = arith.select %654, %652, %656 : vector<16x640xi1>, vector<16x640xf32>
    %cst_279 = arith.constant 0.000000e+00 : f32
    %658 = vector.shape_cast %2 : vector<1x640xi1> to vector<1x640xi1>
    %659 = vector.broadcast %658 : vector<1x640xi1> to vector<16x640xi1>
    %660 = vector.broadcast %cst_279 : f32 to vector<16x640xf32>
    %661 = arith.select %659, %657, %660 : vector<16x640xi1>, vector<16x640xf32>
    %c2 = arith.constant 2 : index
    %c0_280 = arith.constant 0 : index
    %c0_281 = arith.constant 0 : index
    %662 = vector.load %arg6[%c2, %c0_280, %c0_281] : memref<4x16x1xf32, #tpu.memory_space<vmem>>, vector<1x16x1xf32>
    %663 = vector.shape_cast %662 : vector<1x16x1xf32> to vector<16x1xf32>
    %c2_282 = arith.constant 2 : index
    %c0_283 = arith.constant 0 : index
    %c0_284 = arith.constant 0 : index
    %664 = vector.load %arg7[%c2_282, %c0_283, %c0_284] : memref<4x16x1xf32, #tpu.memory_space<vmem>>, vector<1x16x1xf32>
    %665 = vector.shape_cast %664 : vector<1x16x1xf32> to vector<16x1xf32>
    %cst_285 = arith.constant dense<0.000000e+00> : vector<16xf32>
    %666 = vector.multi_reduction <add>, %661, %cst_285 [1] : vector<16x640xf32> to vector<16xf32>
    %667 = vector.shape_cast %666 : vector<16xf32> to vector<16x1xf32>
    %cst_286 = arith.constant 0.000000e+00 : f32
    %668 = vector.broadcast %cst_286 : f32 to vector<16x1xf32>
    %c0_i32_287 = arith.constant 0 : i32
    %669 = vector.broadcast %c0_i32_287 : i32 to vector<16x1xi32>
    %670 = arith.cmpi sge, %3, %669 : vector<16x1xi32>
    %c2_i32_288 = arith.constant 2 : i32
    %671 = vector.broadcast %c2_i32_288 : i32 to vector<16x1xi32>
    %672 = arith.cmpi slt, %3, %671 : vector<16x1xi32>
    %673 = arith.andi %670, %672 : vector<16x1xi1>
    %cst_289 = arith.constant 0.000000e+00 : f32
    %674 = vector.broadcast %cst_289 : f32 to vector<16x1xf32>
    %675 = arith.select %673, %667, %674 : vector<16x1xi1>, vector<16x1xf32>
    %676 = vector.shape_cast %675 : vector<16x1xf32> to vector<1x16x1xf32>
    %cst_290 = arith.constant dense<0.000000e+00> : vector<1xf32>
    %677 = vector.multi_reduction <add>, %676, %cst_290 [1, 2] : vector<1x16x1xf32> to vector<1xf32>
    %678 = vector.shape_cast %677 : vector<1xf32> to vector<1x1x1xf32>
    %679 = vector.extract %678[0, 0, 0] : f32 from vector<1x1x1xf32>
    %680 = vector.broadcast %679 : f32 to vector<1x1xf32>
    %681 = vector.shape_cast %680 : vector<1x1xf32> to vector<1x1xf32>
    %682 = vector.broadcast %681 : vector<1x1xf32> to vector<16x1xf32>
    %683 = arith.select %673, %682, %668 : vector<16x1xi1>, vector<16x1xf32>
    %c2_i32_291 = arith.constant 2 : i32
    %684 = vector.broadcast %c2_i32_291 : i32 to vector<16x1xi32>
    %685 = arith.cmpi sge, %3, %684 : vector<16x1xi32>
    %c4_i32_292 = arith.constant 4 : i32
    %686 = vector.broadcast %c4_i32_292 : i32 to vector<16x1xi32>
    %687 = arith.cmpi slt, %3, %686 : vector<16x1xi32>
    %688 = arith.andi %685, %687 : vector<16x1xi1>
    %cst_293 = arith.constant 0.000000e+00 : f32
    %689 = vector.broadcast %cst_293 : f32 to vector<16x1xf32>
    %690 = arith.select %688, %667, %689 : vector<16x1xi1>, vector<16x1xf32>
    %691 = vector.shape_cast %690 : vector<16x1xf32> to vector<1x16x1xf32>
    %cst_294 = arith.constant dense<0.000000e+00> : vector<1xf32>
    %692 = vector.multi_reduction <add>, %691, %cst_294 [1, 2] : vector<1x16x1xf32> to vector<1xf32>
    %693 = vector.shape_cast %692 : vector<1xf32> to vector<1x1x1xf32>
    %694 = vector.extract %693[0, 0, 0] : f32 from vector<1x1x1xf32>
    %695 = vector.broadcast %694 : f32 to vector<1x1xf32>
    %696 = vector.shape_cast %695 : vector<1x1xf32> to vector<1x1xf32>
    %697 = vector.broadcast %696 : vector<1x1xf32> to vector<16x1xf32>
    %698 = arith.select %688, %697, %683 : vector<16x1xi1>, vector<16x1xf32>
    %c4_i32_295 = arith.constant 4 : i32
    %699 = vector.broadcast %c4_i32_295 : i32 to vector<16x1xi32>
    %700 = arith.cmpi sge, %3, %699 : vector<16x1xi32>
    %c6_i32_296 = arith.constant 6 : i32
    %701 = vector.broadcast %c6_i32_296 : i32 to vector<16x1xi32>
    %702 = arith.cmpi slt, %3, %701 : vector<16x1xi32>
    %703 = arith.andi %700, %702 : vector<16x1xi1>
    %cst_297 = arith.constant 0.000000e+00 : f32
    %704 = vector.broadcast %cst_297 : f32 to vector<16x1xf32>
    %705 = arith.select %703, %667, %704 : vector<16x1xi1>, vector<16x1xf32>
    %706 = vector.shape_cast %705 : vector<16x1xf32> to vector<1x16x1xf32>
    %cst_298 = arith.constant dense<0.000000e+00> : vector<1xf32>
    %707 = vector.multi_reduction <add>, %706, %cst_298 [1, 2] : vector<1x16x1xf32> to vector<1xf32>
    %708 = vector.shape_cast %707 : vector<1xf32> to vector<1x1x1xf32>
    %709 = vector.extract %708[0, 0, 0] : f32 from vector<1x1x1xf32>
    %710 = vector.broadcast %709 : f32 to vector<1x1xf32>
    %711 = vector.shape_cast %710 : vector<1x1xf32> to vector<1x1xf32>
    %712 = vector.broadcast %711 : vector<1x1xf32> to vector<16x1xf32>
    %713 = arith.select %703, %712, %698 : vector<16x1xi1>, vector<16x1xf32>
    %c6_i32_299 = arith.constant 6 : i32
    %714 = vector.broadcast %c6_i32_299 : i32 to vector<16x1xi32>
    %715 = arith.cmpi sge, %3, %714 : vector<16x1xi32>
    %c8_i32_300 = arith.constant 8 : i32
    %716 = vector.broadcast %c8_i32_300 : i32 to vector<16x1xi32>
    %717 = arith.cmpi slt, %3, %716 : vector<16x1xi32>
    %718 = arith.andi %715, %717 : vector<16x1xi1>
    %cst_301 = arith.constant 0.000000e+00 : f32
    %719 = vector.broadcast %cst_301 : f32 to vector<16x1xf32>
    %720 = arith.select %718, %667, %719 : vector<16x1xi1>, vector<16x1xf32>
    %721 = vector.shape_cast %720 : vector<16x1xf32> to vector<1x16x1xf32>
    %cst_302 = arith.constant dense<0.000000e+00> : vector<1xf32>
    %722 = vector.multi_reduction <add>, %721, %cst_302 [1, 2] : vector<1x16x1xf32> to vector<1xf32>
    %723 = vector.shape_cast %722 : vector<1xf32> to vector<1x1x1xf32>
    %724 = vector.extract %723[0, 0, 0] : f32 from vector<1x1x1xf32>
    %725 = vector.broadcast %724 : f32 to vector<1x1xf32>
    %726 = vector.shape_cast %725 : vector<1x1xf32> to vector<1x1xf32>
    %727 = vector.broadcast %726 : vector<1x1xf32> to vector<16x1xf32>
    %728 = arith.select %718, %727, %713 : vector<16x1xi1>, vector<16x1xf32>
    %c8_i32_303 = arith.constant 8 : i32
    %729 = vector.broadcast %c8_i32_303 : i32 to vector<16x1xi32>
    %730 = arith.cmpi sge, %3, %729 : vector<16x1xi32>
    %c10_i32_304 = arith.constant 10 : i32
    %731 = vector.broadcast %c10_i32_304 : i32 to vector<16x1xi32>
    %732 = arith.cmpi slt, %3, %731 : vector<16x1xi32>
    %733 = arith.andi %730, %732 : vector<16x1xi1>
    %cst_305 = arith.constant 0.000000e+00 : f32
    %734 = vector.broadcast %cst_305 : f32 to vector<16x1xf32>
    %735 = arith.select %733, %667, %734 : vector<16x1xi1>, vector<16x1xf32>
    %736 = vector.shape_cast %735 : vector<16x1xf32> to vector<1x16x1xf32>
    %cst_306 = arith.constant dense<0.000000e+00> : vector<1xf32>
    %737 = vector.multi_reduction <add>, %736, %cst_306 [1, 2] : vector<1x16x1xf32> to vector<1xf32>
    %738 = vector.shape_cast %737 : vector<1xf32> to vector<1x1x1xf32>
    %739 = vector.extract %738[0, 0, 0] : f32 from vector<1x1x1xf32>
    %740 = vector.broadcast %739 : f32 to vector<1x1xf32>
    %741 = vector.shape_cast %740 : vector<1x1xf32> to vector<1x1xf32>
    %742 = vector.broadcast %741 : vector<1x1xf32> to vector<16x1xf32>
    %743 = arith.select %733, %742, %728 : vector<16x1xi1>, vector<16x1xf32>
    %c10_i32_307 = arith.constant 10 : i32
    %744 = vector.broadcast %c10_i32_307 : i32 to vector<16x1xi32>
    %745 = arith.cmpi sge, %3, %744 : vector<16x1xi32>
    %c12_i32_308 = arith.constant 12 : i32
    %746 = vector.broadcast %c12_i32_308 : i32 to vector<16x1xi32>
    %747 = arith.cmpi slt, %3, %746 : vector<16x1xi32>
    %748 = arith.andi %745, %747 : vector<16x1xi1>
    %cst_309 = arith.constant 0.000000e+00 : f32
    %749 = vector.broadcast %cst_309 : f32 to vector<16x1xf32>
    %750 = arith.select %748, %667, %749 : vector<16x1xi1>, vector<16x1xf32>
    %751 = vector.shape_cast %750 : vector<16x1xf32> to vector<1x16x1xf32>
    %cst_310 = arith.constant dense<0.000000e+00> : vector<1xf32>
    %752 = vector.multi_reduction <add>, %751, %cst_310 [1, 2] : vector<1x16x1xf32> to vector<1xf32>
    %753 = vector.shape_cast %752 : vector<1xf32> to vector<1x1x1xf32>
    %754 = vector.extract %753[0, 0, 0] : f32 from vector<1x1x1xf32>
    %755 = vector.broadcast %754 : f32 to vector<1x1xf32>
    %756 = vector.shape_cast %755 : vector<1x1xf32> to vector<1x1xf32>
    %757 = vector.broadcast %756 : vector<1x1xf32> to vector<16x1xf32>
    %758 = arith.select %748, %757, %743 : vector<16x1xi1>, vector<16x1xf32>
    %c12_i32_311 = arith.constant 12 : i32
    %759 = vector.broadcast %c12_i32_311 : i32 to vector<16x1xi32>
    %760 = arith.cmpi sge, %3, %759 : vector<16x1xi32>
    %c14_i32_312 = arith.constant 14 : i32
    %761 = vector.broadcast %c14_i32_312 : i32 to vector<16x1xi32>
    %762 = arith.cmpi slt, %3, %761 : vector<16x1xi32>
    %763 = arith.andi %760, %762 : vector<16x1xi1>
    %cst_313 = arith.constant 0.000000e+00 : f32
    %764 = vector.broadcast %cst_313 : f32 to vector<16x1xf32>
    %765 = arith.select %763, %667, %764 : vector<16x1xi1>, vector<16x1xf32>
    %766 = vector.shape_cast %765 : vector<16x1xf32> to vector<1x16x1xf32>
    %cst_314 = arith.constant dense<0.000000e+00> : vector<1xf32>
    %767 = vector.multi_reduction <add>, %766, %cst_314 [1, 2] : vector<1x16x1xf32> to vector<1xf32>
    %768 = vector.shape_cast %767 : vector<1xf32> to vector<1x1x1xf32>
    %769 = vector.extract %768[0, 0, 0] : f32 from vector<1x1x1xf32>
    %770 = vector.broadcast %769 : f32 to vector<1x1xf32>
    %771 = vector.shape_cast %770 : vector<1x1xf32> to vector<1x1xf32>
    %772 = vector.broadcast %771 : vector<1x1xf32> to vector<16x1xf32>
    %773 = arith.select %763, %772, %758 : vector<16x1xi1>, vector<16x1xf32>
    %c14_i32_315 = arith.constant 14 : i32
    %774 = vector.broadcast %c14_i32_315 : i32 to vector<16x1xi32>
    %775 = arith.cmpi sge, %3, %774 : vector<16x1xi32>
    %c16_i32_316 = arith.constant 16 : i32
    %776 = vector.broadcast %c16_i32_316 : i32 to vector<16x1xi32>
    %777 = arith.cmpi slt, %3, %776 : vector<16x1xi32>
    %778 = arith.andi %775, %777 : vector<16x1xi1>
    %cst_317 = arith.constant 0.000000e+00 : f32
    %779 = vector.broadcast %cst_317 : f32 to vector<16x1xf32>
    %780 = arith.select %778, %667, %779 : vector<16x1xi1>, vector<16x1xf32>
    %781 = vector.shape_cast %780 : vector<16x1xf32> to vector<1x16x1xf32>
    %cst_318 = arith.constant dense<0.000000e+00> : vector<1xf32>
    %782 = vector.multi_reduction <add>, %781, %cst_318 [1, 2] : vector<1x16x1xf32> to vector<1xf32>
    %783 = vector.shape_cast %782 : vector<1xf32> to vector<1x1x1xf32>
    %784 = vector.extract %783[0, 0, 0] : f32 from vector<1x1x1xf32>
    %785 = vector.broadcast %784 : f32 to vector<1x1xf32>
    %786 = vector.shape_cast %785 : vector<1x1xf32> to vector<1x1xf32>
    %787 = vector.broadcast %786 : vector<1x1xf32> to vector<16x1xf32>
    %788 = arith.select %778, %787, %773 : vector<16x1xi1>, vector<16x1xf32>
    %cst_319 = arith.constant 0.001953125 : f32
    %789 = vector.broadcast %cst_319 : f32 to vector<16x1xf32>
    %790 = arith.mulf %788, %789 : vector<16x1xf32>
    %791 = vector.broadcast %790 : vector<16x1xf32> to vector<16x640xf32>
    %792 = arith.subf %661, %791 : vector<16x640xf32>
    %cst_320 = arith.constant 0.000000e+00 : f32
    %793 = vector.shape_cast %2 : vector<1x640xi1> to vector<1x640xi1>
    %794 = vector.broadcast %793 : vector<1x640xi1> to vector<16x640xi1>
    %795 = vector.broadcast %cst_320 : f32 to vector<16x640xf32>
    %796 = arith.select %794, %792, %795 : vector<16x640xi1>, vector<16x640xf32>
    %797 = arith.mulf %796, %796 : vector<16x640xf32>
    %cst_321 = arith.constant dense<0.000000e+00> : vector<16xf32>
    %798 = vector.multi_reduction <add>, %797, %cst_321 [1] : vector<16x640xf32> to vector<16xf32>
    %799 = vector.shape_cast %798 : vector<16xf32> to vector<16x1xf32>
    %cst_322 = arith.constant 0.000000e+00 : f32
    %800 = vector.broadcast %cst_322 : f32 to vector<16x1xf32>
    %c0_i32_323 = arith.constant 0 : i32
    %801 = vector.broadcast %c0_i32_323 : i32 to vector<16x1xi32>
    %802 = arith.cmpi sge, %3, %801 : vector<16x1xi32>
    %c2_i32_324 = arith.constant 2 : i32
    %803 = vector.broadcast %c2_i32_324 : i32 to vector<16x1xi32>
    %804 = arith.cmpi slt, %3, %803 : vector<16x1xi32>
    %805 = arith.andi %802, %804 : vector<16x1xi1>
    %cst_325 = arith.constant 0.000000e+00 : f32
    %806 = vector.broadcast %cst_325 : f32 to vector<16x1xf32>
    %807 = arith.select %805, %799, %806 : vector<16x1xi1>, vector<16x1xf32>
    %808 = vector.shape_cast %807 : vector<16x1xf32> to vector<1x16x1xf32>
    %cst_326 = arith.constant dense<0.000000e+00> : vector<1xf32>
    %809 = vector.multi_reduction <add>, %808, %cst_326 [1, 2] : vector<1x16x1xf32> to vector<1xf32>
    %810 = vector.shape_cast %809 : vector<1xf32> to vector<1x1x1xf32>
    %811 = vector.extract %810[0, 0, 0] : f32 from vector<1x1x1xf32>
    %812 = vector.broadcast %811 : f32 to vector<1x1xf32>
    %813 = vector.shape_cast %812 : vector<1x1xf32> to vector<1x1xf32>
    %814 = vector.broadcast %813 : vector<1x1xf32> to vector<16x1xf32>
    %815 = arith.select %805, %814, %800 : vector<16x1xi1>, vector<16x1xf32>
    %c2_i32_327 = arith.constant 2 : i32
    %816 = vector.broadcast %c2_i32_327 : i32 to vector<16x1xi32>
    %817 = arith.cmpi sge, %3, %816 : vector<16x1xi32>
    %c4_i32_328 = arith.constant 4 : i32
    %818 = vector.broadcast %c4_i32_328 : i32 to vector<16x1xi32>
    %819 = arith.cmpi slt, %3, %818 : vector<16x1xi32>
    %820 = arith.andi %817, %819 : vector<16x1xi1>
    %cst_329 = arith.constant 0.000000e+00 : f32
    %821 = vector.broadcast %cst_329 : f32 to vector<16x1xf32>
    %822 = arith.select %820, %799, %821 : vector<16x1xi1>, vector<16x1xf32>
    %823 = vector.shape_cast %822 : vector<16x1xf32> to vector<1x16x1xf32>
    %cst_330 = arith.constant dense<0.000000e+00> : vector<1xf32>
    %824 = vector.multi_reduction <add>, %823, %cst_330 [1, 2] : vector<1x16x1xf32> to vector<1xf32>
    %825 = vector.shape_cast %824 : vector<1xf32> to vector<1x1x1xf32>
    %826 = vector.extract %825[0, 0, 0] : f32 from vector<1x1x1xf32>
    %827 = vector.broadcast %826 : f32 to vector<1x1xf32>
    %828 = vector.shape_cast %827 : vector<1x1xf32> to vector<1x1xf32>
    %829 = vector.broadcast %828 : vector<1x1xf32> to vector<16x1xf32>
    %830 = arith.select %820, %829, %815 : vector<16x1xi1>, vector<16x1xf32>
    %c4_i32_331 = arith.constant 4 : i32
    %831 = vector.broadcast %c4_i32_331 : i32 to vector<16x1xi32>
    %832 = arith.cmpi sge, %3, %831 : vector<16x1xi32>
    %c6_i32_332 = arith.constant 6 : i32
    %833 = vector.broadcast %c6_i32_332 : i32 to vector<16x1xi32>
    %834 = arith.cmpi slt, %3, %833 : vector<16x1xi32>
    %835 = arith.andi %832, %834 : vector<16x1xi1>
    %cst_333 = arith.constant 0.000000e+00 : f32
    %836 = vector.broadcast %cst_333 : f32 to vector<16x1xf32>
    %837 = arith.select %835, %799, %836 : vector<16x1xi1>, vector<16x1xf32>
    %838 = vector.shape_cast %837 : vector<16x1xf32> to vector<1x16x1xf32>
    %cst_334 = arith.constant dense<0.000000e+00> : vector<1xf32>
    %839 = vector.multi_reduction <add>, %838, %cst_334 [1, 2] : vector<1x16x1xf32> to vector<1xf32>
    %840 = vector.shape_cast %839 : vector<1xf32> to vector<1x1x1xf32>
    %841 = vector.extract %840[0, 0, 0] : f32 from vector<1x1x1xf32>
    %842 = vector.broadcast %841 : f32 to vector<1x1xf32>
    %843 = vector.shape_cast %842 : vector<1x1xf32> to vector<1x1xf32>
    %844 = vector.broadcast %843 : vector<1x1xf32> to vector<16x1xf32>
    %845 = arith.select %835, %844, %830 : vector<16x1xi1>, vector<16x1xf32>
    %c6_i32_335 = arith.constant 6 : i32
    %846 = vector.broadcast %c6_i32_335 : i32 to vector<16x1xi32>
    %847 = arith.cmpi sge, %3, %846 : vector<16x1xi32>
    %c8_i32_336 = arith.constant 8 : i32
    %848 = vector.broadcast %c8_i32_336 : i32 to vector<16x1xi32>
    %849 = arith.cmpi slt, %3, %848 : vector<16x1xi32>
    %850 = arith.andi %847, %849 : vector<16x1xi1>
    %cst_337 = arith.constant 0.000000e+00 : f32
    %851 = vector.broadcast %cst_337 : f32 to vector<16x1xf32>
    %852 = arith.select %850, %799, %851 : vector<16x1xi1>, vector<16x1xf32>
    %853 = vector.shape_cast %852 : vector<16x1xf32> to vector<1x16x1xf32>
    %cst_338 = arith.constant dense<0.000000e+00> : vector<1xf32>
    %854 = vector.multi_reduction <add>, %853, %cst_338 [1, 2] : vector<1x16x1xf32> to vector<1xf32>
    %855 = vector.shape_cast %854 : vector<1xf32> to vector<1x1x1xf32>
    %856 = vector.extract %855[0, 0, 0] : f32 from vector<1x1x1xf32>
    %857 = vector.broadcast %856 : f32 to vector<1x1xf32>
    %858 = vector.shape_cast %857 : vector<1x1xf32> to vector<1x1xf32>
    %859 = vector.broadcast %858 : vector<1x1xf32> to vector<16x1xf32>
    %860 = arith.select %850, %859, %845 : vector<16x1xi1>, vector<16x1xf32>
    %c8_i32_339 = arith.constant 8 : i32
    %861 = vector.broadcast %c8_i32_339 : i32 to vector<16x1xi32>
    %862 = arith.cmpi sge, %3, %861 : vector<16x1xi32>
    %c10_i32_340 = arith.constant 10 : i32
    %863 = vector.broadcast %c10_i32_340 : i32 to vector<16x1xi32>
    %864 = arith.cmpi slt, %3, %863 : vector<16x1xi32>
    %865 = arith.andi %862, %864 : vector<16x1xi1>
    %cst_341 = arith.constant 0.000000e+00 : f32
    %866 = vector.broadcast %cst_341 : f32 to vector<16x1xf32>
    %867 = arith.select %865, %799, %866 : vector<16x1xi1>, vector<16x1xf32>
    %868 = vector.shape_cast %867 : vector<16x1xf32> to vector<1x16x1xf32>
    %cst_342 = arith.constant dense<0.000000e+00> : vector<1xf32>
    %869 = vector.multi_reduction <add>, %868, %cst_342 [1, 2] : vector<1x16x1xf32> to vector<1xf32>
    %870 = vector.shape_cast %869 : vector<1xf32> to vector<1x1x1xf32>
    %871 = vector.extract %870[0, 0, 0] : f32 from vector<1x1x1xf32>
    %872 = vector.broadcast %871 : f32 to vector<1x1xf32>
    %873 = vector.shape_cast %872 : vector<1x1xf32> to vector<1x1xf32>
    %874 = vector.broadcast %873 : vector<1x1xf32> to vector<16x1xf32>
    %875 = arith.select %865, %874, %860 : vector<16x1xi1>, vector<16x1xf32>
    %c10_i32_343 = arith.constant 10 : i32
    %876 = vector.broadcast %c10_i32_343 : i32 to vector<16x1xi32>
    %877 = arith.cmpi sge, %3, %876 : vector<16x1xi32>
    %c12_i32_344 = arith.constant 12 : i32
    %878 = vector.broadcast %c12_i32_344 : i32 to vector<16x1xi32>
    %879 = arith.cmpi slt, %3, %878 : vector<16x1xi32>
    %880 = arith.andi %877, %879 : vector<16x1xi1>
    %cst_345 = arith.constant 0.000000e+00 : f32
    %881 = vector.broadcast %cst_345 : f32 to vector<16x1xf32>
    %882 = arith.select %880, %799, %881 : vector<16x1xi1>, vector<16x1xf32>
    %883 = vector.shape_cast %882 : vector<16x1xf32> to vector<1x16x1xf32>
    %cst_346 = arith.constant dense<0.000000e+00> : vector<1xf32>
    %884 = vector.multi_reduction <add>, %883, %cst_346 [1, 2] : vector<1x16x1xf32> to vector<1xf32>
    %885 = vector.shape_cast %884 : vector<1xf32> to vector<1x1x1xf32>
    %886 = vector.extract %885[0, 0, 0] : f32 from vector<1x1x1xf32>
    %887 = vector.broadcast %886 : f32 to vector<1x1xf32>
    %888 = vector.shape_cast %887 : vector<1x1xf32> to vector<1x1xf32>
    %889 = vector.broadcast %888 : vector<1x1xf32> to vector<16x1xf32>
    %890 = arith.select %880, %889, %875 : vector<16x1xi1>, vector<16x1xf32>
    %c12_i32_347 = arith.constant 12 : i32
    %891 = vector.broadcast %c12_i32_347 : i32 to vector<16x1xi32>
    %892 = arith.cmpi sge, %3, %891 : vector<16x1xi32>
    %c14_i32_348 = arith.constant 14 : i32
    %893 = vector.broadcast %c14_i32_348 : i32 to vector<16x1xi32>
    %894 = arith.cmpi slt, %3, %893 : vector<16x1xi32>
    %895 = arith.andi %892, %894 : vector<16x1xi1>
    %cst_349 = arith.constant 0.000000e+00 : f32
    %896 = vector.broadcast %cst_349 : f32 to vector<16x1xf32>
    %897 = arith.select %895, %799, %896 : vector<16x1xi1>, vector<16x1xf32>
    %898 = vector.shape_cast %897 : vector<16x1xf32> to vector<1x16x1xf32>
    %cst_350 = arith.constant dense<0.000000e+00> : vector<1xf32>
    %899 = vector.multi_reduction <add>, %898, %cst_350 [1, 2] : vector<1x16x1xf32> to vector<1xf32>
    %900 = vector.shape_cast %899 : vector<1xf32> to vector<1x1x1xf32>
    %901 = vector.extract %900[0, 0, 0] : f32 from vector<1x1x1xf32>
    %902 = vector.broadcast %901 : f32 to vector<1x1xf32>
    %903 = vector.shape_cast %902 : vector<1x1xf32> to vector<1x1xf32>
    %904 = vector.broadcast %903 : vector<1x1xf32> to vector<16x1xf32>
    %905 = arith.select %895, %904, %890 : vector<16x1xi1>, vector<16x1xf32>
    %c14_i32_351 = arith.constant 14 : i32
    %906 = vector.broadcast %c14_i32_351 : i32 to vector<16x1xi32>
    %907 = arith.cmpi sge, %3, %906 : vector<16x1xi32>
    %c16_i32_352 = arith.constant 16 : i32
    %908 = vector.broadcast %c16_i32_352 : i32 to vector<16x1xi32>
    %909 = arith.cmpi slt, %3, %908 : vector<16x1xi32>
    %910 = arith.andi %907, %909 : vector<16x1xi1>
    %cst_353 = arith.constant 0.000000e+00 : f32
    %911 = vector.broadcast %cst_353 : f32 to vector<16x1xf32>
    %912 = arith.select %910, %799, %911 : vector<16x1xi1>, vector<16x1xf32>
    %913 = vector.shape_cast %912 : vector<16x1xf32> to vector<1x16x1xf32>
    %cst_354 = arith.constant dense<0.000000e+00> : vector<1xf32>
    %914 = vector.multi_reduction <add>, %913, %cst_354 [1, 2] : vector<1x16x1xf32> to vector<1xf32>
    %915 = vector.shape_cast %914 : vector<1xf32> to vector<1x1x1xf32>
    %916 = vector.extract %915[0, 0, 0] : f32 from vector<1x1x1xf32>
    %917 = vector.broadcast %916 : f32 to vector<1x1xf32>
    %918 = vector.shape_cast %917 : vector<1x1xf32> to vector<1x1xf32>
    %919 = vector.broadcast %918 : vector<1x1xf32> to vector<16x1xf32>
    %920 = arith.select %910, %919, %905 : vector<16x1xi1>, vector<16x1xf32>
    %cst_355 = arith.constant 0.001953125 : f32
    %921 = vector.broadcast %cst_355 : f32 to vector<16x1xf32>
    %922 = arith.mulf %920, %921 : vector<16x1xf32>
    %cst_356 = arith.constant 9.99999974E-6 : f32
    %923 = vector.broadcast %cst_356 : f32 to vector<16x1xf32>
    %924 = arith.addf %922, %923 : vector<16x1xf32>
    %925 = math.rsqrt %924 : vector<16x1xf32>
    %926 = arith.mulf %925, %663 : vector<16x1xf32>
    %927 = vector.broadcast %926 : vector<16x1xf32> to vector<16x640xf32>
    %928 = arith.mulf %796, %927 : vector<16x640xf32>
    %929 = vector.broadcast %665 : vector<16x1xf32> to vector<16x640xf32>
    %930 = arith.addf %928, %929 : vector<16x640xf32>
    %cst_357 = arith.constant 0.000000e+00 : f32
    %931 = vector.shape_cast %2 : vector<1x640xi1> to vector<1x640xi1>
    %932 = vector.broadcast %931 : vector<1x640xi1> to vector<16x640xi1>
    %933 = vector.broadcast %cst_357 : f32 to vector<16x640xf32>
    %934 = arith.select %932, %930, %933 : vector<16x640xi1>, vector<16x640xf32>
    %c0_358 = arith.constant 0 : index
    %c128_359 = arith.constant 128 : index
    %935 = vector.load %arg10[%c0_358, %c128_359] : memref<16x896xf32, #tpu.memory_space<vmem>>, vector<16x640xf32>
    tpu.vector_store %arg10[%c0_358, %c128_359], %934 {strides = array<i32>} : memref<16x896xf32, #tpu.memory_space<vmem>>, vector<16x640xf32>,
    %c0_360 = arith.constant 0 : index
    %c117_361 = arith.constant 117 : index
    %936 = vector.load %arg10[%c0_360, %c117_361] : memref<16x896xf32, #tpu.memory_space<vmem>>, vector<16x640xf32>
    %c0_362 = arith.constant 0 : index
    %c0_363 = arith.constant 0 : index
    %937 = vector.load %arg12[%c0_362, %c0_363] : memref<144x640xf32, #tpu.memory_space<vmem>>, vector<16x640xf32>
    tpu.vector_store %arg12[%c0_362, %c0_363], %936 {strides = array<i32>} : memref<144x640xf32, #tpu.memory_space<vmem>>, vector<16x640xf32>,
    %c0_364 = arith.constant 0 : index
    %c118_365 = arith.constant 118 : index
    %938 = vector.load %arg10[%c0_364, %c118_365] : memref<16x896xf32, #tpu.memory_space<vmem>>, vector<16x640xf32>
    %c16_366 = arith.constant 16 : index
    %c0_367 = arith.constant 0 : index
    %939 = vector.load %arg12[%c16_366, %c0_367] : memref<144x640xf32, #tpu.memory_space<vmem>>, vector<16x640xf32>
    tpu.vector_store %arg12[%c16_366, %c0_367], %938 {strides = array<i32>} : memref<144x640xf32, #tpu.memory_space<vmem>>, vector<16x640xf32>,
    %c0_368 = arith.constant 0 : index
    %c119_369 = arith.constant 119 : index
    %940 = vector.load %arg10[%c0_368, %c119_369] : memref<16x896xf32, #tpu.memory_space<vmem>>, vector<16x640xf32>
    %c32_370 = arith.constant 32 : index
    %c0_371 = arith.constant 0 : index
    %941 = vector.load %arg12[%c32_370, %c0_371] : memref<144x640xf32, #tpu.memory_space<vmem>>, vector<16x640xf32>
    tpu.vector_store %arg12[%c32_370, %c0_371], %940 {strides = array<i32>} : memref<144x640xf32, #tpu.memory_space<vmem>>, vector<16x640xf32>,
    %c0_372 = arith.constant 0 : index
    %c127_373 = arith.constant 127 : index
    %942 = vector.load %arg10[%c0_372, %c127_373] : memref<16x896xf32, #tpu.memory_space<vmem>>, vector<16x640xf32>
    %c48_374 = arith.constant 48 : index
    %c0_375 = arith.constant 0 : index
    %943 = vector.load %arg12[%c48_374, %c0_375] : memref<144x640xf32, #tpu.memory_space<vmem>>, vector<16x640xf32>
    tpu.vector_store %arg12[%c48_374, %c0_375], %942 {strides = array<i32>} : memref<144x640xf32, #tpu.memory_space<vmem>>, vector<16x640xf32>,
    %c0_376 = arith.constant 0 : index
    %c128_377 = arith.constant 128 : index
    %944 = vector.load %arg10[%c0_376, %c128_377] : memref<16x896xf32, #tpu.memory_space<vmem>>, vector<16x640xf32>
    %c64_378 = arith.constant 64 : index
    %c0_379 = arith.constant 0 : index
    %945 = vector.load %arg12[%c64_378, %c0_379] : memref<144x640xf32, #tpu.memory_space<vmem>>, vector<16x640xf32>
    tpu.vector_store %arg12[%c64_378, %c0_379], %944 {strides = array<i32>} : memref<144x640xf32, #tpu.memory_space<vmem>>, vector<16x640xf32>,
    %c0_380 = arith.constant 0 : index
    %c129_381 = arith.constant 129 : index
    %946 = vector.load %arg10[%c0_380, %c129_381] : memref<16x896xf32, #tpu.memory_space<vmem>>, vector<16x640xf32>
    %c80_382 = arith.constant 80 : index
    %c0_383 = arith.constant 0 : index
    %947 = vector.load %arg12[%c80_382, %c0_383] : memref<144x640xf32, #tpu.memory_space<vmem>>, vector<16x640xf32>
    tpu.vector_store %arg12[%c80_382, %c0_383], %946 {strides = array<i32>} : memref<144x640xf32, #tpu.memory_space<vmem>>, vector<16x640xf32>,
    %c0_384 = arith.constant 0 : index
    %c137_385 = arith.constant 137 : index
    %948 = vector.load %arg10[%c0_384, %c137_385] : memref<16x896xf32, #tpu.memory_space<vmem>>, vector<16x640xf32>
    %c96_386 = arith.constant 96 : index
    %c0_387 = arith.constant 0 : index
    %949 = vector.load %arg12[%c96_386, %c0_387] : memref<144x640xf32, #tpu.memory_space<vmem>>, vector<16x640xf32>
    tpu.vector_store %arg12[%c96_386, %c0_387], %948 {strides = array<i32>} : memref<144x640xf32, #tpu.memory_space<vmem>>, vector<16x640xf32>,
    %c0_388 = arith.constant 0 : index
    %c138_389 = arith.constant 138 : index
    %950 = vector.load %arg10[%c0_388, %c138_389] : memref<16x896xf32, #tpu.memory_space<vmem>>, vector<16x640xf32>
    %c112_390 = arith.constant 112 : index
    %c0_391 = arith.constant 0 : index
    %951 = vector.load %arg12[%c112_390, %c0_391] : memref<144x640xf32, #tpu.memory_space<vmem>>, vector<16x640xf32>
    tpu.vector_store %arg12[%c112_390, %c0_391], %950 {strides = array<i32>} : memref<144x640xf32, #tpu.memory_space<vmem>>, vector<16x640xf32>,
    %c0_392 = arith.constant 0 : index
    %c139_393 = arith.constant 139 : index
    %952 = vector.load %arg10[%c0_392, %c139_393] : memref<16x896xf32, #tpu.memory_space<vmem>>, vector<16x640xf32>
    %c128_394 = arith.constant 128 : index
    %c0_395 = arith.constant 0 : index
    %953 = vector.load %arg12[%c128_394, %c0_395] : memref<144x640xf32, #tpu.memory_space<vmem>>, vector<16x640xf32>
    tpu.vector_store %arg12[%c128_394, %c0_395], %952 {strides = array<i32>} : memref<144x640xf32, #tpu.memory_space<vmem>>, vector<16x640xf32>,
    %c0_396 = arith.constant 0 : index
    %c0_397 = arith.constant 0 : index
    %954 = vector.load %arg5[%c0_396, %c0_397] : memref<16x144xf32, #tpu.memory_space<vmem>>, vector<16x144xf32>
    %c0_398 = arith.constant 0 : index
    %c0_399 = arith.constant 0 : index
    %955 = vector.load %arg12[%c0_398, %c0_399] : memref<144x640xf32, #tpu.memory_space<vmem>>, vector<144x640xf32>
    %cst_400 = arith.constant dense<0.000000e+00> : vector<16x640xf32>
    %956 = tpu.matmul %954, %955, %cst_400 {dimension_numbers = #tpu.dot_dimension_numbers<[1], [0], [0], [1], [0, 0, 1, 1], [], []>} : vector<16x144xf32>, vector<144x640xf32>, vector<16x640xf32> -> vector<16x640xf32>
    %cst_401 = arith.constant 0.000000e+00 : f32
    %957 = vector.broadcast %cst_401 : f32 to vector<16x640xf32>
    %958 = arith.cmpf oge, %956, %957 : vector<16x640xf32>
    %cst_402 = arith.constant 0.00999999977 : f32
    %959 = vector.broadcast %cst_402 : f32 to vector<16x640xf32>
    %960 = arith.mulf %959, %956 : vector<16x640xf32>
    %961 = arith.select %958, %956, %960 : vector<16x640xi1>, vector<16x640xf32>
    %cst_403 = arith.constant 0.000000e+00 : f32
    %962 = vector.shape_cast %2 : vector<1x640xi1> to vector<1x640xi1>
    %963 = vector.broadcast %962 : vector<1x640xi1> to vector<16x640xi1>
    %964 = vector.broadcast %cst_403 : f32 to vector<16x640xf32>
    %965 = arith.select %963, %961, %964 : vector<16x640xi1>, vector<16x640xf32>
    %c3 = arith.constant 3 : index
    %c0_404 = arith.constant 0 : index
    %c0_405 = arith.constant 0 : index
    %966 = vector.load %arg6[%c3, %c0_404, %c0_405] : memref<4x16x1xf32, #tpu.memory_space<vmem>>, vector<1x16x1xf32>
    %967 = vector.shape_cast %966 : vector<1x16x1xf32> to vector<16x1xf32>
    %c3_406 = arith.constant 3 : index
    %c0_407 = arith.constant 0 : index
    %c0_408 = arith.constant 0 : index
    %968 = vector.load %arg7[%c3_406, %c0_407, %c0_408] : memref<4x16x1xf32, #tpu.memory_space<vmem>>, vector<1x16x1xf32>
    %969 = vector.shape_cast %968 : vector<1x16x1xf32> to vector<16x1xf32>
    %cst_409 = arith.constant dense<0.000000e+00> : vector<16xf32>
    %970 = vector.multi_reduction <add>, %965, %cst_409 [1] : vector<16x640xf32> to vector<16xf32>
    %971 = vector.shape_cast %970 : vector<16xf32> to vector<16x1xf32>
    %cst_410 = arith.constant 0.000000e+00 : f32
    %972 = vector.broadcast %cst_410 : f32 to vector<16x1xf32>
    %c0_i32_411 = arith.constant 0 : i32
    %973 = vector.broadcast %c0_i32_411 : i32 to vector<16x1xi32>
    %974 = arith.cmpi sge, %3, %973 : vector<16x1xi32>
    %c2_i32_412 = arith.constant 2 : i32
    %975 = vector.broadcast %c2_i32_412 : i32 to vector<16x1xi32>
    %976 = arith.cmpi slt, %3, %975 : vector<16x1xi32>
    %977 = arith.andi %974, %976 : vector<16x1xi1>
    %cst_413 = arith.constant 0.000000e+00 : f32
    %978 = vector.broadcast %cst_413 : f32 to vector<16x1xf32>
    %979 = arith.select %977, %971, %978 : vector<16x1xi1>, vector<16x1xf32>
    %980 = vector.shape_cast %979 : vector<16x1xf32> to vector<1x16x1xf32>
    %cst_414 = arith.constant dense<0.000000e+00> : vector<1xf32>
    %981 = vector.multi_reduction <add>, %980, %cst_414 [1, 2] : vector<1x16x1xf32> to vector<1xf32>
    %982 = vector.shape_cast %981 : vector<1xf32> to vector<1x1x1xf32>
    %983 = vector.extract %982[0, 0, 0] : f32 from vector<1x1x1xf32>
    %984 = vector.broadcast %983 : f32 to vector<1x1xf32>
    %985 = vector.shape_cast %984 : vector<1x1xf32> to vector<1x1xf32>
    %986 = vector.broadcast %985 : vector<1x1xf32> to vector<16x1xf32>
    %987 = arith.select %977, %986, %972 : vector<16x1xi1>, vector<16x1xf32>
    %c2_i32_415 = arith.constant 2 : i32
    %988 = vector.broadcast %c2_i32_415 : i32 to vector<16x1xi32>
    %989 = arith.cmpi sge, %3, %988 : vector<16x1xi32>
    %c4_i32_416 = arith.constant 4 : i32
    %990 = vector.broadcast %c4_i32_416 : i32 to vector<16x1xi32>
    %991 = arith.cmpi slt, %3, %990 : vector<16x1xi32>
    %992 = arith.andi %989, %991 : vector<16x1xi1>
    %cst_417 = arith.constant 0.000000e+00 : f32
    %993 = vector.broadcast %cst_417 : f32 to vector<16x1xf32>
    %994 = arith.select %992, %971, %993 : vector<16x1xi1>, vector<16x1xf32>
    %995 = vector.shape_cast %994 : vector<16x1xf32> to vector<1x16x1xf32>
    %cst_418 = arith.constant dense<0.000000e+00> : vector<1xf32>
    %996 = vector.multi_reduction <add>, %995, %cst_418 [1, 2] : vector<1x16x1xf32> to vector<1xf32>
    %997 = vector.shape_cast %996 : vector<1xf32> to vector<1x1x1xf32>
    %998 = vector.extract %997[0, 0, 0] : f32 from vector<1x1x1xf32>
    %999 = vector.broadcast %998 : f32 to vector<1x1xf32>
    %1000 = vector.shape_cast %999 : vector<1x1xf32> to vector<1x1xf32>
    %1001 = vector.broadcast %1000 : vector<1x1xf32> to vector<16x1xf32>
    %1002 = arith.select %992, %1001, %987 : vector<16x1xi1>, vector<16x1xf32>
    %c4_i32_419 = arith.constant 4 : i32
    %1003 = vector.broadcast %c4_i32_419 : i32 to vector<16x1xi32>
    %1004 = arith.cmpi sge, %3, %1003 : vector<16x1xi32>
    %c6_i32_420 = arith.constant 6 : i32
    %1005 = vector.broadcast %c6_i32_420 : i32 to vector<16x1xi32>
    %1006 = arith.cmpi slt, %3, %1005 : vector<16x1xi32>
    %1007 = arith.andi %1004, %1006 : vector<16x1xi1>
    %cst_421 = arith.constant 0.000000e+00 : f32
    %1008 = vector.broadcast %cst_421 : f32 to vector<16x1xf32>
    %1009 = arith.select %1007, %971, %1008 : vector<16x1xi1>, vector<16x1xf32>
    %1010 = vector.shape_cast %1009 : vector<16x1xf32> to vector<1x16x1xf32>
    %cst_422 = arith.constant dense<0.000000e+00> : vector<1xf32>
    %1011 = vector.multi_reduction <add>, %1010, %cst_422 [1, 2] : vector<1x16x1xf32> to vector<1xf32>
    %1012 = vector.shape_cast %1011 : vector<1xf32> to vector<1x1x1xf32>
    %1013 = vector.extract %1012[0, 0, 0] : f32 from vector<1x1x1xf32>
    %1014 = vector.broadcast %1013 : f32 to vector<1x1xf32>
    %1015 = vector.shape_cast %1014 : vector<1x1xf32> to vector<1x1xf32>
    %1016 = vector.broadcast %1015 : vector<1x1xf32> to vector<16x1xf32>
    %1017 = arith.select %1007, %1016, %1002 : vector<16x1xi1>, vector<16x1xf32>
    %c6_i32_423 = arith.constant 6 : i32
    %1018 = vector.broadcast %c6_i32_423 : i32 to vector<16x1xi32>
    %1019 = arith.cmpi sge, %3, %1018 : vector<16x1xi32>
    %c8_i32_424 = arith.constant 8 : i32
    %1020 = vector.broadcast %c8_i32_424 : i32 to vector<16x1xi32>
    %1021 = arith.cmpi slt, %3, %1020 : vector<16x1xi32>
    %1022 = arith.andi %1019, %1021 : vector<16x1xi1>
    %cst_425 = arith.constant 0.000000e+00 : f32
    %1023 = vector.broadcast %cst_425 : f32 to vector<16x1xf32>
    %1024 = arith.select %1022, %971, %1023 : vector<16x1xi1>, vector<16x1xf32>
    %1025 = vector.shape_cast %1024 : vector<16x1xf32> to vector<1x16x1xf32>
    %cst_426 = arith.constant dense<0.000000e+00> : vector<1xf32>
    %1026 = vector.multi_reduction <add>, %1025, %cst_426 [1, 2] : vector<1x16x1xf32> to vector<1xf32>
    %1027 = vector.shape_cast %1026 : vector<1xf32> to vector<1x1x1xf32>
    %1028 = vector.extract %1027[0, 0, 0] : f32 from vector<1x1x1xf32>
    %1029 = vector.broadcast %1028 : f32 to vector<1x1xf32>
    %1030 = vector.shape_cast %1029 : vector<1x1xf32> to vector<1x1xf32>
    %1031 = vector.broadcast %1030 : vector<1x1xf32> to vector<16x1xf32>
    %1032 = arith.select %1022, %1031, %1017 : vector<16x1xi1>, vector<16x1xf32>
    %c8_i32_427 = arith.constant 8 : i32
    %1033 = vector.broadcast %c8_i32_427 : i32 to vector<16x1xi32>
    %1034 = arith.cmpi sge, %3, %1033 : vector<16x1xi32>
    %c10_i32_428 = arith.constant 10 : i32
    %1035 = vector.broadcast %c10_i32_428 : i32 to vector<16x1xi32>
    %1036 = arith.cmpi slt, %3, %1035 : vector<16x1xi32>
    %1037 = arith.andi %1034, %1036 : vector<16x1xi1>
    %cst_429 = arith.constant 0.000000e+00 : f32
    %1038 = vector.broadcast %cst_429 : f32 to vector<16x1xf32>
    %1039 = arith.select %1037, %971, %1038 : vector<16x1xi1>, vector<16x1xf32>
    %1040 = vector.shape_cast %1039 : vector<16x1xf32> to vector<1x16x1xf32>
    %cst_430 = arith.constant dense<0.000000e+00> : vector<1xf32>
    %1041 = vector.multi_reduction <add>, %1040, %cst_430 [1, 2] : vector<1x16x1xf32> to vector<1xf32>
    %1042 = vector.shape_cast %1041 : vector<1xf32> to vector<1x1x1xf32>
    %1043 = vector.extract %1042[0, 0, 0] : f32 from vector<1x1x1xf32>
    %1044 = vector.broadcast %1043 : f32 to vector<1x1xf32>
    %1045 = vector.shape_cast %1044 : vector<1x1xf32> to vector<1x1xf32>
    %1046 = vector.broadcast %1045 : vector<1x1xf32> to vector<16x1xf32>
    %1047 = arith.select %1037, %1046, %1032 : vector<16x1xi1>, vector<16x1xf32>
    %c10_i32_431 = arith.constant 10 : i32
    %1048 = vector.broadcast %c10_i32_431 : i32 to vector<16x1xi32>
    %1049 = arith.cmpi sge, %3, %1048 : vector<16x1xi32>
    %c12_i32_432 = arith.constant 12 : i32
    %1050 = vector.broadcast %c12_i32_432 : i32 to vector<16x1xi32>
    %1051 = arith.cmpi slt, %3, %1050 : vector<16x1xi32>
    %1052 = arith.andi %1049, %1051 : vector<16x1xi1>
    %cst_433 = arith.constant 0.000000e+00 : f32
    %1053 = vector.broadcast %cst_433 : f32 to vector<16x1xf32>
    %1054 = arith.select %1052, %971, %1053 : vector<16x1xi1>, vector<16x1xf32>
    %1055 = vector.shape_cast %1054 : vector<16x1xf32> to vector<1x16x1xf32>
    %cst_434 = arith.constant dense<0.000000e+00> : vector<1xf32>
    %1056 = vector.multi_reduction <add>, %1055, %cst_434 [1, 2] : vector<1x16x1xf32> to vector<1xf32>
    %1057 = vector.shape_cast %1056 : vector<1xf32> to vector<1x1x1xf32>
    %1058 = vector.extract %1057[0, 0, 0] : f32 from vector<1x1x1xf32>
    %1059 = vector.broadcast %1058 : f32 to vector<1x1xf32>
    %1060 = vector.shape_cast %1059 : vector<1x1xf32> to vector<1x1xf32>
    %1061 = vector.broadcast %1060 : vector<1x1xf32> to vector<16x1xf32>
    %1062 = arith.select %1052, %1061, %1047 : vector<16x1xi1>, vector<16x1xf32>
    %c12_i32_435 = arith.constant 12 : i32
    %1063 = vector.broadcast %c12_i32_435 : i32 to vector<16x1xi32>
    %1064 = arith.cmpi sge, %3, %1063 : vector<16x1xi32>
    %c14_i32_436 = arith.constant 14 : i32
    %1065 = vector.broadcast %c14_i32_436 : i32 to vector<16x1xi32>
    %1066 = arith.cmpi slt, %3, %1065 : vector<16x1xi32>
    %1067 = arith.andi %1064, %1066 : vector<16x1xi1>
    %cst_437 = arith.constant 0.000000e+00 : f32
    %1068 = vector.broadcast %cst_437 : f32 to vector<16x1xf32>
    %1069 = arith.select %1067, %971, %1068 : vector<16x1xi1>, vector<16x1xf32>
    %1070 = vector.shape_cast %1069 : vector<16x1xf32> to vector<1x16x1xf32>
    %cst_438 = arith.constant dense<0.000000e+00> : vector<1xf32>
    %1071 = vector.multi_reduction <add>, %1070, %cst_438 [1, 2] : vector<1x16x1xf32> to vector<1xf32>
    %1072 = vector.shape_cast %1071 : vector<1xf32> to vector<1x1x1xf32>
    %1073 = vector.extract %1072[0, 0, 0] : f32 from vector<1x1x1xf32>
    %1074 = vector.broadcast %1073 : f32 to vector<1x1xf32>
    %1075 = vector.shape_cast %1074 : vector<1x1xf32> to vector<1x1xf32>
    %1076 = vector.broadcast %1075 : vector<1x1xf32> to vector<16x1xf32>
    %1077 = arith.select %1067, %1076, %1062 : vector<16x1xi1>, vector<16x1xf32>
    %c14_i32_439 = arith.constant 14 : i32
    %1078 = vector.broadcast %c14_i32_439 : i32 to vector<16x1xi32>
    %1079 = arith.cmpi sge, %3, %1078 : vector<16x1xi32>
    %c16_i32_440 = arith.constant 16 : i32
    %1080 = vector.broadcast %c16_i32_440 : i32 to vector<16x1xi32>
    %1081 = arith.cmpi slt, %3, %1080 : vector<16x1xi32>
    %1082 = arith.andi %1079, %1081 : vector<16x1xi1>
    %cst_441 = arith.constant 0.000000e+00 : f32
    %1083 = vector.broadcast %cst_441 : f32 to vector<16x1xf32>
    %1084 = arith.select %1082, %971, %1083 : vector<16x1xi1>, vector<16x1xf32>
    %1085 = vector.shape_cast %1084 : vector<16x1xf32> to vector<1x16x1xf32>
    %cst_442 = arith.constant dense<0.000000e+00> : vector<1xf32>
    %1086 = vector.multi_reduction <add>, %1085, %cst_442 [1, 2] : vector<1x16x1xf32> to vector<1xf32>
    %1087 = vector.shape_cast %1086 : vector<1xf32> to vector<1x1x1xf32>
    %1088 = vector.extract %1087[0, 0, 0] : f32 from vector<1x1x1xf32>
    %1089 = vector.broadcast %1088 : f32 to vector<1x1xf32>
    %1090 = vector.shape_cast %1089 : vector<1x1xf32> to vector<1x1xf32>
    %1091 = vector.broadcast %1090 : vector<1x1xf32> to vector<16x1xf32>
    %1092 = arith.select %1082, %1091, %1077 : vector<16x1xi1>, vector<16x1xf32>
    %cst_443 = arith.constant 0.001953125 : f32
    %1093 = vector.broadcast %cst_443 : f32 to vector<16x1xf32>
    %1094 = arith.mulf %1092, %1093 : vector<16x1xf32>
    %1095 = vector.broadcast %1094 : vector<16x1xf32> to vector<16x640xf32>
    %1096 = arith.subf %965, %1095 : vector<16x640xf32>
    %cst_444 = arith.constant 0.000000e+00 : f32
    %1097 = vector.shape_cast %2 : vector<1x640xi1> to vector<1x640xi1>
    %1098 = vector.broadcast %1097 : vector<1x640xi1> to vector<16x640xi1>
    %1099 = vector.broadcast %cst_444 : f32 to vector<16x640xf32>
    %1100 = arith.select %1098, %1096, %1099 : vector<16x640xi1>, vector<16x640xf32>
    %1101 = arith.mulf %1100, %1100 : vector<16x640xf32>
    %cst_445 = arith.constant dense<0.000000e+00> : vector<16xf32>
    %1102 = vector.multi_reduction <add>, %1101, %cst_445 [1] : vector<16x640xf32> to vector<16xf32>
    %1103 = vector.shape_cast %1102 : vector<16xf32> to vector<16x1xf32>
    %cst_446 = arith.constant 0.000000e+00 : f32
    %1104 = vector.broadcast %cst_446 : f32 to vector<16x1xf32>
    %c0_i32_447 = arith.constant 0 : i32
    %1105 = vector.broadcast %c0_i32_447 : i32 to vector<16x1xi32>
    %1106 = arith.cmpi sge, %3, %1105 : vector<16x1xi32>
    %c2_i32_448 = arith.constant 2 : i32
    %1107 = vector.broadcast %c2_i32_448 : i32 to vector<16x1xi32>
    %1108 = arith.cmpi slt, %3, %1107 : vector<16x1xi32>
    %1109 = arith.andi %1106, %1108 : vector<16x1xi1>
    %cst_449 = arith.constant 0.000000e+00 : f32
    %1110 = vector.broadcast %cst_449 : f32 to vector<16x1xf32>
    %1111 = arith.select %1109, %1103, %1110 : vector<16x1xi1>, vector<16x1xf32>
    %1112 = vector.shape_cast %1111 : vector<16x1xf32> to vector<1x16x1xf32>
    %cst_450 = arith.constant dense<0.000000e+00> : vector<1xf32>
    %1113 = vector.multi_reduction <add>, %1112, %cst_450 [1, 2] : vector<1x16x1xf32> to vector<1xf32>
    %1114 = vector.shape_cast %1113 : vector<1xf32> to vector<1x1x1xf32>
    %1115 = vector.extract %1114[0, 0, 0] : f32 from vector<1x1x1xf32>
    %1116 = vector.broadcast %1115 : f32 to vector<1x1xf32>
    %1117 = vector.shape_cast %1116 : vector<1x1xf32> to vector<1x1xf32>
    %1118 = vector.broadcast %1117 : vector<1x1xf32> to vector<16x1xf32>
    %1119 = arith.select %1109, %1118, %1104 : vector<16x1xi1>, vector<16x1xf32>
    %c2_i32_451 = arith.constant 2 : i32
    %1120 = vector.broadcast %c2_i32_451 : i32 to vector<16x1xi32>
    %1121 = arith.cmpi sge, %3, %1120 : vector<16x1xi32>
    %c4_i32_452 = arith.constant 4 : i32
    %1122 = vector.broadcast %c4_i32_452 : i32 to vector<16x1xi32>
    %1123 = arith.cmpi slt, %3, %1122 : vector<16x1xi32>
    %1124 = arith.andi %1121, %1123 : vector<16x1xi1>
    %cst_453 = arith.constant 0.000000e+00 : f32
    %1125 = vector.broadcast %cst_453 : f32 to vector<16x1xf32>
    %1126 = arith.select %1124, %1103, %1125 : vector<16x1xi1>, vector<16x1xf32>
    %1127 = vector.shape_cast %1126 : vector<16x1xf32> to vector<1x16x1xf32>
    %cst_454 = arith.constant dense<0.000000e+00> : vector<1xf32>
    %1128 = vector.multi_reduction <add>, %1127, %cst_454 [1, 2] : vector<1x16x1xf32> to vector<1xf32>
    %1129 = vector.shape_cast %1128 : vector<1xf32> to vector<1x1x1xf32>
    %1130 = vector.extract %1129[0, 0, 0] : f32 from vector<1x1x1xf32>
    %1131 = vector.broadcast %1130 : f32 to vector<1x1xf32>
    %1132 = vector.shape_cast %1131 : vector<1x1xf32> to vector<1x1xf32>
    %1133 = vector.broadcast %1132 : vector<1x1xf32> to vector<16x1xf32>
    %1134 = arith.select %1124, %1133, %1119 : vector<16x1xi1>, vector<16x1xf32>
    %c4_i32_455 = arith.constant 4 : i32
    %1135 = vector.broadcast %c4_i32_455 : i32 to vector<16x1xi32>
    %1136 = arith.cmpi sge, %3, %1135 : vector<16x1xi32>
    %c6_i32_456 = arith.constant 6 : i32
    %1137 = vector.broadcast %c6_i32_456 : i32 to vector<16x1xi32>
    %1138 = arith.cmpi slt, %3, %1137 : vector<16x1xi32>
    %1139 = arith.andi %1136, %1138 : vector<16x1xi1>
    %cst_457 = arith.constant 0.000000e+00 : f32
    %1140 = vector.broadcast %cst_457 : f32 to vector<16x1xf32>
    %1141 = arith.select %1139, %1103, %1140 : vector<16x1xi1>, vector<16x1xf32>
    %1142 = vector.shape_cast %1141 : vector<16x1xf32> to vector<1x16x1xf32>
    %cst_458 = arith.constant dense<0.000000e+00> : vector<1xf32>
    %1143 = vector.multi_reduction <add>, %1142, %cst_458 [1, 2] : vector<1x16x1xf32> to vector<1xf32>
    %1144 = vector.shape_cast %1143 : vector<1xf32> to vector<1x1x1xf32>
    %1145 = vector.extract %1144[0, 0, 0] : f32 from vector<1x1x1xf32>
    %1146 = vector.broadcast %1145 : f32 to vector<1x1xf32>
    %1147 = vector.shape_cast %1146 : vector<1x1xf32> to vector<1x1xf32>
    %1148 = vector.broadcast %1147 : vector<1x1xf32> to vector<16x1xf32>
    %1149 = arith.select %1139, %1148, %1134 : vector<16x1xi1>, vector<16x1xf32>
    %c6_i32_459 = arith.constant 6 : i32
    %1150 = vector.broadcast %c6_i32_459 : i32 to vector<16x1xi32>
    %1151 = arith.cmpi sge, %3, %1150 : vector<16x1xi32>
    %c8_i32_460 = arith.constant 8 : i32
    %1152 = vector.broadcast %c8_i32_460 : i32 to vector<16x1xi32>
    %1153 = arith.cmpi slt, %3, %1152 : vector<16x1xi32>
    %1154 = arith.andi %1151, %1153 : vector<16x1xi1>
    %cst_461 = arith.constant 0.000000e+00 : f32
    %1155 = vector.broadcast %cst_461 : f32 to vector<16x1xf32>
    %1156 = arith.select %1154, %1103, %1155 : vector<16x1xi1>, vector<16x1xf32>
    %1157 = vector.shape_cast %1156 : vector<16x1xf32> to vector<1x16x1xf32>
    %cst_462 = arith.constant dense<0.000000e+00> : vector<1xf32>
    %1158 = vector.multi_reduction <add>, %1157, %cst_462 [1, 2] : vector<1x16x1xf32> to vector<1xf32>
    %1159 = vector.shape_cast %1158 : vector<1xf32> to vector<1x1x1xf32>
    %1160 = vector.extract %1159[0, 0, 0] : f32 from vector<1x1x1xf32>
    %1161 = vector.broadcast %1160 : f32 to vector<1x1xf32>
    %1162 = vector.shape_cast %1161 : vector<1x1xf32> to vector<1x1xf32>
    %1163 = vector.broadcast %1162 : vector<1x1xf32> to vector<16x1xf32>
    %1164 = arith.select %1154, %1163, %1149 : vector<16x1xi1>, vector<16x1xf32>
    %c8_i32_463 = arith.constant 8 : i32
    %1165 = vector.broadcast %c8_i32_463 : i32 to vector<16x1xi32>
    %1166 = arith.cmpi sge, %3, %1165 : vector<16x1xi32>
    %c10_i32_464 = arith.constant 10 : i32
    %1167 = vector.broadcast %c10_i32_464 : i32 to vector<16x1xi32>
    %1168 = arith.cmpi slt, %3, %1167 : vector<16x1xi32>
    %1169 = arith.andi %1166, %1168 : vector<16x1xi1>
    %cst_465 = arith.constant 0.000000e+00 : f32
    %1170 = vector.broadcast %cst_465 : f32 to vector<16x1xf32>
    %1171 = arith.select %1169, %1103, %1170 : vector<16x1xi1>, vector<16x1xf32>
    %1172 = vector.shape_cast %1171 : vector<16x1xf32> to vector<1x16x1xf32>
    %cst_466 = arith.constant dense<0.000000e+00> : vector<1xf32>
    %1173 = vector.multi_reduction <add>, %1172, %cst_466 [1, 2] : vector<1x16x1xf32> to vector<1xf32>
    %1174 = vector.shape_cast %1173 : vector<1xf32> to vector<1x1x1xf32>
    %1175 = vector.extract %1174[0, 0, 0] : f32 from vector<1x1x1xf32>
    %1176 = vector.broadcast %1175 : f32 to vector<1x1xf32>
    %1177 = vector.shape_cast %1176 : vector<1x1xf32> to vector<1x1xf32>
    %1178 = vector.broadcast %1177 : vector<1x1xf32> to vector<16x1xf32>
    %1179 = arith.select %1169, %1178, %1164 : vector<16x1xi1>, vector<16x1xf32>
    %c10_i32_467 = arith.constant 10 : i32
    %1180 = vector.broadcast %c10_i32_467 : i32 to vector<16x1xi32>
    %1181 = arith.cmpi sge, %3, %1180 : vector<16x1xi32>
    %c12_i32_468 = arith.constant 12 : i32
    %1182 = vector.broadcast %c12_i32_468 : i32 to vector<16x1xi32>
    %1183 = arith.cmpi slt, %3, %1182 : vector<16x1xi32>
    %1184 = arith.andi %1181, %1183 : vector<16x1xi1>
    %cst_469 = arith.constant 0.000000e+00 : f32
    %1185 = vector.broadcast %cst_469 : f32 to vector<16x1xf32>
    %1186 = arith.select %1184, %1103, %1185 : vector<16x1xi1>, vector<16x1xf32>
    %1187 = vector.shape_cast %1186 : vector<16x1xf32> to vector<1x16x1xf32>
    %cst_470 = arith.constant dense<0.000000e+00> : vector<1xf32>
    %1188 = vector.multi_reduction <add>, %1187, %cst_470 [1, 2] : vector<1x16x1xf32> to vector<1xf32>
    %1189 = vector.shape_cast %1188 : vector<1xf32> to vector<1x1x1xf32>
    %1190 = vector.extract %1189[0, 0, 0] : f32 from vector<1x1x1xf32>
    %1191 = vector.broadcast %1190 : f32 to vector<1x1xf32>
    %1192 = vector.shape_cast %1191 : vector<1x1xf32> to vector<1x1xf32>
    %1193 = vector.broadcast %1192 : vector<1x1xf32> to vector<16x1xf32>
    %1194 = arith.select %1184, %1193, %1179 : vector<16x1xi1>, vector<16x1xf32>
    %c12_i32_471 = arith.constant 12 : i32
    %1195 = vector.broadcast %c12_i32_471 : i32 to vector<16x1xi32>
    %1196 = arith.cmpi sge, %3, %1195 : vector<16x1xi32>
    %c14_i32_472 = arith.constant 14 : i32
    %1197 = vector.broadcast %c14_i32_472 : i32 to vector<16x1xi32>
    %1198 = arith.cmpi slt, %3, %1197 : vector<16x1xi32>
    %1199 = arith.andi %1196, %1198 : vector<16x1xi1>
    %cst_473 = arith.constant 0.000000e+00 : f32
    %1200 = vector.broadcast %cst_473 : f32 to vector<16x1xf32>
    %1201 = arith.select %1199, %1103, %1200 : vector<16x1xi1>, vector<16x1xf32>
    %1202 = vector.shape_cast %1201 : vector<16x1xf32> to vector<1x16x1xf32>
    %cst_474 = arith.constant dense<0.000000e+00> : vector<1xf32>
    %1203 = vector.multi_reduction <add>, %1202, %cst_474 [1, 2] : vector<1x16x1xf32> to vector<1xf32>
    %1204 = vector.shape_cast %1203 : vector<1xf32> to vector<1x1x1xf32>
    %1205 = vector.extract %1204[0, 0, 0] : f32 from vector<1x1x1xf32>
    %1206 = vector.broadcast %1205 : f32 to vector<1x1xf32>
    %1207 = vector.shape_cast %1206 : vector<1x1xf32> to vector<1x1xf32>
    %1208 = vector.broadcast %1207 : vector<1x1xf32> to vector<16x1xf32>
    %1209 = arith.select %1199, %1208, %1194 : vector<16x1xi1>, vector<16x1xf32>
    %c14_i32_475 = arith.constant 14 : i32
    %1210 = vector.broadcast %c14_i32_475 : i32 to vector<16x1xi32>
    %1211 = arith.cmpi sge, %3, %1210 : vector<16x1xi32>
    %c16_i32_476 = arith.constant 16 : i32
    %1212 = vector.broadcast %c16_i32_476 : i32 to vector<16x1xi32>
    %1213 = arith.cmpi slt, %3, %1212 : vector<16x1xi32>
    %1214 = arith.andi %1211, %1213 : vector<16x1xi1>
    %cst_477 = arith.constant 0.000000e+00 : f32
    %1215 = vector.broadcast %cst_477 : f32 to vector<16x1xf32>
    %1216 = arith.select %1214, %1103, %1215 : vector<16x1xi1>, vector<16x1xf32>
    %1217 = vector.shape_cast %1216 : vector<16x1xf32> to vector<1x16x1xf32>
    %cst_478 = arith.constant dense<0.000000e+00> : vector<1xf32>
    %1218 = vector.multi_reduction <add>, %1217, %cst_478 [1, 2] : vector<1x16x1xf32> to vector<1xf32>
    %1219 = vector.shape_cast %1218 : vector<1xf32> to vector<1x1x1xf32>
    %1220 = vector.extract %1219[0, 0, 0] : f32 from vector<1x1x1xf32>
    %1221 = vector.broadcast %1220 : f32 to vector<1x1xf32>
    %1222 = vector.shape_cast %1221 : vector<1x1xf32> to vector<1x1xf32>
    %1223 = vector.broadcast %1222 : vector<1x1xf32> to vector<16x1xf32>
    %1224 = arith.select %1214, %1223, %1209 : vector<16x1xi1>, vector<16x1xf32>
    %cst_479 = arith.constant 0.001953125 : f32
    %1225 = vector.broadcast %cst_479 : f32 to vector<16x1xf32>
    %1226 = arith.mulf %1224, %1225 : vector<16x1xf32>
    %cst_480 = arith.constant 9.99999974E-6 : f32
    %1227 = vector.broadcast %cst_480 : f32 to vector<16x1xf32>
    %1228 = arith.addf %1226, %1227 : vector<16x1xf32>
    %1229 = math.rsqrt %1228 : vector<16x1xf32>
    %1230 = arith.mulf %1229, %967 : vector<16x1xf32>
    %1231 = vector.broadcast %1230 : vector<16x1xf32> to vector<16x640xf32>
    %1232 = arith.mulf %1100, %1231 : vector<16x640xf32>
    %1233 = vector.broadcast %969 : vector<16x1xf32> to vector<16x640xf32>
    %1234 = arith.addf %1232, %1233 : vector<16x640xf32>
    %cst_481 = arith.constant 0.000000e+00 : f32
    %1235 = vector.shape_cast %2 : vector<1x640xi1> to vector<1x640xi1>
    %1236 = vector.broadcast %1235 : vector<1x640xi1> to vector<16x640xi1>
    %1237 = vector.broadcast %cst_481 : f32 to vector<16x640xf32>
    %1238 = arith.select %1236, %1234, %1237 : vector<16x640xi1>, vector<16x640xf32>
    %c0_482 = arith.constant 0 : index
    %c0_483 = arith.constant 0 : index
    %1239 = vector.load %arg11[%c0_482, %c0_483] : memref<16x640xf32, #tpu.memory_space<vmem>>, vector<16x640xf32>
    %1240 = arith.addf %1238, %1239 : vector<16x640xf32>
    %c0_484 = arith.constant 0 : index
    %c0_485 = arith.constant 0 : index
    %c0_486 = arith.constant 0 : index
    %1241 = vector.load %arg9[%c0_484, %c0_485, %c0_486] : memref<1x16x640xf32, #tpu.memory_space<vmem>>, vector<1x16x640xf32>
    %1242 = vector.shape_cast %1241 : vector<1x16x640xf32> to vector<16x640xf32>
    %1243 = vector.shape_cast %1240 : vector<16x640xf32> to vector<1x16x640xf32>
    tpu.vector_store %arg9[%c0_484, %c0_485, %c0_486], %1243 {strides = array<i32>} : memref<1x16x640xf32, #tpu.memory_space<vmem>>, vector<1x16x640xf32>,
    return
  }
  func.func @transform_0(%arg0: i32) -> (i32, i32, i32) {
    %c0_i32 = arith.constant 0 : i32
    %c0_i32_0 = arith.constant 0 : i32
    %c0_i32_1 = arith.constant 0 : i32
    return %arg0, %c0_i32, %c0_i32_0 : i32, i32, i32
  }
  func.func @transform_1(%arg0: i32) -> (i32, i32) {
    %c0_i32 = arith.constant 0 : i32
    %c0_i32_0 = arith.constant 0 : i32
    %c0_i32_1 = arith.constant 0 : i32
    return %c0_i32, %c0_i32_0 : i32, i32
  }
  func.func @transform_2(%arg0: i32) -> (i32, i32) {
    %c0_i32 = arith.constant 0 : i32
    %c0_i32_0 = arith.constant 0 : i32
    %c0_i32_1 = arith.constant 0 : i32
    return %c0_i32, %c0_i32_0 : i32, i32
  }
  func.func @transform_3(%arg0: i32) -> (i32, i32) {
    %c0_i32 = arith.constant 0 : i32
    %c0_i32_0 = arith.constant 0 : i32
    %c0_i32_1 = arith.constant 0 : i32
    return %c0_i32, %c0_i32_0 : i32, i32
  }
  func.func @transform_4(%arg0: i32) -> (i32, i32) {
    %c0_i32 = arith.constant 0 : i32
    %c0_i32_0 = arith.constant 0 : i32
    %c0_i32_1 = arith.constant 0 : i32
    return %c0_i32, %c0_i32_0 : i32, i32
  }
  func.func @transform_5(%arg0: i32) -> (i32, i32, i32) {
    %c0_i32 = arith.constant 0 : i32
    %c0_i32_0 = arith.constant 0 : i32
    %c0_i32_1 = arith.constant 0 : i32
    %c0_i32_2 = arith.constant 0 : i32
    return %c0_i32, %c0_i32_0, %c0_i32_1 : i32, i32, i32
  }
  func.func @transform_6(%arg0: i32) -> (i32, i32, i32) {
    %c0_i32 = arith.constant 0 : i32
    %c0_i32_0 = arith.constant 0 : i32
    %c0_i32_1 = arith.constant 0 : i32
    %c0_i32_2 = arith.constant 0 : i32
    return %c0_i32, %c0_i32_0, %c0_i32_1 : i32, i32, i32
  }
  func.func @transform_7(%arg0: i32) -> (i32, i32) {
    %c0_i32 = arith.constant 0 : i32
    %c0_i32_0 = arith.constant 0 : i32
    %c0_i32_1 = arith.constant 0 : i32
    return %c0_i32, %c0_i32_0 : i32, i32
  }
  func.func @transform_8(%arg0: i32) -> (i32, i32, i32) {
    %c0_i32 = arith.constant 0 : i32
    %c0_i32_0 = arith.constant 0 : i32
    %c0_i32_1 = arith.constant 0 : i32
    return %arg0, %c0_i32, %c0_i32_0 : i32, i32, i32
  }
}

</mosaic_0001>

<llo_original>
// kernel: asym_residual_block_pallas.1
$region0: #{asym_residual_block_pallas.1}
  #allocation0 [shape = 'u32[]', space=smem, size = 0x4, offset = 0x4, fixed_abs, tag = 'smem constant byte address 0x4 - core index']
  #allocation1 [shape = 'u32[144,128]{1,0:T(1,128)}', space=vmem, size = 0x12000, scoped, tag = 'internal scratch']
  #allocation2 [shape = 'f32[16,896]{1,0:T(8,128)}', space=vmem, size = 0xe000, scoped, tag = 'scratch operand']
  #allocation3 [shape = 'f32[16,640]{1,0:T(8,128)}', space=vmem, size = 0xa000, scoped, tag = 'scratch operand']
  #allocation4 [shape = 'f32[144,640]{1,0:T(8,128)}', space=vmem, size = 0x5a000, scoped, tag = 'scratch operand']
  %s0 = inlined_call_operand.vmem [shape: f32[2,8,896], index: 0, kind: input, shape index: {}]
  %s1 = inlined_call_operand.vmem [shape: f32[16,72], index: 1, kind: input, shape index: {}]
  %s2 = inlined_call_operand.vmem [shape: f32[16,144], index: 2, kind: input, shape index: {}]
  %s3 = inlined_call_operand.vmem [shape: f32[16,72], index: 3, kind: input, shape index: {}]
  %s4 = inlined_call_operand.vmem [shape: f32[16,144], index: 4, kind: input, shape index: {}]
  %s5 = inlined_call_operand.vmem [shape: f32[4,16,1], index: 5, kind: input, shape index: {}]
  %s6 = inlined_call_operand.vmem [shape: f32[4,16,1], index: 6, kind: input, shape index: {}]
  %s7 = inlined_call_operand.vmem [shape: f32[1,640], index: 7, kind: input, shape index: {}]
  %s8 = inlined_call_operand.vmem [shape: f32[2,16,640], index: 8, kind: output, shape index: {}]
  %s9 = sld [smem:[#allocation0]]
  $region65: #{asym_residual_block_pallas.1} parent=0
    _
  %s11 = ssub.s32 1, %s9
  %s12 = scalar_select 0, %s11, %s9
  loop: start=0, step=1, limit=4
  $region2: #{asym_residual_block_pallas.1} parent=0 // loop_pre_header
    _
  $region3: #{asym_residual_block_pallas.1} parent=0 // loop_header
    %s14 = sphi 0, %s18
    %p15 = scmp.ge.s32.totalorder %s14, 4
    %s24 = sphi 0, %s26
    %s27 = sphi 0, %s24
    %s28 = sphi 0, %s27
    %s44 = sphi 0, %s28
    %s48 = sphi 0, %s48
    %s50 = sphi 0, %s48
    %s51 = sphi 0, %s50
    %s65 = sphi 0, %s51
    %s69 = sphi 0, %s69
    %s71 = sphi 0, %s69
    %s72 = sphi 0, %s71
    %s86 = sphi 0, %s72
    %s90 = sphi 0, %s90
    %s92 = sphi 0, %s90
    %s93 = sphi 0, %s92
    %s107 = sphi 0, %s93
    %s111 = sphi 0, %s111
    %s113 = sphi 0, %s111
    %s114 = sphi 0, %s113
    %s128 = sphi 0, %s114
    %s132 = sphi 0, %s132
    %s134 = sphi 0, %s132
    %s135 = sphi 0, %s134
    %s149 = sphi 0, %s135
    %s153 = sphi 0, %s153
    %s155 = sphi 0, %s153
    %s156 = sphi 0, %s155
    %s170 = sphi 0, %s156
    %s174 = sphi 0, %s174
    %s176 = sphi 0, %s174
    %s177 = sphi 0, %s176
    %s191 = sphi 0, %s177
    %s197 = sphi 0, %s199
    %s200 = sphi 0, %s197
    %s201 = sphi 0, %s200
    %s217 = sphi 0, %s201
  $region4: #{asym_residual_block_pallas.1} parent=0 // loop_header_branch
    %17 = sbr.rel (%p15) target = $region8
  $region5: #{asym_residual_block_pallas.1} parent=0 // loop_body
    %s19 = ssub.s32 %s14, 1
    %s20 = ssub.s32 %s14, 2
    %s21 = sadd.s32 %s14, 1
    %s22 = ssub.s32 %s14, %s21
    %p23 = scmp.eq.s32.totalorder %s22, 0
    %s25 = sadd.s32 %s24, 1
    %s26 = scalar_select %p23, %s24, %s25
    %p29 = pneg %p23
    %p30 = scmp.eq.s32.totalorder %s14, 1
    %p31 = por %p29, %p30
    %p32 = scmp.ne.s32.totalorder %s24, %s27
    %p33 = scmp.eq.s32.totalorder %s14, 0
    %p34 = por %p32, %p33
    %p35 = scmp.ne.s32.totalorder %s24, %s27
    %p36 = scmp.eq.s32.totalorder %s19, 1
    %p37 = por %p35, %p36
    %p38 = scmp.ne.s32.totalorder %s27, %s28
    %p39 = scmp.eq.s32.totalorder %s19, 0
    %p40 = por %p38, %p39
    %p41 = scmp.ne.s32.totalorder %s27, %s28
    %p42 = scmp.eq.s32.totalorder %s20, 1
    %p43 = por %p41, %p42
    %p45 = scmp.ne.s32.totalorder %s28, %s44
    %p46 = scmp.eq.s32.totalorder %s20, 0
    %p47 = por %p45, %p46
    %s49 = sadd.s32 %s48, 1
    %p52 = scmp.eq.s32.totalorder %s14, 1
    %p53 = scmp.ne.s32.totalorder %s48, %s50
    %p54 = scmp.eq.s32.totalorder %s14, 0
    %p55 = por %p53, %p54
    %p56 = scmp.ne.s32.totalorder %s48, %s50
    %p57 = scmp.eq.s32.totalorder %s19, 1
    %p58 = por %p56, %p57
    %p59 = scmp.ne.s32.totalorder %s50, %s51
    %p60 = scmp.eq.s32.totalorder %s19, 0
    %p61 = por %p59, %p60
    %p62 = scmp.ne.s32.totalorder %s50, %s51
    %p63 = scmp.eq.s32.totalorder %s20, 1
    %p64 = por %p62, %p63
    %p66 = scmp.ne.s32.totalorder %s51, %s65
    %p67 = scmp.eq.s32.totalorder %s20, 0
    %p68 = por %p66, %p67
    %s70 = sadd.s32 %s69, 1
    %p73 = scmp.eq.s32.totalorder %s14, 1
    %p74 = scmp.ne.s32.totalorder %s69, %s71
    %p75 = scmp.eq.s32.totalorder %s14, 0
    %p76 = por %p74, %p75
    %p77 = scmp.ne.s32.totalorder %s69, %s71
    %p78 = scmp.eq.s32.totalorder %s19, 1
    %p79 = por %p77, %p78
    %p80 = scmp.ne.s32.totalorder %s71, %s72
    %p81 = scmp.eq.s32.totalorder %s19, 0
    %p82 = por %p80, %p81
    %p83 = scmp.ne.s32.totalorder %s71, %s72
    %p84 = scmp.eq.s32.totalorder %s20, 1
    %p85 = por %p83, %p84
    %p87 = scmp.ne.s32.totalorder %s72, %s86
    %p88 = scmp.eq.s32.totalorder %s20, 0
    %p89 = por %p87, %p88
    %s91 = sadd.s32 %s90, 1
    %p94 = scmp.eq.s32.totalorder %s14, 1
    %p95 = scmp.ne.s32.totalorder %s90, %s92
    %p96 = scmp.eq.s32.totalorder %s14, 0
    %p97 = por %p95, %p96
    %p98 = scmp.ne.s32.totalorder %s90, %s92
    %p99 = scmp.eq.s32.totalorder %s19, 1
    %p100 = por %p98, %p99
    %p101 = scmp.ne.s32.totalorder %s92, %s93
    %p102 = scmp.eq.s32.totalorder %s19, 0
    %p103 = por %p101, %p102
    %p104 = scmp.ne.s32.totalorder %s92, %s93
    %p105 = scmp.eq.s32.totalorder %s20, 1
    %p106 = por %p104, %p105
    %p108 = scmp.ne.s32.totalorder %s93, %s107
    %p109 = scmp.eq.s32.totalorder %s20, 0
    %p110 = por %p108, %p109
    %s112 = sadd.s32 %s111, 1
    %p115 = scmp.eq.s32.totalorder %s14, 1
    %p116 = scmp.ne.s32.totalorder %s111, %s113
    %p117 = scmp.eq.s32.totalorder %s14, 0
    %p118 = por %p116, %p117
    %p119 = scmp.ne.s32.totalorder %s111, %s113
    %p120 = scmp.eq.s32.totalorder %s19, 1
    %p121 = por %p119, %p120
    %p122 = scmp.ne.s32.totalorder %s113, %s114
    %p123 = scmp.eq.s32.totalorder %s19, 0
    %p124 = por %p122, %p123
    %p125 = scmp.ne.s32.totalorder %s113, %s114
    %p126 = scmp.eq.s32.totalorder %s20, 1
    %p127 = por %p125, %p126
    %p129 = scmp.ne.s32.totalorder %s114, %s128
    %p130 = scmp.eq.s32.totalorder %s20, 0
    %p131 = por %p129, %p130
    %s133 = sadd.s32 %s132, 1
    %p136 = scmp.eq.s32.totalorder %s14, 1
    %p137 = scmp.ne.s32.totalorder %s132, %s134
    %p138 = scmp.eq.s32.totalorder %s14, 0
    %p139 = por %p137, %p138
    %p140 = scmp.ne.s32.totalorder %s132, %s134
    %p141 = scmp.eq.s32.totalorder %s19, 1
    %p142 = por %p140, %p141
    %p143 = scmp.ne.s32.totalorder %s134, %s135
    %p144 = scmp.eq.s32.totalorder %s19, 0
    %p145 = por %p143, %p144
    %p146 = scmp.ne.s32.totalorder %s134, %s135
    %p147 = scmp.eq.s32.totalorder %s20, 1
    %p148 = por %p146, %p147
    %p150 = scmp.ne.s32.totalorder %s135, %s149
    %p151 = scmp.eq.s32.totalorder %s20, 0
    %p152 = por %p150, %p151
    %s154 = sadd.s32 %s153, 1
    %p157 = scmp.eq.s32.totalorder %s14, 1
    %p158 = scmp.ne.s32.totalorder %s153, %s155
    %p159 = scmp.eq.s32.totalorder %s14, 0
    %p160 = por %p158, %p159
    %p161 = scmp.ne.s32.totalorder %s153, %s155
    %p162 = scmp.eq.s32.totalorder %s19, 1
    %p163 = por %p161, %p162
    %p164 = scmp.ne.s32.totalorder %s155, %s156
    %p165 = scmp.eq.s32.totalorder %s19, 0
    %p166 = por %p164, %p165
    %p167 = scmp.ne.s32.totalorder %s155, %s156
    %p168 = scmp.eq.s32.totalorder %s20, 1
    %p169 = por %p167, %p168
    %p171 = scmp.ne.s32.totalorder %s156, %s170
    %p172 = scmp.eq.s32.totalorder %s20, 0
    %p173 = por %p171, %p172
    %s175 = sadd.s32 %s174, 1
    %p178 = scmp.eq.s32.totalorder %s14, 1
    %p179 = scmp.ne.s32.totalorder %s174, %s176
    %p180 = scmp.eq.s32.totalorder %s14, 0
    %p181 = por %p179, %p180
    %p182 = scmp.ne.s32.totalorder %s174, %s176
    %p183 = scmp.eq.s32.totalorder %s19, 1
    %p184 = por %p182, %p183
    %p185 = scmp.ne.s32.totalorder %s176, %s177
    %p186 = scmp.eq.s32.totalorder %s19, 0
    %p187 = por %p185, %p186
    %p188 = scmp.ne.s32.totalorder %s176, %s177
    %p189 = scmp.eq.s32.totalorder %s20, 1
    %p190 = por %p188, %p189
    %p192 = scmp.ne.s32.totalorder %s177, %s191
    %p193 = scmp.eq.s32.totalorder %s20, 0
    %p194 = por %p192, %p193
    %s195 = ssub.s32 %s14, %s21
    %p196 = scmp.eq.s32.totalorder %s195, 0
    %s198 = sadd.s32 %s197, 1
    %s199 = scalar_select %p196, %s197, %s198
    %p202 = pneg %p196
    %p203 = scmp.eq.s32.totalorder %s14, 1
    %p204 = por %p202, %p203
    %p205 = scmp.ne.s32.totalorder %s197, %s200
    %p206 = scmp.eq.s32.totalorder %s14, 0
    %p207 = por %p205, %p206
    %p208 = scmp.ne.s32.totalorder %s197, %s200
    %p209 = scmp.eq.s32.totalorder %s19, 1
    %p210 = por %p208, %p209
    %p211 = scmp.ne.s32.totalorder %s200, %s201
    %p212 = scmp.eq.s32.totalorder %s19, 0
    %p213 = por %p211, %p212
    %p214 = scmp.ne.s32.totalorder %s200, %s201
    %p215 = scmp.eq.s32.totalorder %s20, 1
    %p216 = por %p214, %p215
    %p218 = scmp.ne.s32.totalorder %s201, %s217
    %p219 = scmp.eq.s32.totalorder %s20, 0
    %p220 = por %p218, %p219
    %p221 = scmp.le.s32.totalorder 1, %s14
    %p222 = scmp.lt.s32.totalorder %s14, 3
    %p223 = pnand %p221, %p222
    %p224 = pneg %p223
    // Predicated region
    $region9: #{asym_residual_block_pallas.1} parent=5 // pred_check
      _
    $region10: #{asym_residual_block_pallas.1} parent=5 // pred_check_branch
      %226 = sbr.rel (%p223) target = $region12
    $region11: #{asym_residual_block_pallas.1} parent=5 // pred_region
      %s227 = ssub.s32 %s14, 1
      // Predicated region
      $region13: #{asym_residual_block_pallas.1} parent=11 // pred_check
        %p228 = pneg %p61
      $region14: #{asym_residual_block_pallas.1} parent=11 // pred_check_branch
        %230 = sbr.rel (%p228) target = $region16
      $region15: #{asym_residual_block_pallas.1} parent=11 // pred_region
        _
      $region16: #{asym_residual_block_pallas.1} parent=11 // pred_fallthru
        _
      // Predicated region
      $region17: #{asym_residual_block_pallas.1} parent=11 // pred_check
        %p231 = pneg %p82
      $region18: #{asym_residual_block_pallas.1} parent=11 // pred_check_branch
        %233 = sbr.rel (%p231) target = $region20
      $region19: #{asym_residual_block_pallas.1} parent=11 // pred_region
        _
      $region20: #{asym_residual_block_pallas.1} parent=11 // pred_fallthru
        _
      // Predicated region
      $region21: #{asym_residual_block_pallas.1} parent=11 // pred_check
        %p234 = pneg %p103
      $region22: #{asym_residual_block_pallas.1} parent=11 // pred_check_branch
        %236 = sbr.rel (%p234) target = $region24
      $region23: #{asym_residual_block_pallas.1} parent=11 // pred_region
        _
      $region24: #{asym_residual_block_pallas.1} parent=11 // pred_fallthru
        _
      // Predicated region
      $region25: #{asym_residual_block_pallas.1} parent=11 // pred_check
        %p237 = pneg %p124
      $region26: #{asym_residual_block_pallas.1} parent=11 // pred_check_branch
        %239 = sbr.rel (%p237) target = $region28
      $region27: #{asym_residual_block_pallas.1} parent=11 // pred_region
        _
      $region28: #{asym_residual_block_pallas.1} parent=11 // pred_fallthru
        _
      // Predicated region
      $region29: #{asym_residual_block_pallas.1} parent=11 // pred_check
        %p240 = pneg %p145
      $region30: #{asym_residual_block_pallas.1} parent=11 // pred_check_branch
        %242 = sbr.rel (%p240) target = $region32
      $region31: #{asym_residual_block_pallas.1} parent=11 // pred_region
        _
      $region32: #{asym_residual_block_pallas.1} parent=11 // pred_fallthru
        _
      // Predicated region
      $region33: #{asym_residual_block_pallas.1} parent=11 // pred_check
        %p243 = pneg %p166
      $region34: #{asym_residual_block_pallas.1} parent=11 // pred_check_branch
        %245 = sbr.rel (%p243) target = $region36
      $region35: #{asym_residual_block_pallas.1} parent=11 // pred_region
        _
      $region36: #{asym_residual_block_pallas.1} parent=11 // pred_fallthru
        _
      // Predicated region
      $region37: #{asym_residual_block_pallas.1} parent=11 // pred_check
        %p246 = pneg %p187
      $region38: #{asym_residual_block_pallas.1} parent=11 // pred_check_branch
        %248 = sbr.rel (%p246) target = $region40
      $region39: #{asym_residual_block_pallas.1} parent=11 // pred_region
        _
      $region40: #{asym_residual_block_pallas.1} parent=11 // pred_fallthru
        _
    $region12: #{asym_residual_block_pallas.1} parent=5 // pred_fallthru
      _
    %p249 = scmp.lt.s32.totalorder %s14, 2
    // Predicated region
    $region41: #{asym_residual_block_pallas.1} parent=5 // pred_check
      %p250 = pneg %p249
    $region42: #{asym_residual_block_pallas.1} parent=5 // pred_check_branch
      %252 = sbr.rel (%p250) target = $region44
    $region43: #{asym_residual_block_pallas.1} parent=5 // pred_region
      // Predicated region
      $region45: #{asym_residual_block_pallas.1} parent=43 // pred_check
        %p253 = pneg %p34
      $region46: #{asym_residual_block_pallas.1} parent=43 // pred_check_branch
        %255 = sbr.rel (%p253) target = $region48
      $region47: #{asym_residual_block_pallas.1} parent=43 // pred_region
        %p256 = scmp.lt.s32.totalorder %s14, 1
        %s257 = scalar_select %p256, %s14, 1
        %s258 = smul.addr %s257, 7
        %s259 = smul.addr %s258, 8
        %s260 = scalar_lea.vmem %s0, %s259
      $region48: #{asym_residual_block_pallas.1} parent=43 // pred_fallthru
        _
    $region44: #{asym_residual_block_pallas.1} parent=5 // pred_fallthru
      _
    %p261 = scmp.le.s32.totalorder 1, %s14
    %p262 = scmp.lt.s32.totalorder %s14, 3
    %p263 = pnand %p261, %p262
    %p264 = pneg %p263
    // Predicated region
    $region49: #{asym_residual_block_pallas.1} parent=5 // pred_check
      _
    $region50: #{asym_residual_block_pallas.1} parent=5 // pred_check_branch
      %266 = sbr.rel (%p263) target = $region52
    $region51: #{asym_residual_block_pallas.1} parent=5 // pred_region
      %s267 = ssub.s32 %s14, 1
      %p268 = scmp.lt.s32.totalorder %s19, 1
      %s269 = scalar_select %p268, %s19, 1
      %s270 = smul.addr %s269, 7
      %s271 = smul.addr %s270, 8
      %s272 = scalar_lea.vmem %s0, %s271
      %p273 = pneg %p40
      %p274 = pneg %p37
      %p275 = pneg %p61
      %p276 = pneg %p58
      %p277 = pneg %p82
      %p278 = pneg %p79
      %p279 = pneg %p103
      %p280 = pneg %p100
      %p281 = pneg %p124
      %p282 = pneg %p121
      %p283 = pneg %p145
      %p284 = pneg %p142
      %p285 = pneg %p166
      %p286 = pneg %p163
      %p287 = pneg %p187
      %p288 = pneg %p184
      %p289 = pneg %p213
      %p290 = pneg %p210
      %p291 = scmp.lt.s32.totalorder %s19, 1
      %s292 = scalar_select %p291, %s19, 1
      %s293 = smul.addr %s292, 10
      %s294 = smul.addr %s293, 8
      %s295 = scalar_lea.vmem %s8, %s294
      %p296 = scmp.lt.s32.totalorder %s19, 1
      %s297 = scalar_select %p296, %s19, 1
      %s298 = smul.addr %s297, 7
      %s299 = smul.addr %s298, 8
      %s300 = scalar_lea.vmem %s0, %s299
      %p301 = scmp.lt.s32.totalorder %s19, 1
      %s302 = scalar_select %p301, %s19, 1
      %s303 = smul.addr %s302, 10
      %s304 = smul.addr %s303, 8
      %s305 = scalar_lea.vmem %s8, %s304
      %v306 = vld [vmem:[%s7] sm:$0x1f]
      %vm307 = vcmp.ne.f32.partialorder %v306, 0.0
      %v308 = vlaneseq
      %v309 = vshrl.u32 %v308, 7
      %v310 = vadd.s32 %v309, 8
      %311 = vst [vmem:[#allocation2] sm:$0xff] 0.0
      %312 = vst [vmem:[#allocation2 + $0x8] sm:$0xff] 0.0
      %313 = vst [vmem:[#allocation2 + $0x10] sm:$0xff] 0.0
      %314 = vst [vmem:[#allocation2 + $0x18] sm:$0xff] 0.0
      %315 = vst [vmem:[#allocation2 + $0x20] sm:$0xff] 0.0
      %316 = vst [vmem:[#allocation2 + $0x28] sm:$0xff] 0.0
      %317 = vst [vmem:[#allocation2 + $0x30] sm:$0xff] 0.0
      %318 = vst [vmem:[#allocation2 + $0x38] sm:$0xff] 0.0
      %319 = vst [vmem:[#allocation2 + $0x40] sm:$0xff] 0.0
      %320 = vst [vmem:[#allocation2 + $0x48] sm:$0xff] 0.0
      %321 = vst [vmem:[#allocation2 + $0x50] sm:$0xff] 0.0
      %322 = vst [vmem:[#allocation2 + $0x58] sm:$0xff] 0.0
      %323 = vst [vmem:[#allocation2 + $0x60] sm:$0xff] 0.0
      %324 = vst [vmem:[#allocation2 + $0x68] sm:$0xff] 0.0
      %v325 = vld [vmem:[%s300] sm:$0xff]
      %v326 = vld [vmem:[%s300 + $0x8] sm:$0xff]
      %v327 = vld [vmem:[%s300 + $0x10] sm:$0xff]
      %v328 = vld [vmem:[%s300 + $0x18] sm:$0xff]
      %v329 = vld [vmem:[%s300 + $0x20] sm:$0xff]
      %v330 = vld [vmem:[%s300 + $0x28] sm:$0xff]
      %337 = vrot.lane.b32.xlu0 %v325, 11
      %v338 = vpop.permute.xlu0 %337
      %339 = vrot.lane.b32.xlu0 %v326, 11
      %v340 = vpop.permute.xlu0 %339
      %341 = vrot.lane.b32.xlu0 %v327, 11
      %v342 = vpop.permute.xlu0 %341
      %343 = vrot.lane.b32.xlu0 %v328, 11
      %v344 = vpop.permute.xlu0 %343
      %345 = vrot.lane.b32.xlu0 %v329, 11
      %v346 = vpop.permute.xlu0 %345
      %347 = vrot.lane.b32.xlu0 %v330, 11
      %v348 = vpop.permute.xlu0 %347
      %vm349 = vcmask 89088
      %v350 = vsel %vm349, %v338, %v340
      %v351 = vsel %vm349, %v340, %v342
      %v352 = vsel %vm349, %v342, %v344
      %v353 = vsel %vm349, %v344, %v346
      %v354 = vsel %vm349, %v346, %v348
      %360 = vst [vmem:[#allocation4] sm:$0xff] %v350
      %361 = vst [vmem:[#allocation4 + $0x8] sm:$0xff] %v351
      %362 = vst [vmem:[#allocation4 + $0x10] sm:$0xff] %v352
      %363 = vst [vmem:[#allocation4 + $0x18] sm:$0xff] %v353
      %364 = vst [vmem:[#allocation4 + $0x20] sm:$0xff] %v354
      %v365 = vld [vmem:[%s300] sm:$0xff]
      %v366 = vld [vmem:[%s300 + $0x8] sm:$0xff]
      %v367 = vld [vmem:[%s300 + $0x10] sm:$0xff]
      %v368 = vld [vmem:[%s300 + $0x18] sm:$0xff]
      %v369 = vld [vmem:[%s300 + $0x20] sm:$0xff]
      %v370 = vld [vmem:[%s300 + $0x28] sm:$0xff]
      %377 = vrot.lane.b32.xlu0 %v365, 10
      %v378 = vpop.permute.xlu0 %377
      %379 = vrot.lane.b32.xlu0 %v366, 10
      %v380 = vpop.permute.xlu0 %379
      %381 = vrot.lane.b32.xlu0 %v367, 10
      %v382 = vpop.permute.xlu0 %381
      %383 = vrot.lane.b32.xlu0 %v368, 10
      %v384 = vpop.permute.xlu0 %383
      %385 = vrot.lane.b32.xlu0 %v369, 10
      %v386 = vpop.permute.xlu0 %385
      %387 = vrot.lane.b32.xlu0 %v370, 10
      %v388 = vpop.permute.xlu0 %387
      %vm389 = vcmask 80896
      %v390 = vsel %vm389, %v378, %v380
      %v391 = vsel %vm389, %v380, %v382
      %v392 = vsel %vm389, %v382, %v384
      %v393 = vsel %vm389, %v384, %v386
      %v394 = vsel %vm389, %v386, %v388
      %400 = vst [vmem:[#allocation4 + $0x28] sm:$0xff] %v390
      %401 = vst [vmem:[#allocation4 + $0x30] sm:$0xff] %v391
      %402 = vst [vmem:[#allocation4 + $0x38] sm:$0xff] %v392
      %403 = vst [vmem:[#allocation4 + $0x40] sm:$0xff] %v393
      %404 = vst [vmem:[#allocation4 + $0x48] sm:$0xff] %v394
      %v405 = vld [vmem:[%s300] sm:$0xff]
      %v406 = vld [vmem:[%s300 + $0x8] sm:$0xff]
      %v407 = vld [vmem:[%s300 + $0x10] sm:$0xff]
      %v408 = vld [vmem:[%s300 + $0x18] sm:$0xff]
      %v409 = vld [vmem:[%s300 + $0x20] sm:$0xff]
      %v410 = vld [vmem:[%s300 + $0x28] sm:$0xff]
      %417 = vrot.lane.b32.xlu0 %v405, 9
      %v418 = vpop.permute.xlu0 %417
      %419 = vrot.lane.b32.xlu0 %v406, 9
      %v420 = vpop.permute.xlu0 %419
      %421 = vrot.lane.b32.xlu0 %v407, 9
      %v422 = vpop.permute.xlu0 %421
      %423 = vrot.lane.b32.xlu0 %v408, 9
      %v424 = vpop.permute.xlu0 %423
      %425 = vrot.lane.b32.xlu0 %v409, 9
      %v426 = vpop.permute.xlu0 %425
      %427 = vrot.lane.b32.xlu0 %v410, 9
      %v428 = vpop.permute.xlu0 %427
      %vm429 = vcmask 72704
      %v430 = vsel %vm429, %v418, %v420
      %v431 = vsel %vm429, %v420, %v422
      %v432 = vsel %vm429, %v422, %v424
      %v433 = vsel %vm429, %v424, %v426
      %v434 = vsel %vm429, %v426, %v428
      %440 = vst [vmem:[#allocation4 + $0x50] sm:$0xff] %v430
      %441 = vst [vmem:[#allocation4 + $0x58] sm:$0xff] %v431
      %442 = vst [vmem:[#allocation4 + $0x60] sm:$0xff] %v432
      %443 = vst [vmem:[#allocation4 + $0x68] sm:$0xff] %v433
      %444 = vst [vmem:[#allocation4 + $0x70] sm:$0xff] %v434
      %v445 = vld [vmem:[%s300] sm:$0xff]
      %v446 = vld [vmem:[%s300 + $0x8] sm:$0xff]
      %v447 = vld [vmem:[%s300 + $0x10] sm:$0xff]
      %v448 = vld [vmem:[%s300 + $0x18] sm:$0xff]
      %v449 = vld [vmem:[%s300 + $0x20] sm:$0xff]
      %v450 = vld [vmem:[%s300 + $0x28] sm:$0xff]
      %457 = vrot.lane.b32.xlu0 %v445, 1
      %v458 = vpop.permute.xlu0 %457
      %459 = vrot.lane.b32.xlu0 %v446, 1
      %v460 = vpop.permute.xlu0 %459
      %461 = vrot.lane.b32.xlu0 %v447, 1
      %v462 = vpop.permute.xlu0 %461
      %463 = vrot.lane.b32.xlu0 %v448, 1
      %v464 = vpop.permute.xlu0 %463
      %465 = vrot.lane.b32.xlu0 %v449, 1
      %v466 = vpop.permute.xlu0 %465
      %467 = vrot.lane.b32.xlu0 %v450, 1
      %v468 = vpop.permute.xlu0 %467
      %vm469 = vcmask 7168
      %v470 = vsel %vm469, %v458, %v460
      %v471 = vsel %vm469, %v460, %v462
      %v472 = vsel %vm469, %v462, %v464
      %v473 = vsel %vm469, %v464, %v466
      %v474 = vsel %vm469, %v466, %v468
      %480 = vst [vmem:[#allocation4 + $0x78] sm:$0xff] %v470
      %481 = vst [vmem:[#allocation4 + $0x80] sm:$0xff] %v471
      %482 = vst [vmem:[#allocation4 + $0x88] sm:$0xff] %v472
      %483 = vst [vmem:[#allocation4 + $0x90] sm:$0xff] %v473
      %484 = vst [vmem:[#allocation4 + $0x98] sm:$0xff] %v474
      %v485 = vld [vmem:[%s300 + $0x8] sm:$0xff]
      %v486 = vld [vmem:[%s300 + $0x10] sm:$0xff]
      %v487 = vld [vmem:[%s300 + $0x18] sm:$0xff]
      %v488 = vld [vmem:[%s300 + $0x20] sm:$0xff]
      %v489 = vld [vmem:[%s300 + $0x28] sm:$0xff]
      %490 = vst [vmem:[#allocation4 + $0xa0] sm:$0xff] %v485
      %491 = vst [vmem:[#allocation4 + $0xa8] sm:$0xff] %v486
      %492 = vst [vmem:[#allocation4 + $0xb0] sm:$0xff] %v487
      %493 = vst [vmem:[#allocation4 + $0xb8] sm:$0xff] %v488
      %494 = vst [vmem:[#allocation4 + $0xc0] sm:$0xff] %v489
      %v495 = vld [vmem:[%s300 + $0x8] sm:$0xff]
      %v496 = vld [vmem:[%s300 + $0x10] sm:$0xff]
      %v497 = vld [vmem:[%s300 + $0x18] sm:$0xff]
      %v498 = vld [vmem:[%s300 + $0x20] sm:$0xff]
      %v499 = vld [vmem:[%s300 + $0x28] sm:$0xff]
      %v500 = vld [vmem:[%s300 + $0x30] sm:$0xff]
      %507 = vrot.lane.b32.xlu0 %v495, 127
      %v508 = vpop.permute.xlu0 %507
      %509 = vrot.lane.b32.xlu0 %v496, 127
      %v510 = vpop.permute.xlu0 %509
      %511 = vrot.lane.b32.xlu0 %v497, 127
      %v512 = vpop.permute.xlu0 %511
      %513 = vrot.lane.b32.xlu0 %v498, 127
      %v514 = vpop.permute.xlu0 %513
      %515 = vrot.lane.b32.xlu0 %v499, 127
      %v516 = vpop.permute.xlu0 %515
      %517 = vrot.lane.b32.xlu0 %v500, 127
      %v518 = vpop.permute.xlu0 %517
      %vm519 = vcmask 1039360
      %v520 = vsel %vm519, %v508, %v510
      %v521 = vsel %vm519, %v510, %v512
      %v522 = vsel %vm519, %v512, %v514
      %v523 = vsel %vm519, %v514, %v516
      %v524 = vsel %vm519, %v516, %v518
      %530 = vst [vmem:[#allocation4 + $0xc8] sm:$0xff] %v520
      %531 = vst [vmem:[#allocation4 + $0xd0] sm:$0xff] %v521
      %532 = vst [vmem:[#allocation4 + $0xd8] sm:$0xff] %v522
      %533 = vst [vmem:[#allocation4 + $0xe0] sm:$0xff] %v523
      %534 = vst [vmem:[#allocation4 + $0xe8] sm:$0xff] %v524
      %v535 = vld [vmem:[%s300 + $0x8] sm:$0xff]
      %v536 = vld [vmem:[%s300 + $0x10] sm:$0xff]
      %v537 = vld [vmem:[%s300 + $0x18] sm:$0xff]
      %v538 = vld [vmem:[%s300 + $0x20] sm:$0xff]
      %v539 = vld [vmem:[%s300 + $0x28] sm:$0xff]
      %v540 = vld [vmem:[%s300 + $0x30] sm:$0xff]
      %547 = vrot.lane.b32.xlu0 %v535, 119
      %v548 = vpop.permute.xlu0 %547
      %549 = vrot.lane.b32.xlu0 %v536, 119
      %v550 = vpop.permute.xlu0 %549
      %551 = vrot.lane.b32.xlu0 %v537, 119
      %v552 = vpop.permute.xlu0 %551
      %553 = vrot.lane.b32.xlu0 %v538, 119
      %v554 = vpop.permute.xlu0 %553
      %555 = vrot.lane.b32.xlu0 %v539, 119
      %v556 = vpop.permute.xlu0 %555
      %557 = vrot.lane.b32.xlu0 %v540, 119
      %v558 = vpop.permute.xlu0 %557
      %vm559 = vcmask 973824
      %v560 = vsel %vm559, %v548, %v550
      %v561 = vsel %vm559, %v550, %v552
      %v562 = vsel %vm559, %v552, %v554
      %v563 = vsel %vm559, %v554, %v556
      %v564 = vsel %vm559, %v556, %v558
      %570 = vst [vmem:[#allocation4 + $0xf0] sm:$0xff] %v560
      %571 = vst [vmem:[#allocation4 + $0xf8] sm:$0xff] %v561
      %572 = vst [vmem:[#allocation4 + $0x100] sm:$0xff] %v562
      %573 = vst [vmem:[#allocation4 + $0x108] sm:$0xff] %v563
      %574 = vst [vmem:[#allocation4 + $0x110] sm:$0xff] %v564
      %v575 = vld [vmem:[%s300 + $0x8] sm:$0xff]
      %v576 = vld [vmem:[%s300 + $0x10] sm:$0xff]
      %v577 = vld [vmem:[%s300 + $0x18] sm:$0xff]
      %v578 = vld [vmem:[%s300 + $0x20] sm:$0xff]
      %v579 = vld [vmem:[%s300 + $0x28] sm:$0xff]
      %v580 = vld [vmem:[%s300 + $0x30] sm:$0xff]
      %587 = vrot.lane.b32.xlu0 %v575, 118
      %v588 = vpop.permute.xlu0 %587
      %589 = vrot.lane.b32.xlu0 %v576, 118
      %v590 = vpop.permute.xlu0 %589
      %591 = vrot.lane.b32.xlu0 %v577, 118
      %v592 = vpop.permute.xlu0 %591
      %593 = vrot.lane.b32.xlu0 %v578, 118
      %v594 = vpop.permute.xlu0 %593
      %595 = vrot.lane.b32.xlu0 %v579, 118
      %v596 = vpop.permute.xlu0 %595
      %597 = vrot.lane.b32.xlu0 %v580, 118
      %v598 = vpop.permute.xlu0 %597
      %vm599 = vcmask 965632
      %v600 = vsel %vm599, %v588, %v590
      %v601 = vsel %vm599, %v590, %v592
      %v602 = vsel %vm599, %v592, %v594
      %v603 = vsel %vm599, %v594, %v596
      %v604 = vsel %vm599, %v596, %v598
      %610 = vst [vmem:[#allocation4 + $0x118] sm:$0xff] %v600
      %611 = vst [vmem:[#allocation4 + $0x120] sm:$0xff] %v601
      %612 = vst [vmem:[#allocation4 + $0x128] sm:$0xff] %v602
      %613 = vst [vmem:[#allocation4 + $0x130] sm:$0xff] %v603
      %614 = vst [vmem:[#allocation4 + $0x138] sm:$0xff] %v604
      %v615 = vld [vmem:[%s300 + $0x8] sm:$0xff]
      %v616 = vld [vmem:[%s300 + $0x10] sm:$0xff]
      %v617 = vld [vmem:[%s300 + $0x18] sm:$0xff]
      %v618 = vld [vmem:[%s300 + $0x20] sm:$0xff]
      %v619 = vld [vmem:[%s300 + $0x28] sm:$0xff]
      %v620 = vld [vmem:[%s300 + $0x30] sm:$0xff]
      %627 = vrot.lane.b32.xlu0 %v615, 117
      %v628 = vpop.permute.xlu0 %627
      %629 = vrot.lane.b32.xlu0 %v616, 117
      %v630 = vpop.permute.xlu0 %629
      %631 = vrot.lane.b32.xlu0 %v617, 117
      %v632 = vpop.permute.xlu0 %631
      %633 = vrot.lane.b32.xlu0 %v618, 117
      %v634 = vpop.permute.xlu0 %633
      %635 = vrot.lane.b32.xlu0 %v619, 117
      %v636 = vpop.permute.xlu0 %635
      %637 = vrot.lane.b32.xlu0 %v620, 117
      %v638 = vpop.permute.xlu0 %637
      %vm639 = vcmask 957440
      %v640 = vsel %vm639, %v628, %v630
      %v641 = vsel %vm639, %v630, %v632
      %v642 = vsel %vm639, %v632, %v634
      %v643 = vsel %vm639, %v634, %v636
      %v644 = vsel %vm639, %v636, %v638
      %650 = vst [vmem:[#allocation4 + $0x140] sm:$0xff] %v640
      %651 = vst [vmem:[#allocation4 + $0x148] sm:$0xff] %v641
      %652 = vst [vmem:[#allocation4 + $0x150] sm:$0xff] %v642
      %653 = vst [vmem:[#allocation4 + $0x158] sm:$0xff] %v643
      %654 = vst [vmem:[#allocation4 + $0x160] sm:$0xff] %v644
      %v655 = vld [vmem:[%s1] sm:$0xff]
      %v656 = vld [vmem:[%s1 + $0x8] sm:$0xff]
      %v657 = vld [vmem:[#allocation4] sm:$0xff]
      %v658 = vld [vmem:[#allocation4 + $0x8] sm:$0xff]
      %v659 = vld [vmem:[#allocation4 + $0x10] sm:$0xff]
      %v660 = vld [vmem:[#allocation4 + $0x18] sm:$0xff]
      %v661 = vld [vmem:[#allocation4 + $0x20] sm:$0xff]
      %v662 = vld [vmem:[#allocation4 + $0x28] sm:$0xff]
      %v663 = vld [vmem:[#allocation4 + $0x30] sm:$0xff]
      %v664 = vld [vmem:[#allocation4 + $0x38] sm:$0xff]
      %v665 = vld [vmem:[#allocation4 + $0x40] sm:$0xff]
      %v666 = vld [vmem:[#allocation4 + $0x48] sm:$0xff]
      %v667 = vld [vmem:[#allocation4 + $0x50] sm:$0xff]
      %v668 = vld [vmem:[#allocation4 + $0x58] sm:$0xff]
      %v669 = vld [vmem:[#allocation4 + $0x60] sm:$0xff]
      %v670 = vld [vmem:[#allocation4 + $0x68] sm:$0xff]
      %v671 = vld [vmem:[#allocation4 + $0x70] sm:$0xff]
      %v672 = vld [vmem:[#allocation4 + $0x78] sm:$0xff]
      %v673 = vld [vmem:[#allocation4 + $0x80] sm:$0xff]
      %v674 = vld [vmem:[#allocation4 + $0x88] sm:$0xff]
      %v675 = vld [vmem:[#allocation4 + $0x90] sm:$0xff]
      %v676 = vld [vmem:[#allocation4 + $0x98] sm:$0xff]
      %v677 = vld [vmem:[#allocation4 + $0xa0] sm:$0xff]
      %v678 = vld [vmem:[#allocation4 + $0xa8] sm:$0xff]
      %v679 = vld [vmem:[#allocation4 + $0xb0] sm:$0xff]
      %v680 = vld [vmem:[#allocation4 + $0xb8] sm:$0xff]
      %v681 = vld [vmem:[#allocation4 + $0xc0] sm:$0xff]
      %v682 = vld [vmem:[#allocation4 + $0xc8] sm:$0xff]
      %v683 = vld [vmem:[#allocation4 + $0xd0] sm:$0xff]
      %v684 = vld [vmem:[#allocation4 + $0xd8] sm:$0xff]
      %v685 = vld [vmem:[#allocation4 + $0xe0] sm:$0xff]
      %v686 = vld [vmem:[#allocation4 + $0xe8] sm:$0xff]
      %v687 = vld [vmem:[#allocation4 + $0xf0] sm:$0xff]
      %v688 = vld [vmem:[#allocation4 + $0xf8] sm:$0xff]
      %v689 = vld [vmem:[#allocation4 + $0x100] sm:$0xff]
      %v690 = vld [vmem:[#allocation4 + $0x108] sm:$0xff]
      %v691 = vld [vmem:[#allocation4 + $0x110] sm:$0xff]
      %v692 = vld [vmem:[#allocation4 + $0x118] sm:$0xff]
      %v693 = vld [vmem:[#allocation4 + $0x120] sm:$0xff]
      %v694 = vld [vmem:[#allocation4 + $0x128] sm:$0xff]
      %v695 = vld [vmem:[#allocation4 + $0x130] sm:$0xff]
      %v696 = vld [vmem:[#allocation4 + $0x138] sm:$0xff]
      %v697 = vld [vmem:[#allocation4 + $0x140] sm:$0xff]
      %v698 = vld [vmem:[#allocation4 + $0x148] sm:$0xff]
      %v699 = vld [vmem:[#allocation4 + $0x150] sm:$0xff]
      %v700 = vld [vmem:[#allocation4 + $0x158] sm:$0xff]
      %v701 = vld [vmem:[#allocation4 + $0x160] sm:$0xff]
      %vm702 = vcmask 588800
      %v704 = vsel %vm702, %v655, 0
      %v707 = vsel %vm702, %v656, 0
      %709 = vmatprep.subr.mxu0 0.0
      %710 = vmatpush1.msra.mxu0 0.0
      %711 = vmatprep.subr.mxu0 0.0
      %712 = vmatpush1.msra.mxu0 0.0
      %713 = vmatprep.subr.mxu0 0.0
      %714 = vmatpush1.msra.mxu0 0.0
      %715 = vmatprep.subr.mxu0 0.0
      %716 = vmatpush1.msra.mxu0 0.0
      %717 = vmatprep.subr.mxu0 0.0
      %718 = vmatpush1.msra.mxu0 0.0
      %719 = vmatprep.subr.mxu0 0.0
      %720 = vmatpush1.msra.mxu0 0.0
      %721 = vmatprep.subr.mxu0 0.0
      %722 = vmatpush1.msra.mxu0 0.0
      %723 = vmatprep.subr.mxu0 %v698
      %724 = vmatpush1.msra.mxu0 %v697
      %725 = vmatprep.subr.mxu0 %v693
      %726 = vmatpush1.msra.mxu0 %v692
      %727 = vmatprep.subr.mxu0 %v688
      %728 = vmatpush1.msra.mxu0 %v687
      %729 = vmatprep.subr.mxu0 %v683
      %730 = vmatpush1.msra.mxu0 %v682
      %731 = vmatprep.subr.mxu0 %v678
      %732 = vmatpush1.msra.mxu0 %v677
      %733 = vmatprep.subr.mxu0 %v673
      %734 = vmatpush1.msra.mxu0 %v672
      %735 = vmatprep.subr.mxu0 %v668
      %736 = vmatpush1.msra.mxu0 %v667
      %737 = vmatprep.subr.mxu0 %v663
      %738 = vmatpush1.msra.mxu0 %v662
      %739 = vmatprep.subr.mxu0 %v658
      %740 = vmatpush1.msra.mxu0 %v657
      %741 = vmatprep.subr.mxu0 0.0
      %742 = vmatpush2.msra.mxu0 0.0
      %743 = vmatprep.subr.mxu0 0.0
      %744 = vmatpush2.msra.mxu0 0.0
      %745 = vmatprep.subr.mxu0 0.0
      %746 = vmatpush2.msra.mxu0 0.0
      %747 = vmatprep.subr.mxu0 0.0
      %748 = vmatpush2.msra.mxu0 0.0
      %749 = vmatprep.subr.mxu0 0.0
      %750 = vmatpush2.msra.mxu0 0.0
      %751 = vmatprep.subr.mxu0 0.0
      %752 = vmatpush2.msra.mxu0 0.0
      %753 = vmatprep.subr.mxu0 0.0
      %754 = vmatpush2.msra.mxu0 0.0
      %755 = vmatprep.subr.mxu0 0.0
      %756 = vmatpush2.msra.mxu0 0.0
      %757 = vmatprep.subr.mxu0 0.0
      %758 = vmatpush2.msra.mxu0 0.0
      %759 = vmatprep.subr.mxu0 0.0
      %760 = vmatpush2.msra.mxu0 0.0
      %761 = vmatprep.subr.mxu0 0.0
      %762 = vmatpush2.msra.mxu0 0.0
      %763 = vmatprep.subr.mxu0 0.0
      %764 = vmatpush2.msra.mxu0 0.0
      %765 = vmatprep.subr.mxu0 0.0
      %766 = vmatpush2.msra.mxu0 0.0
      %767 = vmatprep.subr.mxu0 0.0
      %768 = vmatpush2.msra.mxu0 0.0
      %769 = vmatprep.subr.mxu0 0.0
      %770 = vmatpush2.msra.mxu0 0.0
      %771 = vmatprep.subr.mxu0 0.0
      %772 = vmatpush2.msra.mxu0 0.0
      %773 = vmatprep.mubr.f32.mxu0 0.0
      %774 = vmatmul.mubr.f32.gmra.mxu0 %v704
      %v775 = vpop.f32.mrf.mxu0
      %v776 = vadd.f32 0.0, %v775
      %v777 = vpop.f32.mrf.mxu0
      %v778 = vadd.f32 0.0, %v777
      %779 = vmatprep.mubr.f32.mxu0 0.0
      %780 = vmatmul.mubr.f32.gmra.mxu0 %v707
      %v781 = vpop.f32.mrf.mxu0
      %v782 = vadd.f32 0.0, %v781
      %v783 = vpop.f32.mrf.mxu0
      %v784 = vadd.f32 0.0, %v783
      %785 = vdwg.mxu0
      %786 = vmatprep.subr.mxu0 0.0
      %787 = vmatpush1.msra.mxu0 0.0
      %788 = vmatprep.subr.mxu0 0.0
      %789 = vmatpush1.msra.mxu0 0.0
      %790 = vmatprep.subr.mxu0 0.0
      %791 = vmatpush1.msra.mxu0 0.0
      %792 = vmatprep.subr.mxu0 0.0
      %793 = vmatpush1.msra.mxu0 0.0
      %794 = vmatprep.subr.mxu0 0.0
      %795 = vmatpush1.msra.mxu0 0.0
      %796 = vmatprep.subr.mxu0 0.0
      %797 = vmatpush1.msra.mxu0 0.0
      %798 = vmatprep.subr.mxu0 0.0
      %799 = vmatpush1.msra.mxu0 0.0
      %800 = vmatprep.subr.mxu0 %v700
      %801 = vmatpush1.msra.mxu0 %v699
      %802 = vmatprep.subr.mxu0 %v695
      %803 = vmatpush1.msra.mxu0 %v694
      %804 = vmatprep.subr.mxu0 %v690
      %805 = vmatpush1.msra.mxu0 %v689
      %806 = vmatprep.subr.mxu0 %v685
      %807 = vmatpush1.msra.mxu0 %v684
      %808 = vmatprep.subr.mxu0 %v680
      %809 = vmatpush1.msra.mxu0 %v679
      %810 = vmatprep.subr.mxu0 %v675
      %811 = vmatpush1.msra.mxu0 %v674
      %812 = vmatprep.subr.mxu0 %v670
      %813 = vmatpush1.msra.mxu0 %v669
      %814 = vmatprep.subr.mxu0 %v665
      %815 = vmatpush1.msra.mxu0 %v664
      %816 = vmatprep.subr.mxu0 %v660
      %817 = vmatpush1.msra.mxu0 %v659
      %818 = vmatprep.subr.mxu0 0.0
      %819 = vmatpush2.msra.mxu0 0.0
      %820 = vmatprep.subr.mxu0 0.0
      %821 = vmatpush2.msra.mxu0 0.0
      %822 = vmatprep.subr.mxu0 0.0
      %823 = vmatpush2.msra.mxu0 0.0
      %824 = vmatprep.subr.mxu0 0.0
      %825 = vmatpush2.msra.mxu0 0.0
      %826 = vmatprep.subr.mxu0 0.0
      %827 = vmatpush2.msra.mxu0 0.0
      %828 = vmatprep.subr.mxu0 0.0
      %829 = vmatpush2.msra.mxu0 0.0
      %830 = vmatprep.subr.mxu0 0.0
      %831 = vmatpush2.msra.mxu0 0.0
      %832 = vmatprep.subr.mxu0 0.0
      %833 = vmatpush2.msra.mxu0 0.0
      %834 = vmatprep.subr.mxu0 0.0
      %835 = vmatpush2.msra.mxu0 0.0
      %836 = vmatprep.subr.mxu0 0.0
      %837 = vmatpush2.msra.mxu0 0.0
      %838 = vmatprep.subr.mxu0 0.0
      %839 = vmatpush2.msra.mxu0 0.0
      %840 = vmatprep.subr.mxu0 0.0
      %841 = vmatpush2.msra.mxu0 0.0
      %842 = vmatprep.subr.mxu0 0.0
      %843 = vmatpush2.msra.mxu0 0.0
      %844 = vmatprep.subr.mxu0 0.0
      %845 = vmatpush2.msra.mxu0 0.0
      %846 = vmatprep.subr.mxu0 0.0
      %847 = vmatpush2.msra.mxu0 0.0
      %848 = vmatprep.subr.mxu0 0.0
      %849 = vmatpush2.msra.mxu0 0.0
      %850 = vmatprep.mubr.f32.mxu0 0.0
      %851 = vmatmul.mubr.f32.gmra.mxu0 %v704
      %v852 = vpop.f32.mrf.mxu0
      %v853 = vadd.f32 0.0, %v852
      %v854 = vpop.f32.mrf.mxu0
      %v855 = vadd.f32 0.0, %v854
      %856 = vmatprep.mubr.f32.mxu0 0.0
      %857 = vmatmul.mubr.f32.gmra.mxu0 %v707
      %v858 = vpop.f32.mrf.mxu0
      %v859 = vadd.f32 0.0, %v858
      %v860 = vpop.f32.mrf.mxu0
      %v861 = vadd.f32 0.0, %v860
      %862 = vdwg.mxu0
      %863 = vmatprep.subr.mxu0 0.0
      %864 = vmatpush1.msra.mxu0 0.0
      %865 = vmatprep.subr.mxu0 0.0
      %866 = vmatpush1.msra.mxu0 0.0
      %867 = vmatprep.subr.mxu0 0.0
      %868 = vmatpush1.msra.mxu0 0.0
      %869 = vmatprep.subr.mxu0 0.0
      %870 = vmatpush1.msra.mxu0 0.0
      %871 = vmatprep.subr.mxu0 0.0
      %872 = vmatpush1.msra.mxu0 0.0
      %873 = vmatprep.subr.mxu0 0.0
      %874 = vmatpush1.msra.mxu0 0.0
      %875 = vmatprep.subr.mxu0 0.0
      %876 = vmatpush1.msra.mxu0 0.0
      %877 = vmatprep.subr.mxu0 0.0
      %878 = vmatpush1.msra.mxu0 %v701
      %879 = vmatprep.subr.mxu0 0.0
      %880 = vmatpush1.msra.mxu0 %v696
      %881 = vmatprep.subr.mxu0 0.0
      %882 = vmatpush1.msra.mxu0 %v691
      %883 = vmatprep.subr.mxu0 0.0
      %884 = vmatpush1.msra.mxu0 %v686
      %885 = vmatprep.subr.mxu0 0.0
      %886 = vmatpush1.msra.mxu0 %v681
      %887 = vmatprep.subr.mxu0 0.0
      %888 = vmatpush1.msra.mxu0 %v676
      %889 = vmatprep.subr.mxu0 0.0
      %890 = vmatpush1.msra.mxu0 %v671
      %891 = vmatprep.subr.mxu0 0.0
      %892 = vmatpush1.msra.mxu0 %v666
      %893 = vmatprep.subr.mxu0 0.0
      %894 = vmatpush1.msra.mxu0 %v661
      %895 = vmatprep.subr.mxu0 0.0
      %896 = vmatpush2.msra.mxu0 0.0
      %897 = vmatprep.subr.mxu0 0.0
      %898 = vmatpush2.msra.mxu0 0.0
      %899 = vmatprep.subr.mxu0 0.0
      %900 = vmatpush2.msra.mxu0 0.0
      %901 = vmatprep.subr.mxu0 0.0
      %902 = vmatpush2.msra.mxu0 0.0
      %903 = vmatprep.subr.mxu0 0.0
      %904 = vmatpush2.msra.mxu0 0.0
      %905 = vmatprep.subr.mxu0 0.0
      %906 = vmatpush2.msra.mxu0 0.0
      %907 = vmatprep.subr.mxu0 0.0
      %908 = vmatpush2.msra.mxu0 0.0
      %909 = vmatprep.subr.mxu0 0.0
      %910 = vmatpush2.msra.mxu0 0.0
      %911 = vmatprep.subr.mxu0 0.0
      %912 = vmatpush2.msra.mxu0 0.0
      %913 = vmatprep.subr.mxu0 0.0
      %914 = vmatpush2.msra.mxu0 0.0
      %915 = vmatprep.subr.mxu0 0.0
      %916 = vmatpush2.msra.mxu0 0.0
      %917 = vmatprep.subr.mxu0 0.0
      %918 = vmatpush2.msra.mxu0 0.0
      %919 = vmatprep.subr.mxu0 0.0
      %920 = vmatpush2.msra.mxu0 0.0
      %921 = vmatprep.subr.mxu0 0.0
      %922 = vmatpush2.msra.mxu0 0.0
      %923 = vmatprep.subr.mxu0 0.0
      %924 = vmatpush2.msra.mxu0 0.0
      %925 = vmatprep.subr.mxu0 0.0
      %926 = vmatpush2.msra.mxu0 0.0
      %927 = vmatprep.mubr.f32.mxu0 0.0
      %928 = vmatmul.mubr.f32.gmra.mxu0 %v704
      %v929 = vpop.f32.mrf.mxu0
      %v930 = vadd.f32 0.0, %v929
      %v931 = vpop.f32.mrf.mxu0
      %932 = vmatprep.mubr.f32.mxu0 0.0
      %933 = vmatmul.mubr.f32.gmra.mxu0 %v707
      %v934 = vpop.f32.mrf.mxu0
      %v935 = vadd.f32 0.0, %v934
      %v936 = vpop.f32.mrf.mxu0
      %937 = vdwg.mxu0
      %vm938 = vcmp.ge.f32.partialorder %v776, 0.0
      %vm939 = vcmp.ge.f32.partialorder %v778, 0.0
      %vm940 = vcmp.ge.f32.partialorder %v853, 0.0
      %vm941 = vcmp.ge.f32.partialorder %v855, 0.0
      %vm942 = vcmp.ge.f32.partialorder %v930, 0.0
      %vm943 = vcmp.ge.f32.partialorder %v782, 0.0
      %vm944 = vcmp.ge.f32.partialorder %v784, 0.0
      %vm945 = vcmp.ge.f32.partialorder %v859, 0.0
      %vm946 = vcmp.ge.f32.partialorder %v861, 0.0
      %vm947 = vcmp.ge.f32.partialorder %v935, 0.0
      %v948 = vmul.f32 %v776, 0.01
      %v949 = vmul.f32 %v778, 0.01
      %v950 = vmul.f32 %v853, 0.01
      %v951 = vmul.f32 %v855, 0.01
      %v952 = vmul.f32 %v930, 0.01
      %v953 = vmul.f32 %v782, 0.01
      %v954 = vmul.f32 %v784, 0.01
      %v955 = vmul.f32 %v859, 0.01
      %v956 = vmul.f32 %v861, 0.01
      %v957 = vmul.f32 %v935, 0.01
      %v958 = vsel %vm938, %v776, %v948
      %v959 = vsel %vm939, %v778, %v949
      %v960 = vsel %vm940, %v853, %v950
      %v961 = vsel %vm941, %v855, %v951
      %v962 = vsel %vm942, %v930, %v952
      %v963 = vsel %vm943, %v782, %v953
      %v964 = vsel %vm944, %v784, %v954
      %v965 = vsel %vm945, %v859, %v955
      %v966 = vsel %vm946, %v861, %v956
      %v967 = vsel %vm947, %v935, %v957
      %v968 = vsel %vm307, 1, 0
      %v969 = vlaneseq
      %v970 = vshrl.u32 %v969, 7
      %v971 = vsub.s32 0, %v970
      %v972 = vrot.slane %v968, %v971
      %v973 = vlaneseq
      %v974 = vshrl.u32 %v973, 7
      %v975 = vsub.s32 1, %v974
      %v976 = vrot.slane %v968, %v975
      %v977 = vlaneseq
      %v978 = vshrl.u32 %v977, 7
      %v979 = vsub.s32 2, %v978
      %v980 = vrot.slane %v968, %v979
      %v981 = vlaneseq
      %v982 = vshrl.u32 %v981, 7
      %v983 = vsub.s32 3, %v982
      %v984 = vrot.slane %v968, %v983
      %v985 = vlaneseq
      %v986 = vshrl.u32 %v985, 7
      %v987 = vsub.s32 4, %v986
      %v988 = vrot.slane %v968, %v987
      %vm989 = vcmp.eq.s32.totalorder %v972, 1
      %vm990 = vcmp.eq.s32.totalorder %v976, 1
      %vm991 = vcmp.eq.s32.totalorder %v980, 1
      %vm992 = vcmp.eq.s32.totalorder %v984, 1
      %vm993 = vcmp.eq.s32.totalorder %v988, 1
      %v994 = vsel %vm989, %v958, 0.0
      %v995 = vsel %vm990, %v959, 0.0
      %v996 = vsel %vm991, %v960, 0.0
      %v997 = vsel %vm992, %v961, 0.0
      %v998 = vsel %vm993, %v962, 0.0
      %v999 = vsel %vm989, %v963, 0.0
      %v1000 = vsel %vm990, %v964, 0.0
      %v1001 = vsel %vm991, %v965, 0.0
      %v1002 = vsel %vm992, %v966, 0.0
      %v1003 = vsel %vm993, %v967, 0.0
      %v1004 = vld [vmem:[%s5] sm:$0xff]
      %v1005 = vld [vmem:[%s5 + $0x8] sm:$0xff]
      %v1006 = vld [vmem:[%s6] sm:$0xff]
      %v1007 = vld [vmem:[%s6 + $0x8] sm:$0xff]
      %v1008 = vadd.f32 %v994, %v995
      %v1009 = vadd.f32 %v1008, %v996
      %v1010 = vadd.f32 %v1009, %v997
      %v1011 = vadd.f32 %v1010, %v998
      %1012 = vadd.xlane.f32.xlu0 %v1011
      %v1013 = vpop.xlane.xlu0 %1012
      %v1014 = vadd.f32 %v999, %v1000
      %v1015 = vadd.f32 %v1014, %v1001
      %v1016 = vadd.f32 %v1015, %v1002
      %v1017 = vadd.f32 %v1016, %v1003
      %1018 = vadd.xlane.f32.xlu0 %v1017
      %v1019 = vpop.xlane.xlu0 %1018
      %vm1020 = vcmp.ge.s32.totalorder %v309, 0
      %vm1021 = vcmp.ge.s32.totalorder %v310, 0
      %vm1022 = vcmp.lt.s32.totalorder %v309, 2
      %vm1023 = vcmp.lt.s32.totalorder %v310, 2
      %vm1024 = vmand %vm1020, %vm1022
      %vm1025 = vmand %vm1021, %vm1023
      %v1026 = vsel %vm1024, %v1013, 0.0
      %v1027 = vsel %vm1025, %v1019, 0.0
      %v1028 = vsel %vm469, %v1026, 0.0
      %v1029 = vsel %vm469, %v1027, 0.0
      %v1030 = vadd.f32 %v1028, %v1029
      %1031 = vadd.xlane.f32.xlu0 %v1030
      %v1032 = vpop.xlane.xlu0 %1031
      %v1033 = vrot.slane %v1032, 4
      %v1034 = vadd.f32 %v1032, %v1033
      %v1035 = vrot.slane %v1034, 2
      %v1036 = vadd.f32 %v1034, %v1035
      %v1037 = vrot.slane %v1036, 1
      %v1038 = vadd.f32 %v1036, %v1037
      %s1039 = vtos %v1038
      %v1040 = vstv %s1039
      %v1041 = vsel %vm1024, %v1040, 0.0
      %v1042 = vsel %vm1025, %v1040, 0.0
      %vm1043 = vcmp.ge.s32.totalorder %v309, 2
      %vm1044 = vcmp.ge.s32.totalorder %v310, 2
      %vm1045 = vcmp.lt.s32.totalorder %v309, 4
      %vm1046 = vcmp.lt.s32.totalorder %v310, 4
      %vm1047 = vmand %vm1043, %vm1045
      %vm1048 = vmand %vm1044, %vm1046
      %v1049 = vsel %vm1047, %v1013, 0.0
      %v1050 = vsel %vm1048, %v1019, 0.0
      %v1051 = vsel %vm469, %v1049, 0.0
      %v1052 = vsel %vm469, %v1050, 0.0
      %v1053 = vadd.f32 %v1051, %v1052
      %1054 = vadd.xlane.f32.xlu0 %v1053
      %v1055 = vpop.xlane.xlu0 %1054
      %v1056 = vrot.slane %v1055, 4
      %v1057 = vadd.f32 %v1055, %v1056
      %v1058 = vrot.slane %v1057, 2
      %v1059 = vadd.f32 %v1057, %v1058
      %v1060 = vrot.slane %v1059, 1
      %v1061 = vadd.f32 %v1059, %v1060
      %s1062 = vtos %v1061
      %v1063 = vstv %s1062
      %v1064 = vsel %vm1047, %v1063, %v1041
      %v1065 = vsel %vm1048, %v1063, %v1042
      %vm1066 = vcmp.ge.s32.totalorder %v309, 4
      %vm1067 = vcmp.ge.s32.totalorder %v310, 4
      %vm1068 = vcmp.lt.s32.totalorder %v309, 6
      %vm1069 = vcmp.lt.s32.totalorder %v310, 6
      %vm1070 = vmand %vm1066, %vm1068
      %vm1071 = vmand %vm1067, %vm1069
      %v1072 = vsel %vm1070, %v1013, 0.0
      %v1073 = vsel %vm1071, %v1019, 0.0
      %v1074 = vsel %vm469, %v1072, 0.0
      %v1075 = vsel %vm469, %v1073, 0.0
      %v1076 = vadd.f32 %v1074, %v1075
      %1077 = vadd.xlane.f32.xlu0 %v1076
      %v1078 = vpop.xlane.xlu0 %1077
      %v1079 = vrot.slane %v1078, 4
      %v1080 = vadd.f32 %v1078, %v1079
      %v1081 = vrot.slane %v1080, 2
      %v1082 = vadd.f32 %v1080, %v1081
      %v1083 = vrot.slane %v1082, 1
      %v1084 = vadd.f32 %v1082, %v1083
      %s1085 = vtos %v1084
      %v1086 = vstv %s1085
      %v1087 = vsel %vm1070, %v1086, %v1064
      %v1088 = vsel %vm1071, %v1086, %v1065
      %vm1089 = vcmp.ge.s32.totalorder %v309, 6
      %vm1090 = vcmp.ge.s32.totalorder %v310, 6
      %vm1091 = vcmp.lt.s32.totalorder %v309, 8
      %vm1092 = vcmp.lt.s32.totalorder %v310, 8
      %vm1093 = vmand %vm1089, %vm1091
      %vm1094 = vmand %vm1090, %vm1092
      %v1095 = vsel %vm1093, %v1013, 0.0
      %v1096 = vsel %vm1094, %v1019, 0.0
      %v1097 = vsel %vm469, %v1095, 0.0
      %v1098 = vsel %vm469, %v1096, 0.0
      %v1099 = vadd.f32 %v1097, %v1098
      %1100 = vadd.xlane.f32.xlu0 %v1099
      %v1101 = vpop.xlane.xlu0 %1100
      %v1102 = vrot.slane %v1101, 4
      %v1103 = vadd.f32 %v1101, %v1102
      %v1104 = vrot.slane %v1103, 2
      %v1105 = vadd.f32 %v1103, %v1104
      %v1106 = vrot.slane %v1105, 1
      %v1107 = vadd.f32 %v1105, %v1106
      %s1108 = vtos %v1107
      %v1109 = vstv %s1108
      %v1110 = vsel %vm1093, %v1109, %v1087
      %v1111 = vsel %vm1094, %v1109, %v1088
      %vm1112 = vcmp.ge.s32.totalorder %v309, 8
      %vm1113 = vcmp.ge.s32.totalorder %v310, 8
      %vm1114 = vcmp.lt.s32.totalorder %v309, 10
      %vm1115 = vcmp.lt.s32.totalorder %v310, 10
      %vm1116 = vmand %vm1112, %vm1114
      %vm1117 = vmand %vm1113, %vm1115
      %v1118 = vsel %vm1116, %v1013, 0.0
      %v1119 = vsel %vm1117, %v1019, 0.0
      %v1120 = vsel %vm469, %v1118, 0.0
      %v1121 = vsel %vm469, %v1119, 0.0
      %v1122 = vadd.f32 %v1120, %v1121
      %1123 = vadd.xlane.f32.xlu0 %v1122
      %v1124 = vpop.xlane.xlu0 %1123
      %v1125 = vrot.slane %v1124, 4
      %v1126 = vadd.f32 %v1124, %v1125
      %v1127 = vrot.slane %v1126, 2
      %v1128 = vadd.f32 %v1126, %v1127
      %v1129 = vrot.slane %v1128, 1
      %v1130 = vadd.f32 %v1128, %v1129
      %s1131 = vtos %v1130
      %v1132 = vstv %s1131
      %v1133 = vsel %vm1116, %v1132, %v1110
      %v1134 = vsel %vm1117, %v1132, %v1111
      %vm1135 = vcmp.ge.s32.totalorder %v309, 10
      %vm1136 = vcmp.ge.s32.totalorder %v310, 10
      %vm1137 = vcmp.lt.s32.totalorder %v309, 12
      %vm1138 = vcmp.lt.s32.totalorder %v310, 12
      %vm1139 = vmand %vm1135, %vm1137
      %vm1140 = vmand %vm1136, %vm1138
      %v1141 = vsel %vm1139, %v1013, 0.0
      %v1142 = vsel %vm1140, %v1019, 0.0
      %v1143 = vsel %vm469, %v1141, 0.0
      %v1144 = vsel %vm469, %v1142, 0.0
      %v1145 = vadd.f32 %v1143, %v1144
      %1146 = vadd.xlane.f32.xlu0 %v1145
      %v1147 = vpop.xlane.xlu0 %1146
      %v1148 = vrot.slane %v1147, 4
      %v1149 = vadd.f32 %v1147, %v1148
      %v1150 = vrot.slane %v1149, 2
      %v1151 = vadd.f32 %v1149, %v1150
      %v1152 = vrot.slane %v1151, 1
      %v1153 = vadd.f32 %v1151, %v1152
      %s1154 = vtos %v1153
      %v1155 = vstv %s1154
      %v1156 = vsel %vm1139, %v1155, %v1133
      %v1157 = vsel %vm1140, %v1155, %v1134
      %vm1158 = vcmp.ge.s32.totalorder %v309, 12
      %vm1159 = vcmp.ge.s32.totalorder %v310, 12
      %vm1160 = vcmp.lt.s32.totalorder %v309, 14
      %vm1161 = vcmp.lt.s32.totalorder %v310, 14
      %vm1162 = vmand %vm1158, %vm1160
      %vm1163 = vmand %vm1159, %vm1161
      %v1164 = vsel %vm1162, %v1013, 0.0
      %v1165 = vsel %vm1163, %v1019, 0.0
      %v1166 = vsel %vm469, %v1164, 0.0
      %v1167 = vsel %vm469, %v1165, 0.0
      %v1168 = vadd.f32 %v1166, %v1167
      %1169 = vadd.xlane.f32.xlu0 %v1168
      %v1170 = vpop.xlane.xlu0 %1169
      %v1171 = vrot.slane %v1170, 4
      %v1172 = vadd.f32 %v1170, %v1171
      %v1173 = vrot.slane %v1172, 2
      %v1174 = vadd.f32 %v1172, %v1173
      %v1175 = vrot.slane %v1174, 1
      %v1176 = vadd.f32 %v1174, %v1175
      %s1177 = vtos %v1176
      %v1178 = vstv %s1177
      %v1179 = vsel %vm1162, %v1178, %v1156
      %v1180 = vsel %vm1163, %v1178, %v1157
      %vm1181 = vcmp.ge.s32.totalorder %v309, 14
      %vm1182 = vcmp.ge.s32.totalorder %v310, 14
      %vm1183 = vcmp.lt.s32.totalorder %v309, 16
      %vm1184 = vcmp.lt.s32.totalorder %v310, 16
      %vm1185 = vmand %vm1181, %vm1183
      %vm1186 = vmand %vm1182, %vm1184
      %v1187 = vsel %vm1185, %v1013, 0.0
      %v1188 = vsel %vm1186, %v1019, 0.0
      %v1189 = vsel %vm469, %v1187, 0.0
      %v1190 = vsel %vm469, %v1188, 0.0
      %v1191 = vadd.f32 %v1189, %v1190
      %1192 = vadd.xlane.f32.xlu0 %v1191
      %v1193 = vpop.xlane.xlu0 %1192
      %v1194 = vrot.slane %v1193, 4
      %v1195 = vadd.f32 %v1193, %v1194
      %v1196 = vrot.slane %v1195, 2
      %v1197 = vadd.f32 %v1195, %v1196
      %v1198 = vrot.slane %v1197, 1
      %v1199 = vadd.f32 %v1197, %v1198
      %s1200 = vtos %v1199
      %v1201 = vstv %s1200
      %v1202 = vsel %vm1185, %v1201, %v1179
      %v1203 = vsel %vm1186, %v1201, %v1180
      %v1204 = vmul.f32 %v1202, 0.001953125
      %v1205 = vmul.f32 %v1203, 0.001953125
      %v1206 = vsub.f32 %v994, %v1204
      %v1207 = vsub.f32 %v995, %v1204
      %v1208 = vsub.f32 %v996, %v1204
      %v1209 = vsub.f32 %v997, %v1204
      %v1210 = vsub.f32 %v998, %v1204
      %v1211 = vsub.f32 %v999, %v1205
      %v1212 = vsub.f32 %v1000, %v1205
      %v1213 = vsub.f32 %v1001, %v1205
      %v1214 = vsub.f32 %v1002, %v1205
      %v1215 = vsub.f32 %v1003, %v1205
      %v1216 = vsel %vm989, %v1206, 0.0
      %v1217 = vsel %vm990, %v1207, 0.0
      %v1218 = vsel %vm991, %v1208, 0.0
      %v1219 = vsel %vm992, %v1209, 0.0
      %v1220 = vsel %vm993, %v1210, 0.0
      %v1221 = vsel %vm989, %v1211, 0.0
      %v1222 = vsel %vm990, %v1212, 0.0
      %v1223 = vsel %vm991, %v1213, 0.0
      %v1224 = vsel %vm992, %v1214, 0.0
      %v1225 = vsel %vm993, %v1215, 0.0
      %v1226 = vmul.f32 %v1216, %v1216
      %v1227 = vmul.f32 %v1217, %v1217
      %v1228 = vmul.f32 %v1218, %v1218
      %v1229 = vmul.f32 %v1219, %v1219
      %v1230 = vmul.f32 %v1220, %v1220
      %v1231 = vmul.f32 %v1221, %v1221
      %v1232 = vmul.f32 %v1222, %v1222
      %v1233 = vmul.f32 %v1223, %v1223
      %v1234 = vmul.f32 %v1224, %v1224
      %v1235 = vmul.f32 %v1225, %v1225
      %v1236 = vadd.f32 %v1226, %v1227
      %v1237 = vadd.f32 %v1236, %v1228
      %v1238 = vadd.f32 %v1237, %v1229
      %v1239 = vadd.f32 %v1238, %v1230
      %1240 = vadd.xlane.f32.xlu0 %v1239
      %v1241 = vpop.xlane.xlu0 %1240
      %v1242 = vadd.f32 %v1231, %v1232
      %v1243 = vadd.f32 %v1242, %v1233
      %v1244 = vadd.f32 %v1243, %v1234
      %v1245 = vadd.f32 %v1244, %v1235
      %1246 = vadd.xlane.f32.xlu0 %v1245
      %v1247 = vpop.xlane.xlu0 %1246
      %v1248 = vsel %vm1024, %v1241, 0.0
      %v1249 = vsel %vm1025, %v1247, 0.0
      %v1250 = vsel %vm469, %v1248, 0.0
      %v1251 = vsel %vm469, %v1249, 0.0
      %v1252 = vadd.f32 %v1250, %v1251
      %1253 = vadd.xlane.f32.xlu0 %v1252
      %v1254 = vpop.xlane.xlu0 %1253
      %v1255 = vrot.slane %v1254, 4
      %v1256 = vadd.f32 %v1254, %v1255
      %v1257 = vrot.slane %v1256, 2
      %v1258 = vadd.f32 %v1256, %v1257
      %v1259 = vrot.slane %v1258, 1
      %v1260 = vadd.f32 %v1258, %v1259
      %s1261 = vtos %v1260
      %v1262 = vstv %s1261
      %v1263 = vsel %vm1024, %v1262, 0.0
      %v1264 = vsel %vm1025, %v1262, 0.0
      %v1265 = vsel %vm1047, %v1241, 0.0
      %v1266 = vsel %vm1048, %v1247, 0.0
      %v1267 = vsel %vm469, %v1265, 0.0
      %v1268 = vsel %vm469, %v1266, 0.0
      %v1269 = vadd.f32 %v1267, %v1268
      %1270 = vadd.xlane.f32.xlu0 %v1269
      %v1271 = vpop.xlane.xlu0 %1270
      %v1272 = vrot.slane %v1271, 4
      %v1273 = vadd.f32 %v1271, %v1272
      %v1274 = vrot.slane %v1273, 2
      %v1275 = vadd.f32 %v1273, %v1274
      %v1276 = vrot.slane %v1275, 1
      %v1277 = vadd.f32 %v1275, %v1276
      %s1278 = vtos %v1277
      %v1279 = vstv %s1278
      %v1280 = vsel %vm1047, %v1279, %v1263
      %v1281 = vsel %vm1048, %v1279, %v1264
      %v1282 = vsel %vm1070, %v1241, 0.0
      %v1283 = vsel %vm1071, %v1247, 0.0
      %v1284 = vsel %vm469, %v1282, 0.0
      %v1285 = vsel %vm469, %v1283, 0.0
      %v1286 = vadd.f32 %v1284, %v1285
      %1287 = vadd.xlane.f32.xlu0 %v1286
      %v1288 = vpop.xlane.xlu0 %1287
      %v1289 = vrot.slane %v1288, 4
      %v1290 = vadd.f32 %v1288, %v1289
      %v1291 = vrot.slane %v1290, 2
      %v1292 = vadd.f32 %v1290, %v1291
      %v1293 = vrot.slane %v1292, 1
      %v1294 = vadd.f32 %v1292, %v1293
      %s1295 = vtos %v1294
      %v1296 = vstv %s1295
      %v1297 = vsel %vm1070, %v1296, %v1280
      %v1298 = vsel %vm1071, %v1296, %v1281
      %v1299 = vsel %vm1093, %v1241, 0.0
      %v1300 = vsel %vm1094, %v1247, 0.0
      %v1301 = vsel %vm469, %v1299, 0.0
      %v1302 = vsel %vm469, %v1300, 0.0
      %v1303 = vadd.f32 %v1301, %v1302
      %1304 = vadd.xlane.f32.xlu0 %v1303
      %v1305 = vpop.xlane.xlu0 %1304
      %v1306 = vrot.slane %v1305, 4
      %v1307 = vadd.f32 %v1305, %v1306
      %v1308 = vrot.slane %v1307, 2
      %v1309 = vadd.f32 %v1307, %v1308
      %v1310 = vrot.slane %v1309, 1
      %v1311 = vadd.f32 %v1309, %v1310
      %s1312 = vtos %v1311
      %v1313 = vstv %s1312
      %v1314 = vsel %vm1093, %v1313, %v1297
      %v1315 = vsel %vm1094, %v1313, %v1298
      %v1316 = vsel %vm1116, %v1241, 0.0
      %v1317 = vsel %vm1117, %v1247, 0.0
      %v1318 = vsel %vm469, %v1316, 0.0
      %v1319 = vsel %vm469, %v1317, 0.0
      %v1320 = vadd.f32 %v1318, %v1319
      %1321 = vadd.xlane.f32.xlu0 %v1320
      %v1322 = vpop.xlane.xlu0 %1321
      %v1323 = vrot.slane %v1322, 4
      %v1324 = vadd.f32 %v1322, %v1323
      %v1325 = vrot.slane %v1324, 2
      %v1326 = vadd.f32 %v1324, %v1325
      %v1327 = vrot.slane %v1326, 1
      %v1328 = vadd.f32 %v1326, %v1327
      %s1329 = vtos %v1328
      %v1330 = vstv %s1329
      %v1331 = vsel %vm1116, %v1330, %v1314
      %v1332 = vsel %vm1117, %v1330, %v1315
      %v1333 = vsel %vm1139, %v1241, 0.0
      %v1334 = vsel %vm1140, %v1247, 0.0
      %v1335 = vsel %vm469, %v1333, 0.0
      %v1336 = vsel %vm469, %v1334, 0.0
      %v1337 = vadd.f32 %v1335, %v1336
      %1338 = vadd.xlane.f32.xlu0 %v1337
      %v1339 = vpop.xlane.xlu0 %1338
      %v1340 = vrot.slane %v1339, 4
      %v1341 = vadd.f32 %v1339, %v1340
      %v1342 = vrot.slane %v1341, 2
      %v1343 = vadd.f32 %v1341, %v1342
      %v1344 = vrot.slane %v1343, 1
      %v1345 = vadd.f32 %v1343, %v1344
      %s1346 = vtos %v1345
      %v1347 = vstv %s1346
      %v1348 = vsel %vm1139, %v1347, %v1331
      %v1349 = vsel %vm1140, %v1347, %v1332
      %v1350 = vsel %vm1162, %v1241, 0.0
      %v1351 = vsel %vm1163, %v1247, 0.0
      %v1352 = vsel %vm469, %v1350, 0.0
      %v1353 = vsel %vm469, %v1351, 0.0
      %v1354 = vadd.f32 %v1352, %v1353
      %1355 = vadd.xlane.f32.xlu0 %v1354
      %v1356 = vpop.xlane.xlu0 %1355
      %v1357 = vrot.slane %v1356, 4
      %v1358 = vadd.f32 %v1356, %v1357
      %v1359 = vrot.slane %v1358, 2
      %v1360 = vadd.f32 %v1358, %v1359
      %v1361 = vrot.slane %v1360, 1
      %v1362 = vadd.f32 %v1360, %v1361
      %s1363 = vtos %v1362
      %v1364 = vstv %s1363
      %v1365 = vsel %vm1162, %v1364, %v1348
      %v1366 = vsel %vm1163, %v1364, %v1349
      %v1367 = vsel %vm1185, %v1241, 0.0
      %v1368 = vsel %vm1186, %v1247, 0.0
      %v1369 = vsel %vm469, %v1367, 0.0
      %v1370 = vsel %vm469, %v1368, 0.0
      %v1371 = vadd.f32 %v1369, %v1370
      %1372 = vadd.xlane.f32.xlu0 %v1371
      %v1373 = vpop.xlane.xlu0 %1372
      %v1374 = vrot.slane %v1373, 4
      %v1375 = vadd.f32 %v1373, %v1374
      %v1376 = vrot.slane %v1375, 2
      %v1377 = vadd.f32 %v1375, %v1376
      %v1378 = vrot.slane %v1377, 1
      %v1379 = vadd.f32 %v1377, %v1378
      %s1380 = vtos %v1379
      %v1381 = vstv %s1380
      %v1382 = vsel %vm1185, %v1381, %v1365
      %v1383 = vsel %vm1186, %v1381, %v1366
      %v1384 = vmul.f32 %v1382, 0.001953125
      %v1385 = vmul.f32 %v1383, 0.001953125
      %v1386 = vadd.f32 %v1384, 1e-05
      %v1387 = vadd.f32 %v1385, 1e-05
      %v1388 = vrsqrt.pop %v1386
      %v1389 = vrsqrt.pop %v1387
      %v1390 = vmul.f32 %v1388, %v1004
      %v1391 = vmul.f32 %v1389, %v1005
      %1393 = vset.pattern.permute.xlu0 0
      %1394 = vperm.xlu0 %1393, %v1390
      %v1395 = vpop.permute.xlu0 %1394
      %1398 = vset.pattern.permute.xlu0 0
      %1399 = vperm.xlu0 %1398, %v1391
      %v1400 = vpop.permute.xlu0 %1399
      %v1402 = vmul.f32 %v1216, %v1395
      %v1403 = vmul.f32 %v1217, %v1395
      %v1404 = vmul.f32 %v1218, %v1395
      %v1405 = vmul.f32 %v1219, %v1395
      %v1406 = vmul.f32 %v1220, %v1395
      %v1407 = vmul.f32 %v1221, %v1400
      %v1408 = vmul.f32 %v1222, %v1400
      %v1409 = vmul.f32 %v1223, %v1400
      %v1410 = vmul.f32 %v1224, %v1400
      %v1411 = vmul.f32 %v1225, %v1400
      %1413 = vset.pattern.permute.xlu0 0
      %1414 = vperm.xlu0 %1413, %v1006
      %v1415 = vpop.permute.xlu0 %1414
      %1418 = vset.pattern.permute.xlu0 0
      %1419 = vperm.xlu0 %1418, %v1007
      %v1420 = vpop.permute.xlu0 %1419
      %v1422 = vadd.f32 %v1402, %v1415
      %v1423 = vadd.f32 %v1403, %v1415
      %v1424 = vadd.f32 %v1404, %v1415
      %v1425 = vadd.f32 %v1405, %v1415
      %v1426 = vadd.f32 %v1406, %v1415
      %v1427 = vadd.f32 %v1407, %v1420
      %v1428 = vadd.f32 %v1408, %v1420
      %v1429 = vadd.f32 %v1409, %v1420
      %v1430 = vadd.f32 %v1410, %v1420
      %v1431 = vadd.f32 %v1411, %v1420
      %v1432 = vsel %vm989, %v1422, 0.0
      %v1433 = vsel %vm990, %v1423, 0.0
      %v1434 = vsel %vm991, %v1424, 0.0
      %v1435 = vsel %vm992, %v1425, 0.0
      %v1436 = vsel %vm993, %v1426, 0.0
      %v1437 = vsel %vm989, %v1427, 0.0
      %v1438 = vsel %vm990, %v1428, 0.0
      %v1439 = vsel %vm991, %v1429, 0.0
      %v1440 = vsel %vm992, %v1430, 0.0
      %v1441 = vsel %vm993, %v1431, 0.0
      %1442 = vst [vmem:[#allocation2 + $0x8] sm:$0xff] %v1432
      %1443 = vst [vmem:[#allocation2 + $0x10] sm:$0xff] %v1433
      %1444 = vst [vmem:[#allocation2 + $0x18] sm:$0xff] %v1434
      %1445 = vst [vmem:[#allocation2 + $0x20] sm:$0xff] %v1435
      %1446 = vst [vmem:[#allocation2 + $0x28] sm:$0xff] %v1436
      %1447 = vst [vmem:[#allocation2 + $0x40] sm:$0xff] %v1437
      %1448 = vst [vmem:[#allocation2 + $0x48] sm:$0xff] %v1438
      %1449 = vst [vmem:[#allocation2 + $0x50] sm:$0xff] %v1439
      %1450 = vst [vmem:[#allocation2 + $0x58] sm:$0xff] %v1440
      %1451 = vst [vmem:[#allocation2 + $0x60] sm:$0xff] %v1441
      %v1452 = vld [vmem:[#allocation2] sm:$0xff]
      %v1453 = vld [vmem:[#allocation2 + $0x8] sm:$0xff]
      %v1454 = vld [vmem:[#allocation2 + $0x10] sm:$0xff]
      %v1455 = vld [vmem:[#allocation2 + $0x18] sm:$0xff]
      %v1456 = vld [vmem:[#allocation2 + $0x20] sm:$0xff]
      %v1457 = vld [vmem:[#allocation2 + $0x28] sm:$0xff]
      %v1458 = vld [vmem:[#allocation2 + $0x38] sm:$0xff]
      %v1459 = vld [vmem:[#allocation2 + $0x40] sm:$0xff]
      %v1460 = vld [vmem:[#allocation2 + $0x48] sm:$0xff]
      %v1461 = vld [vmem:[#allocation2 + $0x50] sm:$0xff]
      %v1462 = vld [vmem:[#allocation2 + $0x58] sm:$0xff]
      %v1463 = vld [vmem:[#allocation2 + $0x60] sm:$0xff]
      %1476 = vrot.lane.b32.xlu0 %v1452, 101
      %v1477 = vpop.permute.xlu0 %1476
      %1478 = vrot.lane.b32.xlu0 %v1453, 101
      %v1479 = vpop.permute.xlu0 %1478
      %1480 = vrot.lane.b32.xlu0 %v1454, 101
      %v1481 = vpop.permute.xlu0 %1480
      %1482 = vrot.lane.b32.xlu0 %v1455, 101
      %v1483 = vpop.permute.xlu0 %1482
      %1484 = vrot.lane.b32.xlu0 %v1456, 101
      %v1485 = vpop.permute.xlu0 %1484
      %1486 = vrot.lane.b32.xlu0 %v1457, 101
      %v1487 = vpop.permute.xlu0 %1486
      %1488 = vrot.lane.b32.xlu0 %v1458, 101
      %v1489 = vpop.permute.xlu0 %1488
      %1490 = vrot.lane.b32.xlu0 %v1459, 101
      %v1491 = vpop.permute.xlu0 %1490
      %1492 = vrot.lane.b32.xlu0 %v1460, 101
      %v1493 = vpop.permute.xlu0 %1492
      %1494 = vrot.lane.b32.xlu0 %v1461, 101
      %v1495 = vpop.permute.xlu0 %1494
      %1496 = vrot.lane.b32.xlu0 %v1462, 101
      %v1497 = vpop.permute.xlu0 %1496
      %1498 = vrot.lane.b32.xlu0 %v1463, 101
      %v1499 = vpop.permute.xlu0 %1498
      %vm1500 = vcmask 826368
      %v1501 = vsel %vm1500, %v1477, %v1479
      %v1502 = vsel %vm1500, %v1479, %v1481
      %v1503 = vsel %vm1500, %v1481, %v1483
      %v1504 = vsel %vm1500, %v1483, %v1485
      %v1505 = vsel %vm1500, %v1485, %v1487
      %v1506 = vsel %vm1500, %v1489, %v1491
      %v1507 = vsel %vm1500, %v1491, %v1493
      %v1508 = vsel %vm1500, %v1493, %v1495
      %v1509 = vsel %vm1500, %v1495, %v1497
      %v1510 = vsel %vm1500, %v1497, %v1499
      %1521 = vst [vmem:[#allocation4] sm:$0xff] %v1501
      %1522 = vst [vmem:[#allocation4 + $0x8] sm:$0xff] %v1502
      %1523 = vst [vmem:[#allocation4 + $0x10] sm:$0xff] %v1503
      %1524 = vst [vmem:[#allocation4 + $0x18] sm:$0xff] %v1504
      %1525 = vst [vmem:[#allocation4 + $0x20] sm:$0xff] %v1505
      %1526 = vst [vmem:[#allocation4 + $0x28] sm:$0xff] %v1506
      %1527 = vst [vmem:[#allocation4 + $0x30] sm:$0xff] %v1507
      %1528 = vst [vmem:[#allocation4 + $0x38] sm:$0xff] %v1508
      %1529 = vst [vmem:[#allocation4 + $0x40] sm:$0xff] %v1509
      %1530 = vst [vmem:[#allocation4 + $0x48] sm:$0xff] %v1510
      %v1531 = vld [vmem:[#allocation2] sm:$0xff]
      %v1532 = vld [vmem:[#allocation2 + $0x8] sm:$0xff]
      %v1533 = vld [vmem:[#allocation2 + $0x10] sm:$0xff]
      %v1534 = vld [vmem:[#allocation2 + $0x18] sm:$0xff]
      %v1535 = vld [vmem:[#allocation2 + $0x20] sm:$0xff]
      %v1536 = vld [vmem:[#allocation2 + $0x28] sm:$0xff]
      %v1537 = vld [vmem:[#allocation2 + $0x38] sm:$0xff]
      %v1538 = vld [vmem:[#allocation2 + $0x40] sm:$0xff]
      %v1539 = vld [vmem:[#allocation2 + $0x48] sm:$0xff]
      %v1540 = vld [vmem:[#allocation2 + $0x50] sm:$0xff]
      %v1541 = vld [vmem:[#allocation2 + $0x58] sm:$0xff]
      %v1542 = vld [vmem:[#allocation2 + $0x60] sm:$0xff]
      %1555 = vrot.lane.b32.xlu0 %v1531, 100
      %v1556 = vpop.permute.xlu0 %1555
      %1557 = vrot.lane.b32.xlu0 %v1532, 100
      %v1558 = vpop.permute.xlu0 %1557
      %1559 = vrot.lane.b32.xlu0 %v1533, 100
      %v1560 = vpop.permute.xlu0 %1559
      %1561 = vrot.lane.b32.xlu0 %v1534, 100
      %v1562 = vpop.permute.xlu0 %1561
      %1563 = vrot.lane.b32.xlu0 %v1535, 100
      %v1564 = vpop.permute.xlu0 %1563
      %1565 = vrot.lane.b32.xlu0 %v1536, 100
      %v1566 = vpop.permute.xlu0 %1565
      %1567 = vrot.lane.b32.xlu0 %v1537, 100
      %v1568 = vpop.permute.xlu0 %1567
      %1569 = vrot.lane.b32.xlu0 %v1538, 100
      %v1570 = vpop.permute.xlu0 %1569
      %1571 = vrot.lane.b32.xlu0 %v1539, 100
      %v1572 = vpop.permute.xlu0 %1571
      %1573 = vrot.lane.b32.xlu0 %v1540, 100
      %v1574 = vpop.permute.xlu0 %1573
      %1575 = vrot.lane.b32.xlu0 %v1541, 100
      %v1576 = vpop.permute.xlu0 %1575
      %1577 = vrot.lane.b32.xlu0 %v1542, 100
      %v1578 = vpop.permute.xlu0 %1577
      %vm1579 = vcmask 818176
      %v1580 = vsel %vm1579, %v1556, %v1558
      %v1581 = vsel %vm1579, %v1558, %v1560
      %v1582 = vsel %vm1579, %v1560, %v1562
      %v1583 = vsel %vm1579, %v1562, %v1564
      %v1584 = vsel %vm1579, %v1564, %v1566
      %v1585 = vsel %vm1579, %v1568, %v1570
      %v1586 = vsel %vm1579, %v1570, %v1572
      %v1587 = vsel %vm1579, %v1572, %v1574
      %v1588 = vsel %vm1579, %v1574, %v1576
      %v1589 = vsel %vm1579, %v1576, %v1578
      %1600 = vst [vmem:[#allocation4 + $0x50] sm:$0xff] %v1580
      %1601 = vst [vmem:[#allocation4 + $0x58] sm:$0xff] %v1581
      %1602 = vst [vmem:[#allocation4 + $0x60] sm:$0xff] %v1582
      %1603 = vst [vmem:[#allocation4 + $0x68] sm:$0xff] %v1583
      %1604 = vst [vmem:[#allocation4 + $0x70] sm:$0xff] %v1584
      %1605 = vst [vmem:[#allocation4 + $0x78] sm:$0xff] %v1585
      %1606 = vst [vmem:[#allocation4 + $0x80] sm:$0xff] %v1586
      %1607 = vst [vmem:[#allocation4 + $0x88] sm:$0xff] %v1587
      %1608 = vst [vmem:[#allocation4 + $0x90] sm:$0xff] %v1588
      %1609 = vst [vmem:[#allocation4 + $0x98] sm:$0xff] %v1589
      %v1610 = vld [vmem:[#allocation2] sm:$0xff]
      %v1611 = vld [vmem:[#allocation2 + $0x8] sm:$0xff]
      %v1612 = vld [vmem:[#allocation2 + $0x10] sm:$0xff]
      %v1613 = vld [vmem:[#allocation2 + $0x18] sm:$0xff]
      %v1614 = vld [vmem:[#allocation2 + $0x20] sm:$0xff]
      %v1615 = vld [vmem:[#allocation2 + $0x28] sm:$0xff]
      %v1616 = vld [vmem:[#allocation2 + $0x38] sm:$0xff]
      %v1617 = vld [vmem:[#allocation2 + $0x40] sm:$0xff]
      %v1618 = vld [vmem:[#allocation2 + $0x48] sm:$0xff]
      %v1619 = vld [vmem:[#allocation2 + $0x50] sm:$0xff]
      %v1620 = vld [vmem:[#allocation2 + $0x58] sm:$0xff]
      %v1621 = vld [vmem:[#allocation2 + $0x60] sm:$0xff]
      %1634 = vrot.lane.b32.xlu0 %v1610, 99
      %v1635 = vpop.permute.xlu0 %1634
      %1636 = vrot.lane.b32.xlu0 %v1611, 99
      %v1637 = vpop.permute.xlu0 %1636
      %1638 = vrot.lane.b32.xlu0 %v1612, 99
      %v1639 = vpop.permute.xlu0 %1638
      %1640 = vrot.lane.b32.xlu0 %v1613, 99
      %v1641 = vpop.permute.xlu0 %1640
      %1642 = vrot.lane.b32.xlu0 %v1614, 99
      %v1643 = vpop.permute.xlu0 %1642
      %1644 = vrot.lane.b32.xlu0 %v1615, 99
      %v1645 = vpop.permute.xlu0 %1644
      %1646 = vrot.lane.b32.xlu0 %v1616, 99
      %v1647 = vpop.permute.xlu0 %1646
      %1648 = vrot.lane.b32.xlu0 %v1617, 99
      %v1649 = vpop.permute.xlu0 %1648
      %1650 = vrot.lane.b32.xlu0 %v1618, 99
      %v1651 = vpop.permute.xlu0 %1650
      %1652 = vrot.lane.b32.xlu0 %v1619, 99
      %v1653 = vpop.permute.xlu0 %1652
      %1654 = vrot.lane.b32.xlu0 %v1620, 99
      %v1655 = vpop.permute.xlu0 %1654
      %1656 = vrot.lane.b32.xlu0 %v1621, 99
      %v1657 = vpop.permute.xlu0 %1656
      %vm1658 = vcmask 809984
      %v1659 = vsel %vm1658, %v1635, %v1637
      %v1660 = vsel %vm1658, %v1637, %v1639
      %v1661 = vsel %vm1658, %v1639, %v1641
      %v1662 = vsel %vm1658, %v1641, %v1643
      %v1663 = vsel %vm1658, %v1643, %v1645
      %v1664 = vsel %vm1658, %v1647, %v1649
      %v1665 = vsel %vm1658, %v1649, %v1651
      %v1666 = vsel %vm1658, %v1651, %v1653
      %v1667 = vsel %vm1658, %v1653, %v1655
      %v1668 = vsel %vm1658, %v1655, %v1657
      %1679 = vst [vmem:[#allocation4 + $0xa0] sm:$0xff] %v1659
      %1680 = vst [vmem:[#allocation4 + $0xa8] sm:$0xff] %v1660
      %1681 = vst [vmem:[#allocation4 + $0xb0] sm:$0xff] %v1661
      %1682 = vst [vmem:[#allocation4 + $0xb8] sm:$0xff] %v1662
      %1683 = vst [vmem:[#allocation4 + $0xc0] sm:$0xff] %v1663
      %1684 = vst [vmem:[#allocation4 + $0xc8] sm:$0xff] %v1664
      %1685 = vst [vmem:[#allocation4 + $0xd0] sm:$0xff] %v1665
      %1686 = vst [vmem:[#allocation4 + $0xd8] sm:$0xff] %v1666
      %1687 = vst [vmem:[#allocation4 + $0xe0] sm:$0xff] %v1667
      %1688 = vst [vmem:[#allocation4 + $0xe8] sm:$0xff] %v1668
      %v1689 = vld [vmem:[#allocation2] sm:$0xff]
      %v1690 = vld [vmem:[#allocation2 + $0x8] sm:$0xff]
      %v1691 = vld [vmem:[#allocation2 + $0x10] sm:$0xff]
      %v1692 = vld [vmem:[#allocation2 + $0x18] sm:$0xff]
      %v1693 = vld [vmem:[#allocation2 + $0x20] sm:$0xff]
      %v1694 = vld [vmem:[#allocation2 + $0x28] sm:$0xff]
      %v1695 = vld [vmem:[#allocation2 + $0x38] sm:$0xff]
      %v1696 = vld [vmem:[#allocation2 + $0x40] sm:$0xff]
      %v1697 = vld [vmem:[#allocation2 + $0x48] sm:$0xff]
      %v1698 = vld [vmem:[#allocation2 + $0x50] sm:$0xff]
      %v1699 = vld [vmem:[#allocation2 + $0x58] sm:$0xff]
      %v1700 = vld [vmem:[#allocation2 + $0x60] sm:$0xff]
      %1713 = vrot.lane.b32.xlu0 %v1689, 1
      %v1714 = vpop.permute.xlu0 %1713
      %1715 = vrot.lane.b32.xlu0 %v1690, 1
      %v1716 = vpop.permute.xlu0 %1715
      %1717 = vrot.lane.b32.xlu0 %v1691, 1
      %v1718 = vpop.permute.xlu0 %1717
      %1719 = vrot.lane.b32.xlu0 %v1692, 1
      %v1720 = vpop.permute.xlu0 %1719
      %1721 = vrot.lane.b32.xlu0 %v1693, 1
      %v1722 = vpop.permute.xlu0 %1721
      %1723 = vrot.lane.b32.xlu0 %v1694, 1
      %v1724 = vpop.permute.xlu0 %1723
      %1725 = vrot.lane.b32.xlu0 %v1695, 1
      %v1726 = vpop.permute.xlu0 %1725
      %1727 = vrot.lane.b32.xlu0 %v1696, 1
      %v1728 = vpop.permute.xlu0 %1727
      %1729 = vrot.lane.b32.xlu0 %v1697, 1
      %v1730 = vpop.permute.xlu0 %1729
      %1731 = vrot.lane.b32.xlu0 %v1698, 1
      %v1732 = vpop.permute.xlu0 %1731
      %1733 = vrot.lane.b32.xlu0 %v1699, 1
      %v1734 = vpop.permute.xlu0 %1733
      %1735 = vrot.lane.b32.xlu0 %v1700, 1
      %v1736 = vpop.permute.xlu0 %1735
      %v1737 = vsel %vm469, %v1714, %v1716
      %v1738 = vsel %vm469, %v1716, %v1718
      %v1739 = vsel %vm469, %v1718, %v1720
      %v1740 = vsel %vm469, %v1720, %v1722
      %v1741 = vsel %vm469, %v1722, %v1724
      %v1742 = vsel %vm469, %v1726, %v1728
      %v1743 = vsel %vm469, %v1728, %v1730
      %v1744 = vsel %vm469, %v1730, %v1732
      %v1745 = vsel %vm469, %v1732, %v1734
      %v1746 = vsel %vm469, %v1734, %v1736
      %1757 = vst [vmem:[#allocation4 + $0xf0] sm:$0xff] %v1737
      %1758 = vst [vmem:[#allocation4 + $0xf8] sm:$0xff] %v1738
      %1759 = vst [vmem:[#allocation4 + $0x100] sm:$0xff] %v1739
      %1760 = vst [vmem:[#allocation4 + $0x108] sm:$0xff] %v1740
      %1761 = vst [vmem:[#allocation4 + $0x110] sm:$0xff] %v1741
      %1762 = vst [vmem:[#allocation4 + $0x118] sm:$0xff] %v1742
      %1763 = vst [vmem:[#allocation4 + $0x120] sm:$0xff] %v1743
      %1764 = vst [vmem:[#allocation4 + $0x128] sm:$0xff] %v1744
      %1765 = vst [vmem:[#allocation4 + $0x130] sm:$0xff] %v1745
      %1766 = vst [vmem:[#allocation4 + $0x138] sm:$0xff] %v1746
      %v1767 = vld [vmem:[#allocation2 + $0x8] sm:$0xff]
      %v1768 = vld [vmem:[#allocation2 + $0x10] sm:$0xff]
      %v1769 = vld [vmem:[#allocation2 + $0x18] sm:$0xff]
      %v1770 = vld [vmem:[#allocation2 + $0x20] sm:$0xff]
      %v1771 = vld [vmem:[#allocation2 + $0x28] sm:$0xff]
      %v1772 = vld [vmem:[#allocation2 + $0x40] sm:$0xff]
      %v1773 = vld [vmem:[#allocation2 + $0x48] sm:$0xff]
      %v1774 = vld [vmem:[#allocation2 + $0x50] sm:$0xff]
      %v1775 = vld [vmem:[#allocation2 + $0x58] sm:$0xff]
      %v1776 = vld [vmem:[#allocation2 + $0x60] sm:$0xff]
      %1777 = vst [vmem:[#allocation4 + $0x140] sm:$0xff] %v1767
      %1778 = vst [vmem:[#allocation4 + $0x148] sm:$0xff] %v1768
      %1779 = vst [vmem:[#allocation4 + $0x150] sm:$0xff] %v1769
      %1780 = vst [vmem:[#allocation4 + $0x158] sm:$0xff] %v1770
      %1781 = vst [vmem:[#allocation4 + $0x160] sm:$0xff] %v1771
      %1782 = vst [vmem:[#allocation4 + $0x168] sm:$0xff] %v1772
      %1783 = vst [vmem:[#allocation4 + $0x170] sm:$0xff] %v1773
      %1784 = vst [vmem:[#allocation4 + $0x178] sm:$0xff] %v1774
      %1785 = vst [vmem:[#allocation4 + $0x180] sm:$0xff] %v1775
      %1786 = vst [vmem:[#allocation4 + $0x188] sm:$0xff] %v1776
      %v1787 = vld [vmem:[#allocation2 + $0x8] sm:$0xff]
      %v1788 = vld [vmem:[#allocation2 + $0x10] sm:$0xff]
      %v1789 = vld [vmem:[#allocation2 + $0x18] sm:$0xff]
      %v1790 = vld [vmem:[#allocation2 + $0x20] sm:$0xff]
      %v1791 = vld [vmem:[#allocation2 + $0x28] sm:$0xff]
      %v1792 = vld [vmem:[#allocation2 + $0x30] sm:$0xff]
      %v1793 = vld [vmem:[#allocation2 + $0x40] sm:$0xff]
      %v1794 = vld [vmem:[#allocation2 + $0x48] sm:$0xff]
      %v1795 = vld [vmem:[#allocation2 + $0x50] sm:$0xff]
      %v1796 = vld [vmem:[#allocation2 + $0x58] sm:$0xff]
      %v1797 = vld [vmem:[#allocation2 + $0x60] sm:$0xff]
      %v1798 = vld [vmem:[#allocation2 + $0x68] sm:$0xff]
      %1811 = vrot.lane.b32.xlu0 %v1787, 127
      %v1812 = vpop.permute.xlu0 %1811
      %1813 = vrot.lane.b32.xlu0 %v1788, 127
      %v1814 = vpop.permute.xlu0 %1813
      %1815 = vrot.lane.b32.xlu0 %v1789, 127
      %v1816 = vpop.permute.xlu0 %1815
      %1817 = vrot.lane.b32.xlu0 %v1790, 127
      %v1818 = vpop.permute.xlu0 %1817
      %1819 = vrot.lane.b32.xlu0 %v1791, 127
      %v1820 = vpop.permute.xlu0 %1819
      %1821 = vrot.lane.b32.xlu0 %v1792, 127
      %v1822 = vpop.permute.xlu0 %1821
      %1823 = vrot.lane.b32.xlu0 %v1793, 127
      %v1824 = vpop.permute.xlu0 %1823
      %1825 = vrot.lane.b32.xlu0 %v1794, 127
      %v1826 = vpop.permute.xlu0 %1825
      %1827 = vrot.lane.b32.xlu0 %v1795, 127
      %v1828 = vpop.permute.xlu0 %1827
      %1829 = vrot.lane.b32.xlu0 %v1796, 127
      %v1830 = vpop.permute.xlu0 %1829
      %1831 = vrot.lane.b32.xlu0 %v1797, 127
      %v1832 = vpop.permute.xlu0 %1831
      %1833 = vrot.lane.b32.xlu0 %v1798, 127
      %v1834 = vpop.permute.xlu0 %1833
      %v1835 = vsel %vm519, %v1812, %v1814
      %v1836 = vsel %vm519, %v1814, %v1816
      %v1837 = vsel %vm519, %v1816, %v1818
      %v1838 = vsel %vm519, %v1818, %v1820
      %v1839 = vsel %vm519, %v1820, %v1822
      %v1840 = vsel %vm519, %v1824, %v1826
      %v1841 = vsel %vm519, %v1826, %v1828
      %v1842 = vsel %vm519, %v1828, %v1830
      %v1843 = vsel %vm519, %v1830, %v1832
      %v1844 = vsel %vm519, %v1832, %v1834
      %1855 = vst [vmem:[#allocation4 + $0x190] sm:$0xff] %v1835
      %1856 = vst [vmem:[#allocation4 + $0x198] sm:$0xff] %v1836
      %1857 = vst [vmem:[#allocation4 + $0x1a0] sm:$0xff] %v1837
      %1858 = vst [vmem:[#allocation4 + $0x1a8] sm:$0xff] %v1838
      %1859 = vst [vmem:[#allocation4 + $0x1b0] sm:$0xff] %v1839
      %1860 = vst [vmem:[#allocation4 + $0x1b8] sm:$0xff] %v1840
      %1861 = vst [vmem:[#allocation4 + $0x1c0] sm:$0xff] %v1841
      %1862 = vst [vmem:[#allocation4 + $0x1c8] sm:$0xff] %v1842
      %1863 = vst [vmem:[#allocation4 + $0x1d0] sm:$0xff] %v1843
      %1864 = vst [vmem:[#allocation4 + $0x1d8] sm:$0xff] %v1844
      %v1865 = vld [vmem:[#allocation2 + $0x8] sm:$0xff]
      %v1866 = vld [vmem:[#allocation2 + $0x10] sm:$0xff]
      %v1867 = vld [vmem:[#allocation2 + $0x18] sm:$0xff]
      %v1868 = vld [vmem:[#allocation2 + $0x20] sm:$0xff]
      %v1869 = vld [vmem:[#allocation2 + $0x28] sm:$0xff]
      %v1870 = vld [vmem:[#allocation2 + $0x30] sm:$0xff]
      %v1871 = vld [vmem:[#allocation2 + $0x40] sm:$0xff]
      %v1872 = vld [vmem:[#allocation2 + $0x48] sm:$0xff]
      %v1873 = vld [vmem:[#allocation2 + $0x50] sm:$0xff]
      %v1874 = vld [vmem:[#allocation2 + $0x58] sm:$0xff]
      %v1875 = vld [vmem:[#allocation2 + $0x60] sm:$0xff]
      %v1876 = vld [vmem:[#allocation2 + $0x68] sm:$0xff]
      %1889 = vrot.lane.b32.xlu0 %v1865, 29
      %v1890 = vpop.permute.xlu0 %1889
      %1891 = vrot.lane.b32.xlu0 %v1866, 29
      %v1892 = vpop.permute.xlu0 %1891
      %1893 = vrot.lane.b32.xlu0 %v1867, 29
      %v1894 = vpop.permute.xlu0 %1893
      %1895 = vrot.lane.b32.xlu0 %v1868, 29
      %v1896 = vpop.permute.xlu0 %1895
      %1897 = vrot.lane.b32.xlu0 %v1869, 29
      %v1898 = vpop.permute.xlu0 %1897
      %1899 = vrot.lane.b32.xlu0 %v1870, 29
      %v1900 = vpop.permute.xlu0 %1899
      %1901 = vrot.lane.b32.xlu0 %v1871, 29
      %v1902 = vpop.permute.xlu0 %1901
      %1903 = vrot.lane.b32.xlu0 %v1872, 29
      %v1904 = vpop.permute.xlu0 %1903
      %1905 = vrot.lane.b32.xlu0 %v1873, 29
      %v1906 = vpop.permute.xlu0 %1905
      %1907 = vrot.lane.b32.xlu0 %v1874, 29
      %v1908 = vpop.permute.xlu0 %1907
      %1909 = vrot.lane.b32.xlu0 %v1875, 29
      %v1910 = vpop.permute.xlu0 %1909
      %1911 = vrot.lane.b32.xlu0 %v1876, 29
      %v1912 = vpop.permute.xlu0 %1911
      %vm1913 = vcmask 236544
      %v1914 = vsel %vm1913, %v1890, %v1892
      %v1915 = vsel %vm1913, %v1892, %v1894
      %v1916 = vsel %vm1913, %v1894, %v1896
      %v1917 = vsel %vm1913, %v1896, %v1898
      %v1918 = vsel %vm1913, %v1898, %v1900
      %v1919 = vsel %vm1913, %v1902, %v1904
      %v1920 = vsel %vm1913, %v1904, %v1906
      %v1921 = vsel %vm1913, %v1906, %v1908
      %v1922 = vsel %vm1913, %v1908, %v1910
      %v1923 = vsel %vm1913, %v1910, %v1912
      %1934 = vst [vmem:[#allocation4 + $0x1e0] sm:$0xff] %v1914
      %1935 = vst [vmem:[#allocation4 + $0x1e8] sm:$0xff] %v1915
      %1936 = vst [vmem:[#allocation4 + $0x1f0] sm:$0xff] %v1916
      %1937 = vst [vmem:[#allocation4 + $0x1f8] sm:$0xff] %v1917
      %1938 = vst [vmem:[#allocation4 + $0x200] sm:$0xff] %v1918
      %1939 = vst [vmem:[#allocation4 + $0x208] sm:$0xff] %v1919
      %1940 = vst [vmem:[#allocation4 + $0x210] sm:$0xff] %v1920
      %1941 = vst [vmem:[#allocation4 + $0x218] sm:$0xff] %v1921
      %1942 = vst [vmem:[#allocation4 + $0x220] sm:$0xff] %v1922
      %1943 = vst [vmem:[#allocation4 + $0x228] sm:$0xff] %v1923
      %v1944 = vld [vmem:[#allocation2 + $0x8] sm:$0xff]
      %v1945 = vld [vmem:[#allocation2 + $0x10] sm:$0xff]
      %v1946 = vld [vmem:[#allocation2 + $0x18] sm:$0xff]
      %v1947 = vld [vmem:[#allocation2 + $0x20] sm:$0xff]
      %v1948 = vld [vmem:[#allocation2 + $0x28] sm:$0xff]
      %v1949 = vld [vmem:[#allocation2 + $0x30] sm:$0xff]
      %v1950 = vld [vmem:[#allocation2 + $0x40] sm:$0xff]
      %v1951 = vld [vmem:[#allocation2 + $0x48] sm:$0xff]
      %v1952 = vld [vmem:[#allocation2 + $0x50] sm:$0xff]
      %v1953 = vld [vmem:[#allocation2 + $0x58] sm:$0xff]
      %v1954 = vld [vmem:[#allocation2 + $0x60] sm:$0xff]
      %v1955 = vld [vmem:[#allocation2 + $0x68] sm:$0xff]
      %1968 = vrot.lane.b32.xlu0 %v1944, 28
      %v1969 = vpop.permute.xlu0 %1968
      %1970 = vrot.lane.b32.xlu0 %v1945, 28
      %v1971 = vpop.permute.xlu0 %1970
      %1972 = vrot.lane.b32.xlu0 %v1946, 28
      %v1973 = vpop.permute.xlu0 %1972
      %1974 = vrot.lane.b32.xlu0 %v1947, 28
      %v1975 = vpop.permute.xlu0 %1974
      %1976 = vrot.lane.b32.xlu0 %v1948, 28
      %v1977 = vpop.permute.xlu0 %1976
      %1978 = vrot.lane.b32.xlu0 %v1949, 28
      %v1979 = vpop.permute.xlu0 %1978
      %1980 = vrot.lane.b32.xlu0 %v1950, 28
      %v1981 = vpop.permute.xlu0 %1980
      %1982 = vrot.lane.b32.xlu0 %v1951, 28
      %v1983 = vpop.permute.xlu0 %1982
      %1984 = vrot.lane.b32.xlu0 %v1952, 28
      %v1985 = vpop.permute.xlu0 %1984
      %1986 = vrot.lane.b32.xlu0 %v1953, 28
      %v1987 = vpop.permute.xlu0 %1986
      %1988 = vrot.lane.b32.xlu0 %v1954, 28
      %v1989 = vpop.permute.xlu0 %1988
      %1990 = vrot.lane.b32.xlu0 %v1955, 28
      %v1991 = vpop.permute.xlu0 %1990
      %vm1992 = vcmask 228352
      %v1993 = vsel %vm1992, %v1969, %v1971
      %v1994 = vsel %vm1992, %v1971, %v1973
      %v1995 = vsel %vm1992, %v1973, %v1975
      %v1996 = vsel %vm1992, %v1975, %v1977
      %v1997 = vsel %vm1992, %v1977, %v1979
      %v1998 = vsel %vm1992, %v1981, %v1983
      %v1999 = vsel %vm1992, %v1983, %v1985
      %v2000 = vsel %vm1992, %v1985, %v1987
      %v2001 = vsel %vm1992, %v1987, %v1989
      %v2002 = vsel %vm1992, %v1989, %v1991
      %2013 = vst [vmem:[#allocation4 + $0x230] sm:$0xff] %v1993
      %2014 = vst [vmem:[#allocation4 + $0x238] sm:$0xff] %v1994
      %2015 = vst [vmem:[#allocation4 + $0x240] sm:$0xff] %v1995
      %2016 = vst [vmem:[#allocation4 + $0x248] sm:$0xff] %v1996
      %2017 = vst [vmem:[#allocation4 + $0x250] sm:$0xff] %v1997
      %2018 = vst [vmem:[#allocation4 + $0x258] sm:$0xff] %v1998
      %2019 = vst [vmem:[#allocation4 + $0x260] sm:$0xff] %v1999
      %2020 = vst [vmem:[#allocation4 + $0x268] sm:$0xff] %v2000
      %2021 = vst [vmem:[#allocation4 + $0x270] sm:$0xff] %v2001
      %2022 = vst [vmem:[#allocation4 + $0x278] sm:$0xff] %v2002
      %v2023 = vld [vmem:[#allocation2 + $0x8] sm:$0xff]
      %v2024 = vld [vmem:[#allocation2 + $0x10] sm:$0xff]
      %v2025 = vld [vmem:[#allocation2 + $0x18] sm:$0xff]
      %v2026 = vld [vmem:[#allocation2 + $0x20] sm:$0xff]
      %v2027 = vld [vmem:[#allocation2 + $0x28] sm:$0xff]
      %v2028 = vld [vmem:[#allocation2 + $0x30] sm:$0xff]
      %v2029 = vld [vmem:[#allocation2 + $0x40] sm:$0xff]
      %v2030 = vld [vmem:[#allocation2 + $0x48] sm:$0xff]
      %v2031 = vld [vmem:[#allocation2 + $0x50] sm:$0xff]
      %v2032 = vld [vmem:[#allocation2 + $0x58] sm:$0xff]
      %v2033 = vld [vmem:[#allocation2 + $0x60] sm:$0xff]
      %v2034 = vld [vmem:[#allocation2 + $0x68] sm:$0xff]
      %2047 = vrot.lane.b32.xlu0 %v2023, 27
      %v2048 = vpop.permute.xlu0 %2047
      %2049 = vrot.lane.b32.xlu0 %v2024, 27
      %v2050 = vpop.permute.xlu0 %2049
      %2051 = vrot.lane.b32.xlu0 %v2025, 27
      %v2052 = vpop.permute.xlu0 %2051
      %2053 = vrot.lane.b32.xlu0 %v2026, 27
      %v2054 = vpop.permute.xlu0 %2053
      %2055 = vrot.lane.b32.xlu0 %v2027, 27
      %v2056 = vpop.permute.xlu0 %2055
      %2057 = vrot.lane.b32.xlu0 %v2028, 27
      %v2058 = vpop.permute.xlu0 %2057
      %2059 = vrot.lane.b32.xlu0 %v2029, 27
      %v2060 = vpop.permute.xlu0 %2059
      %2061 = vrot.lane.b32.xlu0 %v2030, 27
      %v2062 = vpop.permute.xlu0 %2061
      %2063 = vrot.lane.b32.xlu0 %v2031, 27
      %v2064 = vpop.permute.xlu0 %2063
      %2065 = vrot.lane.b32.xlu0 %v2032, 27
      %v2066 = vpop.permute.xlu0 %2065
      %2067 = vrot.lane.b32.xlu0 %v2033, 27
      %v2068 = vpop.permute.xlu0 %2067
      %2069 = vrot.lane.b32.xlu0 %v2034, 27
      %v2070 = vpop.permute.xlu0 %2069
      %vm2071 = vcmask 220160
      %v2072 = vsel %vm2071, %v2048, %v2050
      %v2073 = vsel %vm2071, %v2050, %v2052
      %v2074 = vsel %vm2071, %v2052, %v2054
      %v2075 = vsel %vm2071, %v2054, %v2056
      %v2076 = vsel %vm2071, %v2056, %v2058
      %v2077 = vsel %vm2071, %v2060, %v2062
      %v2078 = vsel %vm2071, %v2062, %v2064
      %v2079 = vsel %vm2071, %v2064, %v2066
      %v2080 = vsel %vm2071, %v2066, %v2068
      %v2081 = vsel %vm2071, %v2068, %v2070
      %2092 = vst [vmem:[#allocation4 + $0x280] sm:$0xff] %v2072
      %2093 = vst [vmem:[#allocation4 + $0x288] sm:$0xff] %v2073
      %2094 = vst [vmem:[#allocation4 + $0x290] sm:$0xff] %v2074
      %2095 = vst [vmem:[#allocation4 + $0x298] sm:$0xff] %v2075
      %2096 = vst [vmem:[#allocation4 + $0x2a0] sm:$0xff] %v2076
      %2097 = vst [vmem:[#allocation4 + $0x2a8] sm:$0xff] %v2077
      %2098 = vst [vmem:[#allocation4 + $0x2b0] sm:$0xff] %v2078
      %2099 = vst [vmem:[#allocation4 + $0x2b8] sm:$0xff] %v2079
      %2100 = vst [vmem:[#allocation4 + $0x2c0] sm:$0xff] %v2080
      %2101 = vst [vmem:[#allocation4 + $0x2c8] sm:$0xff] %v2081
      %v2102 = vld [vmem:[%s2] sm:$0xff]
      %v2103 = vld [vmem:[%s2 + $0x8] sm:$0xff]
      %v2104 = vld [vmem:[%s2 + $0x10] sm:$0xff]
      %v2105 = vld [vmem:[%s2 + $0x18] sm:$0xff]
      %v2106 = vld [vmem:[#allocation4] sm:$0xff]
      %v2107 = vld [vmem:[#allocation4 + $0x8] sm:$0xff]
      %v2108 = vld [vmem:[#allocation4 + $0x10] sm:$0xff]
      %v2109 = vld [vmem:[#allocation4 + $0x18] sm:$0xff]
      %v2110 = vld [vmem:[#allocation4 + $0x20] sm:$0xff]
      %v2111 = vld [vmem:[#allocation4 + $0x28] sm:$0xff]
      %v2112 = vld [vmem:[#allocation4 + $0x30] sm:$0xff]
      %v2113 = vld [vmem:[#allocation4 + $0x38] sm:$0xff]
      %v2114 = vld [vmem:[#allocation4 + $0x40] sm:$0xff]
      %v2115 = vld [vmem:[#allocation4 + $0x48] sm:$0xff]
      %v2116 = vld [vmem:[#allocation4 + $0x50] sm:$0xff]
      %v2117 = vld [vmem:[#allocation4 + $0x58] sm:$0xff]
      %v2118 = vld [vmem:[#allocation4 + $0x60] sm:$0xff]
      %v2119 = vld [vmem:[#allocation4 + $0x68] sm:$0xff]
      %v2120 = vld [vmem:[#allocation4 + $0x70] sm:$0xff]
      %v2121 = vld [vmem:[#allocation4 + $0x78] sm:$0xff]
      %v2122 = vld [vmem:[#allocation4 + $0x80] sm:$0xff]
      %v2123 = vld [vmem:[#allocation4 + $0x88] sm:$0xff]
      %v2124 = vld [vmem:[#allocation4 + $0x90] sm:$0xff]
      %v2125 = vld [vmem:[#allocation4 + $0x98] sm:$0xff]
      %v2126 = vld [vmem:[#allocation4 + $0xa0] sm:$0xff]
      %v2127 = vld [vmem:[#allocation4 + $0xa8] sm:$0xff]
      %v2128 = vld [vmem:[#allocation4 + $0xb0] sm:$0xff]
      %v2129 = vld [vmem:[#allocation4 + $0xb8] sm:$0xff]
      %v2130 = vld [vmem:[#allocation4 + $0xc0] sm:$0xff]
      %v2131 = vld [vmem:[#allocation4 + $0xc8] sm:$0xff]
      %v2132 = vld [vmem:[#allocation4 + $0xd0] sm:$0xff]
      %v2133 = vld [vmem:[#allocation4 + $0xd8] sm:$0xff]
      %v2134 = vld [vmem:[#allocation4 + $0xe0] sm:$0xff]
      %v2135 = vld [vmem:[#allocation4 + $0xe8] sm:$0xff]
      %v2136 = vld [vmem:[#allocation4 + $0xf0] sm:$0xff]
      %v2137 = vld [vmem:[#allocation4 + $0xf8] sm:$0xff]
      %v2138 = vld [vmem:[#allocation4 + $0x100] sm:$0xff]
      %v2139 = vld [vmem:[#allocation4 + $0x108] sm:$0xff]
      %v2140 = vld [vmem:[#allocation4 + $0x110] sm:$0xff]
      %v2141 = vld [vmem:[#allocation4 + $0x118] sm:$0xff]
      %v2142 = vld [vmem:[#allocation4 + $0x120] sm:$0xff]
      %v2143 = vld [vmem:[#allocation4 + $0x128] sm:$0xff]
      %v2144 = vld [vmem:[#allocation4 + $0x130] sm:$0xff]
      %v2145 = vld [vmem:[#allocation4 + $0x138] sm:$0xff]
      %v2146 = vld [vmem:[#allocation4 + $0x140] sm:$0xff]
      %v2147 = vld [vmem:[#allocation4 + $0x148] sm:$0xff]
      %v2148 = vld [vmem:[#allocation4 + $0x150] sm:$0xff]
      %v2149 = vld [vmem:[#allocation4 + $0x158] sm:$0xff]
      %v2150 = vld [vmem:[#allocation4 + $0x160] sm:$0xff]
      %v2151 = vld [vmem:[#allocation4 + $0x168] sm:$0xff]
      %v2152 = vld [vmem:[#allocation4 + $0x170] sm:$0xff]
      %v2153 = vld [vmem:[#allocation4 + $0x178] sm:$0xff]
      %v2154 = vld [vmem:[#allocation4 + $0x180] sm:$0xff]
      %v2155 = vld [vmem:[#allocation4 + $0x188] sm:$0xff]
      %v2156 = vld [vmem:[#allocation4 + $0x190] sm:$0xff]
      %v2157 = vld [vmem:[#allocation4 + $0x198] sm:$0xff]
      %v2158 = vld [vmem:[#allocation4 + $0x1a0] sm:$0xff]
      %v2159 = vld [vmem:[#allocation4 + $0x1a8] sm:$0xff]
      %v2160 = vld [vmem:[#allocation4 + $0x1b0] sm:$0xff]
      %v2161 = vld [vmem:[#allocation4 + $0x1b8] sm:$0xff]
      %v2162 = vld [vmem:[#allocation4 + $0x1c0] sm:$0xff]
      %v2163 = vld [vmem:[#allocation4 + $0x1c8] sm:$0xff]
      %v2164 = vld [vmem:[#allocation4 + $0x1d0] sm:$0xff]
      %v2165 = vld [vmem:[#allocation4 + $0x1d8] sm:$0xff]
      %v2166 = vld [vmem:[#allocation4 + $0x1e0] sm:$0xff]
      %v2167 = vld [vmem:[#allocation4 + $0x1e8] sm:$0xff]
      %v2168 = vld [vmem:[#allocation4 + $0x1f0] sm:$0xff]
      %v2169 = vld [vmem:[#allocation4 + $0x1f8] sm:$0xff]
      %v2170 = vld [vmem:[#allocation4 + $0x200] sm:$0xff]
      %v2171 = vld [vmem:[#allocation4 + $0x208] sm:$0xff]
      %v2172 = vld [vmem:[#allocation4 + $0x210] sm:$0xff]
      %v2173 = vld [vmem:[#allocation4 + $0x218] sm:$0xff]
      %v2174 = vld [vmem:[#allocation4 + $0x220] sm:$0xff]
      %v2175 = vld [vmem:[#allocation4 + $0x228] sm:$0xff]
      %v2176 = vld [vmem:[#allocation4 + $0x230] sm:$0xff]
      %v2177 = vld [vmem:[#allocation4 + $0x238] sm:$0xff]
      %v2178 = vld [vmem:[#allocation4 + $0x240] sm:$0xff]
      %v2179 = vld [vmem:[#allocation4 + $0x248] sm:$0xff]
      %v2180 = vld [vmem:[#allocation4 + $0x250] sm:$0xff]
      %v2181 = vld [vmem:[#allocation4 + $0x258] sm:$0xff]
      %v2182 = vld [vmem:[#allocation4 + $0x260] sm:$0xff]
      %v2183 = vld [vmem:[#allocation4 + $0x268] sm:$0xff]
      %v2184 = vld [vmem:[#allocation4 + $0x270] sm:$0xff]
      %v2185 = vld [vmem:[#allocation4 + $0x278] sm:$0xff]
      %v2186 = vld [vmem:[#allocation4 + $0x280] sm:$0xff]
      %v2187 = vld [vmem:[#allocation4 + $0x288] sm:$0xff]
      %v2188 = vld [vmem:[#allocation4 + $0x290] sm:$0xff]
      %v2189 = vld [vmem:[#allocation4 + $0x298] sm:$0xff]
      %v2190 = vld [vmem:[#allocation4 + $0x2a0] sm:$0xff]
      %v2191 = vld [vmem:[#allocation4 + $0x2a8] sm:$0xff]
      %v2192 = vld [vmem:[#allocation4 + $0x2b0] sm:$0xff]
      %v2193 = vld [vmem:[#allocation4 + $0x2b8] sm:$0xff]
      %v2194 = vld [vmem:[#allocation4 + $0x2c0] sm:$0xff]
      %v2195 = vld [vmem:[#allocation4 + $0x2c8] sm:$0xff]
      %vm2196 = vcmask 130048
      %v2198 = vsel %vm2196, %v2103, 0
      %v2201 = vsel %vm2196, %v2105, 0
      %2203 = vmatprep.subr.mxu0 %v2182
      %2204 = vmatpush1.msra.mxu0 %v2181
      %2205 = vmatprep.subr.mxu0 %v2177
      %2206 = vmatpush1.msra.mxu0 %v2176
      %2207 = vmatprep.subr.mxu0 %v2172
      %2208 = vmatpush1.msra.mxu0 %v2171
      %2209 = vmatprep.subr.mxu0 %v2167
      %2210 = vmatpush1.msra.mxu0 %v2166
      %2211 = vmatprep.subr.mxu0 %v2162
      %2212 = vmatpush1.msra.mxu0 %v2161
      %2213 = vmatprep.subr.mxu0 %v2157
      %2214 = vmatpush1.msra.mxu0 %v2156
      %2215 = vmatprep.subr.mxu0 %v2152
      %2216 = vmatpush1.msra.mxu0 %v2151
      %2217 = vmatprep.subr.mxu0 %v2147
      %2218 = vmatpush1.msra.mxu0 %v2146
      %2219 = vmatprep.subr.mxu0 %v2142
      %2220 = vmatpush1.msra.mxu0 %v2141
      %2221 = vmatprep.subr.mxu0 %v2137
      %2222 = vmatpush1.msra.mxu0 %v2136
      %2223 = vmatprep.subr.mxu0 %v2132
      %2224 = vmatpush1.msra.mxu0 %v2131
      %2225 = vmatprep.subr.mxu0 %v2127
      %2226 = vmatpush1.msra.mxu0 %v2126
      %2227 = vmatprep.subr.mxu0 %v2122
      %2228 = vmatpush1.msra.mxu0 %v2121
      %2229 = vmatprep.subr.mxu0 %v2117
      %2230 = vmatpush1.msra.mxu0 %v2116
      %2231 = vmatprep.subr.mxu0 %v2112
      %2232 = vmatpush1.msra.mxu0 %v2111
      %2233 = vmatprep.subr.mxu0 %v2107
      %2234 = vmatpush1.msra.mxu0 %v2106
      %2235 = vmatprep.subr.mxu0 0.0
      %2236 = vmatpush2.msra.mxu0 0.0
      %2237 = vmatprep.subr.mxu0 0.0
      %2238 = vmatpush2.msra.mxu0 0.0
      %2239 = vmatprep.subr.mxu0 0.0
      %2240 = vmatpush2.msra.mxu0 0.0
      %2241 = vmatprep.subr.mxu0 0.0
      %2242 = vmatpush2.msra.mxu0 0.0
      %2243 = vmatprep.subr.mxu0 0.0
      %2244 = vmatpush2.msra.mxu0 0.0
      %2245 = vmatprep.subr.mxu0 0.0
      %2246 = vmatpush2.msra.mxu0 0.0
      %2247 = vmatprep.subr.mxu0 0.0
      %2248 = vmatpush2.msra.mxu0 0.0
      %2249 = vmatprep.subr.mxu0 0.0
      %2250 = vmatpush2.msra.mxu0 0.0
      %2251 = vmatprep.subr.mxu0 0.0
      %2252 = vmatpush2.msra.mxu0 0.0
      %2253 = vmatprep.subr.mxu0 0.0
      %2254 = vmatpush2.msra.mxu0 0.0
      %2255 = vmatprep.subr.mxu0 0.0
      %2256 = vmatpush2.msra.mxu0 0.0
      %2257 = vmatprep.subr.mxu0 0.0
      %2258 = vmatpush2.msra.mxu0 0.0
      %2259 = vmatprep.subr.mxu0 0.0
      %2260 = vmatpush2.msra.mxu0 0.0
      %2261 = vmatprep.subr.mxu0 0.0
      %2262 = vmatpush2.msra.mxu0 0.0
      %2263 = vmatprep.subr.mxu0 %v2192
      %2264 = vmatpush2.msra.mxu0 %v2191
      %2265 = vmatprep.subr.mxu0 %v2187
      %2266 = vmatpush2.msra.mxu0 %v2186
      %2267 = vmatprep.mubr.f32.mxu0 %v2198
      %2268 = vmatmul.mubr.f32.gmra.mxu0 %v2102
      %v2269 = vpop.f32.mrf.mxu0
      %v2270 = vadd.f32 0.0, %v2269
      %v2271 = vpop.f32.mrf.mxu0
      %v2272 = vadd.f32 0.0, %v2271
      %2273 = vmatprep.mubr.f32.mxu0 %v2201
      %2274 = vmatmul.mubr.f32.gmra.mxu0 %v2104
      %v2275 = vpop.f32.mrf.mxu0
      %v2276 = vadd.f32 0.0, %v2275
      %v2277 = vpop.f32.mrf.mxu0
      %v2278 = vadd.f32 0.0, %v2277
      %2279 = vdwg.mxu0
      %2280 = vmatprep.subr.mxu0 %v2184
      %2281 = vmatpush1.msra.mxu0 %v2183
      %2282 = vmatprep.subr.mxu0 %v2179
      %2283 = vmatpush1.msra.mxu0 %v2178
      %2284 = vmatprep.subr.mxu0 %v2174
      %2285 = vmatpush1.msra.mxu0 %v2173
      %2286 = vmatprep.subr.mxu0 %v2169
      %2287 = vmatpush1.msra.mxu0 %v2168
      %2288 = vmatprep.subr.mxu0 %v2164
      %2289 = vmatpush1.msra.mxu0 %v2163
      %2290 = vmatprep.subr.mxu0 %v2159
      %2291 = vmatpush1.msra.mxu0 %v2158
      %2292 = vmatprep.subr.mxu0 %v2154
      %2293 = vmatpush1.msra.mxu0 %v2153
      %2294 = vmatprep.subr.mxu0 %v2149
      %2295 = vmatpush1.msra.mxu0 %v2148
      %2296 = vmatprep.subr.mxu0 %v2144
      %2297 = vmatpush1.msra.mxu0 %v2143
      %2298 = vmatprep.subr.mxu0 %v2139
      %2299 = vmatpush1.msra.mxu0 %v2138
      %2300 = vmatprep.subr.mxu0 %v2134
      %2301 = vmatpush1.msra.mxu0 %v2133
      %2302 = vmatprep.subr.mxu0 %v2129
      %2303 = vmatpush1.msra.mxu0 %v2128
      %2304 = vmatprep.subr.mxu0 %v2124
      %2305 = vmatpush1.msra.mxu0 %v2123
      %2306 = vmatprep.subr.mxu0 %v2119
      %2307 = vmatpush1.msra.mxu0 %v2118
      %2308 = vmatprep.subr.mxu0 %v2114
      %2309 = vmatpush1.msra.mxu0 %v2113
      %2310 = vmatprep.subr.mxu0 %v2109
      %2311 = vmatpush1.msra.mxu0 %v2108
      %2312 = vmatprep.subr.mxu0 0.0
      %2313 = vmatpush2.msra.mxu0 0.0
      %2314 = vmatprep.subr.mxu0 0.0
      %2315 = vmatpush2.msra.mxu0 0.0
      %2316 = vmatprep.subr.mxu0 0.0
      %2317 = vmatpush2.msra.mxu0 0.0
      %2318 = vmatprep.subr.mxu0 0.0
      %2319 = vmatpush2.msra.mxu0 0.0
      %2320 = vmatprep.subr.mxu0 0.0
      %2321 = vmatpush2.msra.mxu0 0.0
      %2322 = vmatprep.subr.mxu0 0.0
      %2323 = vmatpush2.msra.mxu0 0.0
      %2324 = vmatprep.subr.mxu0 0.0
      %2325 = vmatpush2.msra.mxu0 0.0
      %2326 = vmatprep.subr.mxu0 0.0
      %2327 = vmatpush2.msra.mxu0 0.0
      %2328 = vmatprep.subr.mxu0 0.0
      %2329 = vmatpush2.msra.mxu0 0.0
      %2330 = vmatprep.subr.mxu0 0.0
      %2331 = vmatpush2.msra.mxu0 0.0
      %2332 = vmatprep.subr.mxu0 0.0
      %2333 = vmatpush2.msra.mxu0 0.0
      %2334 = vmatprep.subr.mxu0 0.0
      %2335 = vmatpush2.msra.mxu0 0.0
      %2336 = vmatprep.subr.mxu0 0.0
      %2337 = vmatpush2.msra.mxu0 0.0
      %2338 = vmatprep.subr.mxu0 0.0
      %2339 = vmatpush2.msra.mxu0 0.0
      %2340 = vmatprep.subr.mxu0 %v2194
      %2341 = vmatpush2.msra.mxu0 %v2193
      %2342 = vmatprep.subr.mxu0 %v2189
      %2343 = vmatpush2.msra.mxu0 %v2188
      %2344 = vmatprep.mubr.f32.mxu0 %v2198
      %2345 = vmatmul.mubr.f32.gmra.mxu0 %v2102
      %v2346 = vpop.f32.mrf.mxu0
      %v2347 = vadd.f32 0.0, %v2346
      %v2348 = vpop.f32.mrf.mxu0
      %v2349 = vadd.f32 0.0, %v2348
      %2350 = vmatprep.mubr.f32.mxu0 %v2201
      %2351 = vmatmul.mubr.f32.gmra.mxu0 %v2104
      %v2352 = vpop.f32.mrf.mxu0
      %v2353 = vadd.f32 0.0, %v2352
      %v2354 = vpop.f32.mrf.mxu0
      %v2355 = vadd.f32 0.0, %v2354
      %2356 = vdwg.mxu0
      %2357 = vmatprep.subr.mxu0 0.0
      %2358 = vmatpush1.msra.mxu0 %v2185
      %2359 = vmatprep.subr.mxu0 0.0
      %2360 = vmatpush1.msra.mxu0 %v2180
      %2361 = vmatprep.subr.mxu0 0.0
      %2362 = vmatpush1.msra.mxu0 %v2175
      %2363 = vmatprep.subr.mxu0 0.0
      %2364 = vmatpush1.msra.mxu0 %v2170
      %2365 = vmatprep.subr.mxu0 0.0
      %2366 = vmatpush1.msra.mxu0 %v2165
      %2367 = vmatprep.subr.mxu0 0.0
      %2368 = vmatpush1.msra.mxu0 %v2160
      %2369 = vmatprep.subr.mxu0 0.0
      %2370 = vmatpush1.msra.mxu0 %v2155
      %2371 = vmatprep.subr.mxu0 0.0
      %2372 = vmatpush1.msra.mxu0 %v2150
      %2373 = vmatprep.subr.mxu0 0.0
      %2374 = vmatpush1.msra.mxu0 %v2145
      %2375 = vmatprep.subr.mxu0 0.0
      %2376 = vmatpush1.msra.mxu0 %v2140
      %2377 = vmatprep.subr.mxu0 0.0
      %2378 = vmatpush1.msra.mxu0 %v2135
      %2379 = vmatprep.subr.mxu0 0.0
      %2380 = vmatpush1.msra.mxu0 %v2130
      %2381 = vmatprep.subr.mxu0 0.0
      %2382 = vmatpush1.msra.mxu0 %v2125
      %2383 = vmatprep.subr.mxu0 0.0
      %2384 = vmatpush1.msra.mxu0 %v2120
      %2385 = vmatprep.subr.mxu0 0.0
      %2386 = vmatpush1.msra.mxu0 %v2115
      %2387 = vmatprep.subr.mxu0 0.0
      %2388 = vmatpush1.msra.mxu0 %v2110
      %2389 = vmatprep.subr.mxu0 0.0
      %2390 = vmatpush2.msra.mxu0 0.0
      %2391 = vmatprep.subr.mxu0 0.0
      %2392 = vmatpush2.msra.mxu0 0.0
      %2393 = vmatprep.subr.mxu0 0.0
      %2394 = vmatpush2.msra.mxu0 0.0
      %2395 = vmatprep.subr.mxu0 0.0
      %2396 = vmatpush2.msra.mxu0 0.0
      %2397 = vmatprep.subr.mxu0 0.0
      %2398 = vmatpush2.msra.mxu0 0.0
      %2399 = vmatprep.subr.mxu0 0.0
      %2400 = vmatpush2.msra.mxu0 0.0
      %2401 = vmatprep.subr.mxu0 0.0
      %2402 = vmatpush2.msra.mxu0 0.0
      %2403 = vmatprep.subr.mxu0 0.0
      %2404 = vmatpush2.msra.mxu0 0.0
      %2405 = vmatprep.subr.mxu0 0.0
      %2406 = vmatpush2.msra.mxu0 0.0
      %2407 = vmatprep.subr.mxu0 0.0
      %2408 = vmatpush2.msra.mxu0 0.0
      %2409 = vmatprep.subr.mxu0 0.0
      %2410 = vmatpush2.msra.mxu0 0.0
      %2411 = vmatprep.subr.mxu0 0.0
      %2412 = vmatpush2.msra.mxu0 0.0
      %2413 = vmatprep.subr.mxu0 0.0
      %2414 = vmatpush2.msra.mxu0 0.0
      %2415 = vmatprep.subr.mxu0 0.0
      %2416 = vmatpush2.msra.mxu0 0.0
      %2417 = vmatprep.subr.mxu0 0.0
      %2418 = vmatpush2.msra.mxu0 %v2195
      %2419 = vmatprep.subr.mxu0 0.0
      %2420 = vmatpush2.msra.mxu0 %v2190
      %2421 = vmatprep.mubr.f32.mxu0 %v2198
      %2422 = vmatmul.mubr.f32.gmra.mxu0 %v2102
      %v2423 = vpop.f32.mrf.mxu0
      %v2424 = vadd.f32 0.0, %v2423
      %v2425 = vpop.f32.mrf.mxu0
      %2426 = vmatprep.mubr.f32.mxu0 %v2201
      %2427 = vmatmul.mubr.f32.gmra.mxu0 %v2104
      %v2428 = vpop.f32.mrf.mxu0
      %v2429 = vadd.f32 0.0, %v2428
      %v2430 = vpop.f32.mrf.mxu0
      %2431 = vdwg.mxu0
      %vm2432 = vcmp.ge.f32.partialorder %v2270, 0.0
      %vm2433 = vcmp.ge.f32.partialorder %v2272, 0.0
      %vm2434 = vcmp.ge.f32.partialorder %v2347, 0.0
      %vm2435 = vcmp.ge.f32.partialorder %v2349, 0.0
      %vm2436 = vcmp.ge.f32.partialorder %v2424, 0.0
      %vm2437 = vcmp.ge.f32.partialorder %v2276, 0.0
      %vm2438 = vcmp.ge.f32.partialorder %v2278, 0.0
      %vm2439 = vcmp.ge.f32.partialorder %v2353, 0.0
      %vm2440 = vcmp.ge.f32.partialorder %v2355, 0.0
      %vm2441 = vcmp.ge.f32.partialorder %v2429, 0.0
      %v2442 = vmul.f32 %v2270, 0.01
      %v2443 = vmul.f32 %v2272, 0.01
      %v2444 = vmul.f32 %v2347, 0.01
      %v2445 = vmul.f32 %v2349, 0.01
      %v2446 = vmul.f32 %v2424, 0.01
      %v2447 = vmul.f32 %v2276, 0.01
      %v2448 = vmul.f32 %v2278, 0.01
      %v2449 = vmul.f32 %v2353, 0.01
      %v2450 = vmul.f32 %v2355, 0.01
      %v2451 = vmul.f32 %v2429, 0.01
      %v2452 = vsel %vm2432, %v2270, %v2442
      %v2453 = vsel %vm2433, %v2272, %v2443
      %v2454 = vsel %vm2434, %v2347, %v2444
      %v2455 = vsel %vm2435, %v2349, %v2445
      %v2456 = vsel %vm2436, %v2424, %v2446
      %v2457 = vsel %vm2437, %v2276, %v2447
      %v2458 = vsel %vm2438, %v2278, %v2448
      %v2459 = vsel %vm2439, %v2353, %v2449
      %v2460 = vsel %vm2440, %v2355, %v2450
      %v2461 = vsel %vm2441, %v2429, %v2451
      %v2462 = vsel %vm989, %v2452, 0.0
      %v2463 = vsel %vm990, %v2453, 0.0
      %v2464 = vsel %vm991, %v2454, 0.0
      %v2465 = vsel %vm992, %v2455, 0.0
      %v2466 = vsel %vm993, %v2456, 0.0
      %v2467 = vsel %vm989, %v2457, 0.0
      %v2468 = vsel %vm990, %v2458, 0.0
      %v2469 = vsel %vm991, %v2459, 0.0
      %v2470 = vsel %vm992, %v2460, 0.0
      %v2471 = vsel %vm993, %v2461, 0.0
      %s2472 = scalar_lea.vmem %s5, 16
      %v2473 = vld [vmem:[%s2472] sm:$0xff]
      %v2474 = vld [vmem:[%s2472 + $0x8] sm:$0xff]
      %s2475 = scalar_lea.vmem %s6, 16
      %v2476 = vld [vmem:[%s2475] sm:$0xff]
      %v2477 = vld [vmem:[%s2475 + $0x8] sm:$0xff]
      %v2478 = vadd.f32 %v2462, %v2463
      %v2479 = vadd.f32 %v2478, %v2464
      %v2480 = vadd.f32 %v2479, %v2465
      %v2481 = vadd.f32 %v2480, %v2466
      %2482 = vadd.xlane.f32.xlu0 %v2481
      %v2483 = vpop.xlane.xlu0 %2482
      %v2484 = vadd.f32 %v2467, %v2468
      %v2485 = vadd.f32 %v2484, %v2469
      %v2486 = vadd.f32 %v2485, %v2470
      %v2487 = vadd.f32 %v2486, %v2471
      %2488 = vadd.xlane.f32.xlu0 %v2487
      %v2489 = vpop.xlane.xlu0 %2488
      %v2490 = vsel %vm1024, %v2483, 0.0
      %v2491 = vsel %vm1025, %v2489, 0.0
      %v2492 = vsel %vm469, %v2490, 0.0
      %v2493 = vsel %vm469, %v2491, 0.0
      %v2494 = vadd.f32 %v2492, %v2493
      %2495 = vadd.xlane.f32.xlu0 %v2494
      %v2496 = vpop.xlane.xlu0 %2495
      %v2497 = vrot.slane %v2496, 4
      %v2498 = vadd.f32 %v2496, %v2497
      %v2499 = vrot.slane %v2498, 2
      %v2500 = vadd.f32 %v2498, %v2499
      %v2501 = vrot.slane %v2500, 1
      %v2502 = vadd.f32 %v2500, %v2501
      %s2503 = vtos %v2502
      %v2504 = vstv %s2503
      %v2505 = vsel %vm1024, %v2504, 0.0
      %v2506 = vsel %vm1025, %v2504, 0.0
      %v2507 = vsel %vm1047, %v2483, 0.0
      %v2508 = vsel %vm1048, %v2489, 0.0
      %v2509 = vsel %vm469, %v2507, 0.0
      %v2510 = vsel %vm469, %v2508, 0.0
      %v2511 = vadd.f32 %v2509, %v2510
      %2512 = vadd.xlane.f32.xlu0 %v2511
      %v2513 = vpop.xlane.xlu0 %2512
      %v2514 = vrot.slane %v2513, 4
      %v2515 = vadd.f32 %v2513, %v2514
      %v2516 = vrot.slane %v2515, 2
      %v2517 = vadd.f32 %v2515, %v2516
      %v2518 = vrot.slane %v2517, 1
      %v2519 = vadd.f32 %v2517, %v2518
      %s2520 = vtos %v2519
      %v2521 = vstv %s2520
      %v2522 = vsel %vm1047, %v2521, %v2505
      %v2523 = vsel %vm1048, %v2521, %v2506
      %v2524 = vsel %vm1070, %v2483, 0.0
      %v2525 = vsel %vm1071, %v2489, 0.0
      %v2526 = vsel %vm469, %v2524, 0.0
      %v2527 = vsel %vm469, %v2525, 0.0
      %v2528 = vadd.f32 %v2526, %v2527
      %2529 = vadd.xlane.f32.xlu0 %v2528
      %v2530 = vpop.xlane.xlu0 %2529
      %v2531 = vrot.slane %v2530, 4
      %v2532 = vadd.f32 %v2530, %v2531
      %v2533 = vrot.slane %v2532, 2
      %v2534 = vadd.f32 %v2532, %v2533
      %v2535 = vrot.slane %v2534, 1
      %v2536 = vadd.f32 %v2534, %v2535
      %s2537 = vtos %v2536
      %v2538 = vstv %s2537
      %v2539 = vsel %vm1070, %v2538, %v2522
      %v2540 = vsel %vm1071, %v2538, %v2523
      %v2541 = vsel %vm1093, %v2483, 0.0
      %v2542 = vsel %vm1094, %v2489, 0.0
      %v2543 = vsel %vm469, %v2541, 0.0
      %v2544 = vsel %vm469, %v2542, 0.0
      %v2545 = vadd.f32 %v2543, %v2544
      %2546 = vadd.xlane.f32.xlu0 %v2545
      %v2547 = vpop.xlane.xlu0 %2546
      %v2548 = vrot.slane %v2547, 4
      %v2549 = vadd.f32 %v2547, %v2548
      %v2550 = vrot.slane %v2549, 2
      %v2551 = vadd.f32 %v2549, %v2550
      %v2552 = vrot.slane %v2551, 1
      %v2553 = vadd.f32 %v2551, %v2552
      %s2554 = vtos %v2553
      %v2555 = vstv %s2554
      %v2556 = vsel %vm1093, %v2555, %v2539
      %v2557 = vsel %vm1094, %v2555, %v2540
      %v2558 = vsel %vm1116, %v2483, 0.0
      %v2559 = vsel %vm1117, %v2489, 0.0
      %v2560 = vsel %vm469, %v2558, 0.0
      %v2561 = vsel %vm469, %v2559, 0.0
      %v2562 = vadd.f32 %v2560, %v2561
      %2563 = vadd.xlane.f32.xlu0 %v2562
      %v2564 = vpop.xlane.xlu0 %2563
      %v2565 = vrot.slane %v2564, 4
      %v2566 = vadd.f32 %v2564, %v2565
      %v2567 = vrot.slane %v2566, 2
      %v2568 = vadd.f32 %v2566, %v2567
      %v2569 = vrot.slane %v2568, 1
      %v2570 = vadd.f32 %v2568, %v2569
      %s2571 = vtos %v2570
      %v2572 = vstv %s2571
      %v2573 = vsel %vm1116, %v2572, %v2556
      %v2574 = vsel %vm1117, %v2572, %v2557
      %v2575 = vsel %vm1139, %v2483, 0.0
      %v2576 = vsel %vm1140, %v2489, 0.0
      %v2577 = vsel %vm469, %v2575, 0.0
      %v2578 = vsel %vm469, %v2576, 0.0
      %v2579 = vadd.f32 %v2577, %v2578
      %2580 = vadd.xlane.f32.xlu0 %v2579
      %v2581 = vpop.xlane.xlu0 %2580
      %v2582 = vrot.slane %v2581, 4
      %v2583 = vadd.f32 %v2581, %v2582
      %v2584 = vrot.slane %v2583, 2
      %v2585 = vadd.f32 %v2583, %v2584
      %v2586 = vrot.slane %v2585, 1
      %v2587 = vadd.f32 %v2585, %v2586
      %s2588 = vtos %v2587
      %v2589 = vstv %s2588
      %v2590 = vsel %vm1139, %v2589, %v2573
      %v2591 = vsel %vm1140, %v2589, %v2574
      %v2592 = vsel %vm1162, %v2483, 0.0
      %v2593 = vsel %vm1163, %v2489, 0.0
      %v2594 = vsel %vm469, %v2592, 0.0
      %v2595 = vsel %vm469, %v2593, 0.0
      %v2596 = vadd.f32 %v2594, %v2595
      %2597 = vadd.xlane.f32.xlu0 %v2596
      %v2598 = vpop.xlane.xlu0 %2597
      %v2599 = vrot.slane %v2598, 4
      %v2600 = vadd.f32 %v2598, %v2599
      %v2601 = vrot.slane %v2600, 2
      %v2602 = vadd.f32 %v2600, %v2601
      %v2603 = vrot.slane %v2602, 1
      %v2604 = vadd.f32 %v2602, %v2603
      %s2605 = vtos %v2604
      %v2606 = vstv %s2605
      %v2607 = vsel %vm1162, %v2606, %v2590
      %v2608 = vsel %vm1163, %v2606, %v2591
      %v2609 = vsel %vm1185, %v2483, 0.0
      %v2610 = vsel %vm1186, %v2489, 0.0
      %v2611 = vsel %vm469, %v2609, 0.0
      %v2612 = vsel %vm469, %v2610, 0.0
      %v2613 = vadd.f32 %v2611, %v2612
      %2614 = vadd.xlane.f32.xlu0 %v2613
      %v2615 = vpop.xlane.xlu0 %2614
      %v2616 = vrot.slane %v2615, 4
      %v2617 = vadd.f32 %v2615, %v2616
      %v2618 = vrot.slane %v2617, 2
      %v2619 = vadd.f32 %v2617, %v2618
      %v2620 = vrot.slane %v2619, 1
      %v2621 = vadd.f32 %v2619, %v2620
      %s2622 = vtos %v2621
      %v2623 = vstv %s2622
      %v2624 = vsel %vm1185, %v2623, %v2607
      %v2625 = vsel %vm1186, %v2623, %v2608
      %v2626 = vmul.f32 %v2624, 0.001953125
      %v2627 = vmul.f32 %v2625, 0.001953125
      %v2628 = vsub.f32 %v2462, %v2626
      %v2629 = vsub.f32 %v2463, %v2626
      %v2630 = vsub.f32 %v2464, %v2626
      %v2631 = vsub.f32 %v2465, %v2626
      %v2632 = vsub.f32 %v2466, %v2626
      %v2633 = vsub.f32 %v2467, %v2627
      %v2634 = vsub.f32 %v2468, %v2627
      %v2635 = vsub.f32 %v2469, %v2627
      %v2636 = vsub.f32 %v2470, %v2627
      %v2637 = vsub.f32 %v2471, %v2627
      %v2638 = vsel %vm989, %v2628, 0.0
      %v2639 = vsel %vm990, %v2629, 0.0
      %v2640 = vsel %vm991, %v2630, 0.0
      %v2641 = vsel %vm992, %v2631, 0.0
      %v2642 = vsel %vm993, %v2632, 0.0
      %v2643 = vsel %vm989, %v2633, 0.0
      %v2644 = vsel %vm990, %v2634, 0.0
      %v2645 = vsel %vm991, %v2635, 0.0
      %v2646 = vsel %vm992, %v2636, 0.0
      %v2647 = vsel %vm993, %v2637, 0.0
      %v2648 = vmul.f32 %v2638, %v2638
      %v2649 = vmul.f32 %v2639, %v2639
      %v2650 = vmul.f32 %v2640, %v2640
      %v2651 = vmul.f32 %v2641, %v2641
      %v2652 = vmul.f32 %v2642, %v2642
      %v2653 = vmul.f32 %v2643, %v2643
      %v2654 = vmul.f32 %v2644, %v2644
      %v2655 = vmul.f32 %v2645, %v2645
      %v2656 = vmul.f32 %v2646, %v2646
      %v2657 = vmul.f32 %v2647, %v2647
      %v2658 = vadd.f32 %v2648, %v2649
      %v2659 = vadd.f32 %v2658, %v2650
      %v2660 = vadd.f32 %v2659, %v2651
      %v2661 = vadd.f32 %v2660, %v2652
      %2662 = vadd.xlane.f32.xlu0 %v2661
      %v2663 = vpop.xlane.xlu0 %2662
      %v2664 = vadd.f32 %v2653, %v2654
      %v2665 = vadd.f32 %v2664, %v2655
      %v2666 = vadd.f32 %v2665, %v2656
      %v2667 = vadd.f32 %v2666, %v2657
      %2668 = vadd.xlane.f32.xlu0 %v2667
      %v2669 = vpop.xlane.xlu0 %2668
      %v2670 = vsel %vm1024, %v2663, 0.0
      %v2671 = vsel %vm1025, %v2669, 0.0
      %v2672 = vsel %vm469, %v2670, 0.0
      %v2673 = vsel %vm469, %v2671, 0.0
      %v2674 = vadd.f32 %v2672, %v2673
      %2675 = vadd.xlane.f32.xlu0 %v2674
      %v2676 = vpop.xlane.xlu0 %2675
      %v2677 = vrot.slane %v2676, 4
      %v2678 = vadd.f32 %v2676, %v2677
      %v2679 = vrot.slane %v2678, 2
      %v2680 = vadd.f32 %v2678, %v2679
      %v2681 = vrot.slane %v2680, 1
      %v2682 = vadd.f32 %v2680, %v2681
      %s2683 = vtos %v2682
      %v2684 = vstv %s2683
      %v2685 = vsel %vm1024, %v2684, 0.0
      %v2686 = vsel %vm1025, %v2684, 0.0
      %v2687 = vsel %vm1047, %v2663, 0.0
      %v2688 = vsel %vm1048, %v2669, 0.0
      %v2689 = vsel %vm469, %v2687, 0.0
      %v2690 = vsel %vm469, %v2688, 0.0
      %v2691 = vadd.f32 %v2689, %v2690
      %2692 = vadd.xlane.f32.xlu0 %v2691
      %v2693 = vpop.xlane.xlu0 %2692
      %v2694 = vrot.slane %v2693, 4
      %v2695 = vadd.f32 %v2693, %v2694
      %v2696 = vrot.slane %v2695, 2
      %v2697 = vadd.f32 %v2695, %v2696
      %v2698 = vrot.slane %v2697, 1
      %v2699 = vadd.f32 %v2697, %v2698
      %s2700 = vtos %v2699
      %v2701 = vstv %s2700
      %v2702 = vsel %vm1047, %v2701, %v2685
      %v2703 = vsel %vm1048, %v2701, %v2686
      %v2704 = vsel %vm1070, %v2663, 0.0
      %v2705 = vsel %vm1071, %v2669, 0.0
      %v2706 = vsel %vm469, %v2704, 0.0
      %v2707 = vsel %vm469, %v2705, 0.0
      %v2708 = vadd.f32 %v2706, %v2707
      %2709 = vadd.xlane.f32.xlu0 %v2708
      %v2710 = vpop.xlane.xlu0 %2709
      %v2711 = vrot.slane %v2710, 4
      %v2712 = vadd.f32 %v2710, %v2711
      %v2713 = vrot.slane %v2712, 2
      %v2714 = vadd.f32 %v2712, %v2713
      %v2715 = vrot.slane %v2714, 1
      %v2716 = vadd.f32 %v2714, %v2715
      %s2717 = vtos %v2716
      %v2718 = vstv %s2717
      %v2719 = vsel %vm1070, %v2718, %v2702
      %v2720 = vsel %vm1071, %v2718, %v2703
      %v2721 = vsel %vm1093, %v2663, 0.0
      %v2722 = vsel %vm1094, %v2669, 0.0
      %v2723 = vsel %vm469, %v2721, 0.0
      %v2724 = vsel %vm469, %v2722, 0.0
      %v2725 = vadd.f32 %v2723, %v2724
      %2726 = vadd.xlane.f32.xlu0 %v2725
      %v2727 = vpop.xlane.xlu0 %2726
      %v2728 = vrot.slane %v2727, 4
      %v2729 = vadd.f32 %v2727, %v2728
      %v2730 = vrot.slane %v2729, 2
      %v2731 = vadd.f32 %v2729, %v2730
      %v2732 = vrot.slane %v2731, 1
      %v2733 = vadd.f32 %v2731, %v2732
      %s2734 = vtos %v2733
      %v2735 = vstv %s2734
      %v2736 = vsel %vm1093, %v2735, %v2719
      %v2737 = vsel %vm1094, %v2735, %v2720
      %v2738 = vsel %vm1116, %v2663, 0.0
      %v2739 = vsel %vm1117, %v2669, 0.0
      %v2740 = vsel %vm469, %v2738, 0.0
      %v2741 = vsel %vm469, %v2739, 0.0
      %v2742 = vadd.f32 %v2740, %v2741
      %2743 = vadd.xlane.f32.xlu0 %v2742
      %v2744 = vpop.xlane.xlu0 %2743
      %v2745 = vrot.slane %v2744, 4
      %v2746 = vadd.f32 %v2744, %v2745
      %v2747 = vrot.slane %v2746, 2
      %v2748 = vadd.f32 %v2746, %v2747
      %v2749 = vrot.slane %v2748, 1
      %v2750 = vadd.f32 %v2748, %v2749
      %s2751 = vtos %v2750
      %v2752 = vstv %s2751
      %v2753 = vsel %vm1116, %v2752, %v2736
      %v2754 = vsel %vm1117, %v2752, %v2737
      %v2755 = vsel %vm1139, %v2663, 0.0
      %v2756 = vsel %vm1140, %v2669, 0.0
      %v2757 = vsel %vm469, %v2755, 0.0
      %v2758 = vsel %vm469, %v2756, 0.0
      %v2759 = vadd.f32 %v2757, %v2758
      %2760 = vadd.xlane.f32.xlu0 %v2759
      %v2761 = vpop.xlane.xlu0 %2760
      %v2762 = vrot.slane %v2761, 4
      %v2763 = vadd.f32 %v2761, %v2762
      %v2764 = vrot.slane %v2763, 2
      %v2765 = vadd.f32 %v2763, %v2764
      %v2766 = vrot.slane %v2765, 1
      %v2767 = vadd.f32 %v2765, %v2766
      %s2768 = vtos %v2767
      %v2769 = vstv %s2768
      %v2770 = vsel %vm1139, %v2769, %v2753
      %v2771 = vsel %vm1140, %v2769, %v2754
      %v2772 = vsel %vm1162, %v2663, 0.0
      %v2773 = vsel %vm1163, %v2669, 0.0
      %v2774 = vsel %vm469, %v2772, 0.0
      %v2775 = vsel %vm469, %v2773, 0.0
      %v2776 = vadd.f32 %v2774, %v2775
      %2777 = vadd.xlane.f32.xlu0 %v2776
      %v2778 = vpop.xlane.xlu0 %2777
      %v2779 = vrot.slane %v2778, 4
      %v2780 = vadd.f32 %v2778, %v2779
      %v2781 = vrot.slane %v2780, 2
      %v2782 = vadd.f32 %v2780, %v2781
      %v2783 = vrot.slane %v2782, 1
      %v2784 = vadd.f32 %v2782, %v2783
      %s2785 = vtos %v2784
      %v2786 = vstv %s2785
      %v2787 = vsel %vm1162, %v2786, %v2770
      %v2788 = vsel %vm1163, %v2786, %v2771
      %v2789 = vsel %vm1185, %v2663, 0.0
      %v2790 = vsel %vm1186, %v2669, 0.0
      %v2791 = vsel %vm469, %v2789, 0.0
      %v2792 = vsel %vm469, %v2790, 0.0
      %v2793 = vadd.f32 %v2791, %v2792
      %2794 = vadd.xlane.f32.xlu0 %v2793
      %v2795 = vpop.xlane.xlu0 %2794
      %v2796 = vrot.slane %v2795, 4
      %v2797 = vadd.f32 %v2795, %v2796
      %v2798 = vrot.slane %v2797, 2
      %v2799 = vadd.f32 %v2797, %v2798
      %v2800 = vrot.slane %v2799, 1
      %v2801 = vadd.f32 %v2799, %v2800
      %s2802 = vtos %v2801
      %v2803 = vstv %s2802
      %v2804 = vsel %vm1185, %v2803, %v2787
      %v2805 = vsel %vm1186, %v2803, %v2788
      %v2806 = vmul.f32 %v2804, 0.001953125
      %v2807 = vmul.f32 %v2805, 0.001953125
      %v2808 = vadd.f32 %v2806, 1e-05
      %v2809 = vadd.f32 %v2807, 1e-05
      %v2810 = vrsqrt.pop %v2808
      %v2811 = vrsqrt.pop %v2809
      %v2812 = vmul.f32 %v2810, %v2473
      %v2813 = vmul.f32 %v2811, %v2474
      %2815 = vset.pattern.permute.xlu0 0
      %2816 = vperm.xlu0 %2815, %v2812
      %v2817 = vpop.permute.xlu0 %2816
      %2820 = vset.pattern.permute.xlu0 0
      %2821 = vperm.xlu0 %2820, %v2813
      %v2822 = vpop.permute.xlu0 %2821
      %v2824 = vmul.f32 %v2638, %v2817
      %v2825 = vmul.f32 %v2639, %v2817
      %v2826 = vmul.f32 %v2640, %v2817
      %v2827 = vmul.f32 %v2641, %v2817
      %v2828 = vmul.f32 %v2642, %v2817
      %v2829 = vmul.f32 %v2643, %v2822
      %v2830 = vmul.f32 %v2644, %v2822
      %v2831 = vmul.f32 %v2645, %v2822
      %v2832 = vmul.f32 %v2646, %v2822
      %v2833 = vmul.f32 %v2647, %v2822
      %2835 = vset.pattern.permute.xlu0 0
      %2836 = vperm.xlu0 %2835, %v2476
      %v2837 = vpop.permute.xlu0 %2836
      %2840 = vset.pattern.permute.xlu0 0
      %2841 = vperm.xlu0 %2840, %v2477
      %v2842 = vpop.permute.xlu0 %2841
      %v2844 = vadd.f32 %v2824, %v2837
      %v2845 = vadd.f32 %v2825, %v2837
      %v2846 = vadd.f32 %v2826, %v2837
      %v2847 = vadd.f32 %v2827, %v2837
      %v2848 = vadd.f32 %v2828, %v2837
      %v2849 = vadd.f32 %v2829, %v2842
      %v2850 = vadd.f32 %v2830, %v2842
      %v2851 = vadd.f32 %v2831, %v2842
      %v2852 = vadd.f32 %v2832, %v2842
      %v2853 = vadd.f32 %v2833, %v2842
      %v2854 = vsel %vm989, %v2844, 0.0
      %v2855 = vsel %vm990, %v2845, 0.0
      %v2856 = vsel %vm991, %v2846, 0.0
      %v2857 = vsel %vm992, %v2847, 0.0
      %v2858 = vsel %vm993, %v2848, 0.0
      %v2859 = vsel %vm989, %v2849, 0.0
      %v2860 = vsel %vm990, %v2850, 0.0
      %v2861 = vsel %vm991, %v2851, 0.0
      %v2862 = vsel %vm992, %v2852, 0.0
      %v2863 = vsel %vm993, %v2853, 0.0
      %2864 = vst [vmem:[#allocation3] sm:$0xff] %v2854
      %2865 = vst [vmem:[#allocation3 + $0x8] sm:$0xff] %v2855
      %2866 = vst [vmem:[#allocation3 + $0x10] sm:$0xff] %v2856
      %2867 = vst [vmem:[#allocation3 + $0x18] sm:$0xff] %v2857
      %2868 = vst [vmem:[#allocation3 + $0x20] sm:$0xff] %v2858
      %2869 = vst [vmem:[#allocation3 + $0x28] sm:$0xff] %v2859
      %2870 = vst [vmem:[#allocation3 + $0x30] sm:$0xff] %v2860
      %2871 = vst [vmem:[#allocation3 + $0x38] sm:$0xff] %v2861
      %2872 = vst [vmem:[#allocation3 + $0x40] sm:$0xff] %v2862
      %2873 = vst [vmem:[#allocation3 + $0x48] sm:$0xff] %v2863
      %v2874 = vld [vmem:[%s300] sm:$0xff]
      %v2875 = vld [vmem:[%s300 + $0x8] sm:$0xff]
      %v2876 = vld [vmem:[%s300 + $0x10] sm:$0xff]
      %v2877 = vld [vmem:[%s300 + $0x18] sm:$0xff]
      %v2878 = vld [vmem:[%s300 + $0x20] sm:$0xff]
      %v2879 = vld [vmem:[%s300 + $0x28] sm:$0xff]
      %2886 = vrot.lane.b32.xlu0 %v2874, 101
      %v2887 = vpop.permute.xlu0 %2886
      %2888 = vrot.lane.b32.xlu0 %v2875, 101
      %v2889 = vpop.permute.xlu0 %2888
      %2890 = vrot.lane.b32.xlu0 %v2876, 101
      %v2891 = vpop.permute.xlu0 %2890
      %2892 = vrot.lane.b32.xlu0 %v2877, 101
      %v2893 = vpop.permute.xlu0 %2892
      %2894 = vrot.lane.b32.xlu0 %v2878, 101
      %v2895 = vpop.permute.xlu0 %2894
      %2896 = vrot.lane.b32.xlu0 %v2879, 101
      %v2897 = vpop.permute.xlu0 %2896
      %v2898 = vsel %vm1500, %v2887, %v2889
      %v2899 = vsel %vm1500, %v2889, %v2891
      %v2900 = vsel %vm1500, %v2891, %v2893
      %v2901 = vsel %vm1500, %v2893, %v2895
      %v2902 = vsel %vm1500, %v2895, %v2897
      %2908 = vst [vmem:[#allocation4] sm:$0xff] %v2898
      %2909 = vst [vmem:[#allocation4 + $0x8] sm:$0xff] %v2899
      %2910 = vst [vmem:[#allocation4 + $0x10] sm:$0xff] %v2900
      %2911 = vst [vmem:[#allocation4 + $0x18] sm:$0xff] %v2901
      %2912 = vst [vmem:[#allocation4 + $0x20] sm:$0xff] %v2902
      %v2913 = vld [vmem:[%s300] sm:$0xff]
      %v2914 = vld [vmem:[%s300 + $0x8] sm:$0xff]
      %v2915 = vld [vmem:[%s300 + $0x10] sm:$0xff]
      %v2916 = vld [vmem:[%s300 + $0x18] sm:$0xff]
      %v2917 = vld [vmem:[%s300 + $0x20] sm:$0xff]
      %v2918 = vld [vmem:[%s300 + $0x28] sm:$0xff]
      %2925 = vrot.lane.b32.xlu0 %v2913, 100
      %v2926 = vpop.permute.xlu0 %2925
      %2927 = vrot.lane.b32.xlu0 %v2914, 100
      %v2928 = vpop.permute.xlu0 %2927
      %2929 = vrot.lane.b32.xlu0 %v2915, 100
      %v2930 = vpop.permute.xlu0 %2929
      %2931 = vrot.lane.b32.xlu0 %v2916, 100
      %v2932 = vpop.permute.xlu0 %2931
      %2933 = vrot.lane.b32.xlu0 %v2917, 100
      %v2934 = vpop.permute.xlu0 %2933
      %2935 = vrot.lane.b32.xlu0 %v2918, 100
      %v2936 = vpop.permute.xlu0 %2935
      %v2937 = vsel %vm1579, %v2926, %v2928
      %v2938 = vsel %vm1579, %v2928, %v2930
      %v2939 = vsel %vm1579, %v2930, %v2932
      %v2940 = vsel %vm1579, %v2932, %v2934
      %v2941 = vsel %vm1579, %v2934, %v2936
      %2947 = vst [vmem:[#allocation4 + $0x28] sm:$0xff] %v2937
      %2948 = vst [vmem:[#allocation4 + $0x30] sm:$0xff] %v2938
      %2949 = vst [vmem:[#allocation4 + $0x38] sm:$0xff] %v2939
      %2950 = vst [vmem:[#allocation4 + $0x40] sm:$0xff] %v2940
      %2951 = vst [vmem:[#allocation4 + $0x48] sm:$0xff] %v2941
      %v2952 = vld [vmem:[%s300] sm:$0xff]
      %v2953 = vld [vmem:[%s300 + $0x8] sm:$0xff]
      %v2954 = vld [vmem:[%s300 + $0x10] sm:$0xff]
      %v2955 = vld [vmem:[%s300 + $0x18] sm:$0xff]
      %v2956 = vld [vmem:[%s300 + $0x20] sm:$0xff]
      %v2957 = vld [vmem:[%s300 + $0x28] sm:$0xff]
      %2964 = vrot.lane.b32.xlu0 %v2952, 99
      %v2965 = vpop.permute.xlu0 %2964
      %2966 = vrot.lane.b32.xlu0 %v2953, 99
      %v2967 = vpop.permute.xlu0 %2966
      %2968 = vrot.lane.b32.xlu0 %v2954, 99
      %v2969 = vpop.permute.xlu0 %2968
      %2970 = vrot.lane.b32.xlu0 %v2955, 99
      %v2971 = vpop.permute.xlu0 %2970
      %2972 = vrot.lane.b32.xlu0 %v2956, 99
      %v2973 = vpop.permute.xlu0 %2972
      %2974 = vrot.lane.b32.xlu0 %v2957, 99
      %v2975 = vpop.permute.xlu0 %2974
      %v2976 = vsel %vm1658, %v2965, %v2967
      %v2977 = vsel %vm1658, %v2967, %v2969
      %v2978 = vsel %vm1658, %v2969, %v2971
      %v2979 = vsel %vm1658, %v2971, %v2973
      %v2980 = vsel %vm1658, %v2973, %v2975
      %2986 = vst [vmem:[#allocation4 + $0x50] sm:$0xff] %v2976
      %2987 = vst [vmem:[#allocation4 + $0x58] sm:$0xff] %v2977
      %2988 = vst [vmem:[#allocation4 + $0x60] sm:$0xff] %v2978
      %2989 = vst [vmem:[#allocation4 + $0x68] sm:$0xff] %v2979
      %2990 = vst [vmem:[#allocation4 + $0x70] sm:$0xff] %v2980
      %v2991 = vld [vmem:[%s300] sm:$0xff]
      %v2992 = vld [vmem:[%s300 + $0x8] sm:$0xff]
      %v2993 = vld [vmem:[%s300 + $0x10] sm:$0xff]
      %v2994 = vld [vmem:[%s300 + $0x18] sm:$0xff]
      %v2995 = vld [vmem:[%s300 + $0x20] sm:$0xff]
      %v2996 = vld [vmem:[%s300 + $0x28] sm:$0xff]
      %3003 = vrot.lane.b32.xlu0 %v2991, 1
      %v3004 = vpop.permute.xlu0 %3003
      %3005 = vrot.lane.b32.xlu0 %v2992, 1
      %v3006 = vpop.permute.xlu0 %3005
      %3007 = vrot.lane.b32.xlu0 %v2993, 1
      %v3008 = vpop.permute.xlu0 %3007
      %3009 = vrot.lane.b32.xlu0 %v2994, 1
      %v3010 = vpop.permute.xlu0 %3009
      %3011 = vrot.lane.b32.xlu0 %v2995, 1
      %v3012 = vpop.permute.xlu0 %3011
      %3013 = vrot.lane.b32.xlu0 %v2996, 1
      %v3014 = vpop.permute.xlu0 %3013
      %v3015 = vsel %vm469, %v3004, %v3006
      %v3016 = vsel %vm469, %v3006, %v3008
      %v3017 = vsel %vm469, %v3008, %v3010
      %v3018 = vsel %vm469, %v3010, %v3012
      %v3019 = vsel %vm469, %v3012, %v3014
      %3025 = vst [vmem:[#allocation4 + $0x78] sm:$0xff] %v3015
      %3026 = vst [vmem:[#allocation4 + $0x80] sm:$0xff] %v3016
      %3027 = vst [vmem:[#allocation4 + $0x88] sm:$0xff] %v3017
      %3028 = vst [vmem:[#allocation4 + $0x90] sm:$0xff] %v3018
      %3029 = vst [vmem:[#allocation4 + $0x98] sm:$0xff] %v3019
      %v3030 = vld [vmem:[%s300 + $0x8] sm:$0xff]
      %v3031 = vld [vmem:[%s300 + $0x10] sm:$0xff]
      %v3032 = vld [vmem:[%s300 + $0x18] sm:$0xff]
      %v3033 = vld [vmem:[%s300 + $0x20] sm:$0xff]
      %v3034 = vld [vmem:[%s300 + $0x28] sm:$0xff]
      %3035 = vst [vmem:[#allocation4 + $0xa0] sm:$0xff] %v3030
      %3036 = vst [vmem:[#allocation4 + $0xa8] sm:$0xff] %v3031
      %3037 = vst [vmem:[#allocation4 + $0xb0] sm:$0xff] %v3032
      %3038 = vst [vmem:[#allocation4 + $0xb8] sm:$0xff] %v3033
      %3039 = vst [vmem:[#allocation4 + $0xc0] sm:$0xff] %v3034
      %v3040 = vld [vmem:[%s300 + $0x8] sm:$0xff]
      %v3041 = vld [vmem:[%s300 + $0x10] sm:$0xff]
      %v3042 = vld [vmem:[%s300 + $0x18] sm:$0xff]
      %v3043 = vld [vmem:[%s300 + $0x20] sm:$0xff]
      %v3044 = vld [vmem:[%s300 + $0x28] sm:$0xff]
      %v3045 = vld [vmem:[%s300 + $0x30] sm:$0xff]
      %3052 = vrot.lane.b32.xlu0 %v3040, 127
      %v3053 = vpop.permute.xlu0 %3052
      %3054 = vrot.lane.b32.xlu0 %v3041, 127
      %v3055 = vpop.permute.xlu0 %3054
      %3056 = vrot.lane.b32.xlu0 %v3042, 127
      %v3057 = vpop.permute.xlu0 %3056
      %3058 = vrot.lane.b32.xlu0 %v3043, 127
      %v3059 = vpop.permute.xlu0 %3058
      %3060 = vrot.lane.b32.xlu0 %v3044, 127
      %v3061 = vpop.permute.xlu0 %3060
      %3062 = vrot.lane.b32.xlu0 %v3045, 127
      %v3063 = vpop.permute.xlu0 %3062
      %v3064 = vsel %vm519, %v3053, %v3055
      %v3065 = vsel %vm519, %v3055, %v3057
      %v3066 = vsel %vm519, %v3057, %v3059
      %v3067 = vsel %vm519, %v3059, %v3061
      %v3068 = vsel %vm519, %v3061, %v3063
      %3074 = vst [vmem:[#allocation4 + $0xc8] sm:$0xff] %v3064
      %3075 = vst [vmem:[#allocation4 + $0xd0] sm:$0xff] %v3065
      %3076 = vst [vmem:[#allocation4 + $0xd8] sm:$0xff] %v3066
      %3077 = vst [vmem:[#allocation4 + $0xe0] sm:$0xff] %v3067
      %3078 = vst [vmem:[#allocation4 + $0xe8] sm:$0xff] %v3068
      %v3079 = vld [vmem:[%s300 + $0x8] sm:$0xff]
      %v3080 = vld [vmem:[%s300 + $0x10] sm:$0xff]
      %v3081 = vld [vmem:[%s300 + $0x18] sm:$0xff]
      %v3082 = vld [vmem:[%s300 + $0x20] sm:$0xff]
      %v3083 = vld [vmem:[%s300 + $0x28] sm:$0xff]
      %v3084 = vld [vmem:[%s300 + $0x30] sm:$0xff]
      %3091 = vrot.lane.b32.xlu0 %v3079, 29
      %v3092 = vpop.permute.xlu0 %3091
      %3093 = vrot.lane.b32.xlu0 %v3080, 29
      %v3094 = vpop.permute.xlu0 %3093
      %3095 = vrot.lane.b32.xlu0 %v3081, 29
      %v3096 = vpop.permute.xlu0 %3095
      %3097 = vrot.lane.b32.xlu0 %v3082, 29
      %v3098 = vpop.permute.xlu0 %3097
      %3099 = vrot.lane.b32.xlu0 %v3083, 29
      %v3100 = vpop.permute.xlu0 %3099
      %3101 = vrot.lane.b32.xlu0 %v3084, 29
      %v3102 = vpop.permute.xlu0 %3101
      %v3103 = vsel %vm1913, %v3092, %v3094
      %v3104 = vsel %vm1913, %v3094, %v3096
      %v3105 = vsel %vm1913, %v3096, %v3098
      %v3106 = vsel %vm1913, %v3098, %v3100
      %v3107 = vsel %vm1913, %v3100, %v3102
      %3113 = vst [vmem:[#allocation4 + $0xf0] sm:$0xff] %v3103
      %3114 = vst [vmem:[#allocation4 + $0xf8] sm:$0xff] %v3104
      %3115 = vst [vmem:[#allocation4 + $0x100] sm:$0xff] %v3105
      %3116 = vst [vmem:[#allocation4 + $0x108] sm:$0xff] %v3106
      %3117 = vst [vmem:[#allocation4 + $0x110] sm:$0xff] %v3107
      %v3118 = vld [vmem:[%s300 + $0x8] sm:$0xff]
      %v3119 = vld [vmem:[%s300 + $0x10] sm:$0xff]
      %v3120 = vld [vmem:[%s300 + $0x18] sm:$0xff]
      %v3121 = vld [vmem:[%s300 + $0x20] sm:$0xff]
      %v3122 = vld [vmem:[%s300 + $0x28] sm:$0xff]
      %v3123 = vld [vmem:[%s300 + $0x30] sm:$0xff]
      %3130 = vrot.lane.b32.xlu0 %v3118, 28
      %v3131 = vpop.permute.xlu0 %3130
      %3132 = vrot.lane.b32.xlu0 %v3119, 28
      %v3133 = vpop.permute.xlu0 %3132
      %3134 = vrot.lane.b32.xlu0 %v3120, 28
      %v3135 = vpop.permute.xlu0 %3134
      %3136 = vrot.lane.b32.xlu0 %v3121, 28
      %v3137 = vpop.permute.xlu0 %3136
      %3138 = vrot.lane.b32.xlu0 %v3122, 28
      %v3139 = vpop.permute.xlu0 %3138
      %3140 = vrot.lane.b32.xlu0 %v3123, 28
      %v3141 = vpop.permute.xlu0 %3140
      %v3142 = vsel %vm1992, %v3131, %v3133
      %v3143 = vsel %vm1992, %v3133, %v3135
      %v3144 = vsel %vm1992, %v3135, %v3137
      %v3145 = vsel %vm1992, %v3137, %v3139
      %v3146 = vsel %vm1992, %v3139, %v3141
      %3152 = vst [vmem:[#allocation4 + $0x118] sm:$0xff] %v3142
      %3153 = vst [vmem:[#allocation4 + $0x120] sm:$0xff] %v3143
      %3154 = vst [vmem:[#allocation4 + $0x128] sm:$0xff] %v3144
      %3155 = vst [vmem:[#allocation4 + $0x130] sm:$0xff] %v3145
      %3156 = vst [vmem:[#allocation4 + $0x138] sm:$0xff] %v3146
      %v3157 = vld [vmem:[%s300 + $0x8] sm:$0xff]
      %v3158 = vld [vmem:[%s300 + $0x10] sm:$0xff]
      %v3159 = vld [vmem:[%s300 + $0x18] sm:$0xff]
      %v3160 = vld [vmem:[%s300 + $0x20] sm:$0xff]
      %v3161 = vld [vmem:[%s300 + $0x28] sm:$0xff]
      %v3162 = vld [vmem:[%s300 + $0x30] sm:$0xff]
      %3169 = vrot.lane.b32.xlu0 %v3157, 27
      %v3170 = vpop.permute.xlu0 %3169
      %3171 = vrot.lane.b32.xlu0 %v3158, 27
      %v3172 = vpop.permute.xlu0 %3171
      %3173 = vrot.lane.b32.xlu0 %v3159, 27
      %v3174 = vpop.permute.xlu0 %3173
      %3175 = vrot.lane.b32.xlu0 %v3160, 27
      %v3176 = vpop.permute.xlu0 %3175
      %3177 = vrot.lane.b32.xlu0 %v3161, 27
      %v3178 = vpop.permute.xlu0 %3177
      %3179 = vrot.lane.b32.xlu0 %v3162, 27
      %v3180 = vpop.permute.xlu0 %3179
      %v3181 = vsel %vm2071, %v3170, %v3172
      %v3182 = vsel %vm2071, %v3172, %v3174
      %v3183 = vsel %vm2071, %v3174, %v3176
      %v3184 = vsel %vm2071, %v3176, %v3178
      %v3185 = vsel %vm2071, %v3178, %v3180
      %3191 = vst [vmem:[#allocation4 + $0x140] sm:$0xff] %v3181
      %3192 = vst [vmem:[#allocation4 + $0x148] sm:$0xff] %v3182
      %3193 = vst [vmem:[#allocation4 + $0x150] sm:$0xff] %v3183
      %3194 = vst [vmem:[#allocation4 + $0x158] sm:$0xff] %v3184
      %3195 = vst [vmem:[#allocation4 + $0x160] sm:$0xff] %v3185
      %v3196 = vld [vmem:[%s3] sm:$0xff]
      %v3197 = vld [vmem:[%s3 + $0x8] sm:$0xff]
      %v3198 = vld [vmem:[#allocation4] sm:$0xff]
      %v3199 = vld [vmem:[#allocation4 + $0x8] sm:$0xff]
      %v3200 = vld [vmem:[#allocation4 + $0x10] sm:$0xff]
      %v3201 = vld [vmem:[#allocation4 + $0x18] sm:$0xff]
      %v3202 = vld [vmem:[#allocation4 + $0x20] sm:$0xff]
      %v3203 = vld [vmem:[#allocation4 + $0x28] sm:$0xff]
      %v3204 = vld [vmem:[#allocation4 + $0x30] sm:$0xff]
      %v3205 = vld [vmem:[#allocation4 + $0x38] sm:$0xff]
      %v3206 = vld [vmem:[#allocation4 + $0x40] sm:$0xff]
      %v3207 = vld [vmem:[#allocation4 + $0x48] sm:$0xff]
      %v3208 = vld [vmem:[#allocation4 + $0x50] sm:$0xff]
      %v3209 = vld [vmem:[#allocation4 + $0x58] sm:$0xff]
      %v3210 = vld [vmem:[#allocation4 + $0x60] sm:$0xff]
      %v3211 = vld [vmem:[#allocation4 + $0x68] sm:$0xff]
      %v3212 = vld [vmem:[#allocation4 + $0x70] sm:$0xff]
      %v3213 = vld [vmem:[#allocation4 + $0x78] sm:$0xff]
      %v3214 = vld [vmem:[#allocation4 + $0x80] sm:$0xff]
      %v3215 = vld [vmem:[#allocation4 + $0x88] sm:$0xff]
      %v3216 = vld [vmem:[#allocation4 + $0x90] sm:$0xff]
      %v3217 = vld [vmem:[#allocation4 + $0x98] sm:$0xff]
      %v3218 = vld [vmem:[#allocation4 + $0xa0] sm:$0xff]
      %v3219 = vld [vmem:[#allocation4 + $0xa8] sm:$0xff]
      %v3220 = vld [vmem:[#allocation4 + $0xb0] sm:$0xff]
      %v3221 = vld [vmem:[#allocation4 + $0xb8] sm:$0xff]
      %v3222 = vld [vmem:[#allocation4 + $0xc0] sm:$0xff]
      %v3223 = vld [vmem:[#allocation4 + $0xc8] sm:$0xff]
      %v3224 = vld [vmem:[#allocation4 + $0xd0] sm:$0xff]
      %v3225 = vld [vmem:[#allocation4 + $0xd8] sm:$0xff]
      %v3226 = vld [vmem:[#allocation4 + $0xe0] sm:$0xff]
      %v3227 = vld [vmem:[#allocation4 + $0xe8] sm:$0xff]
      %v3228 = vld [vmem:[#allocation4 + $0xf0] sm:$0xff]
      %v3229 = vld [vmem:[#allocation4 + $0xf8] sm:$0xff]
      %v3230 = vld [vmem:[#allocation4 + $0x100] sm:$0xff]
      %v3231 = vld [vmem:[#allocation4 + $0x108] sm:$0xff]
      %v3232 = vld [vmem:[#allocation4 + $0x110] sm:$0xff]
      %v3233 = vld [vmem:[#allocation4 + $0x118] sm:$0xff]
      %v3234 = vld [vmem:[#allocation4 + $0x120] sm:$0xff]
      %v3235 = vld [vmem:[#allocation4 + $0x128] sm:$0xff]
      %v3236 = vld [vmem:[#allocation4 + $0x130] sm:$0xff]
      %v3237 = vld [vmem:[#allocation4 + $0x138] sm:$0xff]
      %v3238 = vld [vmem:[#allocation4 + $0x140] sm:$0xff]
      %v3239 = vld [vmem:[#allocation4 + $0x148] sm:$0xff]
      %v3240 = vld [vmem:[#allocation4 + $0x150] sm:$0xff]
      %v3241 = vld [vmem:[#allocation4 + $0x158] sm:$0xff]
      %v3242 = vld [vmem:[#allocation4 + $0x160] sm:$0xff]
      %v3244 = vsel %vm702, %v3196, 0
      %v3247 = vsel %vm702, %v3197, 0
      %3249 = vmatprep.subr.mxu0 0.0
      %3250 = vmatpush1.msra.mxu0 0.0
      %3251 = vmatprep.subr.mxu0 0.0
      %3252 = vmatpush1.msra.mxu0 0.0
      %3253 = vmatprep.subr.mxu0 0.0
      %3254 = vmatpush1.msra.mxu0 0.0
      %3255 = vmatprep.subr.mxu0 0.0
      %3256 = vmatpush1.msra.mxu0 0.0
      %3257 = vmatprep.subr.mxu0 0.0
      %3258 = vmatpush1.msra.mxu0 0.0
      %3259 = vmatprep.subr.mxu0 0.0
      %3260 = vmatpush1.msra.mxu0 0.0
      %3261 = vmatprep.subr.mxu0 0.0
      %3262 = vmatpush1.msra.mxu0 0.0
      %3263 = vmatprep.subr.mxu0 %v3239
      %3264 = vmatpush1.msra.mxu0 %v3238
      %3265 = vmatprep.subr.mxu0 %v3234
      %3266 = vmatpush1.msra.mxu0 %v3233
      %3267 = vmatprep.subr.mxu0 %v3229
      %3268 = vmatpush1.msra.mxu0 %v3228
      %3269 = vmatprep.subr.mxu0 %v3224
      %3270 = vmatpush1.msra.mxu0 %v3223
      %3271 = vmatprep.subr.mxu0 %v3219
      %3272 = vmatpush1.msra.mxu0 %v3218
      %3273 = vmatprep.subr.mxu0 %v3214
      %3274 = vmatpush1.msra.mxu0 %v3213
      %3275 = vmatprep.subr.mxu0 %v3209
      %3276 = vmatpush1.msra.mxu0 %v3208
      %3277 = vmatprep.subr.mxu0 %v3204
      %3278 = vmatpush1.msra.mxu0 %v3203
      %3279 = vmatprep.subr.mxu0 %v3199
      %3280 = vmatpush1.msra.mxu0 %v3198
      %3281 = vmatprep.subr.mxu0 0.0
      %3282 = vmatpush2.msra.mxu0 0.0
      %3283 = vmatprep.subr.mxu0 0.0
      %3284 = vmatpush2.msra.mxu0 0.0
      %3285 = vmatprep.subr.mxu0 0.0
      %3286 = vmatpush2.msra.mxu0 0.0
      %3287 = vmatprep.subr.mxu0 0.0
      %3288 = vmatpush2.msra.mxu0 0.0
      %3289 = vmatprep.subr.mxu0 0.0
      %3290 = vmatpush2.msra.mxu0 0.0
      %3291 = vmatprep.subr.mxu0 0.0
      %3292 = vmatpush2.msra.mxu0 0.0
      %3293 = vmatprep.subr.mxu0 0.0
      %3294 = vmatpush2.msra.mxu0 0.0
      %3295 = vmatprep.subr.mxu0 0.0
      %3296 = vmatpush2.msra.mxu0 0.0
      %3297 = vmatprep.subr.mxu0 0.0
      %3298 = vmatpush2.msra.mxu0 0.0
      %3299 = vmatprep.subr.mxu0 0.0
      %3300 = vmatpush2.msra.mxu0 0.0
      %3301 = vmatprep.subr.mxu0 0.0
      %3302 = vmatpush2.msra.mxu0 0.0
      %3303 = vmatprep.subr.mxu0 0.0
      %3304 = vmatpush2.msra.mxu0 0.0
      %3305 = vmatprep.subr.mxu0 0.0
      %3306 = vmatpush2.msra.mxu0 0.0
      %3307 = vmatprep.subr.mxu0 0.0
      %3308 = vmatpush2.msra.mxu0 0.0
      %3309 = vmatprep.subr.mxu0 0.0
      %3310 = vmatpush2.msra.mxu0 0.0
      %3311 = vmatprep.subr.mxu0 0.0
      %3312 = vmatpush2.msra.mxu0 0.0
      %3313 = vmatprep.mubr.f32.mxu0 0.0
      %3314 = vmatmul.mubr.f32.gmra.mxu0 %v3244
      %v3315 = vpop.f32.mrf.mxu0
      %v3316 = vadd.f32 0.0, %v3315
      %v3317 = vpop.f32.mrf.mxu0
      %v3318 = vadd.f32 0.0, %v3317
      %3319 = vmatprep.mubr.f32.mxu0 0.0
      %3320 = vmatmul.mubr.f32.gmra.mxu0 %v3247
      %v3321 = vpop.f32.mrf.mxu0
      %v3322 = vadd.f32 0.0, %v3321
      %v3323 = vpop.f32.mrf.mxu0
      %v3324 = vadd.f32 0.0, %v3323
      %3325 = vdwg.mxu0
      %3326 = vmatprep.subr.mxu0 0.0
      %3327 = vmatpush1.msra.mxu0 0.0
      %3328 = vmatprep.subr.mxu0 0.0
      %3329 = vmatpush1.msra.mxu0 0.0
      %3330 = vmatprep.subr.mxu0 0.0
      %3331 = vmatpush1.msra.mxu0 0.0
      %3332 = vmatprep.subr.mxu0 0.0
      %3333 = vmatpush1.msra.mxu0 0.0
      %3334 = vmatprep.subr.mxu0 0.0
      %3335 = vmatpush1.msra.mxu0 0.0
      %3336 = vmatprep.subr.mxu0 0.0
      %3337 = vmatpush1.msra.mxu0 0.0
      %3338 = vmatprep.subr.mxu0 0.0
      %3339 = vmatpush1.msra.mxu0 0.0
      %3340 = vmatprep.subr.mxu0 %v3241
      %3341 = vmatpush1.msra.mxu0 %v3240
      %3342 = vmatprep.subr.mxu0 %v3236
      %3343 = vmatpush1.msra.mxu0 %v3235
      %3344 = vmatprep.subr.mxu0 %v3231
      %3345 = vmatpush1.msra.mxu0 %v3230
      %3346 = vmatprep.subr.mxu0 %v3226
      %3347 = vmatpush1.msra.mxu0 %v3225
      %3348 = vmatprep.subr.mxu0 %v3221
      %3349 = vmatpush1.msra.mxu0 %v3220
      %3350 = vmatprep.subr.mxu0 %v3216
      %3351 = vmatpush1.msra.mxu0 %v3215
      %3352 = vmatprep.subr.mxu0 %v3211
      %3353 = vmatpush1.msra.mxu0 %v3210
      %3354 = vmatprep.subr.mxu0 %v3206
      %3355 = vmatpush1.msra.mxu0 %v3205
      %3356 = vmatprep.subr.mxu0 %v3201
      %3357 = vmatpush1.msra.mxu0 %v3200
      %3358 = vmatprep.subr.mxu0 0.0
      %3359 = vmatpush2.msra.mxu0 0.0
      %3360 = vmatprep.subr.mxu0 0.0
      %3361 = vmatpush2.msra.mxu0 0.0
      %3362 = vmatprep.subr.mxu0 0.0
      %3363 = vmatpush2.msra.mxu0 0.0
      %3364 = vmatprep.subr.mxu0 0.0
      %3365 = vmatpush2.msra.mxu0 0.0
      %3366 = vmatprep.subr.mxu0 0.0
      %3367 = vmatpush2.msra.mxu0 0.0
      %3368 = vmatprep.subr.mxu0 0.0
      %3369 = vmatpush2.msra.mxu0 0.0
      %3370 = vmatprep.subr.mxu0 0.0
      %3371 = vmatpush2.msra.mxu0 0.0
      %3372 = vmatprep.subr.mxu0 0.0
      %3373 = vmatpush2.msra.mxu0 0.0
      %3374 = vmatprep.subr.mxu0 0.0
      %3375 = vmatpush2.msra.mxu0 0.0
      %3376 = vmatprep.subr.mxu0 0.0
      %3377 = vmatpush2.msra.mxu0 0.0
      %3378 = vmatprep.subr.mxu0 0.0
      %3379 = vmatpush2.msra.mxu0 0.0
      %3380 = vmatprep.subr.mxu0 0.0
      %3381 = vmatpush2.msra.mxu0 0.0
      %3382 = vmatprep.subr.mxu0 0.0
      %3383 = vmatpush2.msra.mxu0 0.0
      %3384 = vmatprep.subr.mxu0 0.0
      %3385 = vmatpush2.msra.mxu0 0.0
      %3386 = vmatprep.subr.mxu0 0.0
      %3387 = vmatpush2.msra.mxu0 0.0
      %3388 = vmatprep.subr.mxu0 0.0
      %3389 = vmatpush2.msra.mxu0 0.0
      %3390 = vmatprep.mubr.f32.mxu0 0.0
      %3391 = vmatmul.mubr.f32.gmra.mxu0 %v3244
      %v3392 = vpop.f32.mrf.mxu0
      %v3393 = vadd.f32 0.0, %v3392
      %v3394 = vpop.f32.mrf.mxu0
      %v3395 = vadd.f32 0.0, %v3394
      %3396 = vmatprep.mubr.f32.mxu0 0.0
      %3397 = vmatmul.mubr.f32.gmra.mxu0 %v3247
      %v3398 = vpop.f32.mrf.mxu0
      %v3399 = vadd.f32 0.0, %v3398
      %v3400 = vpop.f32.mrf.mxu0
      %v3401 = vadd.f32 0.0, %v3400
      %3402 = vdwg.mxu0
      %3403 = vmatprep.subr.mxu0 0.0
      %3404 = vmatpush1.msra.mxu0 0.0
      %3405 = vmatprep.subr.mxu0 0.0
      %3406 = vmatpush1.msra.mxu0 0.0
      %3407 = vmatprep.subr.mxu0 0.0
      %3408 = vmatpush1.msra.mxu0 0.0
      %3409 = vmatprep.subr.mxu0 0.0
      %3410 = vmatpush1.msra.mxu0 0.0
      %3411 = vmatprep.subr.mxu0 0.0
      %3412 = vmatpush1.msra.mxu0 0.0
      %3413 = vmatprep.subr.mxu0 0.0
      %3414 = vmatpush1.msra.mxu0 0.0
      %3415 = vmatprep.subr.mxu0 0.0
      %3416 = vmatpush1.msra.mxu0 0.0
      %3417 = vmatprep.subr.mxu0 0.0
      %3418 = vmatpush1.msra.mxu0 %v3242
      %3419 = vmatprep.subr.mxu0 0.0
      %3420 = vmatpush1.msra.mxu0 %v3237
      %3421 = vmatprep.subr.mxu0 0.0
      %3422 = vmatpush1.msra.mxu0 %v3232
      %3423 = vmatprep.subr.mxu0 0.0
      %3424 = vmatpush1.msra.mxu0 %v3227
      %3425 = vmatprep.subr.mxu0 0.0
      %3426 = vmatpush1.msra.mxu0 %v3222
      %3427 = vmatprep.subr.mxu0 0.0
      %3428 = vmatpush1.msra.mxu0 %v3217
      %3429 = vmatprep.subr.mxu0 0.0
      %3430 = vmatpush1.msra.mxu0 %v3212
      %3431 = vmatprep.subr.mxu0 0.0
      %3432 = vmatpush1.msra.mxu0 %v3207
      %3433 = vmatprep.subr.mxu0 0.0
      %3434 = vmatpush1.msra.mxu0 %v3202
      %3435 = vmatprep.subr.mxu0 0.0
      %3436 = vmatpush2.msra.mxu0 0.0
      %3437 = vmatprep.subr.mxu0 0.0
      %3438 = vmatpush2.msra.mxu0 0.0
      %3439 = vmatprep.subr.mxu0 0.0
      %3440 = vmatpush2.msra.mxu0 0.0
      %3441 = vmatprep.subr.mxu0 0.0
      %3442 = vmatpush2.msra.mxu0 0.0
      %3443 = vmatprep.subr.mxu0 0.0
      %3444 = vmatpush2.msra.mxu0 0.0
      %3445 = vmatprep.subr.mxu0 0.0
      %3446 = vmatpush2.msra.mxu0 0.0
      %3447 = vmatprep.subr.mxu0 0.0
      %3448 = vmatpush2.msra.mxu0 0.0
      %3449 = vmatprep.subr.mxu0 0.0
      %3450 = vmatpush2.msra.mxu0 0.0
      %3451 = vmatprep.subr.mxu0 0.0
      %3452 = vmatpush2.msra.mxu0 0.0
      %3453 = vmatprep.subr.mxu0 0.0
      %3454 = vmatpush2.msra.mxu0 0.0
      %3455 = vmatprep.subr.mxu0 0.0
      %3456 = vmatpush2.msra.mxu0 0.0
      %3457 = vmatprep.subr.mxu0 0.0
      %3458 = vmatpush2.msra.mxu0 0.0
      %3459 = vmatprep.subr.mxu0 0.0
      %3460 = vmatpush2.msra.mxu0 0.0
      %3461 = vmatprep.subr.mxu0 0.0
      %3462 = vmatpush2.msra.mxu0 0.0
      %3463 = vmatprep.subr.mxu0 0.0
      %3464 = vmatpush2.msra.mxu0 0.0
      %3465 = vmatprep.subr.mxu0 0.0
      %3466 = vmatpush2.msra.mxu0 0.0
      %3467 = vmatprep.mubr.f32.mxu0 0.0
      %3468 = vmatmul.mubr.f32.gmra.mxu0 %v3244
      %v3469 = vpop.f32.mrf.mxu0
      %v3470 = vadd.f32 0.0, %v3469
      %v3471 = vpop.f32.mrf.mxu0
      %3472 = vmatprep.mubr.f32.mxu0 0.0
      %3473 = vmatmul.mubr.f32.gmra.mxu0 %v3247
      %v3474 = vpop.f32.mrf.mxu0
      %v3475 = vadd.f32 0.0, %v3474
      %v3476 = vpop.f32.mrf.mxu0
      %3477 = vdwg.mxu0
      %vm3478 = vcmp.ge.f32.partialorder %v3316, 0.0
      %vm3479 = vcmp.ge.f32.partialorder %v3318, 0.0
      %vm3480 = vcmp.ge.f32.partialorder %v3393, 0.0
      %vm3481 = vcmp.ge.f32.partialorder %v3395, 0.0
      %vm3482 = vcmp.ge.f32.partialorder %v3470, 0.0
      %vm3483 = vcmp.ge.f32.partialorder %v3322, 0.0
      %vm3484 = vcmp.ge.f32.partialorder %v3324, 0.0
      %vm3485 = vcmp.ge.f32.partialorder %v3399, 0.0
      %vm3486 = vcmp.ge.f32.partialorder %v3401, 0.0
      %vm3487 = vcmp.ge.f32.partialorder %v3475, 0.0
      %v3488 = vmul.f32 %v3316, 0.01
      %v3489 = vmul.f32 %v3318, 0.01
      %v3490 = vmul.f32 %v3393, 0.01
      %v3491 = vmul.f32 %v3395, 0.01
      %v3492 = vmul.f32 %v3470, 0.01
      %v3493 = vmul.f32 %v3322, 0.01
      %v3494 = vmul.f32 %v3324, 0.01
      %v3495 = vmul.f32 %v3399, 0.01
      %v3496 = vmul.f32 %v3401, 0.01
      %v3497 = vmul.f32 %v3475, 0.01
      %v3498 = vsel %vm3478, %v3316, %v3488
      %v3499 = vsel %vm3479, %v3318, %v3489
      %v3500 = vsel %vm3480, %v3393, %v3490
      %v3501 = vsel %vm3481, %v3395, %v3491
      %v3502 = vsel %vm3482, %v3470, %v3492
      %v3503 = vsel %vm3483, %v3322, %v3493
      %v3504 = vsel %vm3484, %v3324, %v3494
      %v3505 = vsel %vm3485, %v3399, %v3495
      %v3506 = vsel %vm3486, %v3401, %v3496
      %v3507 = vsel %vm3487, %v3475, %v3497
      %v3508 = vsel %vm989, %v3498, 0.0
      %v3509 = vsel %vm990, %v3499, 0.0
      %v3510 = vsel %vm991, %v3500, 0.0
      %v3511 = vsel %vm992, %v3501, 0.0
      %v3512 = vsel %vm993, %v3502, 0.0
      %v3513 = vsel %vm989, %v3503, 0.0
      %v3514 = vsel %vm990, %v3504, 0.0
      %v3515 = vsel %vm991, %v3505, 0.0
      %v3516 = vsel %vm992, %v3506, 0.0
      %v3517 = vsel %vm993, %v3507, 0.0
      %s3518 = scalar_lea.vmem %s5, 32
      %v3519 = vld [vmem:[%s3518] sm:$0xff]
      %v3520 = vld [vmem:[%s3518 + $0x8] sm:$0xff]
      %s3521 = scalar_lea.vmem %s6, 32
      %v3522 = vld [vmem:[%s3521] sm:$0xff]
      %v3523 = vld [vmem:[%s3521 + $0x8] sm:$0xff]
      %v3524 = vadd.f32 %v3508, %v3509
      %v3525 = vadd.f32 %v3524, %v3510
      %v3526 = vadd.f32 %v3525, %v3511
      %v3527 = vadd.f32 %v3526, %v3512
      %3528 = vadd.xlane.f32.xlu0 %v3527
      %v3529 = vpop.xlane.xlu0 %3528
      %v3530 = vadd.f32 %v3513, %v3514
      %v3531 = vadd.f32 %v3530, %v3515
      %v3532 = vadd.f32 %v3531, %v3516
      %v3533 = vadd.f32 %v3532, %v3517
      %3534 = vadd.xlane.f32.xlu0 %v3533
      %v3535 = vpop.xlane.xlu0 %3534
      %v3536 = vsel %vm1024, %v3529, 0.0
      %v3537 = vsel %vm1025, %v3535, 0.0
      %v3538 = vsel %vm469, %v3536, 0.0
      %v3539 = vsel %vm469, %v3537, 0.0
      %v3540 = vadd.f32 %v3538, %v3539
      %3541 = vadd.xlane.f32.xlu0 %v3540
      %v3542 = vpop.xlane.xlu0 %3541
      %v3543 = vrot.slane %v3542, 4
      %v3544 = vadd.f32 %v3542, %v3543
      %v3545 = vrot.slane %v3544, 2
      %v3546 = vadd.f32 %v3544, %v3545
      %v3547 = vrot.slane %v3546, 1
      %v3548 = vadd.f32 %v3546, %v3547
      %s3549 = vtos %v3548
      %v3550 = vstv %s3549
      %v3551 = vsel %vm1024, %v3550, 0.0
      %v3552 = vsel %vm1025, %v3550, 0.0
      %v3553 = vsel %vm1047, %v3529, 0.0
      %v3554 = vsel %vm1048, %v3535, 0.0
      %v3555 = vsel %vm469, %v3553, 0.0
      %v3556 = vsel %vm469, %v3554, 0.0
      %v3557 = vadd.f32 %v3555, %v3556
      %3558 = vadd.xlane.f32.xlu0 %v3557
      %v3559 = vpop.xlane.xlu0 %3558
      %v3560 = vrot.slane %v3559, 4
      %v3561 = vadd.f32 %v3559, %v3560
      %v3562 = vrot.slane %v3561, 2
      %v3563 = vadd.f32 %v3561, %v3562
      %v3564 = vrot.slane %v3563, 1
      %v3565 = vadd.f32 %v3563, %v3564
      %s3566 = vtos %v3565
      %v3567 = vstv %s3566
      %v3568 = vsel %vm1047, %v3567, %v3551
      %v3569 = vsel %vm1048, %v3567, %v3552
      %v3570 = vsel %vm1070, %v3529, 0.0
      %v3571 = vsel %vm1071, %v3535, 0.0
      %v3572 = vsel %vm469, %v3570, 0.0
      %v3573 = vsel %vm469, %v3571, 0.0
      %v3574 = vadd.f32 %v3572, %v3573
      %3575 = vadd.xlane.f32.xlu0 %v3574
      %v3576 = vpop.xlane.xlu0 %3575
      %v3577 = vrot.slane %v3576, 4
      %v3578 = vadd.f32 %v3576, %v3577
      %v3579 = vrot.slane %v3578, 2
      %v3580 = vadd.f32 %v3578, %v3579
      %v3581 = vrot.slane %v3580, 1
      %v3582 = vadd.f32 %v3580, %v3581
      %s3583 = vtos %v3582
      %v3584 = vstv %s3583
      %v3585 = vsel %vm1070, %v3584, %v3568
      %v3586 = vsel %vm1071, %v3584, %v3569
      %v3587 = vsel %vm1093, %v3529, 0.0
      %v3588 = vsel %vm1094, %v3535, 0.0
      %v3589 = vsel %vm469, %v3587, 0.0
      %v3590 = vsel %vm469, %v3588, 0.0
      %v3591 = vadd.f32 %v3589, %v3590
      %3592 = vadd.xlane.f32.xlu0 %v3591
      %v3593 = vpop.xlane.xlu0 %3592
      %v3594 = vrot.slane %v3593, 4
      %v3595 = vadd.f32 %v3593, %v3594
      %v3596 = vrot.slane %v3595, 2
      %v3597 = vadd.f32 %v3595, %v3596
      %v3598 = vrot.slane %v3597, 1
      %v3599 = vadd.f32 %v3597, %v3598
      %s3600 = vtos %v3599
      %v3601 = vstv %s3600
      %v3602 = vsel %vm1093, %v3601, %v3585
      %v3603 = vsel %vm1094, %v3601, %v3586
      %v3604 = vsel %vm1116, %v3529, 0.0
      %v3605 = vsel %vm1117, %v3535, 0.0
      %v3606 = vsel %vm469, %v3604, 0.0
      %v3607 = vsel %vm469, %v3605, 0.0
      %v3608 = vadd.f32 %v3606, %v3607
      %3609 = vadd.xlane.f32.xlu0 %v3608
      %v3610 = vpop.xlane.xlu0 %3609
      %v3611 = vrot.slane %v3610, 4
      %v3612 = vadd.f32 %v3610, %v3611
      %v3613 = vrot.slane %v3612, 2
      %v3614 = vadd.f32 %v3612, %v3613
      %v3615 = vrot.slane %v3614, 1
      %v3616 = vadd.f32 %v3614, %v3615
      %s3617 = vtos %v3616
      %v3618 = vstv %s3617
      %v3619 = vsel %vm1116, %v3618, %v3602
      %v3620 = vsel %vm1117, %v3618, %v3603
      %v3621 = vsel %vm1139, %v3529, 0.0
      %v3622 = vsel %vm1140, %v3535, 0.0
      %v3623 = vsel %vm469, %v3621, 0.0
      %v3624 = vsel %vm469, %v3622, 0.0
      %v3625 = vadd.f32 %v3623, %v3624
      %3626 = vadd.xlane.f32.xlu0 %v3625
      %v3627 = vpop.xlane.xlu0 %3626
      %v3628 = vrot.slane %v3627, 4
      %v3629 = vadd.f32 %v3627, %v3628
      %v3630 = vrot.slane %v3629, 2
      %v3631 = vadd.f32 %v3629, %v3630
      %v3632 = vrot.slane %v3631, 1
      %v3633 = vadd.f32 %v3631, %v3632
      %s3634 = vtos %v3633
      %v3635 = vstv %s3634
      %v3636 = vsel %vm1139, %v3635, %v3619
      %v3637 = vsel %vm1140, %v3635, %v3620
      %v3638 = vsel %vm1162, %v3529, 0.0
      %v3639 = vsel %vm1163, %v3535, 0.0
      %v3640 = vsel %vm469, %v3638, 0.0
      %v3641 = vsel %vm469, %v3639, 0.0
      %v3642 = vadd.f32 %v3640, %v3641
      %3643 = vadd.xlane.f32.xlu0 %v3642
      %v3644 = vpop.xlane.xlu0 %3643
      %v3645 = vrot.slane %v3644, 4
      %v3646 = vadd.f32 %v3644, %v3645
      %v3647 = vrot.slane %v3646, 2
      %v3648 = vadd.f32 %v3646, %v3647
      %v3649 = vrot.slane %v3648, 1
      %v3650 = vadd.f32 %v3648, %v3649
      %s3651 = vtos %v3650
      %v3652 = vstv %s3651
      %v3653 = vsel %vm1162, %v3652, %v3636
      %v3654 = vsel %vm1163, %v3652, %v3637
      %v3655 = vsel %vm1185, %v3529, 0.0
      %v3656 = vsel %vm1186, %v3535, 0.0
      %v3657 = vsel %vm469, %v3655, 0.0
      %v3658 = vsel %vm469, %v3656, 0.0
      %v3659 = vadd.f32 %v3657, %v3658
      %3660 = vadd.xlane.f32.xlu0 %v3659
      %v3661 = vpop.xlane.xlu0 %3660
      %v3662 = vrot.slane %v3661, 4
      %v3663 = vadd.f32 %v3661, %v3662
      %v3664 = vrot.slane %v3663, 2
      %v3665 = vadd.f32 %v3663, %v3664
      %v3666 = vrot.slane %v3665, 1
      %v3667 = vadd.f32 %v3665, %v3666
      %s3668 = vtos %v3667
      %v3669 = vstv %s3668
      %v3670 = vsel %vm1185, %v3669, %v3653
      %v3671 = vsel %vm1186, %v3669, %v3654
      %v3672 = vmul.f32 %v3670, 0.001953125
      %v3673 = vmul.f32 %v3671, 0.001953125
      %v3674 = vsub.f32 %v3508, %v3672
      %v3675 = vsub.f32 %v3509, %v3672
      %v3676 = vsub.f32 %v3510, %v3672
      %v3677 = vsub.f32 %v3511, %v3672
      %v3678 = vsub.f32 %v3512, %v3672
      %v3679 = vsub.f32 %v3513, %v3673
      %v3680 = vsub.f32 %v3514, %v3673
      %v3681 = vsub.f32 %v3515, %v3673
      %v3682 = vsub.f32 %v3516, %v3673
      %v3683 = vsub.f32 %v3517, %v3673
      %v3684 = vsel %vm989, %v3674, 0.0
      %v3685 = vsel %vm990, %v3675, 0.0
      %v3686 = vsel %vm991, %v3676, 0.0
      %v3687 = vsel %vm992, %v3677, 0.0
      %v3688 = vsel %vm993, %v3678, 0.0
      %v3689 = vsel %vm989, %v3679, 0.0
      %v3690 = vsel %vm990, %v3680, 0.0
      %v3691 = vsel %vm991, %v3681, 0.0
      %v3692 = vsel %vm992, %v3682, 0.0
      %v3693 = vsel %vm993, %v3683, 0.0
      %v3694 = vmul.f32 %v3684, %v3684
      %v3695 = vmul.f32 %v3685, %v3685
      %v3696 = vmul.f32 %v3686, %v3686
      %v3697 = vmul.f32 %v3687, %v3687
      %v3698 = vmul.f32 %v3688, %v3688
      %v3699 = vmul.f32 %v3689, %v3689
      %v3700 = vmul.f32 %v3690, %v3690
      %v3701 = vmul.f32 %v3691, %v3691
      %v3702 = vmul.f32 %v3692, %v3692
      %v3703 = vmul.f32 %v3693, %v3693
      %v3704 = vadd.f32 %v3694, %v3695
      %v3705 = vadd.f32 %v3704, %v3696
      %v3706 = vadd.f32 %v3705, %v3697
      %v3707 = vadd.f32 %v3706, %v3698
      %3708 = vadd.xlane.f32.xlu0 %v3707
      %v3709 = vpop.xlane.xlu0 %3708
      %v3710 = vadd.f32 %v3699, %v3700
      %v3711 = vadd.f32 %v3710, %v3701
      %v3712 = vadd.f32 %v3711, %v3702
      %v3713 = vadd.f32 %v3712, %v3703
      %3714 = vadd.xlane.f32.xlu0 %v3713
      %v3715 = vpop.xlane.xlu0 %3714
      %v3716 = vsel %vm1024, %v3709, 0.0
      %v3717 = vsel %vm1025, %v3715, 0.0
      %v3718 = vsel %vm469, %v3716, 0.0
      %v3719 = vsel %vm469, %v3717, 0.0
      %v3720 = vadd.f32 %v3718, %v3719
      %3721 = vadd.xlane.f32.xlu0 %v3720
      %v3722 = vpop.xlane.xlu0 %3721
      %v3723 = vrot.slane %v3722, 4
      %v3724 = vadd.f32 %v3722, %v3723
      %v3725 = vrot.slane %v3724, 2
      %v3726 = vadd.f32 %v3724, %v3725
      %v3727 = vrot.slane %v3726, 1
      %v3728 = vadd.f32 %v3726, %v3727
      %s3729 = vtos %v3728
      %v3730 = vstv %s3729
      %v3731 = vsel %vm1024, %v3730, 0.0
      %v3732 = vsel %vm1025, %v3730, 0.0
      %v3733 = vsel %vm1047, %v3709, 0.0
      %v3734 = vsel %vm1048, %v3715, 0.0
      %v3735 = vsel %vm469, %v3733, 0.0
      %v3736 = vsel %vm469, %v3734, 0.0
      %v3737 = vadd.f32 %v3735, %v3736
      %3738 = vadd.xlane.f32.xlu0 %v3737
      %v3739 = vpop.xlane.xlu0 %3738
      %v3740 = vrot.slane %v3739, 4
      %v3741 = vadd.f32 %v3739, %v3740
      %v3742 = vrot.slane %v3741, 2
      %v3743 = vadd.f32 %v3741, %v3742
      %v3744 = vrot.slane %v3743, 1
      %v3745 = vadd.f32 %v3743, %v3744
      %s3746 = vtos %v3745
      %v3747 = vstv %s3746
      %v3748 = vsel %vm1047, %v3747, %v3731
      %v3749 = vsel %vm1048, %v3747, %v3732
      %v3750 = vsel %vm1070, %v3709, 0.0
      %v3751 = vsel %vm1071, %v3715, 0.0
      %v3752 = vsel %vm469, %v3750, 0.0
      %v3753 = vsel %vm469, %v3751, 0.0
      %v3754 = vadd.f32 %v3752, %v3753
      %3755 = vadd.xlane.f32.xlu0 %v3754
      %v3756 = vpop.xlane.xlu0 %3755
      %v3757 = vrot.slane %v3756, 4
      %v3758 = vadd.f32 %v3756, %v3757
      %v3759 = vrot.slane %v3758, 2
      %v3760 = vadd.f32 %v3758, %v3759
      %v3761 = vrot.slane %v3760, 1
      %v3762 = vadd.f32 %v3760, %v3761
      %s3763 = vtos %v3762
      %v3764 = vstv %s3763
      %v3765 = vsel %vm1070, %v3764, %v3748
      %v3766 = vsel %vm1071, %v3764, %v3749
      %v3767 = vsel %vm1093, %v3709, 0.0
      %v3768 = vsel %vm1094, %v3715, 0.0
      %v3769 = vsel %vm469, %v3767, 0.0
      %v3770 = vsel %vm469, %v3768, 0.0
      %v3771 = vadd.f32 %v3769, %v3770
      %3772 = vadd.xlane.f32.xlu0 %v3771
      %v3773 = vpop.xlane.xlu0 %3772
      %v3774 = vrot.slane %v3773, 4
      %v3775 = vadd.f32 %v3773, %v3774
      %v3776 = vrot.slane %v3775, 2
      %v3777 = vadd.f32 %v3775, %v3776
      %v3778 = vrot.slane %v3777, 1
      %v3779 = vadd.f32 %v3777, %v3778
      %s3780 = vtos %v3779
      %v3781 = vstv %s3780
      %v3782 = vsel %vm1093, %v3781, %v3765
      %v3783 = vsel %vm1094, %v3781, %v3766
      %v3784 = vsel %vm1116, %v3709, 0.0
      %v3785 = vsel %vm1117, %v3715, 0.0
      %v3786 = vsel %vm469, %v3784, 0.0
      %v3787 = vsel %vm469, %v3785, 0.0
      %v3788 = vadd.f32 %v3786, %v3787
      %3789 = vadd.xlane.f32.xlu0 %v3788
      %v3790 = vpop.xlane.xlu0 %3789
      %v3791 = vrot.slane %v3790, 4
      %v3792 = vadd.f32 %v3790, %v3791
      %v3793 = vrot.slane %v3792, 2
      %v3794 = vadd.f32 %v3792, %v3793
      %v3795 = vrot.slane %v3794, 1
      %v3796 = vadd.f32 %v3794, %v3795
      %s3797 = vtos %v3796
      %v3798 = vstv %s3797
      %v3799 = vsel %vm1116, %v3798, %v3782
      %v3800 = vsel %vm1117, %v3798, %v3783
      %v3801 = vsel %vm1139, %v3709, 0.0
      %v3802 = vsel %vm1140, %v3715, 0.0
      %v3803 = vsel %vm469, %v3801, 0.0
      %v3804 = vsel %vm469, %v3802, 0.0
      %v3805 = vadd.f32 %v3803, %v3804
      %3806 = vadd.xlane.f32.xlu0 %v3805
      %v3807 = vpop.xlane.xlu0 %3806
      %v3808 = vrot.slane %v3807, 4
      %v3809 = vadd.f32 %v3807, %v3808
      %v3810 = vrot.slane %v3809, 2
      %v3811 = vadd.f32 %v3809, %v3810
      %v3812 = vrot.slane %v3811, 1
      %v3813 = vadd.f32 %v3811, %v3812
      %s3814 = vtos %v3813
      %v3815 = vstv %s3814
      %v3816 = vsel %vm1139, %v3815, %v3799
      %v3817 = vsel %vm1140, %v3815, %v3800
      %v3818 = vsel %vm1162, %v3709, 0.0
      %v3819 = vsel %vm1163, %v3715, 0.0
      %v3820 = vsel %vm469, %v3818, 0.0
      %v3821 = vsel %vm469, %v3819, 0.0
      %v3822 = vadd.f32 %v3820, %v3821
      %3823 = vadd.xlane.f32.xlu0 %v3822
      %v3824 = vpop.xlane.xlu0 %3823
      %v3825 = vrot.slane %v3824, 4
      %v3826 = vadd.f32 %v3824, %v3825
      %v3827 = vrot.slane %v3826, 2
      %v3828 = vadd.f32 %v3826, %v3827
      %v3829 = vrot.slane %v3828, 1
      %v3830 = vadd.f32 %v3828, %v3829
      %s3831 = vtos %v3830
      %v3832 = vstv %s3831
      %v3833 = vsel %vm1162, %v3832, %v3816
      %v3834 = vsel %vm1163, %v3832, %v3817
      %v3835 = vsel %vm1185, %v3709, 0.0
      %v3836 = vsel %vm1186, %v3715, 0.0
      %v3837 = vsel %vm469, %v3835, 0.0
      %v3838 = vsel %vm469, %v3836, 0.0
      %v3839 = vadd.f32 %v3837, %v3838
      %3840 = vadd.xlane.f32.xlu0 %v3839
      %v3841 = vpop.xlane.xlu0 %3840
      %v3842 = vrot.slane %v3841, 4
      %v3843 = vadd.f32 %v3841, %v3842
      %v3844 = vrot.slane %v3843, 2
      %v3845 = vadd.f32 %v3843, %v3844
      %v3846 = vrot.slane %v3845, 1
      %v3847 = vadd.f32 %v3845, %v3846
      %s3848 = vtos %v3847
      %v3849 = vstv %s3848
      %v3850 = vsel %vm1185, %v3849, %v3833
      %v3851 = vsel %vm1186, %v3849, %v3834
      %v3852 = vmul.f32 %v3850, 0.001953125
      %v3853 = vmul.f32 %v3851, 0.001953125
      %v3854 = vadd.f32 %v3852, 1e-05
      %v3855 = vadd.f32 %v3853, 1e-05
      %v3856 = vrsqrt.pop %v3854
      %v3857 = vrsqrt.pop %v3855
      %v3858 = vmul.f32 %v3856, %v3519
      %v3859 = vmul.f32 %v3857, %v3520
      %3861 = vset.pattern.permute.xlu0 0
      %3862 = vperm.xlu0 %3861, %v3858
      %v3863 = vpop.permute.xlu0 %3862
      %3866 = vset.pattern.permute.xlu0 0
      %3867 = vperm.xlu0 %3866, %v3859
      %v3868 = vpop.permute.xlu0 %3867
      %v3870 = vmul.f32 %v3684, %v3863
      %v3871 = vmul.f32 %v3685, %v3863
      %v3872 = vmul.f32 %v3686, %v3863
      %v3873 = vmul.f32 %v3687, %v3863
      %v3874 = vmul.f32 %v3688, %v3863
      %v3875 = vmul.f32 %v3689, %v3868
      %v3876 = vmul.f32 %v3690, %v3868
      %v3877 = vmul.f32 %v3691, %v3868
      %v3878 = vmul.f32 %v3692, %v3868
      %v3879 = vmul.f32 %v3693, %v3868
      %3881 = vset.pattern.permute.xlu0 0
      %3882 = vperm.xlu0 %3881, %v3522
      %v3883 = vpop.permute.xlu0 %3882
      %3886 = vset.pattern.permute.xlu0 0
      %3887 = vperm.xlu0 %3886, %v3523
      %v3888 = vpop.permute.xlu0 %3887
      %v3890 = vadd.f32 %v3870, %v3883
      %v3891 = vadd.f32 %v3871, %v3883
      %v3892 = vadd.f32 %v3872, %v3883
      %v3893 = vadd.f32 %v3873, %v3883
      %v3894 = vadd.f32 %v3874, %v3883
      %v3895 = vadd.f32 %v3875, %v3888
      %v3896 = vadd.f32 %v3876, %v3888
      %v3897 = vadd.f32 %v3877, %v3888
      %v3898 = vadd.f32 %v3878, %v3888
      %v3899 = vadd.f32 %v3879, %v3888
      %v3900 = vsel %vm989, %v3890, 0.0
      %v3901 = vsel %vm990, %v3891, 0.0
      %v3902 = vsel %vm991, %v3892, 0.0
      %v3903 = vsel %vm992, %v3893, 0.0
      %v3904 = vsel %vm993, %v3894, 0.0
      %v3905 = vsel %vm989, %v3895, 0.0
      %v3906 = vsel %vm990, %v3896, 0.0
      %v3907 = vsel %vm991, %v3897, 0.0
      %v3908 = vsel %vm992, %v3898, 0.0
      %v3909 = vsel %vm993, %v3899, 0.0
      %3910 = vst [vmem:[#allocation2 + $0x8] sm:$0xff] %v3900
      %3911 = vst [vmem:[#allocation2 + $0x10] sm:$0xff] %v3901
      %3912 = vst [vmem:[#allocation2 + $0x18] sm:$0xff] %v3902
      %3913 = vst [vmem:[#allocation2 + $0x20] sm:$0xff] %v3903
      %3914 = vst [vmem:[#allocation2 + $0x28] sm:$0xff] %v3904
      %3915 = vst [vmem:[#allocation2 + $0x40] sm:$0xff] %v3905
      %3916 = vst [vmem:[#allocation2 + $0x48] sm:$0xff] %v3906
      %3917 = vst [vmem:[#allocation2 + $0x50] sm:$0xff] %v3907
      %3918 = vst [vmem:[#allocation2 + $0x58] sm:$0xff] %v3908
      %3919 = vst [vmem:[#allocation2 + $0x60] sm:$0xff] %v3909
      %v3920 = vld [vmem:[#allocation2] sm:$0xff]
      %v3921 = vld [vmem:[#allocation2 + $0x8] sm:$0xff]
      %v3922 = vld [vmem:[#allocation2 + $0x10] sm:$0xff]
      %v3923 = vld [vmem:[#allocation2 + $0x18] sm:$0xff]
      %v3924 = vld [vmem:[#allocation2 + $0x20] sm:$0xff]
      %v3925 = vld [vmem:[#allocation2 + $0x28] sm:$0xff]
      %v3926 = vld [vmem:[#allocation2 + $0x38] sm:$0xff]
      %v3927 = vld [vmem:[#allocation2 + $0x40] sm:$0xff]
      %v3928 = vld [vmem:[#allocation2 + $0x48] sm:$0xff]
      %v3929 = vld [vmem:[#allocation2 + $0x50] sm:$0xff]
      %v3930 = vld [vmem:[#allocation2 + $0x58] sm:$0xff]
      %v3931 = vld [vmem:[#allocation2 + $0x60] sm:$0xff]
      %3944 = vrot.lane.b32.xlu0 %v3920, 11
      %v3945 = vpop.permute.xlu0 %3944
      %3946 = vrot.lane.b32.xlu0 %v3921, 11
      %v3947 = vpop.permute.xlu0 %3946
      %3948 = vrot.lane.b32.xlu0 %v3922, 11
      %v3949 = vpop.permute.xlu0 %3948
      %3950 = vrot.lane.b32.xlu0 %v3923, 11
      %v3951 = vpop.permute.xlu0 %3950
      %3952 = vrot.lane.b32.xlu0 %v3924, 11
      %v3953 = vpop.permute.xlu0 %3952
      %3954 = vrot.lane.b32.xlu0 %v3925, 11
      %v3955 = vpop.permute.xlu0 %3954
      %3956 = vrot.lane.b32.xlu0 %v3926, 11
      %v3957 = vpop.permute.xlu0 %3956
      %3958 = vrot.lane.b32.xlu0 %v3927, 11
      %v3959 = vpop.permute.xlu0 %3958
      %3960 = vrot.lane.b32.xlu0 %v3928, 11
      %v3961 = vpop.permute.xlu0 %3960
      %3962 = vrot.lane.b32.xlu0 %v3929, 11
      %v3963 = vpop.permute.xlu0 %3962
      %3964 = vrot.lane.b32.xlu0 %v3930, 11
      %v3965 = vpop.permute.xlu0 %3964
      %3966 = vrot.lane.b32.xlu0 %v3931, 11
      %v3967 = vpop.permute.xlu0 %3966
      %v3968 = vsel %vm349, %v3945, %v3947
      %v3969 = vsel %vm349, %v3947, %v3949
      %v3970 = vsel %vm349, %v3949, %v3951
      %v3971 = vsel %vm349, %v3951, %v3953
      %v3972 = vsel %vm349, %v3953, %v3955
      %v3973 = vsel %vm349, %v3957, %v3959
      %v3974 = vsel %vm349, %v3959, %v3961
      %v3975 = vsel %vm349, %v3961, %v3963
      %v3976 = vsel %vm349, %v3963, %v3965
      %v3977 = vsel %vm349, %v3965, %v3967
      %3988 = vst [vmem:[#allocation4] sm:$0xff] %v3968
      %3989 = vst [vmem:[#allocation4 + $0x8] sm:$0xff] %v3969
      %3990 = vst [vmem:[#allocation4 + $0x10] sm:$0xff] %v3970
      %3991 = vst [vmem:[#allocation4 + $0x18] sm:$0xff] %v3971
      %3992 = vst [vmem:[#allocation4 + $0x20] sm:$0xff] %v3972
      %3993 = vst [vmem:[#allocation4 + $0x28] sm:$0xff] %v3973
      %3994 = vst [vmem:[#allocation4 + $0x30] sm:$0xff] %v3974
      %3995 = vst [vmem:[#allocation4 + $0x38] sm:$0xff] %v3975
      %3996 = vst [vmem:[#allocation4 + $0x40] sm:$0xff] %v3976
      %3997 = vst [vmem:[#allocation4 + $0x48] sm:$0xff] %v3977
      %v3998 = vld [vmem:[#allocation2] sm:$0xff]
      %v3999 = vld [vmem:[#allocation2 + $0x8] sm:$0xff]
      %v4000 = vld [vmem:[#allocation2 + $0x10] sm:$0xff]
      %v4001 = vld [vmem:[#allocation2 + $0x18] sm:$0xff]
      %v4002 = vld [vmem:[#allocation2 + $0x20] sm:$0xff]
      %v4003 = vld [vmem:[#allocation2 + $0x28] sm:$0xff]
      %v4004 = vld [vmem:[#allocation2 + $0x38] sm:$0xff]
      %v4005 = vld [vmem:[#allocation2 + $0x40] sm:$0xff]
      %v4006 = vld [vmem:[#allocation2 + $0x48] sm:$0xff]
      %v4007 = vld [vmem:[#allocation2 + $0x50] sm:$0xff]
      %v4008 = vld [vmem:[#allocation2 + $0x58] sm:$0xff]
      %v4009 = vld [vmem:[#allocation2 + $0x60] sm:$0xff]
      %4022 = vrot.lane.b32.xlu0 %v3998, 10
      %v4023 = vpop.permute.xlu0 %4022
      %4024 = vrot.lane.b32.xlu0 %v3999, 10
      %v4025 = vpop.permute.xlu0 %4024
      %4026 = vrot.lane.b32.xlu0 %v4000, 10
      %v4027 = vpop.permute.xlu0 %4026
      %4028 = vrot.lane.b32.xlu0 %v4001, 10
      %v4029 = vpop.permute.xlu0 %4028
      %4030 = vrot.lane.b32.xlu0 %v4002, 10
      %v4031 = vpop.permute.xlu0 %4030
      %4032 = vrot.lane.b32.xlu0 %v4003, 10
      %v4033 = vpop.permute.xlu0 %4032
      %4034 = vrot.lane.b32.xlu0 %v4004, 10
      %v4035 = vpop.permute.xlu0 %4034
      %4036 = vrot.lane.b32.xlu0 %v4005, 10
      %v4037 = vpop.permute.xlu0 %4036
      %4038 = vrot.lane.b32.xlu0 %v4006, 10
      %v4039 = vpop.permute.xlu0 %4038
      %4040 = vrot.lane.b32.xlu0 %v4007, 10
      %v4041 = vpop.permute.xlu0 %4040
      %4042 = vrot.lane.b32.xlu0 %v4008, 10
      %v4043 = vpop.permute.xlu0 %4042
      %4044 = vrot.lane.b32.xlu0 %v4009, 10
      %v4045 = vpop.permute.xlu0 %4044
      %v4046 = vsel %vm389, %v4023, %v4025
      %v4047 = vsel %vm389, %v4025, %v4027
      %v4048 = vsel %vm389, %v4027, %v4029
      %v4049 = vsel %vm389, %v4029, %v4031
      %v4050 = vsel %vm389, %v4031, %v4033
      %v4051 = vsel %vm389, %v4035, %v4037
      %v4052 = vsel %vm389, %v4037, %v4039
      %v4053 = vsel %vm389, %v4039, %v4041
      %v4054 = vsel %vm389, %v4041, %v4043
      %v4055 = vsel %vm389, %v4043, %v4045
      %4066 = vst [vmem:[#allocation4 + $0x50] sm:$0xff] %v4046
      %4067 = vst [vmem:[#allocation4 + $0x58] sm:$0xff] %v4047
      %4068 = vst [vmem:[#allocation4 + $0x60] sm:$0xff] %v4048
      %4069 = vst [vmem:[#allocation4 + $0x68] sm:$0xff] %v4049
      %4070 = vst [vmem:[#allocation4 + $0x70] sm:$0xff] %v4050
      %4071 = vst [vmem:[#allocation4 + $0x78] sm:$0xff] %v4051
      %4072 = vst [vmem:[#allocation4 + $0x80] sm:$0xff] %v4052
      %4073 = vst [vmem:[#allocation4 + $0x88] sm:$0xff] %v4053
      %4074 = vst [vmem:[#allocation4 + $0x90] sm:$0xff] %v4054
      %4075 = vst [vmem:[#allocation4 + $0x98] sm:$0xff] %v4055
      %v4076 = vld [vmem:[#allocation2] sm:$0xff]
      %v4077 = vld [vmem:[#allocation2 + $0x8] sm:$0xff]
      %v4078 = vld [vmem:[#allocation2 + $0x10] sm:$0xff]
      %v4079 = vld [vmem:[#allocation2 + $0x18] sm:$0xff]
      %v4080 = vld [vmem:[#allocation2 + $0x20] sm:$0xff]
      %v4081 = vld [vmem:[#allocation2 + $0x28] sm:$0xff]
      %v4082 = vld [vmem:[#allocation2 + $0x38] sm:$0xff]
      %v4083 = vld [vmem:[#allocation2 + $0x40] sm:$0xff]
      %v4084 = vld [vmem:[#allocation2 + $0x48] sm:$0xff]
      %v4085 = vld [vmem:[#allocation2 + $0x50] sm:$0xff]
      %v4086 = vld [vmem:[#allocation2 + $0x58] sm:$0xff]
      %v4087 = vld [vmem:[#allocation2 + $0x60] sm:$0xff]
      %4100 = vrot.lane.b32.xlu0 %v4076, 9
      %v4101 = vpop.permute.xlu0 %4100
      %4102 = vrot.lane.b32.xlu0 %v4077, 9
      %v4103 = vpop.permute.xlu0 %4102
      %4104 = vrot.lane.b32.xlu0 %v4078, 9
      %v4105 = vpop.permute.xlu0 %4104
      %4106 = vrot.lane.b32.xlu0 %v4079, 9
      %v4107 = vpop.permute.xlu0 %4106
      %4108 = vrot.lane.b32.xlu0 %v4080, 9
      %v4109 = vpop.permute.xlu0 %4108
      %4110 = vrot.lane.b32.xlu0 %v4081, 9
      %v4111 = vpop.permute.xlu0 %4110
      %4112 = vrot.lane.b32.xlu0 %v4082, 9
      %v4113 = vpop.permute.xlu0 %4112
      %4114 = vrot.lane.b32.xlu0 %v4083, 9
      %v4115 = vpop.permute.xlu0 %4114
      %4116 = vrot.lane.b32.xlu0 %v4084, 9
      %v4117 = vpop.permute.xlu0 %4116
      %4118 = vrot.lane.b32.xlu0 %v4085, 9
      %v4119 = vpop.permute.xlu0 %4118
      %4120 = vrot.lane.b32.xlu0 %v4086, 9
      %v4121 = vpop.permute.xlu0 %4120
      %4122 = vrot.lane.b32.xlu0 %v4087, 9
      %v4123 = vpop.permute.xlu0 %4122
      %v4124 = vsel %vm429, %v4101, %v4103
      %v4125 = vsel %vm429, %v4103, %v4105
      %v4126 = vsel %vm429, %v4105, %v4107
      %v4127 = vsel %vm429, %v4107, %v4109
      %v4128 = vsel %vm429, %v4109, %v4111
      %v4129 = vsel %vm429, %v4113, %v4115
      %v4130 = vsel %vm429, %v4115, %v4117
      %v4131 = vsel %vm429, %v4117, %v4119
      %v4132 = vsel %vm429, %v4119, %v4121
      %v4133 = vsel %vm429, %v4121, %v4123
      %4144 = vst [vmem:[#allocation4 + $0xa0] sm:$0xff] %v4124
      %4145 = vst [vmem:[#allocation4 + $0xa8] sm:$0xff] %v4125
      %4146 = vst [vmem:[#allocation4 + $0xb0] sm:$0xff] %v4126
      %4147 = vst [vmem:[#allocation4 + $0xb8] sm:$0xff] %v4127
      %4148 = vst [vmem:[#allocation4 + $0xc0] sm:$0xff] %v4128
      %4149 = vst [vmem:[#allocation4 + $0xc8] sm:$0xff] %v4129
      %4150 = vst [vmem:[#allocation4 + $0xd0] sm:$0xff] %v4130
      %4151 = vst [vmem:[#allocation4 + $0xd8] sm:$0xff] %v4131
      %4152 = vst [vmem:[#allocation4 + $0xe0] sm:$0xff] %v4132
      %4153 = vst [vmem:[#allocation4 + $0xe8] sm:$0xff] %v4133
      %v4154 = vld [vmem:[#allocation2] sm:$0xff]
      %v4155 = vld [vmem:[#allocation2 + $0x8] sm:$0xff]
      %v4156 = vld [vmem:[#allocation2 + $0x10] sm:$0xff]
      %v4157 = vld [vmem:[#allocation2 + $0x18] sm:$0xff]
      %v4158 = vld [vmem:[#allocation2 + $0x20] sm:$0xff]
      %v4159 = vld [vmem:[#allocation2 + $0x28] sm:$0xff]
      %v4160 = vld [vmem:[#allocation2 + $0x38] sm:$0xff]
      %v4161 = vld [vmem:[#allocation2 + $0x40] sm:$0xff]
      %v4162 = vld [vmem:[#allocation2 + $0x48] sm:$0xff]
      %v4163 = vld [vmem:[#allocation2 + $0x50] sm:$0xff]
      %v4164 = vld [vmem:[#allocation2 + $0x58] sm:$0xff]
      %v4165 = vld [vmem:[#allocation2 + $0x60] sm:$0xff]
      %4178 = vrot.lane.b32.xlu0 %v4154, 1
      %v4179 = vpop.permute.xlu0 %4178
      %4180 = vrot.lane.b32.xlu0 %v4155, 1
      %v4181 = vpop.permute.xlu0 %4180
      %4182 = vrot.lane.b32.xlu0 %v4156, 1
      %v4183 = vpop.permute.xlu0 %4182
      %4184 = vrot.lane.b32.xlu0 %v4157, 1
      %v4185 = vpop.permute.xlu0 %4184
      %4186 = vrot.lane.b32.xlu0 %v4158, 1
      %v4187 = vpop.permute.xlu0 %4186
      %4188 = vrot.lane.b32.xlu0 %v4159, 1
      %v4189 = vpop.permute.xlu0 %4188
      %4190 = vrot.lane.b32.xlu0 %v4160, 1
      %v4191 = vpop.permute.xlu0 %4190
      %4192 = vrot.lane.b32.xlu0 %v4161, 1
      %v4193 = vpop.permute.xlu0 %4192
      %4194 = vrot.lane.b32.xlu0 %v4162, 1
      %v4195 = vpop.permute.xlu0 %4194
      %4196 = vrot.lane.b32.xlu0 %v4163, 1
      %v4197 = vpop.permute.xlu0 %4196
      %4198 = vrot.lane.b32.xlu0 %v4164, 1
      %v4199 = vpop.permute.xlu0 %4198
      %4200 = vrot.lane.b32.xlu0 %v4165, 1
      %v4201 = vpop.permute.xlu0 %4200
      %v4202 = vsel %vm469, %v4179, %v4181
      %v4203 = vsel %vm469, %v4181, %v4183
      %v4204 = vsel %vm469, %v4183, %v4185
      %v4205 = vsel %vm469, %v4185, %v4187
      %v4206 = vsel %vm469, %v4187, %v4189
      %v4207 = vsel %vm469, %v4191, %v4193
      %v4208 = vsel %vm469, %v4193, %v4195
      %v4209 = vsel %vm469, %v4195, %v4197
      %v4210 = vsel %vm469, %v4197, %v4199
      %v4211 = vsel %vm469, %v4199, %v4201
      %4222 = vst [vmem:[#allocation4 + $0xf0] sm:$0xff] %v4202
      %4223 = vst [vmem:[#allocation4 + $0xf8] sm:$0xff] %v4203
      %4224 = vst [vmem:[#allocation4 + $0x100] sm:$0xff] %v4204
      %4225 = vst [vmem:[#allocation4 + $0x108] sm:$0xff] %v4205
      %4226 = vst [vmem:[#allocation4 + $0x110] sm:$0xff] %v4206
      %4227 = vst [vmem:[#allocation4 + $0x118] sm:$0xff] %v4207
      %4228 = vst [vmem:[#allocation4 + $0x120] sm:$0xff] %v4208
      %4229 = vst [vmem:[#allocation4 + $0x128] sm:$0xff] %v4209
      %4230 = vst [vmem:[#allocation4 + $0x130] sm:$0xff] %v4210
      %4231 = vst [vmem:[#allocation4 + $0x138] sm:$0xff] %v4211
      %v4232 = vld [vmem:[#allocation2 + $0x8] sm:$0xff]
      %v4233 = vld [vmem:[#allocation2 + $0x10] sm:$0xff]
      %v4234 = vld [vmem:[#allocation2 + $0x18] sm:$0xff]
      %v4235 = vld [vmem:[#allocation2 + $0x20] sm:$0xff]
      %v4236 = vld [vmem:[#allocation2 + $0x28] sm:$0xff]
      %v4237 = vld [vmem:[#allocation2 + $0x40] sm:$0xff]
      %v4238 = vld [vmem:[#allocation2 + $0x48] sm:$0xff]
      %v4239 = vld [vmem:[#allocation2 + $0x50] sm:$0xff]
      %v4240 = vld [vmem:[#allocation2 + $0x58] sm:$0xff]
      %v4241 = vld [vmem:[#allocation2 + $0x60] sm:$0xff]
      %4242 = vst [vmem:[#allocation4 + $0x140] sm:$0xff] %v4232
      %4243 = vst [vmem:[#allocation4 + $0x148] sm:$0xff] %v4233
      %4244 = vst [vmem:[#allocation4 + $0x150] sm:$0xff] %v4234
      %4245 = vst [vmem:[#allocation4 + $0x158] sm:$0xff] %v4235
      %4246 = vst [vmem:[#allocation4 + $0x160] sm:$0xff] %v4236
      %4247 = vst [vmem:[#allocation4 + $0x168] sm:$0xff] %v4237
      %4248 = vst [vmem:[#allocation4 + $0x170] sm:$0xff] %v4238
      %4249 = vst [vmem:[#allocation4 + $0x178] sm:$0xff] %v4239
      %4250 = vst [vmem:[#allocation4 + $0x180] sm:$0xff] %v4240
      %4251 = vst [vmem:[#allocation4 + $0x188] sm:$0xff] %v4241
      %v4252 = vld [vmem:[#allocation2 + $0x8] sm:$0xff]
      %v4253 = vld [vmem:[#allocation2 + $0x10] sm:$0xff]
      %v4254 = vld [vmem:[#allocation2 + $0x18] sm:$0xff]
      %v4255 = vld [vmem:[#allocation2 + $0x20] sm:$0xff]
      %v4256 = vld [vmem:[#allocation2 + $0x28] sm:$0xff]
      %v4257 = vld [vmem:[#allocation2 + $0x30] sm:$0xff]
      %v4258 = vld [vmem:[#allocation2 + $0x40] sm:$0xff]
      %v4259 = vld [vmem:[#allocation2 + $0x48] sm:$0xff]
      %v4260 = vld [vmem:[#allocation2 + $0x50] sm:$0xff]
      %v4261 = vld [vmem:[#allocation2 + $0x58] sm:$0xff]
      %v4262 = vld [vmem:[#allocation2 + $0x60] sm:$0xff]
      %v4263 = vld [vmem:[#allocation2 + $0x68] sm:$0xff]
      %4276 = vrot.lane.b32.xlu0 %v4252, 127
      %v4277 = vpop.permute.xlu0 %4276
      %4278 = vrot.lane.b32.xlu0 %v4253, 127
      %v4279 = vpop.permute.xlu0 %4278
      %4280 = vrot.lane.b32.xlu0 %v4254, 127
      %v4281 = vpop.permute.xlu0 %4280
      %4282 = vrot.lane.b32.xlu0 %v4255, 127
      %v4283 = vpop.permute.xlu0 %4282
      %4284 = vrot.lane.b32.xlu0 %v4256, 127
      %v4285 = vpop.permute.xlu0 %4284
      %4286 = vrot.lane.b32.xlu0 %v4257, 127
      %v4287 = vpop.permute.xlu0 %4286
      %4288 = vrot.lane.b32.xlu0 %v4258, 127
      %v4289 = vpop.permute.xlu0 %4288
      %4290 = vrot.lane.b32.xlu0 %v4259, 127
      %v4291 = vpop.permute.xlu0 %4290
      %4292 = vrot.lane.b32.xlu0 %v4260, 127
      %v4293 = vpop.permute.xlu0 %4292
      %4294 = vrot.lane.b32.xlu0 %v4261, 127
      %v4295 = vpop.permute.xlu0 %4294
      %4296 = vrot.lane.b32.xlu0 %v4262, 127
      %v4297 = vpop.permute.xlu0 %4296
      %4298 = vrot.lane.b32.xlu0 %v4263, 127
      %v4299 = vpop.permute.xlu0 %4298
      %v4300 = vsel %vm519, %v4277, %v4279
      %v4301 = vsel %vm519, %v4279, %v4281
      %v4302 = vsel %vm519, %v4281, %v4283
      %v4303 = vsel %vm519, %v4283, %v4285
      %v4304 = vsel %vm519, %v4285, %v4287
      %v4305 = vsel %vm519, %v4289, %v4291
      %v4306 = vsel %vm519, %v4291, %v4293
      %v4307 = vsel %vm519, %v4293, %v4295
      %v4308 = vsel %vm519, %v4295, %v4297
      %v4309 = vsel %vm519, %v4297, %v4299
      %4320 = vst [vmem:[#allocation4 + $0x190] sm:$0xff] %v4300
      %4321 = vst [vmem:[#allocation4 + $0x198] sm:$0xff] %v4301
      %4322 = vst [vmem:[#allocation4 + $0x1a0] sm:$0xff] %v4302
      %4323 = vst [vmem:[#allocation4 + $0x1a8] sm:$0xff] %v4303
      %4324 = vst [vmem:[#allocation4 + $0x1b0] sm:$0xff] %v4304
      %4325 = vst [vmem:[#allocation4 + $0x1b8] sm:$0xff] %v4305
      %4326 = vst [vmem:[#allocation4 + $0x1c0] sm:$0xff] %v4306
      %4327 = vst [vmem:[#allocation4 + $0x1c8] sm:$0xff] %v4307
      %4328 = vst [vmem:[#allocation4 + $0x1d0] sm:$0xff] %v4308
      %4329 = vst [vmem:[#allocation4 + $0x1d8] sm:$0xff] %v4309
      %v4330 = vld [vmem:[#allocation2 + $0x8] sm:$0xff]
      %v4331 = vld [vmem:[#allocation2 + $0x10] sm:$0xff]
      %v4332 = vld [vmem:[#allocation2 + $0x18] sm:$0xff]
      %v4333 = vld [vmem:[#allocation2 + $0x20] sm:$0xff]
      %v4334 = vld [vmem:[#allocation2 + $0x28] sm:$0xff]
      %v4335 = vld [vmem:[#allocation2 + $0x30] sm:$0xff]
      %v4336 = vld [vmem:[#allocation2 + $0x40] sm:$0xff]
      %v4337 = vld [vmem:[#allocation2 + $0x48] sm:$0xff]
      %v4338 = vld [vmem:[#allocation2 + $0x50] sm:$0xff]
      %v4339 = vld [vmem:[#allocation2 + $0x58] sm:$0xff]
      %v4340 = vld [vmem:[#allocation2 + $0x60] sm:$0xff]
      %v4341 = vld [vmem:[#allocation2 + $0x68] sm:$0xff]
      %4354 = vrot.lane.b32.xlu0 %v4330, 119
      %v4355 = vpop.permute.xlu0 %4354
      %4356 = vrot.lane.b32.xlu0 %v4331, 119
      %v4357 = vpop.permute.xlu0 %4356
      %4358 = vrot.lane.b32.xlu0 %v4332, 119
      %v4359 = vpop.permute.xlu0 %4358
      %4360 = vrot.lane.b32.xlu0 %v4333, 119
      %v4361 = vpop.permute.xlu0 %4360
      %4362 = vrot.lane.b32.xlu0 %v4334, 119
      %v4363 = vpop.permute.xlu0 %4362
      %4364 = vrot.lane.b32.xlu0 %v4335, 119
      %v4365 = vpop.permute.xlu0 %4364
      %4366 = vrot.lane.b32.xlu0 %v4336, 119
      %v4367 = vpop.permute.xlu0 %4366
      %4368 = vrot.lane.b32.xlu0 %v4337, 119
      %v4369 = vpop.permute.xlu0 %4368
      %4370 = vrot.lane.b32.xlu0 %v4338, 119
      %v4371 = vpop.permute.xlu0 %4370
      %4372 = vrot.lane.b32.xlu0 %v4339, 119
      %v4373 = vpop.permute.xlu0 %4372
      %4374 = vrot.lane.b32.xlu0 %v4340, 119
      %v4375 = vpop.permute.xlu0 %4374
      %4376 = vrot.lane.b32.xlu0 %v4341, 119
      %v4377 = vpop.permute.xlu0 %4376
      %v4378 = vsel %vm559, %v4355, %v4357
      %v4379 = vsel %vm559, %v4357, %v4359
      %v4380 = vsel %vm559, %v4359, %v4361
      %v4381 = vsel %vm559, %v4361, %v4363
      %v4382 = vsel %vm559, %v4363, %v4365
      %v4383 = vsel %vm559, %v4367, %v4369
      %v4384 = vsel %vm559, %v4369, %v4371
      %v4385 = vsel %vm559, %v4371, %v4373
      %v4386 = vsel %vm559, %v4373, %v4375
      %v4387 = vsel %vm559, %v4375, %v4377
      %4398 = vst [vmem:[#allocation4 + $0x1e0] sm:$0xff] %v4378
      %4399 = vst [vmem:[#allocation4 + $0x1e8] sm:$0xff] %v4379
      %4400 = vst [vmem:[#allocation4 + $0x1f0] sm:$0xff] %v4380
      %4401 = vst [vmem:[#allocation4 + $0x1f8] sm:$0xff] %v4381
      %4402 = vst [vmem:[#allocation4 + $0x200] sm:$0xff] %v4382
      %4403 = vst [vmem:[#allocation4 + $0x208] sm:$0xff] %v4383
      %4404 = vst [vmem:[#allocation4 + $0x210] sm:$0xff] %v4384
      %4405 = vst [vmem:[#allocation4 + $0x218] sm:$0xff] %v4385
      %4406 = vst [vmem:[#allocation4 + $0x220] sm:$0xff] %v4386
      %4407 = vst [vmem:[#allocation4 + $0x228] sm:$0xff] %v4387
      %v4408 = vld [vmem:[#allocation2 + $0x8] sm:$0xff]
      %v4409 = vld [vmem:[#allocation2 + $0x10] sm:$0xff]
      %v4410 = vld [vmem:[#allocation2 + $0x18] sm:$0xff]
      %v4411 = vld [vmem:[#allocation2 + $0x20] sm:$0xff]
      %v4412 = vld [vmem:[#allocation2 + $0x28] sm:$0xff]
      %v4413 = vld [vmem:[#allocation2 + $0x30] sm:$0xff]
      %v4414 = vld [vmem:[#allocation2 + $0x40] sm:$0xff]
      %v4415 = vld [vmem:[#allocation2 + $0x48] sm:$0xff]
      %v4416 = vld [vmem:[#allocation2 + $0x50] sm:$0xff]
      %v4417 = vld [vmem:[#allocation2 + $0x58] sm:$0xff]
      %v4418 = vld [vmem:[#allocation2 + $0x60] sm:$0xff]
      %v4419 = vld [vmem:[#allocation2 + $0x68] sm:$0xff]
      %4432 = vrot.lane.b32.xlu0 %v4408, 118
      %v4433 = vpop.permute.xlu0 %4432
      %4434 = vrot.lane.b32.xlu0 %v4409, 118
      %v4435 = vpop.permute.xlu0 %4434
      %4436 = vrot.lane.b32.xlu0 %v4410, 118
      %v4437 = vpop.permute.xlu0 %4436
      %4438 = vrot.lane.b32.xlu0 %v4411, 118
      %v4439 = vpop.permute.xlu0 %4438
      %4440 = vrot.lane.b32.xlu0 %v4412, 118
      %v4441 = vpop.permute.xlu0 %4440
      %4442 = vrot.lane.b32.xlu0 %v4413, 118
      %v4443 = vpop.permute.xlu0 %4442
      %4444 = vrot.lane.b32.xlu0 %v4414, 118
      %v4445 = vpop.permute.xlu0 %4444
      %4446 = vrot.lane.b32.xlu0 %v4415, 118
      %v4447 = vpop.permute.xlu0 %4446
      %4448 = vrot.lane.b32.xlu0 %v4416, 118
      %v4449 = vpop.permute.xlu0 %4448
      %4450 = vrot.lane.b32.xlu0 %v4417, 118
      %v4451 = vpop.permute.xlu0 %4450
      %4452 = vrot.lane.b32.xlu0 %v4418, 118
      %v4453 = vpop.permute.xlu0 %4452
      %4454 = vrot.lane.b32.xlu0 %v4419, 118
      %v4455 = vpop.permute.xlu0 %4454
      %v4456 = vsel %vm599, %v4433, %v4435
      %v4457 = vsel %vm599, %v4435, %v4437
      %v4458 = vsel %vm599, %v4437, %v4439
      %v4459 = vsel %vm599, %v4439, %v4441
      %v4460 = vsel %vm599, %v4441, %v4443
      %v4461 = vsel %vm599, %v4445, %v4447
      %v4462 = vsel %vm599, %v4447, %v4449
      %v4463 = vsel %vm599, %v4449, %v4451
      %v4464 = vsel %vm599, %v4451, %v4453
      %v4465 = vsel %vm599, %v4453, %v4455
      %4476 = vst [vmem:[#allocation4 + $0x230] sm:$0xff] %v4456
      %4477 = vst [vmem:[#allocation4 + $0x238] sm:$0xff] %v4457
      %4478 = vst [vmem:[#allocation4 + $0x240] sm:$0xff] %v4458
      %4479 = vst [vmem:[#allocation4 + $0x248] sm:$0xff] %v4459
      %4480 = vst [vmem:[#allocation4 + $0x250] sm:$0xff] %v4460
      %4481 = vst [vmem:[#allocation4 + $0x258] sm:$0xff] %v4461
      %4482 = vst [vmem:[#allocation4 + $0x260] sm:$0xff] %v4462
      %4483 = vst [vmem:[#allocation4 + $0x268] sm:$0xff] %v4463
      %4484 = vst [vmem:[#allocation4 + $0x270] sm:$0xff] %v4464
      %4485 = vst [vmem:[#allocation4 + $0x278] sm:$0xff] %v4465
      %v4486 = vld [vmem:[#allocation2 + $0x8] sm:$0xff]
      %v4487 = vld [vmem:[#allocation2 + $0x10] sm:$0xff]
      %v4488 = vld [vmem:[#allocation2 + $0x18] sm:$0xff]
      %v4489 = vld [vmem:[#allocation2 + $0x20] sm:$0xff]
      %v4490 = vld [vmem:[#allocation2 + $0x28] sm:$0xff]
      %v4491 = vld [vmem:[#allocation2 + $0x30] sm:$0xff]
      %v4492 = vld [vmem:[#allocation2 + $0x40] sm:$0xff]
      %v4493 = vld [vmem:[#allocation2 + $0x48] sm:$0xff]
      %v4494 = vld [vmem:[#allocation2 + $0x50] sm:$0xff]
      %v4495 = vld [vmem:[#allocation2 + $0x58] sm:$0xff]
      %v4496 = vld [vmem:[#allocation2 + $0x60] sm:$0xff]
      %v4497 = vld [vmem:[#allocation2 + $0x68] sm:$0xff]
      %4510 = vrot.lane.b32.xlu0 %v4486, 117
      %v4511 = vpop.permute.xlu0 %4510
      %4512 = vrot.lane.b32.xlu0 %v4487, 117
      %v4513 = vpop.permute.xlu0 %4512
      %4514 = vrot.lane.b32.xlu0 %v4488, 117
      %v4515 = vpop.permute.xlu0 %4514
      %4516 = vrot.lane.b32.xlu0 %v4489, 117
      %v4517 = vpop.permute.xlu0 %4516
      %4518 = vrot.lane.b32.xlu0 %v4490, 117
      %v4519 = vpop.permute.xlu0 %4518
      %4520 = vrot.lane.b32.xlu0 %v4491, 117
      %v4521 = vpop.permute.xlu0 %4520
      %4522 = vrot.lane.b32.xlu0 %v4492, 117
      %v4523 = vpop.permute.xlu0 %4522
      %4524 = vrot.lane.b32.xlu0 %v4493, 117
      %v4525 = vpop.permute.xlu0 %4524
      %4526 = vrot.lane.b32.xlu0 %v4494, 117
      %v4527 = vpop.permute.xlu0 %4526
      %4528 = vrot.lane.b32.xlu0 %v4495, 117
      %v4529 = vpop.permute.xlu0 %4528
      %4530 = vrot.lane.b32.xlu0 %v4496, 117
      %v4531 = vpop.permute.xlu0 %4530
      %4532 = vrot.lane.b32.xlu0 %v4497, 117
      %v4533 = vpop.permute.xlu0 %4532
      %v4534 = vsel %vm639, %v4511, %v4513
      %v4535 = vsel %vm639, %v4513, %v4515
      %v4536 = vsel %vm639, %v4515, %v4517
      %v4537 = vsel %vm639, %v4517, %v4519
      %v4538 = vsel %vm639, %v4519, %v4521
      %v4539 = vsel %vm639, %v4523, %v4525
      %v4540 = vsel %vm639, %v4525, %v4527
      %v4541 = vsel %vm639, %v4527, %v4529
      %v4542 = vsel %vm639, %v4529, %v4531
      %v4543 = vsel %vm639, %v4531, %v4533
      %4554 = vst [vmem:[#allocation4 + $0x280] sm:$0xff] %v4534
      %4555 = vst [vmem:[#allocation4 + $0x288] sm:$0xff] %v4535
      %4556 = vst [vmem:[#allocation4 + $0x290] sm:$0xff] %v4536
      %4557 = vst [vmem:[#allocation4 + $0x298] sm:$0xff] %v4537
      %4558 = vst [vmem:[#allocation4 + $0x2a0] sm:$0xff] %v4538
      %4559 = vst [vmem:[#allocation4 + $0x2a8] sm:$0xff] %v4539
      %4560 = vst [vmem:[#allocation4 + $0x2b0] sm:$0xff] %v4540
      %4561 = vst [vmem:[#allocation4 + $0x2b8] sm:$0xff] %v4541
      %4562 = vst [vmem:[#allocation4 + $0x2c0] sm:$0xff] %v4542
      %4563 = vst [vmem:[#allocation4 + $0x2c8] sm:$0xff] %v4543
      %v4564 = vld [vmem:[%s4] sm:$0xff]
      %v4565 = vld [vmem:[%s4 + $0x8] sm:$0xff]
      %v4566 = vld [vmem:[%s4 + $0x10] sm:$0xff]
      %v4567 = vld [vmem:[%s4 + $0x18] sm:$0xff]
      %v4568 = vld [vmem:[#allocation4] sm:$0xff]
      %v4569 = vld [vmem:[#allocation4 + $0x8] sm:$0xff]
      %v4570 = vld [vmem:[#allocation4 + $0x10] sm:$0xff]
      %v4571 = vld [vmem:[#allocation4 + $0x18] sm:$0xff]
      %v4572 = vld [vmem:[#allocation4 + $0x20] sm:$0xff]
      %v4573 = vld [vmem:[#allocation4 + $0x28] sm:$0xff]
      %v4574 = vld [vmem:[#allocation4 + $0x30] sm:$0xff]
      %v4575 = vld [vmem:[#allocation4 + $0x38] sm:$0xff]
      %v4576 = vld [vmem:[#allocation4 + $0x40] sm:$0xff]
      %v4577 = vld [vmem:[#allocation4 + $0x48] sm:$0xff]
      %v4578 = vld [vmem:[#allocation4 + $0x50] sm:$0xff]
      %v4579 = vld [vmem:[#allocation4 + $0x58] sm:$0xff]
      %v4580 = vld [vmem:[#allocation4 + $0x60] sm:$0xff]
      %v4581 = vld [vmem:[#allocation4 + $0x68] sm:$0xff]
      %v4582 = vld [vmem:[#allocation4 + $0x70] sm:$0xff]
      %v4583 = vld [vmem:[#allocation4 + $0x78] sm:$0xff]
      %v4584 = vld [vmem:[#allocation4 + $0x80] sm:$0xff]
      %v4585 = vld [vmem:[#allocation4 + $0x88] sm:$0xff]
      %v4586 = vld [vmem:[#allocation4 + $0x90] sm:$0xff]
      %v4587 = vld [vmem:[#allocation4 + $0x98] sm:$0xff]
      %v4588 = vld [vmem:[#allocation4 + $0xa0] sm:$0xff]
      %v4589 = vld [vmem:[#allocation4 + $0xa8] sm:$0xff]
      %v4590 = vld [vmem:[#allocation4 + $0xb0] sm:$0xff]
      %v4591 = vld [vmem:[#allocation4 + $0xb8] sm:$0xff]
      %v4592 = vld [vmem:[#allocation4 + $0xc0] sm:$0xff]
      %v4593 = vld [vmem:[#allocation4 + $0xc8] sm:$0xff]
      %v4594 = vld [vmem:[#allocation4 + $0xd0] sm:$0xff]
      %v4595 = vld [vmem:[#allocation4 + $0xd8] sm:$0xff]
      %v4596 = vld [vmem:[#allocation4 + $0xe0] sm:$0xff]
      %v4597 = vld [vmem:[#allocation4 + $0xe8] sm:$0xff]
      %v4598 = vld [vmem:[#allocation4 + $0xf0] sm:$0xff]
      %v4599 = vld [vmem:[#allocation4 + $0xf8] sm:$0xff]
      %v4600 = vld [vmem:[#allocation4 + $0x100] sm:$0xff]
      %v4601 = vld [vmem:[#allocation4 + $0x108] sm:$0xff]
      %v4602 = vld [vmem:[#allocation4 + $0x110] sm:$0xff]
      %v4603 = vld [vmem:[#allocation4 + $0x118] sm:$0xff]
      %v4604 = vld [vmem:[#allocation4 + $0x120] sm:$0xff]
      %v4605 = vld [vmem:[#allocation4 + $0x128] sm:$0xff]
      %v4606 = vld [vmem:[#allocation4 + $0x130] sm:$0xff]
      %v4607 = vld [vmem:[#allocation4 + $0x138] sm:$0xff]
      %v4608 = vld [vmem:[#allocation4 + $0x140] sm:$0xff]
      %v4609 = vld [vmem:[#allocation4 + $0x148] sm:$0xff]
      %v4610 = vld [vmem:[#allocation4 + $0x150] sm:$0xff]
      %v4611 = vld [vmem:[#allocation4 + $0x158] sm:$0xff]
      %v4612 = vld [vmem:[#allocation4 + $0x160] sm:$0xff]
      %v4613 = vld [vmem:[#allocation4 + $0x168] sm:$0xff]
      %v4614 = vld [vmem:[#allocation4 + $0x170] sm:$0xff]
      %v4615 = vld [vmem:[#allocation4 + $0x178] sm:$0xff]
      %v4616 = vld [vmem:[#allocation4 + $0x180] sm:$0xff]
      %v4617 = vld [vmem:[#allocation4 + $0x188] sm:$0xff]
      %v4618 = vld [vmem:[#allocation4 + $0x190] sm:$0xff]
      %v4619 = vld [vmem:[#allocation4 + $0x198] sm:$0xff]
      %v4620 = vld [vmem:[#allocation4 + $0x1a0] sm:$0xff]
      %v4621 = vld [vmem:[#allocation4 + $0x1a8] sm:$0xff]
      %v4622 = vld [vmem:[#allocation4 + $0x1b0] sm:$0xff]
      %v4623 = vld [vmem:[#allocation4 + $0x1b8] sm:$0xff]
      %v4624 = vld [vmem:[#allocation4 + $0x1c0] sm:$0xff]
      %v4625 = vld [vmem:[#allocation4 + $0x1c8] sm:$0xff]
      %v4626 = vld [vmem:[#allocation4 + $0x1d0] sm:$0xff]
      %v4627 = vld [vmem:[#allocation4 + $0x1d8] sm:$0xff]
      %v4628 = vld [vmem:[#allocation4 + $0x1e0] sm:$0xff]
      %v4629 = vld [vmem:[#allocation4 + $0x1e8] sm:$0xff]
      %v4630 = vld [vmem:[#allocation4 + $0x1f0] sm:$0xff]
      %v4631 = vld [vmem:[#allocation4 + $0x1f8] sm:$0xff]
      %v4632 = vld [vmem:[#allocation4 + $0x200] sm:$0xff]
      %v4633 = vld [vmem:[#allocation4 + $0x208] sm:$0xff]
      %v4634 = vld [vmem:[#allocation4 + $0x210] sm:$0xff]
      %v4635 = vld [vmem:[#allocation4 + $0x218] sm:$0xff]
      %v4636 = vld [vmem:[#allocation4 + $0x220] sm:$0xff]
      %v4637 = vld [vmem:[#allocation4 + $0x228] sm:$0xff]
      %v4638 = vld [vmem:[#allocation4 + $0x230] sm:$0xff]
      %v4639 = vld [vmem:[#allocation4 + $0x238] sm:$0xff]
      %v4640 = vld [vmem:[#allocation4 + $0x240] sm:$0xff]
      %v4641 = vld [vmem:[#allocation4 + $0x248] sm:$0xff]
      %v4642 = vld [vmem:[#allocation4 + $0x250] sm:$0xff]
      %v4643 = vld [vmem:[#allocation4 + $0x258] sm:$0xff]
      %v4644 = vld [vmem:[#allocation4 + $0x260] sm:$0xff]
      %v4645 = vld [vmem:[#allocation4 + $0x268] sm:$0xff]
      %v4646 = vld [vmem:[#allocation4 + $0x270] sm:$0xff]
      %v4647 = vld [vmem:[#allocation4 + $0x278] sm:$0xff]
      %v4648 = vld [vmem:[#allocation4 + $0x280] sm:$0xff]
      %v4649 = vld [vmem:[#allocation4 + $0x288] sm:$0xff]
      %v4650 = vld [vmem:[#allocation4 + $0x290] sm:$0xff]
      %v4651 = vld [vmem:[#allocation4 + $0x298] sm:$0xff]
      %v4652 = vld [vmem:[#allocation4 + $0x2a0] sm:$0xff]
      %v4653 = vld [vmem:[#allocation4 + $0x2a8] sm:$0xff]
      %v4654 = vld [vmem:[#allocation4 + $0x2b0] sm:$0xff]
      %v4655 = vld [vmem:[#allocation4 + $0x2b8] sm:$0xff]
      %v4656 = vld [vmem:[#allocation4 + $0x2c0] sm:$0xff]
      %v4657 = vld [vmem:[#allocation4 + $0x2c8] sm:$0xff]
      %v4659 = vsel %vm2196, %v4565, 0
      %v4662 = vsel %vm2196, %v4567, 0
      %4664 = vmatprep.subr.mxu0 %v4644
      %4665 = vmatpush1.msra.mxu0 %v4643
      %4666 = vmatprep.subr.mxu0 %v4639
      %4667 = vmatpush1.msra.mxu0 %v4638
      %4668 = vmatprep.subr.mxu0 %v4634
      %4669 = vmatpush1.msra.mxu0 %v4633
      %4670 = vmatprep.subr.mxu0 %v4629
      %4671 = vmatpush1.msra.mxu0 %v4628
      %4672 = vmatprep.subr.mxu0 %v4624
      %4673 = vmatpush1.msra.mxu0 %v4623
      %4674 = vmatprep.subr.mxu0 %v4619
      %4675 = vmatpush1.msra.mxu0 %v4618
      %4676 = vmatprep.subr.mxu0 %v4614
      %4677 = vmatpush1.msra.mxu0 %v4613
      %4678 = vmatprep.subr.mxu0 %v4609
      %4679 = vmatpush1.msra.mxu0 %v4608
      %4680 = vmatprep.subr.mxu0 %v4604
      %4681 = vmatpush1.msra.mxu0 %v4603
      %4682 = vmatprep.subr.mxu0 %v4599
      %4683 = vmatpush1.msra.mxu0 %v4598
      %4684 = vmatprep.subr.mxu0 %v4594
      %4685 = vmatpush1.msra.mxu0 %v4593
      %4686 = vmatprep.subr.mxu0 %v4589
      %4687 = vmatpush1.msra.mxu0 %v4588
      %4688 = vmatprep.subr.mxu0 %v4584
      %4689 = vmatpush1.msra.mxu0 %v4583
      %4690 = vmatprep.subr.mxu0 %v4579
      %4691 = vmatpush1.msra.mxu0 %v4578
      %4692 = vmatprep.subr.mxu0 %v4574
      %4693 = vmatpush1.msra.mxu0 %v4573
      %4694 = vmatprep.subr.mxu0 %v4569
      %4695 = vmatpush1.msra.mxu0 %v4568
      %4696 = vmatprep.subr.mxu0 0.0
      %4697 = vmatpush2.msra.mxu0 0.0
      %4698 = vmatprep.subr.mxu0 0.0
      %4699 = vmatpush2.msra.mxu0 0.0
      %4700 = vmatprep.subr.mxu0 0.0
      %4701 = vmatpush2.msra.mxu0 0.0
      %4702 = vmatprep.subr.mxu0 0.0
      %4703 = vmatpush2.msra.mxu0 0.0
      %4704 = vmatprep.subr.mxu0 0.0
      %4705 = vmatpush2.msra.mxu0 0.0
      %4706 = vmatprep.subr.mxu0 0.0
      %4707 = vmatpush2.msra.mxu0 0.0
      %4708 = vmatprep.subr.mxu0 0.0
      %4709 = vmatpush2.msra.mxu0 0.0
      %4710 = vmatprep.subr.mxu0 0.0
      %4711 = vmatpush2.msra.mxu0 0.0
      %4712 = vmatprep.subr.mxu0 0.0
      %4713 = vmatpush2.msra.mxu0 0.0
      %4714 = vmatprep.subr.mxu0 0.0
      %4715 = vmatpush2.msra.mxu0 0.0
      %4716 = vmatprep.subr.mxu0 0.0
      %4717 = vmatpush2.msra.mxu0 0.0
      %4718 = vmatprep.subr.mxu0 0.0
      %4719 = vmatpush2.msra.mxu0 0.0
      %4720 = vmatprep.subr.mxu0 0.0
      %4721 = vmatpush2.msra.mxu0 0.0
      %4722 = vmatprep.subr.mxu0 0.0
      %4723 = vmatpush2.msra.mxu0 0.0
      %4724 = vmatprep.subr.mxu0 %v4654
      %4725 = vmatpush2.msra.mxu0 %v4653
      %4726 = vmatprep.subr.mxu0 %v4649
      %4727 = vmatpush2.msra.mxu0 %v4648
      %4728 = vmatprep.mubr.f32.mxu0 %v4659
      %4729 = vmatmul.mubr.f32.gmra.mxu0 %v4564
      %v4730 = vpop.f32.mrf.mxu0
      %v4731 = vadd.f32 0.0, %v4730
      %v4732 = vpop.f32.mrf.mxu0
      %v4733 = vadd.f32 0.0, %v4732
      %4734 = vmatprep.mubr.f32.mxu0 %v4662
      %4735 = vmatmul.mubr.f32.gmra.mxu0 %v4566
      %v4736 = vpop.f32.mrf.mxu0
      %v4737 = vadd.f32 0.0, %v4736
      %v4738 = vpop.f32.mrf.mxu0
      %v4739 = vadd.f32 0.0, %v4738
      %4740 = vdwg.mxu0
      %4741 = vmatprep.subr.mxu0 %v4646
      %4742 = vmatpush1.msra.mxu0 %v4645
      %4743 = vmatprep.subr.mxu0 %v4641
      %4744 = vmatpush1.msra.mxu0 %v4640
      %4745 = vmatprep.subr.mxu0 %v4636
      %4746 = vmatpush1.msra.mxu0 %v4635
      %4747 = vmatprep.subr.mxu0 %v4631
      %4748 = vmatpush1.msra.mxu0 %v4630
      %4749 = vmatprep.subr.mxu0 %v4626
      %4750 = vmatpush1.msra.mxu0 %v4625
      %4751 = vmatprep.subr.mxu0 %v4621
      %4752 = vmatpush1.msra.mxu0 %v4620
      %4753 = vmatprep.subr.mxu0 %v4616
      %4754 = vmatpush1.msra.mxu0 %v4615
      %4755 = vmatprep.subr.mxu0 %v4611
      %4756 = vmatpush1.msra.mxu0 %v4610
      %4757 = vmatprep.subr.mxu0 %v4606
      %4758 = vmatpush1.msra.mxu0 %v4605
      %4759 = vmatprep.subr.mxu0 %v4601
      %4760 = vmatpush1.msra.mxu0 %v4600
      %4761 = vmatprep.subr.mxu0 %v4596
      %4762 = vmatpush1.msra.mxu0 %v4595
      %4763 = vmatprep.subr.mxu0 %v4591
      %4764 = vmatpush1.msra.mxu0 %v4590
      %4765 = vmatprep.subr.mxu0 %v4586
      %4766 = vmatpush1.msra.mxu0 %v4585
      %4767 = vmatprep.subr.mxu0 %v4581
      %4768 = vmatpush1.msra.mxu0 %v4580
      %4769 = vmatprep.subr.mxu0 %v4576
      %4770 = vmatpush1.msra.mxu0 %v4575
      %4771 = vmatprep.subr.mxu0 %v4571
      %4772 = vmatpush1.msra.mxu0 %v4570
      %4773 = vmatprep.subr.mxu0 0.0
      %4774 = vmatpush2.msra.mxu0 0.0
      %4775 = vmatprep.subr.mxu0 0.0
      %4776 = vmatpush2.msra.mxu0 0.0
      %4777 = vmatprep.subr.mxu0 0.0
      %4778 = vmatpush2.msra.mxu0 0.0
      %4779 = vmatprep.subr.mxu0 0.0
      %4780 = vmatpush2.msra.mxu0 0.0
      %4781 = vmatprep.subr.mxu0 0.0
      %4782 = vmatpush2.msra.mxu0 0.0
      %4783 = vmatprep.subr.mxu0 0.0
      %4784 = vmatpush2.msra.mxu0 0.0
      %4785 = vmatprep.subr.mxu0 0.0
      %4786 = vmatpush2.msra.mxu0 0.0
      %4787 = vmatprep.subr.mxu0 0.0
      %4788 = vmatpush2.msra.mxu0 0.0
      %4789 = vmatprep.subr.mxu0 0.0
      %4790 = vmatpush2.msra.mxu0 0.0
      %4791 = vmatprep.subr.mxu0 0.0
      %4792 = vmatpush2.msra.mxu0 0.0
      %4793 = vmatprep.subr.mxu0 0.0
      %4794 = vmatpush2.msra.mxu0 0.0
      %4795 = vmatprep.subr.mxu0 0.0
      %4796 = vmatpush2.msra.mxu0 0.0
      %4797 = vmatprep.subr.mxu0 0.0
      %4798 = vmatpush2.msra.mxu0 0.0
      %4799 = vmatprep.subr.mxu0 0.0
      %4800 = vmatpush2.msra.mxu0 0.0
      %4801 = vmatprep.subr.mxu0 %v4656
      %4802 = vmatpush2.msra.mxu0 %v4655
      %4803 = vmatprep.subr.mxu0 %v4651
      %4804 = vmatpush2.msra.mxu0 %v4650
      %4805 = vmatprep.mubr.f32.mxu0 %v4659
      %4806 = vmatmul.mubr.f32.gmra.mxu0 %v4564
      %v4807 = vpop.f32.mrf.mxu0
      %v4808 = vadd.f32 0.0, %v4807
      %v4809 = vpop.f32.mrf.mxu0
      %v4810 = vadd.f32 0.0, %v4809
      %4811 = vmatprep.mubr.f32.mxu0 %v4662
      %4812 = vmatmul.mubr.f32.gmra.mxu0 %v4566
      %v4813 = vpop.f32.mrf.mxu0
      %v4814 = vadd.f32 0.0, %v4813
      %v4815 = vpop.f32.mrf.mxu0
      %v4816 = vadd.f32 0.0, %v4815
      %4817 = vdwg.mxu0
      %4818 = vmatprep.subr.mxu0 0.0
      %4819 = vmatpush1.msra.mxu0 %v4647
      %4820 = vmatprep.subr.mxu0 0.0
      %4821 = vmatpush1.msra.mxu0 %v4642
      %4822 = vmatprep.subr.mxu0 0.0
      %4823 = vmatpush1.msra.mxu0 %v4637
      %4824 = vmatprep.subr.mxu0 0.0
      %4825 = vmatpush1.msra.mxu0 %v4632
      %4826 = vmatprep.subr.mxu0 0.0
      %4827 = vmatpush1.msra.mxu0 %v4627
      %4828 = vmatprep.subr.mxu0 0.0
      %4829 = vmatpush1.msra.mxu0 %v4622
      %4830 = vmatprep.subr.mxu0 0.0
      %4831 = vmatpush1.msra.mxu0 %v4617
      %4832 = vmatprep.subr.mxu0 0.0
      %4833 = vmatpush1.msra.mxu0 %v4612
      %4834 = vmatprep.subr.mxu0 0.0
      %4835 = vmatpush1.msra.mxu0 %v4607
      %4836 = vmatprep.subr.mxu0 0.0
      %4837 = vmatpush1.msra.mxu0 %v4602
      %4838 = vmatprep.subr.mxu0 0.0
      %4839 = vmatpush1.msra.mxu0 %v4597
      %4840 = vmatprep.subr.mxu0 0.0
      %4841 = vmatpush1.msra.mxu0 %v4592
      %4842 = vmatprep.subr.mxu0 0.0
      %4843 = vmatpush1.msra.mxu0 %v4587
      %4844 = vmatprep.subr.mxu0 0.0
      %4845 = vmatpush1.msra.mxu0 %v4582
      %4846 = vmatprep.subr.mxu0 0.0
      %4847 = vmatpush1.msra.mxu0 %v4577
      %4848 = vmatprep.subr.mxu0 0.0
      %4849 = vmatpush1.msra.mxu0 %v4572
      %4850 = vmatprep.subr.mxu0 0.0
      %4851 = vmatpush2.msra.mxu0 0.0
      %4852 = vmatprep.subr.mxu0 0.0
      %4853 = vmatpush2.msra.mxu0 0.0
      %4854 = vmatprep.subr.mxu0 0.0
      %4855 = vmatpush2.msra.mxu0 0.0
      %4856 = vmatprep.subr.mxu0 0.0
      %4857 = vmatpush2.msra.mxu0 0.0
      %4858 = vmatprep.subr.mxu0 0.0
      %4859 = vmatpush2.msra.mxu0 0.0
      %4860 = vmatprep.subr.mxu0 0.0
      %4861 = vmatpush2.msra.mxu0 0.0
      %4862 = vmatprep.subr.mxu0 0.0
      %4863 = vmatpush2.msra.mxu0 0.0
      %4864 = vmatprep.subr.mxu0 0.0
      %4865 = vmatpush2.msra.mxu0 0.0
      %4866 = vmatprep.subr.mxu0 0.0
      %4867 = vmatpush2.msra.mxu0 0.0
      %4868 = vmatprep.subr.mxu0 0.0
      %4869 = vmatpush2.msra.mxu0 0.0
      %4870 = vmatprep.subr.mxu0 0.0
      %4871 = vmatpush2.msra.mxu0 0.0
      %4872 = vmatprep.subr.mxu0 0.0
      %4873 = vmatpush2.msra.mxu0 0.0
      %4874 = vmatprep.subr.mxu0 0.0
      %4875 = vmatpush2.msra.mxu0 0.0
      %4876 = vmatprep.subr.mxu0 0.0
      %4877 = vmatpush2.msra.mxu0 0.0
      %4878 = vmatprep.subr.mxu0 0.0
      %4879 = vmatpush2.msra.mxu0 %v4657
      %4880 = vmatprep.subr.mxu0 0.0
      %4881 = vmatpush2.msra.mxu0 %v4652
      %4882 = vmatprep.mubr.f32.mxu0 %v4659
      %4883 = vmatmul.mubr.f32.gmra.mxu0 %v4564
      %v4884 = vpop.f32.mrf.mxu0
      %v4885 = vadd.f32 0.0, %v4884
      %v4886 = vpop.f32.mrf.mxu0
      %4887 = vmatprep.mubr.f32.mxu0 %v4662
      %4888 = vmatmul.mubr.f32.gmra.mxu0 %v4566
      %v4889 = vpop.f32.mrf.mxu0
      %v4890 = vadd.f32 0.0, %v4889
      %v4891 = vpop.f32.mrf.mxu0
      %4892 = vdwg.mxu0
      %vm4893 = vcmp.ge.f32.partialorder %v4731, 0.0
      %vm4894 = vcmp.ge.f32.partialorder %v4733, 0.0
      %vm4895 = vcmp.ge.f32.partialorder %v4808, 0.0
      %vm4896 = vcmp.ge.f32.partialorder %v4810, 0.0
      %vm4897 = vcmp.ge.f32.partialorder %v4885, 0.0
      %vm4898 = vcmp.ge.f32.partialorder %v4737, 0.0
      %vm4899 = vcmp.ge.f32.partialorder %v4739, 0.0
      %vm4900 = vcmp.ge.f32.partialorder %v4814, 0.0
      %vm4901 = vcmp.ge.f32.partialorder %v4816, 0.0
      %vm4902 = vcmp.ge.f32.partialorder %v4890, 0.0
      %v4903 = vmul.f32 %v4731, 0.01
      %v4904 = vmul.f32 %v4733, 0.01
      %v4905 = vmul.f32 %v4808, 0.01
      %v4906 = vmul.f32 %v4810, 0.01
      %v4907 = vmul.f32 %v4885, 0.01
      %v4908 = vmul.f32 %v4737, 0.01
      %v4909 = vmul.f32 %v4739, 0.01
      %v4910 = vmul.f32 %v4814, 0.01
      %v4911 = vmul.f32 %v4816, 0.01
      %v4912 = vmul.f32 %v4890, 0.01
      %v4913 = vsel %vm4893, %v4731, %v4903
      %v4914 = vsel %vm4894, %v4733, %v4904
      %v4915 = vsel %vm4895, %v4808, %v4905
      %v4916 = vsel %vm4896, %v4810, %v4906
      %v4917 = vsel %vm4897, %v4885, %v4907
      %v4918 = vsel %vm4898, %v4737, %v4908
      %v4919 = vsel %vm4899, %v4739, %v4909
      %v4920 = vsel %vm4900, %v4814, %v4910
      %v4921 = vsel %vm4901, %v4816, %v4911
      %v4922 = vsel %vm4902, %v4890, %v4912
      %v4923 = vsel %vm989, %v4913, 0.0
      %v4924 = vsel %vm990, %v4914, 0.0
      %v4925 = vsel %vm991, %v4915, 0.0
      %v4926 = vsel %vm992, %v4916, 0.0
      %v4927 = vsel %vm993, %v4917, 0.0
      %v4928 = vsel %vm989, %v4918, 0.0
      %v4929 = vsel %vm990, %v4919, 0.0
      %v4930 = vsel %vm991, %v4920, 0.0
      %v4931 = vsel %vm992, %v4921, 0.0
      %v4932 = vsel %vm993, %v4922, 0.0
      %s4933 = scalar_lea.vmem %s5, 48
      %v4934 = vld [vmem:[%s4933] sm:$0xff]
      %v4935 = vld [vmem:[%s4933 + $0x8] sm:$0xff]
      %s4936 = scalar_lea.vmem %s6, 48
      %v4937 = vld [vmem:[%s4936] sm:$0xff]
      %v4938 = vld [vmem:[%s4936 + $0x8] sm:$0xff]
      %v4939 = vadd.f32 %v4923, %v4924
      %v4940 = vadd.f32 %v4939, %v4925
      %v4941 = vadd.f32 %v4940, %v4926
      %v4942 = vadd.f32 %v4941, %v4927
      %4943 = vadd.xlane.f32.xlu0 %v4942
      %v4944 = vpop.xlane.xlu0 %4943
      %v4945 = vadd.f32 %v4928, %v4929
      %v4946 = vadd.f32 %v4945, %v4930
      %v4947 = vadd.f32 %v4946, %v4931
      %v4948 = vadd.f32 %v4947, %v4932
      %4949 = vadd.xlane.f32.xlu0 %v4948
      %v4950 = vpop.xlane.xlu0 %4949
      %v4951 = vsel %vm1024, %v4944, 0.0
      %v4952 = vsel %vm1025, %v4950, 0.0
      %v4953 = vsel %vm469, %v4951, 0.0
      %v4954 = vsel %vm469, %v4952, 0.0
      %v4955 = vadd.f32 %v4953, %v4954
      %4956 = vadd.xlane.f32.xlu0 %v4955
      %v4957 = vpop.xlane.xlu0 %4956
      %v4958 = vrot.slane %v4957, 4
      %v4959 = vadd.f32 %v4957, %v4958
      %v4960 = vrot.slane %v4959, 2
      %v4961 = vadd.f32 %v4959, %v4960
      %v4962 = vrot.slane %v4961, 1
      %v4963 = vadd.f32 %v4961, %v4962
      %s4964 = vtos %v4963
      %v4965 = vstv %s4964
      %v4966 = vsel %vm1024, %v4965, 0.0
      %v4967 = vsel %vm1025, %v4965, 0.0
      %v4968 = vsel %vm1047, %v4944, 0.0
      %v4969 = vsel %vm1048, %v4950, 0.0
      %v4970 = vsel %vm469, %v4968, 0.0
      %v4971 = vsel %vm469, %v4969, 0.0
      %v4972 = vadd.f32 %v4970, %v4971
      %4973 = vadd.xlane.f32.xlu0 %v4972
      %v4974 = vpop.xlane.xlu0 %4973
      %v4975 = vrot.slane %v4974, 4
      %v4976 = vadd.f32 %v4974, %v4975
      %v4977 = vrot.slane %v4976, 2
      %v4978 = vadd.f32 %v4976, %v4977
      %v4979 = vrot.slane %v4978, 1
      %v4980 = vadd.f32 %v4978, %v4979
      %s4981 = vtos %v4980
      %v4982 = vstv %s4981
      %v4983 = vsel %vm1047, %v4982, %v4966
      %v4984 = vsel %vm1048, %v4982, %v4967
      %v4985 = vsel %vm1070, %v4944, 0.0
      %v4986 = vsel %vm1071, %v4950, 0.0
      %v4987 = vsel %vm469, %v4985, 0.0
      %v4988 = vsel %vm469, %v4986, 0.0
      %v4989 = vadd.f32 %v4987, %v4988
      %4990 = vadd.xlane.f32.xlu0 %v4989
      %v4991 = vpop.xlane.xlu0 %4990
      %v4992 = vrot.slane %v4991, 4
      %v4993 = vadd.f32 %v4991, %v4992
      %v4994 = vrot.slane %v4993, 2
      %v4995 = vadd.f32 %v4993, %v4994
      %v4996 = vrot.slane %v4995, 1
      %v4997 = vadd.f32 %v4995, %v4996
      %s4998 = vtos %v4997
      %v4999 = vstv %s4998
      %v5000 = vsel %vm1070, %v4999, %v4983
      %v5001 = vsel %vm1071, %v4999, %v4984
      %v5002 = vsel %vm1093, %v4944, 0.0
      %v5003 = vsel %vm1094, %v4950, 0.0
      %v5004 = vsel %vm469, %v5002, 0.0
      %v5005 = vsel %vm469, %v5003, 0.0
      %v5006 = vadd.f32 %v5004, %v5005
      %5007 = vadd.xlane.f32.xlu0 %v5006
      %v5008 = vpop.xlane.xlu0 %5007
      %v5009 = vrot.slane %v5008, 4
      %v5010 = vadd.f32 %v5008, %v5009
      %v5011 = vrot.slane %v5010, 2
      %v5012 = vadd.f32 %v5010, %v5011
      %v5013 = vrot.slane %v5012, 1
      %v5014 = vadd.f32 %v5012, %v5013
      %s5015 = vtos %v5014
      %v5016 = vstv %s5015
      %v5017 = vsel %vm1093, %v5016, %v5000
      %v5018 = vsel %vm1094, %v5016, %v5001
      %v5019 = vsel %vm1116, %v4944, 0.0
      %v5020 = vsel %vm1117, %v4950, 0.0
      %v5021 = vsel %vm469, %v5019, 0.0
      %v5022 = vsel %vm469, %v5020, 0.0
      %v5023 = vadd.f32 %v5021, %v5022
      %5024 = vadd.xlane.f32.xlu0 %v5023
      %v5025 = vpop.xlane.xlu0 %5024
      %v5026 = vrot.slane %v5025, 4
      %v5027 = vadd.f32 %v5025, %v5026
      %v5028 = vrot.slane %v5027, 2
      %v5029 = vadd.f32 %v5027, %v5028
      %v5030 = vrot.slane %v5029, 1
      %v5031 = vadd.f32 %v5029, %v5030
      %s5032 = vtos %v5031
      %v5033 = vstv %s5032
      %v5034 = vsel %vm1116, %v5033, %v5017
      %v5035 = vsel %vm1117, %v5033, %v5018
      %v5036 = vsel %vm1139, %v4944, 0.0
      %v5037 = vsel %vm1140, %v4950, 0.0
      %v5038 = vsel %vm469, %v5036, 0.0
      %v5039 = vsel %vm469, %v5037, 0.0
      %v5040 = vadd.f32 %v5038, %v5039
      %5041 = vadd.xlane.f32.xlu0 %v5040
      %v5042 = vpop.xlane.xlu0 %5041
      %v5043 = vrot.slane %v5042, 4
      %v5044 = vadd.f32 %v5042, %v5043
      %v5045 = vrot.slane %v5044, 2
      %v5046 = vadd.f32 %v5044, %v5045
      %v5047 = vrot.slane %v5046, 1
      %v5048 = vadd.f32 %v5046, %v5047
      %s5049 = vtos %v5048
      %v5050 = vstv %s5049
      %v5051 = vsel %vm1139, %v5050, %v5034
      %v5052 = vsel %vm1140, %v5050, %v5035
      %v5053 = vsel %vm1162, %v4944, 0.0
      %v5054 = vsel %vm1163, %v4950, 0.0
      %v5055 = vsel %vm469, %v5053, 0.0
      %v5056 = vsel %vm469, %v5054, 0.0
      %v5057 = vadd.f32 %v5055, %v5056
      %5058 = vadd.xlane.f32.xlu0 %v5057
      %v5059 = vpop.xlane.xlu0 %5058
      %v5060 = vrot.slane %v5059, 4
      %v5061 = vadd.f32 %v5059, %v5060
      %v5062 = vrot.slane %v5061, 2
      %v5063 = vadd.f32 %v5061, %v5062
      %v5064 = vrot.slane %v5063, 1
      %v5065 = vadd.f32 %v5063, %v5064
      %s5066 = vtos %v5065
      %v5067 = vstv %s5066
      %v5068 = vsel %vm1162, %v5067, %v5051
      %v5069 = vsel %vm1163, %v5067, %v5052
      %v5070 = vsel %vm1185, %v4944, 0.0
      %v5071 = vsel %vm1186, %v4950, 0.0
      %v5072 = vsel %vm469, %v5070, 0.0
      %v5073 = vsel %vm469, %v5071, 0.0
      %v5074 = vadd.f32 %v5072, %v5073
      %5075 = vadd.xlane.f32.xlu0 %v5074
      %v5076 = vpop.xlane.xlu0 %5075
      %v5077 = vrot.slane %v5076, 4
      %v5078 = vadd.f32 %v5076, %v5077
      %v5079 = vrot.slane %v5078, 2
      %v5080 = vadd.f32 %v5078, %v5079
      %v5081 = vrot.slane %v5080, 1
      %v5082 = vadd.f32 %v5080, %v5081
      %s5083 = vtos %v5082
      %v5084 = vstv %s5083
      %v5085 = vsel %vm1185, %v5084, %v5068
      %v5086 = vsel %vm1186, %v5084, %v5069
      %v5087 = vmul.f32 %v5085, 0.001953125
      %v5088 = vmul.f32 %v5086, 0.001953125
      %v5089 = vsub.f32 %v4923, %v5087
      %v5090 = vsub.f32 %v4924, %v5087
      %v5091 = vsub.f32 %v4925, %v5087
      %v5092 = vsub.f32 %v4926, %v5087
      %v5093 = vsub.f32 %v4927, %v5087
      %v5094 = vsub.f32 %v4928, %v5088
      %v5095 = vsub.f32 %v4929, %v5088
      %v5096 = vsub.f32 %v4930, %v5088
      %v5097 = vsub.f32 %v4931, %v5088
      %v5098 = vsub.f32 %v4932, %v5088
      %v5099 = vsel %vm989, %v5089, 0.0
      %v5100 = vsel %vm990, %v5090, 0.0
      %v5101 = vsel %vm991, %v5091, 0.0
      %v5102 = vsel %vm992, %v5092, 0.0
      %v5103 = vsel %vm993, %v5093, 0.0
      %v5104 = vsel %vm989, %v5094, 0.0
      %v5105 = vsel %vm990, %v5095, 0.0
      %v5106 = vsel %vm991, %v5096, 0.0
      %v5107 = vsel %vm992, %v5097, 0.0
      %v5108 = vsel %vm993, %v5098, 0.0
      %v5109 = vmul.f32 %v5099, %v5099
      %v5110 = vmul.f32 %v5100, %v5100
      %v5111 = vmul.f32 %v5101, %v5101
      %v5112 = vmul.f32 %v5102, %v5102
      %v5113 = vmul.f32 %v5103, %v5103
      %v5114 = vmul.f32 %v5104, %v5104
      %v5115 = vmul.f32 %v5105, %v5105
      %v5116 = vmul.f32 %v5106, %v5106
      %v5117 = vmul.f32 %v5107, %v5107
      %v5118 = vmul.f32 %v5108, %v5108
      %v5119 = vadd.f32 %v5109, %v5110
      %v5120 = vadd.f32 %v5119, %v5111
      %v5121 = vadd.f32 %v5120, %v5112
      %v5122 = vadd.f32 %v5121, %v5113
      %5123 = vadd.xlane.f32.xlu0 %v5122
      %v5124 = vpop.xlane.xlu0 %5123
      %v5125 = vadd.f32 %v5114, %v5115
      %v5126 = vadd.f32 %v5125, %v5116
      %v5127 = vadd.f32 %v5126, %v5117
      %v5128 = vadd.f32 %v5127, %v5118
      %5129 = vadd.xlane.f32.xlu0 %v5128
      %v5130 = vpop.xlane.xlu0 %5129
      %v5131 = vsel %vm1024, %v5124, 0.0
      %v5132 = vsel %vm1025, %v5130, 0.0
      %v5133 = vsel %vm469, %v5131, 0.0
      %v5134 = vsel %vm469, %v5132, 0.0
      %v5135 = vadd.f32 %v5133, %v5134
      %5136 = vadd.xlane.f32.xlu0 %v5135
      %v5137 = vpop.xlane.xlu0 %5136
      %v5138 = vrot.slane %v5137, 4
      %v5139 = vadd.f32 %v5137, %v5138
      %v5140 = vrot.slane %v5139, 2
      %v5141 = vadd.f32 %v5139, %v5140
      %v5142 = vrot.slane %v5141, 1
      %v5143 = vadd.f32 %v5141, %v5142
      %s5144 = vtos %v5143
      %v5145 = vstv %s5144
      %v5146 = vsel %vm1024, %v5145, 0.0
      %v5147 = vsel %vm1025, %v5145, 0.0
      %v5148 = vsel %vm1047, %v5124, 0.0
      %v5149 = vsel %vm1048, %v5130, 0.0
      %v5150 = vsel %vm469, %v5148, 0.0
      %v5151 = vsel %vm469, %v5149, 0.0
      %v5152 = vadd.f32 %v5150, %v5151
      %5153 = vadd.xlane.f32.xlu0 %v5152
      %v5154 = vpop.xlane.xlu0 %5153
      %v5155 = vrot.slane %v5154, 4
      %v5156 = vadd.f32 %v5154, %v5155
      %v5157 = vrot.slane %v5156, 2
      %v5158 = vadd.f32 %v5156, %v5157
      %v5159 = vrot.slane %v5158, 1
      %v5160 = vadd.f32 %v5158, %v5159
      %s5161 = vtos %v5160
      %v5162 = vstv %s5161
      %v5163 = vsel %vm1047, %v5162, %v5146
      %v5164 = vsel %vm1048, %v5162, %v5147
      %v5165 = vsel %vm1070, %v5124, 0.0
      %v5166 = vsel %vm1071, %v5130, 0.0
      %v5167 = vsel %vm469, %v5165, 0.0
      %v5168 = vsel %vm469, %v5166, 0.0
      %v5169 = vadd.f32 %v5167, %v5168
      %5170 = vadd.xlane.f32.xlu0 %v5169
      %v5171 = vpop.xlane.xlu0 %5170
      %v5172 = vrot.slane %v5171, 4
      %v5173 = vadd.f32 %v5171, %v5172
      %v5174 = vrot.slane %v5173, 2
      %v5175 = vadd.f32 %v5173, %v5174
      %v5176 = vrot.slane %v5175, 1
      %v5177 = vadd.f32 %v5175, %v5176
      %s5178 = vtos %v5177
      %v5179 = vstv %s5178
      %v5180 = vsel %vm1070, %v5179, %v5163
      %v5181 = vsel %vm1071, %v5179, %v5164
      %v5182 = vsel %vm1093, %v5124, 0.0
      %v5183 = vsel %vm1094, %v5130, 0.0
      %v5184 = vsel %vm469, %v5182, 0.0
      %v5185 = vsel %vm469, %v5183, 0.0
      %v5186 = vadd.f32 %v5184, %v5185
      %5187 = vadd.xlane.f32.xlu0 %v5186
      %v5188 = vpop.xlane.xlu0 %5187
      %v5189 = vrot.slane %v5188, 4
      %v5190 = vadd.f32 %v5188, %v5189
      %v5191 = vrot.slane %v5190, 2
      %v5192 = vadd.f32 %v5190, %v5191
      %v5193 = vrot.slane %v5192, 1
      %v5194 = vadd.f32 %v5192, %v5193
      %s5195 = vtos %v5194
      %v5196 = vstv %s5195
      %v5197 = vsel %vm1093, %v5196, %v5180
      %v5198 = vsel %vm1094, %v5196, %v5181
      %v5199 = vsel %vm1116, %v5124, 0.0
      %v5200 = vsel %vm1117, %v5130, 0.0
      %v5201 = vsel %vm469, %v5199, 0.0
      %v5202 = vsel %vm469, %v5200, 0.0
      %v5203 = vadd.f32 %v5201, %v5202
      %5204 = vadd.xlane.f32.xlu0 %v5203
      %v5205 = vpop.xlane.xlu0 %5204
      %v5206 = vrot.slane %v5205, 4
      %v5207 = vadd.f32 %v5205, %v5206
      %v5208 = vrot.slane %v5207, 2
      %v5209 = vadd.f32 %v5207, %v5208
      %v5210 = vrot.slane %v5209, 1
      %v5211 = vadd.f32 %v5209, %v5210
      %s5212 = vtos %v5211
      %v5213 = vstv %s5212
      %v5214 = vsel %vm1116, %v5213, %v5197
      %v5215 = vsel %vm1117, %v5213, %v5198
      %v5216 = vsel %vm1139, %v5124, 0.0
      %v5217 = vsel %vm1140, %v5130, 0.0
      %v5218 = vsel %vm469, %v5216, 0.0
      %v5219 = vsel %vm469, %v5217, 0.0
      %v5220 = vadd.f32 %v5218, %v5219
      %5221 = vadd.xlane.f32.xlu0 %v5220
      %v5222 = vpop.xlane.xlu0 %5221
      %v5223 = vrot.slane %v5222, 4
      %v5224 = vadd.f32 %v5222, %v5223
      %v5225 = vrot.slane %v5224, 2
      %v5226 = vadd.f32 %v5224, %v5225
      %v5227 = vrot.slane %v5226, 1
      %v5228 = vadd.f32 %v5226, %v5227
      %s5229 = vtos %v5228
      %v5230 = vstv %s5229
      %v5231 = vsel %vm1139, %v5230, %v5214
      %v5232 = vsel %vm1140, %v5230, %v5215
      %v5233 = vsel %vm1162, %v5124, 0.0
      %v5234 = vsel %vm1163, %v5130, 0.0
      %v5235 = vsel %vm469, %v5233, 0.0
      %v5236 = vsel %vm469, %v5234, 0.0
      %v5237 = vadd.f32 %v5235, %v5236
      %5238 = vadd.xlane.f32.xlu0 %v5237
      %v5239 = vpop.xlane.xlu0 %5238
      %v5240 = vrot.slane %v5239, 4
      %v5241 = vadd.f32 %v5239, %v5240
      %v5242 = vrot.slane %v5241, 2
      %v5243 = vadd.f32 %v5241, %v5242
      %v5244 = vrot.slane %v5243, 1
      %v5245 = vadd.f32 %v5243, %v5244
      %s5246 = vtos %v5245
      %v5247 = vstv %s5246
      %v5248 = vsel %vm1162, %v5247, %v5231
      %v5249 = vsel %vm1163, %v5247, %v5232
      %v5250 = vsel %vm1185, %v5124, 0.0
      %v5251 = vsel %vm1186, %v5130, 0.0
      %v5252 = vsel %vm469, %v5250, 0.0
      %v5253 = vsel %vm469, %v5251, 0.0
      %v5254 = vadd.f32 %v5252, %v5253
      %5255 = vadd.xlane.f32.xlu0 %v5254
      %v5256 = vpop.xlane.xlu0 %5255
      %v5257 = vrot.slane %v5256, 4
      %v5258 = vadd.f32 %v5256, %v5257
      %v5259 = vrot.slane %v5258, 2
      %v5260 = vadd.f32 %v5258, %v5259
      %v5261 = vrot.slane %v5260, 1
      %v5262 = vadd.f32 %v5260, %v5261
      %s5263 = vtos %v5262
      %v5264 = vstv %s5263
      %v5265 = vsel %vm1185, %v5264, %v5248
      %v5266 = vsel %vm1186, %v5264, %v5249
      %v5267 = vmul.f32 %v5265, 0.001953125
      %v5268 = vmul.f32 %v5266, 0.001953125
      %v5269 = vadd.f32 %v5267, 1e-05
      %v5270 = vadd.f32 %v5268, 1e-05
      %v5271 = vrsqrt.pop %v5269
      %v5272 = vrsqrt.pop %v5270
      %v5273 = vmul.f32 %v5271, %v4934
      %v5274 = vmul.f32 %v5272, %v4935
      %5276 = vset.pattern.permute.xlu0 0
      %5277 = vperm.xlu0 %5276, %v5273
      %v5278 = vpop.permute.xlu0 %5277
      %5281 = vset.pattern.permute.xlu0 0
      %5282 = vperm.xlu0 %5281, %v5274
      %v5283 = vpop.permute.xlu0 %5282
      %v5285 = vmul.f32 %v5099, %v5278
      %v5286 = vmul.f32 %v5100, %v5278
      %v5287 = vmul.f32 %v5101, %v5278
      %v5288 = vmul.f32 %v5102, %v5278
      %v5289 = vmul.f32 %v5103, %v5278
      %v5290 = vmul.f32 %v5104, %v5283
      %v5291 = vmul.f32 %v5105, %v5283
      %v5292 = vmul.f32 %v5106, %v5283
      %v5293 = vmul.f32 %v5107, %v5283
      %v5294 = vmul.f32 %v5108, %v5283
      %5296 = vset.pattern.permute.xlu0 0
      %5297 = vperm.xlu0 %5296, %v4937
      %v5298 = vpop.permute.xlu0 %5297
      %5301 = vset.pattern.permute.xlu0 0
      %5302 = vperm.xlu0 %5301, %v4938
      %v5303 = vpop.permute.xlu0 %5302
      %v5305 = vadd.f32 %v5285, %v5298
      %v5306 = vadd.f32 %v5286, %v5298
      %v5307 = vadd.f32 %v5287, %v5298
      %v5308 = vadd.f32 %v5288, %v5298
      %v5309 = vadd.f32 %v5289, %v5298
      %v5310 = vadd.f32 %v5290, %v5303
      %v5311 = vadd.f32 %v5291, %v5303
      %v5312 = vadd.f32 %v5292, %v5303
      %v5313 = vadd.f32 %v5293, %v5303
      %v5314 = vadd.f32 %v5294, %v5303
      %v5315 = vsel %vm989, %v5305, 0.0
      %v5316 = vsel %vm990, %v5306, 0.0
      %v5317 = vsel %vm991, %v5307, 0.0
      %v5318 = vsel %vm992, %v5308, 0.0
      %v5319 = vsel %vm993, %v5309, 0.0
      %v5320 = vsel %vm989, %v5310, 0.0
      %v5321 = vsel %vm990, %v5311, 0.0
      %v5322 = vsel %vm991, %v5312, 0.0
      %v5323 = vsel %vm992, %v5313, 0.0
      %v5324 = vsel %vm993, %v5314, 0.0
      %v5325 = vld [vmem:[#allocation3] sm:$0xff]
      %v5326 = vld [vmem:[#allocation3 + $0x8] sm:$0xff]
      %v5327 = vld [vmem:[#allocation3 + $0x10] sm:$0xff]
      %v5328 = vld [vmem:[#allocation3 + $0x18] sm:$0xff]
      %v5329 = vld [vmem:[#allocation3 + $0x20] sm:$0xff]
      %v5330 = vld [vmem:[#allocation3 + $0x28] sm:$0xff]
      %v5331 = vld [vmem:[#allocation3 + $0x30] sm:$0xff]
      %v5332 = vld [vmem:[#allocation3 + $0x38] sm:$0xff]
      %v5333 = vld [vmem:[#allocation3 + $0x40] sm:$0xff]
      %v5334 = vld [vmem:[#allocation3 + $0x48] sm:$0xff]
      %v5335 = vadd.f32 %v5315, %v5325
      %v5336 = vadd.f32 %v5316, %v5326
      %v5337 = vadd.f32 %v5317, %v5327
      %v5338 = vadd.f32 %v5318, %v5328
      %v5339 = vadd.f32 %v5319, %v5329
      %v5340 = vadd.f32 %v5320, %v5330
      %v5341 = vadd.f32 %v5321, %v5331
      %v5342 = vadd.f32 %v5322, %v5332
      %v5343 = vadd.f32 %v5323, %v5333
      %v5344 = vadd.f32 %v5324, %v5334
      %5345 = vst [vmem:[%s305] sm:$0xff] %v5335
      %5346 = vst [vmem:[%s305 + $0x8] sm:$0xff] %v5336
      %5347 = vst [vmem:[%s305 + $0x10] sm:$0xff] %v5337
      %5348 = vst [vmem:[%s305 + $0x18] sm:$0xff] %v5338
      %5349 = vst [vmem:[%s305 + $0x20] sm:$0xff] %v5339
      %5350 = vst [vmem:[%s305 + $0x28] sm:$0xff] %v5340
      %5351 = vst [vmem:[%s305 + $0x30] sm:$0xff] %v5341
      %5352 = vst [vmem:[%s305 + $0x38] sm:$0xff] %v5342
      %5353 = vst [vmem:[%s305 + $0x40] sm:$0xff] %v5343
      %5354 = vst [vmem:[%s305 + $0x48] sm:$0xff] %v5344
      %p5355 = scmp.lt.s32.totalorder %s19, 1
      %s5356 = scalar_select %p5355, %s19, 1
      %s5357 = smul.addr %s5356, 10
      %s5358 = smul.addr %s5357, 8
      %s5359 = scalar_lea.vmem %s8, %s5358
      // Predicated region
      $region53: #{asym_residual_block_pallas.1} parent=51 // pred_check
        %p5360 = pneg %p210
      $region54: #{asym_residual_block_pallas.1} parent=51 // pred_check_branch
        %5362 = sbr.rel (%p5360) target = $region56
      $region55: #{asym_residual_block_pallas.1} parent=51 // pred_region
        _
      $region56: #{asym_residual_block_pallas.1} parent=51 // pred_fallthru
        _
    $region52: #{asym_residual_block_pallas.1} parent=5 // pred_fallthru
      _
    %p5363 = scmp.le.s32.totalorder 2, %s14
    // Predicated region
    $region57: #{asym_residual_block_pallas.1} parent=5 // pred_check
      %p5364 = pneg %p5363
    $region58: #{asym_residual_block_pallas.1} parent=5 // pred_check_branch
      %5366 = sbr.rel (%p5364) target = $region60
    $region59: #{asym_residual_block_pallas.1} parent=5 // pred_region
      %s5367 = ssub.s32 %s14, 2
      // Predicated region
      $region61: #{asym_residual_block_pallas.1} parent=59 // pred_check
        %p5368 = pneg %p216
      $region62: #{asym_residual_block_pallas.1} parent=59 // pred_check_branch
        %5370 = sbr.rel (%p5368) target = $region64
      $region63: #{asym_residual_block_pallas.1} parent=59 // pred_region
        %p5371 = scmp.lt.s32.totalorder %s20, 1
        %s5372 = scalar_select %p5371, %s20, 1
        %s5373 = smul.addr %s5372, 10
        %s5374 = smul.addr %s5373, 8
        %s5375 = scalar_lea.vmem %s8, %s5374
      $region64: #{asym_residual_block_pallas.1} parent=59 // pred_fallthru
        _
    $region60: #{asym_residual_block_pallas.1} parent=5 // pred_fallthru
      _
  $region6: #{asym_residual_block_pallas.1} parent=0 // loop_footer
    %s18 = sadd.s32 1, %s14
  $region7: #{asym_residual_block_pallas.1} parent=0 // loop_footer_branch
    %13 = sbr.rel target = $region3
  $region8: #{asym_residual_block_pallas.1} parent=0 // loop_exit
    _

</llo_original>
